<compile_context>
chip_gen: v5e
topology: v5e:2x2
jax: 0.10.0
libtpu: 0.0.40
codegen_flags: <defaults>
</compile_context>

<pallas_src>
import functools
import math

import jax
import jax.numpy as jnp
from jax import lax
from jax.experimental import pallas as pl
from jax.experimental.pallas import tpu as pltpu


# ----------------------------------------------------------------------------
# Small helpers
# ----------------------------------------------------------------------------

def _round_up(x, m):
    return ((x + m - 1) // m) * m


def _row_tile(m, max_rows=512):
    """Row tile: multiple of 8, <= max_rows, preferring a grid of >= 2 (v7x dual TC)."""
    if m <= 8:
        return m
    cap = min(max_rows, m)
    best = None
    for t in range(8, cap + 1, 8):
        if m % t == 0 and m // t >= 2:
            best = t
    if best is not None:
        return best
    for t in range(8, cap + 1, 8):
        if m % t == 0:
            best = t
    return best if best is not None else m


def _cparams(*sems):
    # Explicit VMEM budget: safe on v7x (64 MiB physical / 32 MiB scoped default) and
    # raises v5e's 16 MiB scoped default.
    return pltpu.CompilerParams(dimension_semantics=sems,
                                vmem_limit_bytes=32 * 1024 * 1024)


# ----------------------------------------------------------------------------
# Pallas kernels
# ----------------------------------------------------------------------------

def _mlp2_kernel(x_ref, w0_ref, b0_ref, w1_ref, b1_ref, o_ref):
    """Fused Linear -> ReLU -> Linear."""
    h = jnp.dot(x_ref[...], w0_ref[...], preferred_element_type=jnp.float32) + b0_ref[...]
    h = jnp.maximum(h, 0.0)
    o_ref[...] = jnp.dot(h, w1_ref[...], preferred_element_type=jnp.float32) + b1_ref[...]


def pallas_mlp2(x, w0, b0, w1, b1):
    """Row-tiled fused MLP (Linear -> ReLU -> Linear) on [M, cin]."""
    M, cin = x.shape
    h0 = w0.shape[1]
    cout = w1.shape[1]
    Mp = _round_up(M, 8)
    if Mp != M:
        x = jnp.pad(x, ((0, Mp - M), (0, 0)))
    TM = _row_tile(Mp)
    out = pl.pallas_call(
        _mlp2_kernel,
        grid=(Mp // TM,),
        in_specs=[
            pl.BlockSpec((TM, cin), lambda i: (i, 0)),
            pl.BlockSpec((cin, h0), lambda i: (0, 0)),
            pl.BlockSpec((1, h0), lambda i: (0, 0)),
            pl.BlockSpec((h0, cout), lambda i: (0, 0)),
            pl.BlockSpec((1, cout), lambda i: (0, 0)),
        ],
        out_specs=pl.BlockSpec((TM, cout), lambda i: (i, 0)),
        out_shape=jax.ShapeDtypeStruct((Mp, cout), jnp.float32),
        compiler_params=_cparams("parallel"),
    )(x, w0, b0.reshape(1, h0), w1, b1.reshape(1, cout))
    return out[:M]


def _mlp2_pool_kernel(x_ref, w0_ref, b0_ref, w1_ref, b1_ref, o_ref):
    """Fused Linear -> ReLU -> Linear -> max-pool over the node axis (one batch per block)."""
    x = x_ref[0]                                                    # [Np, C]
    h = jnp.maximum(jnp.dot(x, w0_ref[...], preferred_element_type=jnp.float32) + b0_ref[...], 0.0)
    r = jnp.dot(h, w1_ref[...], preferred_element_type=jnp.float32) + b1_ref[...]
    o_ref[...] = jnp.max(r, axis=0, keepdims=True).reshape(1, 1, -1)


def pallas_mlp2_maxpool(points, w0, b0, w1, b1):
    """points: [B, Np, C] -> per-batch max over nodes of MLP(points): [B, cout]."""
    B, Np, C = points.shape
    h0 = w0.shape[1]
    cout = w1.shape[1]
    out = pl.pallas_call(
        _mlp2_pool_kernel,
        grid=(B,),
        in_specs=[
            pl.BlockSpec((1, Np, C), lambda b: (b, 0, 0)),
            pl.BlockSpec((C, h0), lambda b: (0, 0)),
            pl.BlockSpec((1, h0), lambda b: (0, 0)),
            pl.BlockSpec((h0, cout), lambda b: (0, 0)),
            pl.BlockSpec((1, cout), lambda b: (0, 0)),
        ],
        out_specs=pl.BlockSpec((1, 1, cout), lambda b: (b, 0, 0)),
        out_shape=jax.ShapeDtypeStruct((B, 1, cout), jnp.float32),
        compiler_params=_cparams("parallel"),
    )(points, w0, b0.reshape(1, h0), w1, b1.reshape(1, cout))
    return out.reshape(B, cout)


def _fc1_qkv_kernel(x_ref, w_fc1_ref, b_fc1_ref, w_qkv_ref, o_ref):
    """Fused fc1 (Linear+bias) followed by a packed Q|K|V|0 projection (single [dm, 4*dm]
       matmul -> 128-lane, unmasked output stores)."""
    x2 = jnp.dot(x_ref[...], w_fc1_ref[...], preferred_element_type=jnp.float32) + b_fc1_ref[...]
    o_ref[...] = jnp.dot(x2, w_qkv_ref[...], preferred_element_type=jnp.float32)


def fused_fc1_qkv(x, fc1_w, fc1_b, w_pack):
    M, cin = x.shape
    dm = fc1_w.shape[1]
    outw = w_pack.shape[1]                                          # 4*dm, lane-dense
    Mp = _round_up(M, 8)
    if Mp != M:
        x = jnp.pad(x, ((0, Mp - M), (0, 0)))
    TM = _row_tile(Mp)
    out = pl.pallas_call(
        _fc1_qkv_kernel,
        grid=(Mp // TM,),
        in_specs=[
            pl.BlockSpec((TM, cin), lambda i: (i, 0)),
            pl.BlockSpec((cin, dm), lambda i: (0, 0)),
            pl.BlockSpec((1, dm), lambda i: (0, 0)),
            pl.BlockSpec((dm, outw), lambda i: (0, 0)),
        ],
        out_specs=pl.BlockSpec((TM, outw), lambda i: (i, 0)),
        out_shape=jax.ShapeDtypeStruct((Mp, outw), jnp.float32),
        compiler_params=_cparams("parallel"),
    )(x, fc1_w, fc1_b.reshape(1, dm), w_pack)
    return out[:M]


def _point_attn_kernel(q_ref, kg_ref, vg_ref, pe_ref, pre_ref,
                       g1_ref, g1b_ref, g2_ref, g2b_ref,
                       fc2w_ref, fc2b_ref, o_ref, *, k, dm, scale):
    """Fused point-transformer attention on lane-packed [TM, k*dm] neighbor data:
         gamma MLP as two block-diagonal [k*dm, k*dm] matmuls (one MXU push each),
         softmax over the k lane segments (approx reciprocal on the EUP),
         weighted aggregation, fc2 + residual."""
    q = q_ref[...]                                                  # [TM, dm]
    qt = jnp.concatenate([q] * k, axis=1)                           # [TM, k*dm]
    pe = pe_ref[...]                                                # [TM, k*dm]
    gin = qt - kg_ref[...] + pe

    g = jnp.dot(gin, g1_ref[...], preferred_element_type=jnp.float32) + g1b_ref[...]
    g = jnp.maximum(g, 0.0)
    s = (jnp.dot(g, g2_ref[...], preferred_element_type=jnp.float32) + g2b_ref[...]) * scale

    # softmax over the neighbor axis (k lane segments of width dm), per feature channel
    m = s[:, 0:dm]
    for j in range(1, k):
        m = jnp.maximum(m, s[:, j * dm:(j + 1) * dm])
    p = jnp.exp(s - jnp.concatenate([m] * k, axis=1))
    den = p[:, 0:dm]
    for j in range(1, k):
        den = den + p[:, j * dm:(j + 1) * dm]
    inv = pl.reciprocal(den, approx=True)
    w = p * jnp.concatenate([inv] * k, axis=1)

    # weighted aggregation of (v + pos_enc) over neighbors
    wv = w * (vg_ref[...] + pe)
    res = wv[:, 0:dm]
    for j in range(1, k):
        res = res + wv[:, j * dm:(j + 1) * dm]

    out = jnp.dot(res, fc2w_ref[...], preferred_element_type=jnp.float32) + fc2b_ref[...]
    o_ref[...] = out + pre_ref[...]


def fused_point_attention(q, kg, vg, pe, pre, p, k, dm, scale):
    M = q.shape[0]
    d_points = pre.shape[1]
    kd = k * dm
    Mp = _round_up(M, 8)
    pad = Mp - M
    if pad:
        q = jnp.pad(q, ((0, pad), (0, 0)))
        kg = jnp.pad(kg, ((0, pad), (0, 0)))
        vg = jnp.pad(vg, ((0, pad), (0, 0)))
        pe = jnp.pad(pe, ((0, pad), (0, 0)))
        pre = jnp.pad(pre, ((0, pad), (0, 0)))
    TM = _row_tile(Mp)

    # block-diagonal gamma-MLP weights: one [k*dm, k*dm] matmul per layer for all k neighbors
    eye_k = jnp.eye(k, dtype=jnp.float32)
    g1_bd = jnp.kron(eye_k, p["g1_w"])
    g2_bd = jnp.kron(eye_k, p["g2_w"])
    g1b = jnp.tile(p["g1_b"].reshape(1, dm), (1, k))
    g2b = jnp.tile(p["g2_b"].reshape(1, dm), (1, k))

    wmap = lambda i: (0, 0)
    out = pl.pallas_call(
        functools.partial(_point_attn_kernel, k=k, dm=dm, scale=scale),
        grid=(Mp // TM,),
        in_specs=[
            pl.BlockSpec((TM, dm), lambda i: (i, 0)),
            pl.BlockSpec((TM, kd), lambda i: (i, 0)),
            pl.BlockSpec((TM, kd), lambda i: (i, 0)),
            pl.BlockSpec((TM, kd), lambda i: (i, 0)),
            pl.BlockSpec((TM, d_points), lambda i: (i, 0)),
            pl.BlockSpec((kd, kd), wmap),
            pl.BlockSpec((1, kd), wmap),
            pl.BlockSpec((kd, kd), wmap),
            pl.BlockSpec((1, kd), wmap),
            pl.BlockSpec((dm, d_points), wmap),
            pl.BlockSpec((1, d_points), wmap),
        ],
        out_specs=pl.BlockSpec((TM, d_points), lambda i: (i, 0)),
        out_shape=jax.ShapeDtypeStruct((Mp, d_points), jnp.float32),
        compiler_params=_cparams("parallel"),
    )(q, kg, vg, pe, pre, g1_bd, g1b, g2_bd, g2b,
      p["fc2_w"], p["fc2_b"].reshape(1, d_points))
    return out[:M]


# --------------------------- TransitionDown kernels --------------------------

def _td_stage_kernel(x_ref, sc_ref, sh_ref, w_ref, b_ref, y_ref, st_ref, *, pre_bn):
    """Row-tiled Conv1x1 stage: optional (BN-affine + ReLU) on the input, then one wide
       matmul; per-channel sum / sum-of-squares accumulated across the grid for BatchNorm."""
    x = x_ref[...]
    if pre_bn:
        x = jnp.maximum(x * sc_ref[...] + sh_ref[...], 0.0)
    y = jnp.dot(x, w_ref[...], preferred_element_type=jnp.float32) + b_ref[...]
    y_ref[...] = y

    @pl.when(pl.program_id(0) == 0)
    def _():
        st_ref[...] = jnp.zeros_like(st_ref)

    st_ref[...] += jnp.concatenate(
        [jnp.sum(y, axis=0, keepdims=True),
         jnp.sum(y * y, axis=0, keepdims=True)], axis=0)


def pallas_td_stage(x, w, b, scale=None, shift=None):
    Mr, cin = x.shape
    cout = w.shape[1]
    pre_bn = scale is not None
    if scale is None:
        scale = jnp.ones((1, cin), jnp.float32)
        shift = jnp.zeros((1, cin), jnp.float32)
    TR = _row_tile(Mr)
    y, st = pl.pallas_call(
        functools.partial(_td_stage_kernel, pre_bn=pre_bn),
        grid=(Mr // TR,),
        in_specs=[
            pl.BlockSpec((TR, cin), lambda i: (i, 0)),
            pl.BlockSpec((1, cin), lambda i: (0, 0)),
            pl.BlockSpec((1, cin), lambda i: (0, 0)),
            pl.BlockSpec((cin, cout), lambda i: (0, 0)),
            pl.BlockSpec((1, cout), lambda i: (0, 0)),
        ],
        out_specs=(
            pl.BlockSpec((TR, cout), lambda i: (i, 0)),
            pl.BlockSpec((2, cout), lambda i: (0, 0)),      # resident accumulator
        ),
        out_shape=(
            jax.ShapeDtypeStruct((Mr, cout), jnp.float32),
            jax.ShapeDtypeStruct((2, cout), jnp.float32),
        ),
        compiler_params=_cparams("arbitrary"),               # sequential for the accumulator
    )(x, scale, shift, w, b.reshape(1, cout))
    return y, st


def _td_pool_kernel(x_ref, sc_ref, sh_ref, o_ref, *, K):
    """BN-affine + ReLU + max-pool over the K neighbor lane segments of a [TG, K*C] block."""
    C = o_ref.shape[-1]
    x = x_ref[...]
    sc = sc_ref[...]
    sh = sh_ref[...]
    out = None
    for j in range(K):
        hj = jnp.maximum(x[:, j * C:(j + 1) * C] * sc + sh, 0.0)
        out = hj if out is None else jnp.maximum(out, hj)
    o_ref[...] = out


def pallas_td_pool(h, scale, shift, K):
    MK, C = h.shape
    M = MK // K
    xg = h.reshape(M, K * C)                                 # lane-packed neighbors (contiguous)
    TG = _row_tile(M)
    return pl.pallas_call(
        functools.partial(_td_pool_kernel, K=K),
        grid=(M // TG,),
        in_specs=[
            pl.BlockSpec((TG, K * C), lambda i: (i, 0)),
            pl.BlockSpec((1, C), lambda i: (0, 0)),
            pl.BlockSpec((1, C), lambda i: (0, 0)),
        ],
        out_specs=pl.BlockSpec((TG, C), lambda i: (i, 0)),
        out_shape=jax.ShapeDtypeStruct((M, C), jnp.float32),
        compiler_params=_cparams("parallel"),
    )(xg, scale, shift)


def _bn_affine(stats, cnt, gamma, beta, eps=1e-5):
    """Fold train-mode BatchNorm (biased batch variance, like the torch reference in train())
       into a per-channel affine y = x*scale + shift from (sum, sumsq) stats."""
    mean = stats[0:1, :] / cnt
    var = jnp.maximum(stats[1:2, :] / cnt - mean * mean, 0.0)
    scale = gamma.reshape(1, -1) * lax.rsqrt(var + eps)
    shift = beta.reshape(1, -1) - mean * scale
    return scale, shift


# ----------------------------------------------------------------------------
# Plain-JAX glue (gather / top-k kNN / FPS — data-dependent indexing)
# ----------------------------------------------------------------------------

def index_points(points, idx):
    """points:[B,N,C], idx:[B,...] -> [B, ..., C]."""
    B = points.shape[0]
    C = points.shape[-1]
    raw = idx.shape
    flat = idx.reshape(B, -1)
    gather_idx = jnp.broadcast_to(flat[..., None], flat.shape + (C,))
    out = jnp.take_along_axis(points, gather_idx, axis=1)
    return out.reshape(raw + (C,))


def square_distance(src, dst):
    return jnp.sum((src[:, :, None, :] - dst[:, None, :, :]) ** 2, axis=-1)


def knn_indices(dists, k):
    """k smallest-distance indices along the last axis (avoids a full argsort)."""
    # TODO(synk): at realistic N, replace the dense [B,N,N] distance + top_k with a tiled
    #             Pallas running-top-k kernel to keep HBM traffic proportional to N*k.
    _, idx = lax.top_k(-dists, k)
    return idx


def farthest_point_sample(xyz, npoint):
    # TODO(synk): torch.randint starting index replaced by deterministic index 0.
    B, N, _ = xyz.shape
    centroids = jnp.zeros((B, npoint), dtype=jnp.int32)
    distance = jnp.full((B, N), 1e10, dtype=jnp.float32)
    farthest = jnp.zeros((B,), dtype=jnp.int32)

    def body(i, carry):
        centroids, distance, farthest = carry
        centroids = centroids.at[:, i].set(farthest)
        centroid = index_points(xyz, farthest[:, None])          # [B,1,3]
        dist = jnp.sum((xyz - centroid) ** 2, axis=-1)
        distance = jnp.minimum(distance, dist)
        farthest = jnp.argmax(distance, axis=-1).astype(jnp.int32)
        return centroids, distance, farthest

    centroids, _, _ = lax.fori_loop(0, npoint, body, (centroids, distance, farthest))
    return centroids


# ----------------------------------------------------------------------------
# Modules
# ----------------------------------------------------------------------------

def transformer_block(p, xyz, features, k):
    B, N, _ = xyz.shape
    d_points = features.shape[-1]
    dm = p["fc1_w"].shape[1]

    dists = square_distance(xyz, xyz)                                # [B,N,N]
    knn_idx = knn_indices(dists, k)                                  # [B,N,k]
    knn_xyz = index_points(xyz, knn_idx)                             # [B,N,k,3]

    feats2d = features.reshape(B * N, d_points)

    # kernel A: fc1 + packed Q|K|V|0 projection -> lane-dense [B*N, 4*dm] output
    w_pack = jnp.concatenate(
        [p["wq_w"], p["wk_w"], p["wv_w"], jnp.zeros_like(p["wq_w"])], axis=1)
    qkv = fused_fc1_qkv(feats2d, p["fc1_w"], p["fc1_b"], w_pack)     # [B*N, 4*dm]
    q = qkv[:, :dm]
    kf = qkv[:, dm:2 * dm].reshape(B, N, dm)
    vf = qkv[:, 2 * dm:3 * dm].reshape(B, N, dm)

    # TODO(synk): fold this HBM neighbor gather into the attention kernel (scalar-prefetch
    #             knn_idx + per-neighborhood make_async_copy) — dominant cost on v5e at large N.
    k_g = index_points(kf, knn_idx).reshape(B * N, k * dm)           # lane-packed [M, k*dm]
    v_g = index_points(vf, knn_idx).reshape(B * N, k * dm)

    # positional-encoding MLP (3 -> dm -> dm) as lane-dense row matmuls over all pairs
    rel = (xyz[:, :, None, :] - knn_xyz).reshape(B * N * k, 3)
    pe = pallas_mlp2(rel, p["d1_w"], p["d1_b"], p["d2_w"], p["d2_b"])   # [B*N*k, dm]
    pe = pe.reshape(B * N, k * dm)

    out = fused_point_attention(q, k_g, v_g, pe, feats2d, p, k, dm,
                                scale=1.0 / math.sqrt(dm))
    return out.reshape(B, N, d_points)


def transition_down(layers, xyz, points, nsample):
    B, N, _ = xyz.shape
    npoint = N // 3
    fps_idx = farthest_point_sample(xyz, npoint)
    new_xyz = index_points(xyz, fps_idx)                             # [B,S,3]
    dists = square_distance(new_xyz, xyz)                            # [B,S,N]
    idx = knn_indices(dists, nsample)                                # knn=True
    grouped_xyz = index_points(xyz, idx)                             # [B,S,K,3]
    grouped_xyz_norm = grouped_xyz - new_xyz[:, :, None, :]
    grouped_points = index_points(points, idx)                       # [B,S,K,D]
    new_points = jnp.concatenate([grouped_xyz_norm, grouped_points], axis=-1)

    S, K = npoint, nsample
    C0 = new_points.shape[-1]
    l1, l2 = layers
    x = new_points.reshape(B * S * K, C0)
    cnt = float(B * S * K)

    # stage 1: conv1x1 (+ batch stats) -> BN affine -> stage 2: BN+ReLU+conv1x1 (+stats)
    # -> BN+ReLU+neighbor max pool.  Train-mode BatchNorm (batch stats), as in the reference.
    h1, st1 = pallas_td_stage(x, l1["w"], l1["b"])
    sc1, sh1 = _bn_affine(st1, cnt, l1["gamma"], l1["beta"])
    h2, st2 = pallas_td_stage(h1, l2["w"], l2["b"], sc1, sh1)
    sc2, sh2 = _bn_affine(st2, cnt, l2["gamma"], l2["beta"])
    pooled = pallas_td_pool(h2, sc2, sh2, K)                         # [B*S, C2]
    return new_xyz, pooled.reshape(B, S, -1)


def encoder_forward(params, x, *, nblocks, nneighbor):
    B, N, _ = x.shape
    xyz = x[..., :3]

    # backbone fc1: fused Linear -> ReLU -> Linear
    (w0, b0), (w1, b1) = params["bb_fc1"]
    h = pallas_mlp2(x.reshape(B * N, -1), w0, b0, w1, b1).reshape(B, N, 32)

    points = transformer_block(params["tf1"], xyz, h, nneighbor)
    for i in range(nblocks):
        xyz, points = transition_down(params["tds"][i], xyz, points, nneighbor)
        points = transformer_block(params["tfs"][i], xyz, points, nneighbor)

    # encoder fc2 (Linear -> ReLU -> Linear) fused with per-batch max pool over nodes
    (w2, b2), (w3, b3) = params["fc2"]
    return pallas_mlp2_maxpool(points, w2, b2, w3, b3)               # [B, latent]


# ----------------------------------------------------------------------------
# Deterministic parameter init
# ----------------------------------------------------------------------------

def init_linear(key, cin, cout, bias=True):
    kw, kb = jax.random.split(key)
    bound = 1.0 / math.sqrt(cin)
    w = jax.random.uniform(kw, (cin, cout), minval=-bound, maxval=bound, dtype=jnp.float32)
    if bias:
        b = jax.random.uniform(kb, (cout,), minval=-bound, maxval=bound, dtype=jnp.float32)
    else:
        b = jnp.zeros((cout,), jnp.float32)
    return w, b


def init_transformer_params(key, d_points, d_model):
    ks = jax.random.split(key, 9)
    p = {}
    p["fc1_w"], p["fc1_b"] = init_linear(ks[0], d_points, d_model)
    p["fc2_w"], p["fc2_b"] = init_linear(ks[1], d_model, d_points)
    p["d1_w"], p["d1_b"] = init_linear(ks[2], 3, d_model)
    p["d2_w"], p["d2_b"] = init_linear(ks[3], d_model, d_model)
    p["g1_w"], p["g1_b"] = init_linear(ks[4], d_model, d_model)
    p["g2_w"], p["g2_b"] = init_linear(ks[5], d_model, d_model)
    p["wq_w"], _ = init_linear(ks[6], d_model, d_model, bias=False)
    p["wk_w"], _ = init_linear(ks[7], d_model, d_model, bias=False)
    p["wv_w"], _ = init_linear(ks[8], d_model, d_model, bias=False)
    return p


def init_td_params(key, channels):
    in_c, mlp = channels[0], channels[1:]
    layers, last = [], in_c
    ks = jax.random.split(key, len(mlp))
    for kk, out_c in zip(ks, mlp):
        w, b = init_linear(kk, last, out_c)
        layers.append({
            "w": w, "b": b,
            "gamma": jnp.ones((out_c,), jnp.float32),
            "beta": jnp.zeros((out_c,), jnp.float32),
        })
        last = out_c
    return layers


def init_params(key, nblocks, feat_dim, transformer_dim, latent_features):
    keys = jax.random.split(key, 4 + 2 * nblocks)
    p = {}
    k0, k1 = jax.random.split(keys[0])
    p["bb_fc1"] = [init_linear(k0, feat_dim, 32), init_linear(k1, 32, 32)]
    p["tf1"] = init_transformer_params(keys[1], 32, transformer_dim)
    p["tds"], p["tfs"] = [], []
    for i in range(nblocks):
        channel = 32 * 2 ** (i + 1)
        p["tds"].append(init_td_params(keys[2 + 2 * i], [channel // 2 + 3, channel, channel]))
        p["tfs"].append(init_transformer_params(keys[3 + 2 * i], channel, transformer_dim))
    ka, kb = jax.random.split(keys[2 + 2 * nblocks])
    p["fc2"] = [init_linear(ka, 32 * 2 ** nblocks, 256), init_linear(kb, 256, latent_features)]
    return p


# ----------------------------------------------------------------------------
# Main
# ----------------------------------------------------------------------------

if __name__ == "__main__":
    nblocks = 2
    nneighbor = 4
    latent_features = 16
    feat_dim = 6
    transformer_dim = 32
    B, N = 2, 36                       # N -> 12 -> 4 across transition downs

    key = jax.random.PRNGKey(0)
    kx, kp = jax.random.split(key)
    x = jax.random.normal(kx, (B, N, feat_dim), dtype=jnp.float32)
    params = init_params(kp, nblocks, feat_dim, transformer_dim, latent_features)

    fwd = jax.jit(functools.partial(encoder_forward, nblocks=nblocks, nneighbor=nneighbor))
    out = fwd(params, x)
    out = jax.block_until_ready(out)
    assert out.shape == (B, latent_features), out.shape
    assert bool(jnp.all(jnp.isfinite(out)))
    print("KERNEL_OK")
</pallas_src>

<mosaic_0001>
module attributes {stable_mosaic.version = 11 : i64} {
  func.func @_mlp2_kernel(%arg0: i32, %arg1: memref<24x6xf32, #tpu.memory_space<vmem>>, %arg2: memref<6x32xf32, #tpu.memory_space<vmem>>, %arg3: memref<1x32xf32, #tpu.memory_space<vmem>>, %arg4: memref<32x32xf32, #tpu.memory_space<vmem>>, %arg5: memref<1x32xf32, #tpu.memory_space<vmem>>, %arg6: memref<24x32xf32, #tpu.memory_space<vmem>>) attributes {dimension_semantics = [#tpu.dimension_semantics<parallel>], iteration_bounds = array<i64: 3>, scalar_prefetch = 0 : i64, scratch_operands = 0 : i64, tpu.core_type = #tpu.core_type<tc>, window_params = [{transform_indices = @transform_0, window_bounds = array<i64: 24, 6>}, {pipeline_mode = #tpu.pipeline_mode<synchronous>, transform_indices = @transform_1, window_bounds = array<i64: 6, 32>}, {pipeline_mode = #tpu.pipeline_mode<synchronous>, transform_indices = @transform_2, window_bounds = array<i64: 1, 32>}, {pipeline_mode = #tpu.pipeline_mode<synchronous>, transform_indices = @transform_3, window_bounds = array<i64: 32, 32>}, {pipeline_mode = #tpu.pipeline_mode<synchronous>, transform_indices = @transform_4, window_bounds = array<i64: 1, 32>}, {transform_indices = @transform_5, window_bounds = array<i64: 24, 32>}]} {
    %c0 = arith.constant 0 : index
    %c0_0 = arith.constant 0 : index
    %0 = vector.load %arg1[%c0, %c0_0] : memref<24x6xf32, #tpu.memory_space<vmem>>, vector<24x6xf32>
    %c0_1 = arith.constant 0 : index
    %c0_2 = arith.constant 0 : index
    %1 = vector.load %arg2[%c0_1, %c0_2] : memref<6x32xf32, #tpu.memory_space<vmem>>, vector<6x32xf32>
    %cst = arith.constant dense<0.000000e+00> : vector<24x32xf32>
    %2 = tpu.matmul %0, %1, %cst {dimension_numbers = #tpu.dot_dimension_numbers<[1], [0], [0], [1], [0, 0, 1, 1], [], []>} : vector<24x6xf32>, vector<6x32xf32>, vector<24x32xf32> -> vector<24x32xf32>
    %c0_3 = arith.constant 0 : index
    %c0_4 = arith.constant 0 : index
    %3 = vector.load %arg3[%c0_3, %c0_4] : memref<1x32xf32, #tpu.memory_space<vmem>>, vector<1x32xf32>
    %4 = vector.broadcast %3 : vector<1x32xf32> to vector<24x32xf32>
    %5 = arith.addf %2, %4 : vector<24x32xf32>
    %cst_5 = arith.constant 0.000000e+00 : f32
    %6 = vector.broadcast %cst_5 : f32 to vector<24x32xf32>
    %7 = arith.maximumf %5, %6 : vector<24x32xf32>
    %c0_6 = arith.constant 0 : index
    %c0_7 = arith.constant 0 : index
    %8 = vector.load %arg4[%c0_6, %c0_7] : memref<32x32xf32, #tpu.memory_space<vmem>>, vector<32x32xf32>
    %cst_8 = arith.constant dense<0.000000e+00> : vector<24x32xf32>
    %9 = tpu.matmul %7, %8, %cst_8 {dimension_numbers = #tpu.dot_dimension_numbers<[1], [0], [0], [1], [0, 0, 1, 1], [], []>} : vector<24x32xf32>, vector<32x32xf32>, vector<24x32xf32> -> vector<24x32xf32>
    %c0_9 = arith.constant 0 : index
    %c0_10 = arith.constant 0 : index
    %10 = vector.load %arg5[%c0_9, %c0_10] : memref<1x32xf32, #tpu.memory_space<vmem>>, vector<1x32xf32>
    %11 = vector.broadcast %10 : vector<1x32xf32> to vector<24x32xf32>
    %12 = arith.addf %9, %11 : vector<24x32xf32>
    %c0_11 = arith.constant 0 : index
    %c0_12 = arith.constant 0 : index
    %13 = vector.load %arg6[%c0_11, %c0_12] : memref<24x32xf32, #tpu.memory_space<vmem>>, vector<24x32xf32>
    tpu.vector_store %arg6[%c0_11, %c0_12], %12 {strides = array<i32>} : memref<24x32xf32, #tpu.memory_space<vmem>>, vector<24x32xf32>,
    return
  }
  func.func @transform_0(%arg0: i32) -> (i32, i32) {
    %c0_i32 = arith.constant 0 : i32
    %c0_i32_0 = arith.constant 0 : i32
    return %arg0, %c0_i32 : i32, i32
  }
  func.func @transform_1(%arg0: i32) -> (i32, i32) {
    %c0_i32 = arith.constant 0 : i32
    %c0_i32_0 = arith.constant 0 : i32
    %c0_i32_1 = arith.constant 0 : i32
    return %c0_i32, %c0_i32_0 : i32, i32
  }
  func.func @transform_2(%arg0: i32) -> (i32, i32) {
    %c0_i32 = arith.constant 0 : i32
    %c0_i32_0 = arith.constant 0 : i32
    %c0_i32_1 = arith.constant 0 : i32
    return %c0_i32, %c0_i32_0 : i32, i32
  }
  func.func @transform_3(%arg0: i32) -> (i32, i32) {
    %c0_i32 = arith.constant 0 : i32
    %c0_i32_0 = arith.constant 0 : i32
    %c0_i32_1 = arith.constant 0 : i32
    return %c0_i32, %c0_i32_0 : i32, i32
  }
  func.func @transform_4(%arg0: i32) -> (i32, i32) {
    %c0_i32 = arith.constant 0 : i32
    %c0_i32_0 = arith.constant 0 : i32
    %c0_i32_1 = arith.constant 0 : i32
    return %c0_i32, %c0_i32_0 : i32, i32
  }
  func.func @transform_5(%arg0: i32) -> (i32, i32) {
    %c0_i32 = arith.constant 0 : i32
    %c0_i32_0 = arith.constant 0 : i32
    return %arg0, %c0_i32 : i32, i32
  }
}

module attributes {stable_mosaic.version = 11 : i64} {
  func.func @_fc1_qkv_kernel(%arg0: i32, %arg1: memref<24x32xf32, #tpu.memory_space<vmem>>, %arg2: memref<32x32xf32, #tpu.memory_space<vmem>>, %arg3: memref<1x32xf32, #tpu.memory_space<vmem>>, %arg4: memref<32x128xf32, #tpu.memory_space<vmem>>, %arg5: memref<24x128xf32, #tpu.memory_space<vmem>>) attributes {dimension_semantics = [#tpu.dimension_semantics<parallel>], iteration_bounds = array<i64: 3>, scalar_prefetch = 0 : i64, scratch_operands = 0 : i64, tpu.core_type = #tpu.core_type<tc>, window_params = [{transform_indices = @transform_0, window_bounds = array<i64: 24, 32>}, {pipeline_mode = #tpu.pipeline_mode<synchronous>, transform_indices = @transform_1, window_bounds = array<i64: 32, 32>}, {pipeline_mode = #tpu.pipeline_mode<synchronous>, transform_indices = @transform_2, window_bounds = array<i64: 1, 32>}, {pipeline_mode = #tpu.pipeline_mode<synchronous>, transform_indices = @transform_3, window_bounds = array<i64: 32, 128>}, {transform_indices = @transform_4, window_bounds = array<i64: 24, 128>}]} {
    %c0 = arith.constant 0 : index
    %c0_0 = arith.constant 0 : index
    %0 = vector.load %arg1[%c0, %c0_0] : memref<24x32xf32, #tpu.memory_space<vmem>>, vector<24x32xf32>
    %c0_1 = arith.constant 0 : index
    %c0_2 = arith.constant 0 : index
    %1 = vector.load %arg2[%c0_1, %c0_2] : memref<32x32xf32, #tpu.memory_space<vmem>>, vector<32x32xf32>
    %cst = arith.constant dense<0.000000e+00> : vector<24x32xf32>
    %2 = tpu.matmul %0, %1, %cst {dimension_numbers = #tpu.dot_dimension_numbers<[1], [0], [0], [1], [0, 0, 1, 1], [], []>} : vector<24x32xf32>, vector<32x32xf32>, vector<24x32xf32> -> vector<24x32xf32>
    %c0_3 = arith.constant 0 : index
    %c0_4 = arith.constant 0 : index
    %3 = vector.load %arg3[%c0_3, %c0_4] : memref<1x32xf32, #tpu.memory_space<vmem>>, vector<1x32xf32>
    %4 = vector.broadcast %3 : vector<1x32xf32> to vector<24x32xf32>
    %5 = arith.addf %2, %4 : vector<24x32xf32>
    %c0_5 = arith.constant 0 : index
    %c0_6 = arith.constant 0 : index
    %6 = vector.load %arg4[%c0_5, %c0_6] : memref<32x128xf32, #tpu.memory_space<vmem>>, vector<32x128xf32>
    %cst_7 = arith.constant dense<0.000000e+00> : vector<24x128xf32>
    %7 = tpu.matmul %5, %6, %cst_7 {dimension_numbers = #tpu.dot_dimension_numbers<[1], [0], [0], [1], [0, 0, 1, 1], [], []>} : vector<24x32xf32>, vector<32x128xf32>, vector<24x128xf32> -> vector<24x128xf32>
    %c0_8 = arith.constant 0 : index
    %c0_9 = arith.constant 0 : index
    %8 = vector.load %arg5[%c0_8, %c0_9] : memref<24x128xf32, #tpu.memory_space<vmem>>, vector<24x128xf32>
    tpu.vector_store %arg5[%c0_8, %c0_9], %7 {strides = array<i32>} : memref<24x128xf32, #tpu.memory_space<vmem>>, vector<24x128xf32>,
    return
  }
  func.func @transform_0(%arg0: i32) -> (i32, i32) {
    %c0_i32 = arith.constant 0 : i32
    %c0_i32_0 = arith.constant 0 : i32
    return %arg0, %c0_i32 : i32, i32
  }
  func.func @transform_1(%arg0: i32) -> (i32, i32) {
    %c0_i32 = arith.constant 0 : i32
    %c0_i32_0 = arith.constant 0 : i32
    %c0_i32_1 = arith.constant 0 : i32
    return %c0_i32, %c0_i32_0 : i32, i32
  }
  func.func @transform_2(%arg0: i32) -> (i32, i32) {
    %c0_i32 = arith.constant 0 : i32
    %c0_i32_0 = arith.constant 0 : i32
    %c0_i32_1 = arith.constant 0 : i32
    return %c0_i32, %c0_i32_0 : i32, i32
  }
  func.func @transform_3(%arg0: i32) -> (i32, i32) {
    %c0_i32 = arith.constant 0 : i32
    %c0_i32_0 = arith.constant 0 : i32
    %c0_i32_1 = arith.constant 0 : i32
    return %c0_i32, %c0_i32_0 : i32, i32
  }
  func.func @transform_4(%arg0: i32) -> (i32, i32) {
    %c0_i32 = arith.constant 0 : i32
    %c0_i32_0 = arith.constant 0 : i32
    return %arg0, %c0_i32 : i32, i32
  }
}

module attributes {stable_mosaic.version = 11 : i64} {
  func.func @_mlp2_kernel(%arg0: i32, %arg1: memref<144x3xf32, #tpu.memory_space<vmem>>, %arg2: memref<3x32xf32, #tpu.memory_space<vmem>>, %arg3: memref<1x32xf32, #tpu.memory_space<vmem>>, %arg4: memref<32x32xf32, #tpu.memory_space<vmem>>, %arg5: memref<1x32xf32, #tpu.memory_space<vmem>>, %arg6: memref<144x32xf32, #tpu.memory_space<vmem>>) attributes {dimension_semantics = [#tpu.dimension_semantics<parallel>], iteration_bounds = array<i64: 2>, scalar_prefetch = 0 : i64, scratch_operands = 0 : i64, tpu.core_type = #tpu.core_type<tc>, window_params = [{transform_indices = @transform_0, window_bounds = array<i64: 144, 3>}, {pipeline_mode = #tpu.pipeline_mode<synchronous>, transform_indices = @transform_1, window_bounds = array<i64: 3, 32>}, {pipeline_mode = #tpu.pipeline_mode<synchronous>, transform_indices = @transform_2, window_bounds = array<i64: 1, 32>}, {pipeline_mode = #tpu.pipeline_mode<synchronous>, transform_indices = @transform_3, window_bounds = array<i64: 32, 32>}, {pipeline_mode = #tpu.pipeline_mode<synchronous>, transform_indices = @transform_4, window_bounds = array<i64: 1, 32>}, {transform_indices = @transform_5, window_bounds = array<i64: 144, 32>}]} {
    %c0 = arith.constant 0 : index
    %c0_0 = arith.constant 0 : index
    %0 = vector.load %arg1[%c0, %c0_0] : memref<144x3xf32, #tpu.memory_space<vmem>>, vector<144x3xf32>
    %c0_1 = arith.constant 0 : index
    %c0_2 = arith.constant 0 : index
    %1 = vector.load %arg2[%c0_1, %c0_2] : memref<3x32xf32, #tpu.memory_space<vmem>>, vector<3x32xf32>
    %cst = arith.constant dense<0.000000e+00> : vector<144x32xf32>
    %2 = tpu.matmul %0, %1, %cst {dimension_numbers = #tpu.dot_dimension_numbers<[1], [0], [0], [1], [0, 0, 1, 1], [], []>} : vector<144x3xf32>, vector<3x32xf32>, vector<144x32xf32> -> vector<144x32xf32>
    %c0_3 = arith.constant 0 : index
    %c0_4 = arith.constant 0 : index
    %3 = vector.load %arg3[%c0_3, %c0_4] : memref<1x32xf32, #tpu.memory_space<vmem>>, vector<1x32xf32>
    %4 = vector.broadcast %3 : vector<1x32xf32> to vector<144x32xf32>
    %5 = arith.addf %2, %4 : vector<144x32xf32>
    %cst_5 = arith.constant 0.000000e+00 : f32
    %6 = vector.broadcast %cst_5 : f32 to vector<144x32xf32>
    %7 = arith.maximumf %5, %6 : vector<144x32xf32>
    %c0_6 = arith.constant 0 : index
    %c0_7 = arith.constant 0 : index
    %8 = vector.load %arg4[%c0_6, %c0_7] : memref<32x32xf32, #tpu.memory_space<vmem>>, vector<32x32xf32>
    %cst_8 = arith.constant dense<0.000000e+00> : vector<144x32xf32>
    %9 = tpu.matmul %7, %8, %cst_8 {dimension_numbers = #tpu.dot_dimension_numbers<[1], [0], [0], [1], [0, 0, 1, 1], [], []>} : vector<144x32xf32>, vector<32x32xf32>, vector<144x32xf32> -> vector<144x32xf32>
    %c0_9 = arith.constant 0 : index
    %c0_10 = arith.constant 0 : index
    %10 = vector.load %arg5[%c0_9, %c0_10] : memref<1x32xf32, #tpu.memory_space<vmem>>, vector<1x32xf32>
    %11 = vector.broadcast %10 : vector<1x32xf32> to vector<144x32xf32>
    %12 = arith.addf %9, %11 : vector<144x32xf32>
    %c0_11 = arith.constant 0 : index
    %c0_12 = arith.constant 0 : index
    %13 = vector.load %arg6[%c0_11, %c0_12] : memref<144x32xf32, #tpu.memory_space<vmem>>, vector<144x32xf32>
    tpu.vector_store %arg6[%c0_11, %c0_12], %12 {strides = array<i32>} : memref<144x32xf32, #tpu.memory_space<vmem>>, vector<144x32xf32>,
    return
  }
  func.func @transform_0(%arg0: i32) -> (i32, i32) {
    %c0_i32 = arith.constant 0 : i32
    %c0_i32_0 = arith.constant 0 : i32
    return %arg0, %c0_i32 : i32, i32
  }
  func.func @transform_1(%arg0: i32) -> (i32, i32) {
    %c0_i32 = arith.constant 0 : i32
    %c0_i32_0 = arith.constant 0 : i32
    %c0_i32_1 = arith.constant 0 : i32
    return %c0_i32, %c0_i32_0 : i32, i32
  }
  func.func @transform_2(%arg0: i32) -> (i32, i32) {
    %c0_i32 = arith.constant 0 : i32
    %c0_i32_0 = arith.constant 0 : i32
    %c0_i32_1 = arith.constant 0 : i32
    return %c0_i32, %c0_i32_0 : i32, i32
  }
  func.func @transform_3(%arg0: i32) -> (i32, i32) {
    %c0_i32 = arith.constant 0 : i32
    %c0_i32_0 = arith.constant 0 : i32
    %c0_i32_1 = arith.constant 0 : i32
    return %c0_i32, %c0_i32_0 : i32, i32
  }
  func.func @transform_4(%arg0: i32) -> (i32, i32) {
    %c0_i32 = arith.constant 0 : i32
    %c0_i32_0 = arith.constant 0 : i32
    %c0_i32_1 = arith.constant 0 : i32
    return %c0_i32, %c0_i32_0 : i32, i32
  }
  func.func @transform_5(%arg0: i32) -> (i32, i32) {
    %c0_i32 = arith.constant 0 : i32
    %c0_i32_0 = arith.constant 0 : i32
    return %arg0, %c0_i32 : i32, i32
  }
}

module attributes {stable_mosaic.version = 11 : i64} {
  func.func @_point_attn_kernel(%arg0: i32, %arg1: memref<24x32xf32, #tpu.memory_space<vmem>>, %arg2: memref<24x128xf32, #tpu.memory_space<vmem>>, %arg3: memref<24x128xf32, #tpu.memory_space<vmem>>, %arg4: memref<24x128xf32, #tpu.memory_space<vmem>>, %arg5: memref<24x32xf32, #tpu.memory_space<vmem>>, %arg6: memref<128x128xf32, #tpu.memory_space<vmem>>, %arg7: memref<1x128xf32, #tpu.memory_space<vmem>>, %arg8: memref<128x128xf32, #tpu.memory_space<vmem>>, %arg9: memref<1x128xf32, #tpu.memory_space<vmem>>, %arg10: memref<32x32xf32, #tpu.memory_space<vmem>>, %arg11: memref<1x32xf32, #tpu.memory_space<vmem>>, %arg12: memref<24x32xf32, #tpu.memory_space<vmem>>) attributes {dimension_semantics = [#tpu.dimension_semantics<parallel>], iteration_bounds = array<i64: 3>, scalar_prefetch = 0 : i64, scratch_operands = 0 : i64, tpu.core_type = #tpu.core_type<tc>, window_params = [{transform_indices = @transform_0, window_bounds = array<i64: 24, 32>}, {transform_indices = @transform_1, window_bounds = array<i64: 24, 128>}, {transform_indices = @transform_2, window_bounds = array<i64: 24, 128>}, {transform_indices = @transform_3, window_bounds = array<i64: 24, 128>}, {transform_indices = @transform_4, window_bounds = array<i64: 24, 32>}, {pipeline_mode = #tpu.pipeline_mode<synchronous>, transform_indices = @transform_5, window_bounds = array<i64: 128, 128>}, {pipeline_mode = #tpu.pipeline_mode<synchronous>, transform_indices = @transform_6, window_bounds = array<i64: 1, 128>}, {pipeline_mode = #tpu.pipeline_mode<synchronous>, transform_indices = @transform_7, window_bounds = array<i64: 128, 128>}, {pipeline_mode = #tpu.pipeline_mode<synchronous>, transform_indices = @transform_8, window_bounds = array<i64: 1, 128>}, {pipeline_mode = #tpu.pipeline_mode<synchronous>, transform_indices = @transform_9, window_bounds = array<i64: 32, 32>}, {pipeline_mode = #tpu.pipeline_mode<synchronous>, transform_indices = @transform_10, window_bounds = array<i64: 1, 32>}, {transform_indices = @transform_11, window_bounds = array<i64: 24, 32>}]} {
    %c0 = arith.constant 0 : index
    %c0_0 = arith.constant 0 : index
    %0 = vector.load %arg1[%c0, %c0_0] : memref<24x32xf32, #tpu.memory_space<vmem>>, vector<24x32xf32>
    %1 = tpu.concatenate %0, %0, %0, %0 in 1 : vector<24x32xf32>, vector<24x32xf32>, vector<24x32xf32>, vector<24x32xf32> -> vector<24x128xf32>
    %c0_1 = arith.constant 0 : index
    %c0_2 = arith.constant 0 : index
    %2 = vector.load %arg4[%c0_1, %c0_2] : memref<24x128xf32, #tpu.memory_space<vmem>>, vector<24x128xf32>
    %c0_3 = arith.constant 0 : index
    %c0_4 = arith.constant 0 : index
    %3 = vector.load %arg2[%c0_3, %c0_4] : memref<24x128xf32, #tpu.memory_space<vmem>>, vector<24x128xf32>
    %4 = arith.subf %1, %3 : vector<24x128xf32>
    %5 = arith.addf %4, %2 : vector<24x128xf32>
    %c0_5 = arith.constant 0 : index
    %c0_6 = arith.constant 0 : index
    %6 = vector.load %arg6[%c0_5, %c0_6] : memref<128x128xf32, #tpu.memory_space<vmem>>, vector<128x128xf32>
    %cst = arith.constant dense<0.000000e+00> : vector<24x128xf32>
    %7 = tpu.matmul %5, %6, %cst {dimension_numbers = #tpu.dot_dimension_numbers<[1], [0], [0], [1], [0, 0, 1, 1], [], []>} : vector<24x128xf32>, vector<128x128xf32>, vector<24x128xf32> -> vector<24x128xf32>
    %c0_7 = arith.constant 0 : index
    %c0_8 = arith.constant 0 : index
    %8 = vector.load %arg7[%c0_7, %c0_8] : memref<1x128xf32, #tpu.memory_space<vmem>>, vector<1x128xf32>
    %9 = vector.broadcast %8 : vector<1x128xf32> to vector<24x128xf32>
    %10 = arith.addf %7, %9 : vector<24x128xf32>
    %cst_9 = arith.constant 0.000000e+00 : f32
    %11 = vector.broadcast %cst_9 : f32 to vector<24x128xf32>
    %12 = arith.maximumf %10, %11 : vector<24x128xf32>
    %c0_10 = arith.constant 0 : index
    %c0_11 = arith.constant 0 : index
    %13 = vector.load %arg8[%c0_10, %c0_11] : memref<128x128xf32, #tpu.memory_space<vmem>>, vector<128x128xf32>
    %cst_12 = arith.constant dense<0.000000e+00> : vector<24x128xf32>
    %14 = tpu.matmul %12, %13, %cst_12 {dimension_numbers = #tpu.dot_dimension_numbers<[1], [0], [0], [1], [0, 0, 1, 1], [], []>} : vector<24x128xf32>, vector<128x128xf32>, vector<24x128xf32> -> vector<24x128xf32>
    %c0_13 = arith.constant 0 : index
    %c0_14 = arith.constant 0 : index
    %15 = vector.load %arg9[%c0_13, %c0_14] : memref<1x128xf32, #tpu.memory_space<vmem>>, vector<1x128xf32>
    %16 = vector.broadcast %15 : vector<1x128xf32> to vector<24x128xf32>
    %17 = arith.addf %14, %16 : vector<24x128xf32>
    %cst_15 = arith.constant 0.176776692 : f32
    %18 = vector.broadcast %cst_15 : f32 to vector<24x128xf32>
    %19 = arith.mulf %17, %18 : vector<24x128xf32>
    %20 = vector.extract_strided_slice %19 {offsets = [0, 0], sizes = [24, 32], strides = [1, 1]} : vector<24x128xf32> to vector<24x32xf32>
    %21 = vector.extract_strided_slice %19 {offsets = [0, 32], sizes = [24, 32], strides = [1, 1]} : vector<24x128xf32> to vector<24x32xf32>
    %22 = arith.maximumf %20, %21 : vector<24x32xf32>
    %23 = vector.extract_strided_slice %19 {offsets = [0, 64], sizes = [24, 32], strides = [1, 1]} : vector<24x128xf32> to vector<24x32xf32>
    %24 = arith.maximumf %22, %23 : vector<24x32xf32>
    %25 = vector.extract_strided_slice %19 {offsets = [0, 96], sizes = [24, 32], strides = [1, 1]} : vector<24x128xf32> to vector<24x32xf32>
    %26 = arith.maximumf %24, %25 : vector<24x32xf32>
    %27 = tpu.concatenate %26, %26, %26, %26 in 1 : vector<24x32xf32>, vector<24x32xf32>, vector<24x32xf32>, vector<24x32xf32> -> vector<24x128xf32>
    %28 = arith.subf %19, %27 : vector<24x128xf32>
    %29 = math.exp %28 : vector<24x128xf32>
    %30 = vector.extract_strided_slice %29 {offsets = [0, 0], sizes = [24, 32], strides = [1, 1]} : vector<24x128xf32> to vector<24x32xf32>
    %31 = vector.extract_strided_slice %29 {offsets = [0, 32], sizes = [24, 32], strides = [1, 1]} : vector<24x128xf32> to vector<24x32xf32>
    %32 = arith.addf %30, %31 : vector<24x32xf32>
    %33 = vector.extract_strided_slice %29 {offsets = [0, 64], sizes = [24, 32], strides = [1, 1]} : vector<24x128xf32> to vector<24x32xf32>
    %34 = arith.addf %32, %33 : vector<24x32xf32>
    %35 = vector.extract_strided_slice %29 {offsets = [0, 96], sizes = [24, 32], strides = [1, 1]} : vector<24x128xf32> to vector<24x32xf32>
    %36 = arith.addf %34, %35 : vector<24x32xf32>
    %37 = tpu.reciprocal %36 {approx = true} : vector<24x32xf32> -> vector<24x32xf32>
    %38 = tpu.concatenate %37, %37, %37, %37 in 1 : vector<24x32xf32>, vector<24x32xf32>, vector<24x32xf32>, vector<24x32xf32> -> vector<24x128xf32>
    %39 = arith.mulf %29, %38 : vector<24x128xf32>
    %c0_16 = arith.constant 0 : index
    %c0_17 = arith.constant 0 : index
    %40 = vector.load %arg3[%c0_16, %c0_17] : memref<24x128xf32, #tpu.memory_space<vmem>>, vector<24x128xf32>
    %41 = arith.addf %40, %2 : vector<24x128xf32>
    %42 = arith.mulf %39, %41 : vector<24x128xf32>
    %43 = vector.extract_strided_slice %42 {offsets = [0, 0], sizes = [24, 32], strides = [1, 1]} : vector<24x128xf32> to vector<24x32xf32>
    %44 = vector.extract_strided_slice %42 {offsets = [0, 32], sizes = [24, 32], strides = [1, 1]} : vector<24x128xf32> to vector<24x32xf32>
    %45 = arith.addf %43, %44 : vector<24x32xf32>
    %46 = vector.extract_strided_slice %42 {offsets = [0, 64], sizes = [24, 32], strides = [1, 1]} : vector<24x128xf32> to vector<24x32xf32>
    %47 = arith.addf %45, %46 : vector<24x32xf32>
    %48 = vector.extract_strided_slice %42 {offsets = [0, 96], sizes = [24, 32], strides = [1, 1]} : vector<24x128xf32> to vector<24x32xf32>
    %49 = arith.addf %47, %48 : vector<24x32xf32>
    %c0_18 = arith.constant 0 : index
    %c0_19 = arith.constant 0 : index
    %50 = vector.load %arg10[%c0_18, %c0_19] : memref<32x32xf32, #tpu.memory_space<vmem>>, vector<32x32xf32>
    %cst_20 = arith.constant dense<0.000000e+00> : vector<24x32xf32>
    %51 = tpu.matmul %49, %50, %cst_20 {dimension_numbers = #tpu.dot_dimension_numbers<[1], [0], [0], [1], [0, 0, 1, 1], [], []>} : vector<24x32xf32>, vector<32x32xf32>, vector<24x32xf32> -> vector<24x32xf32>
    %c0_21 = arith.constant 0 : index
    %c0_22 = arith.constant 0 : index
    %52 = vector.load %arg11[%c0_21, %c0_22] : memref<1x32xf32, #tpu.memory_space<vmem>>, vector<1x32xf32>
    %53 = vector.broadcast %52 : vector<1x32xf32> to vector<24x32xf32>
    %54 = arith.addf %51, %53 : vector<24x32xf32>
    %c0_23 = arith.constant 0 : index
    %c0_24 = arith.constant 0 : index
    %55 = vector.load %arg5[%c0_23, %c0_24] : memref<24x32xf32, #tpu.memory_space<vmem>>, vector<24x32xf32>
    %56 = arith.addf %54, %55 : vector<24x32xf32>
    %c0_25 = arith.constant 0 : index
    %c0_26 = arith.constant 0 : index
    %57 = vector.load %arg12[%c0_25, %c0_26] : memref<24x32xf32, #tpu.memory_space<vmem>>, vector<24x32xf32>
    tpu.vector_store %arg12[%c0_25, %c0_26], %56 {strides = array<i32>} : memref<24x32xf32, #tpu.memory_space<vmem>>, vector<24x32xf32>,
    return
  }
  func.func @transform_0(%arg0: i32) -> (i32, i32) {
    %c0_i32 = arith.constant 0 : i32
    %c0_i32_0 = arith.constant 0 : i32
    return %arg0, %c0_i32 : i32, i32
  }
  func.func @transform_1(%arg0: i32) -> (i32, i32) {
    %c0_i32 = arith.constant 0 : i32
    %c0_i32_0 = arith.constant 0 : i32
    return %arg0, %c0_i32 : i32, i32
  }
  func.func @transform_2(%arg0: i32) -> (i32, i32) {
    %c0_i32 = arith.constant 0 : i32
    %c0_i32_0 = arith.constant 0 : i32
    return %arg0, %c0_i32 : i32, i32
  }
  func.func @transform_3(%arg0: i32) -> (i32, i32) {
    %c0_i32 = arith.constant 0 : i32
    %c0_i32_0 = arith.constant 0 : i32
    return %arg0, %c0_i32 : i32, i32
  }
  func.func @transform_4(%arg0: i32) -> (i32, i32) {
    %c0_i32 = arith.constant 0 : i32
    %c0_i32_0 = arith.constant 0 : i32
    return %arg0, %c0_i32 : i32, i32
  }
  func.func @transform_5(%arg0: i32) -> (i32, i32) {
    %c0_i32 = arith.constant 0 : i32
    %c0_i32_0 = arith.constant 0 : i32
    %c0_i32_1 = arith.constant 0 : i32
    return %c0_i32, %c0_i32_0 : i32, i32
  }
  func.func @transform_6(%arg0: i32) -> (i32, i32) {
    %c0_i32 = arith.constant 0 : i32
    %c0_i32_0 = arith.constant 0 : i32
    %c0_i32_1 = arith.constant 0 : i32
    return %c0_i32, %c0_i32_0 : i32, i32
  }
  func.func @transform_7(%arg0: i32) -> (i32, i32) {
    %c0_i32 = arith.constant 0 : i32
    %c0_i32_0 = arith.constant 0 : i32
    %c0_i32_1 = arith.constant 0 : i32
    return %c0_i32, %c0_i32_0 : i32, i32
  }
  func.func @transform_8(%arg0: i32) -> (i32, i32) {
    %c0_i32 = arith.constant 0 : i32
    %c0_i32_0 = arith.constant 0 : i32
    %c0_i32_1 = arith.constant 0 : i32
    return %c0_i32, %c0_i32_0 : i32, i32
  }
  func.func @transform_9(%arg0: i32) -> (i32, i32) {
    %c0_i32 = arith.constant 0 : i32
    %c0_i32_0 = arith.constant 0 : i32
    %c0_i32_1 = arith.constant 0 : i32
    return %c0_i32, %c0_i32_0 : i32, i32
  }
  func.func @transform_10(%arg0: i32) -> (i32, i32) {
    %c0_i32 = arith.constant 0 : i32
    %c0_i32_0 = arith.constant 0 : i32
    %c0_i32_1 = arith.constant 0 : i32
    return %c0_i32, %c0_i32_0 : i32, i32
  }
  func.func @transform_11(%arg0: i32) -> (i32, i32) {
    %c0_i32 = arith.constant 0 : i32
    %c0_i32_0 = arith.constant 0 : i32
    return %arg0, %c0_i32 : i32, i32
  }
}

module attributes {stable_mosaic.version = 11 : i64} {
  func.func @_td_stage_kernel(%arg0: i32, %arg1: memref<48x35xf32, #tpu.memory_space<vmem>>, %arg2: memref<1x35xf32, #tpu.memory_space<vmem>>, %arg3: memref<1x35xf32, #tpu.memory_space<vmem>>, %arg4: memref<35x64xf32, #tpu.memory_space<vmem>>, %arg5: memref<1x64xf32, #tpu.memory_space<vmem>>, %arg6: memref<48x64xf32, #tpu.memory_space<vmem>>, %arg7: memref<2x64xf32, #tpu.memory_space<vmem>>) attributes {dimension_semantics = [#tpu.dimension_semantics<arbitrary>], iteration_bounds = array<i64: 2>, scalar_prefetch = 0 : i64, scratch_operands = 0 : i64, tpu.core_type = #tpu.core_type<tc>, window_params = [{transform_indices = @transform_0, window_bounds = array<i64: 48, 35>}, {pipeline_mode = #tpu.pipeline_mode<synchronous>, transform_indices = @transform_1, window_bounds = array<i64: 1, 35>}, {pipeline_mode = #tpu.pipeline_mode<synchronous>, transform_indices = @transform_2, window_bounds = array<i64: 1, 35>}, {pipeline_mode = #tpu.pipeline_mode<synchronous>, transform_indices = @transform_3, window_bounds = array<i64: 35, 64>}, {pipeline_mode = #tpu.pipeline_mode<synchronous>, transform_indices = @transform_4, window_bounds = array<i64: 1, 64>}, {transform_indices = @transform_5, window_bounds = array<i64: 48, 64>}, {pipeline_mode = #tpu.pipeline_mode<synchronous>, transform_indices = @transform_6, window_bounds = array<i64: 2, 64>}]} {
    %c0 = arith.constant 0 : index
    %c0_0 = arith.constant 0 : index
    %0 = vector.load %arg1[%c0, %c0_0] : memref<48x35xf32, #tpu.memory_space<vmem>>, vector<48x35xf32>
    %c0_1 = arith.constant 0 : index
    %c0_2 = arith.constant 0 : index
    %1 = vector.load %arg4[%c0_1, %c0_2] : memref<35x64xf32, #tpu.memory_space<vmem>>, vector<35x64xf32>
    %cst = arith.constant dense<0.000000e+00> : vector<48x64xf32>
    %2 = tpu.matmul %0, %1, %cst {dimension_numbers = #tpu.dot_dimension_numbers<[1], [0], [0], [1], [0, 0, 1, 1], [], []>} : vector<48x35xf32>, vector<35x64xf32>, vector<48x64xf32> -> vector<48x64xf32>
    %c0_3 = arith.constant 0 : index
    %c0_4 = arith.constant 0 : index
    %3 = vector.load %arg5[%c0_3, %c0_4] : memref<1x64xf32, #tpu.memory_space<vmem>>, vector<1x64xf32>
    %4 = vector.broadcast %3 : vector<1x64xf32> to vector<48x64xf32>
    %5 = arith.addf %2, %4 : vector<48x64xf32>
    %c0_5 = arith.constant 0 : index
    %c0_6 = arith.constant 0 : index
    %6 = vector.load %arg6[%c0_5, %c0_6] : memref<48x64xf32, #tpu.memory_space<vmem>>, vector<48x64xf32>
    tpu.vector_store %arg6[%c0_5, %c0_6], %5 {strides = array<i32>} : memref<48x64xf32, #tpu.memory_space<vmem>>, vector<48x64xf32>,
    %c0_i32 = arith.constant 0 : i32
    %7 = arith.cmpi eq, %arg0, %c0_i32 : i32
    %8 = arith.extui %7 : i1 to i32
    %c0_i32_7 = arith.constant 0 : i32
    %9 = arith.cmpi ne, %8, %c0_i32_7 : i32
    scf.if %9 {
      %cst_14 = arith.constant 0.000000e+00 : f32
      %19 = vector.broadcast %cst_14 : f32 to vector<2x64xf32>
      %c0_15 = arith.constant 0 : index
      %c0_16 = arith.constant 0 : index
      %20 = vector.load %arg7[%c0_15, %c0_16] : memref<2x64xf32, #tpu.memory_space<vmem>>, vector<2x64xf32>
      tpu.vector_store %arg7[%c0_15, %c0_16], %19 {strides = array<i32>} : memref<2x64xf32, #tpu.memory_space<vmem>>, vector<2x64xf32>,
    } else {
    }
    %c0_8 = arith.constant 0 : index
    %c0_9 = arith.constant 0 : index
    %10 = vector.load %arg7[%c0_8, %c0_9] : memref<2x64xf32, #tpu.memory_space<vmem>>, vector<2x64xf32>
    %cst_10 = arith.constant dense<0.000000e+00> : vector<64xf32>
    %11 = vector.multi_reduction <add>, %5, %cst_10 [0] : vector<48x64xf32> to vector<64xf32>
    %12 = vector.shape_cast %11 : vector<64xf32> to vector<1x64xf32>
    %13 = arith.mulf %5, %5 : vector<48x64xf32>
    %cst_11 = arith.constant dense<0.000000e+00> : vector<64xf32>
    %14 = vector.multi_reduction <add>, %13, %cst_11 [0] : vector<48x64xf32> to vector<64xf32>
    %15 = vector.shape_cast %14 : vector<64xf32> to vector<1x64xf32>
    %16 = tpu.concatenate %12, %15 in 0 : vector<1x64xf32>, vector<1x64xf32> -> vector<2x64xf32>
    %17 = arith.addf %10, %16 : vector<2x64xf32>
    %c0_12 = arith.constant 0 : index
    %c0_13 = arith.constant 0 : index
    %18 = vector.load %arg7[%c0_12, %c0_13] : memref<2x64xf32, #tpu.memory_space<vmem>>, vector<2x64xf32>
    tpu.vector_store %arg7[%c0_12, %c0_13], %17 {strides = array<i32>} : memref<2x64xf32, #tpu.memory_space<vmem>>, vector<2x64xf32>,
    return
  }
  func.func @transform_0(%arg0: i32) -> (i32, i32) {
    %c0_i32 = arith.constant 0 : i32
    %c0_i32_0 = arith.constant 0 : i32
    return %arg0, %c0_i32 : i32, i32
  }
  func.func @transform_1(%arg0: i32) -> (i32, i32) {
    %c0_i32 = arith.constant 0 : i32
    %c0_i32_0 = arith.constant 0 : i32
    %c0_i32_1 = arith.constant 0 : i32
    return %c0_i32, %c0_i32_0 : i32, i32
  }
  func.func @transform_2(%arg0: i32) -> (i32, i32) {
    %c0_i32 = arith.constant 0 : i32
    %c0_i32_0 = arith.constant 0 : i32
    %c0_i32_1 = arith.constant 0 : i32
    return %c0_i32, %c0_i32_0 : i32, i32
  }
  func.func @transform_3(%arg0: i32) -> (i32, i32) {
    %c0_i32 = arith.constant 0 : i32
    %c0_i32_0 = arith.constant 0 : i32
    %c0_i32_1 = arith.constant 0 : i32
    return %c0_i32, %c0_i32_0 : i32, i32
  }
  func.func @transform_4(%arg0: i32) -> (i32, i32) {
    %c0_i32 = arith.constant 0 : i32
    %c0_i32_0 = arith.constant 0 : i32
    %c0_i32_1 = arith.constant 0 : i32
    return %c0_i32, %c0_i32_0 : i32, i32
  }
  func.func @transform_5(%arg0: i32) -> (i32, i32) {
    %c0_i32 = arith.constant 0 : i32
    %c0_i32_0 = arith.constant 0 : i32
    return %arg0, %c0_i32 : i32, i32
  }
  func.func @transform_6(%arg0: i32) -> (i32, i32) {
    %c0_i32 = arith.constant 0 : i32
    %c0_i32_0 = arith.constant 0 : i32
    %c0_i32_1 = arith.constant 0 : i32
    return %c0_i32, %c0_i32_0 : i32, i32
  }
}

module attributes {stable_mosaic.version = 11 : i64} {
  func.func @_td_stage_kernel(%arg0: i32, %arg1: memref<48x64xf32, #tpu.memory_space<vmem>>, %arg2: memref<1x64xf32, #tpu.memory_space<vmem>>, %arg3: memref<1x64xf32, #tpu.memory_space<vmem>>, %arg4: memref<64x64xf32, #tpu.memory_space<vmem>>, %arg5: memref<1x64xf32, #tpu.memory_space<vmem>>, %arg6: memref<48x64xf32, #tpu.memory_space<vmem>>, %arg7: memref<2x64xf32, #tpu.memory_space<vmem>>) attributes {dimension_semantics = [#tpu.dimension_semantics<arbitrary>], iteration_bounds = array<i64: 2>, scalar_prefetch = 0 : i64, scratch_operands = 0 : i64, tpu.core_type = #tpu.core_type<tc>, window_params = [{transform_indices = @transform_0, window_bounds = array<i64: 48, 64>}, {pipeline_mode = #tpu.pipeline_mode<synchronous>, transform_indices = @transform_1, window_bounds = array<i64: 1, 64>}, {pipeline_mode = #tpu.pipeline_mode<synchronous>, transform_indices = @transform_2, window_bounds = array<i64: 1, 64>}, {pipeline_mode = #tpu.pipeline_mode<synchronous>, transform_indices = @transform_3, window_bounds = array<i64: 64, 64>}, {pipeline_mode = #tpu.pipeline_mode<synchronous>, transform_indices = @transform_4, window_bounds = array<i64: 1, 64>}, {transform_indices = @transform_5, window_bounds = array<i64: 48, 64>}, {pipeline_mode = #tpu.pipeline_mode<synchronous>, transform_indices = @transform_6, window_bounds = array<i64: 2, 64>}]} {
    %c0 = arith.constant 0 : index
    %c0_0 = arith.constant 0 : index
    %0 = vector.load %arg1[%c0, %c0_0] : memref<48x64xf32, #tpu.memory_space<vmem>>, vector<48x64xf32>
    %c0_1 = arith.constant 0 : index
    %c0_2 = arith.constant 0 : index
    %1 = vector.load %arg2[%c0_1, %c0_2] : memref<1x64xf32, #tpu.memory_space<vmem>>, vector<1x64xf32>
    %2 = vector.broadcast %1 : vector<1x64xf32> to vector<48x64xf32>
    %3 = arith.mulf %0, %2 : vector<48x64xf32>
    %c0_3 = arith.constant 0 : index
    %c0_4 = arith.constant 0 : index
    %4 = vector.load %arg3[%c0_3, %c0_4] : memref<1x64xf32, #tpu.memory_space<vmem>>, vector<1x64xf32>
    %5 = vector.broadcast %4 : vector<1x64xf32> to vector<48x64xf32>
    %6 = arith.addf %3, %5 : vector<48x64xf32>
    %cst = arith.constant 0.000000e+00 : f32
    %7 = vector.broadcast %cst : f32 to vector<48x64xf32>
    %8 = arith.maximumf %6, %7 : vector<48x64xf32>
    %c0_5 = arith.constant 0 : index
    %c0_6 = arith.constant 0 : index
    %9 = vector.load %arg4[%c0_5, %c0_6] : memref<64x64xf32, #tpu.memory_space<vmem>>, vector<64x64xf32>
    %cst_7 = arith.constant dense<0.000000e+00> : vector<48x64xf32>
    %10 = tpu.matmul %8, %9, %cst_7 {dimension_numbers = #tpu.dot_dimension_numbers<[1], [0], [0], [1], [0, 0, 1, 1], [], []>} : vector<48x64xf32>, vector<64x64xf32>, vector<48x64xf32> -> vector<48x64xf32>
    %c0_8 = arith.constant 0 : index
    %c0_9 = arith.constant 0 : index
    %11 = vector.load %arg5[%c0_8, %c0_9] : memref<1x64xf32, #tpu.memory_space<vmem>>, vector<1x64xf32>
    %12 = vector.broadcast %11 : vector<1x64xf32> to vector<48x64xf32>
    %13 = arith.addf %10, %12 : vector<48x64xf32>
    %c0_10 = arith.constant 0 : index
    %c0_11 = arith.constant 0 : index
    %14 = vector.load %arg6[%c0_10, %c0_11] : memref<48x64xf32, #tpu.memory_space<vmem>>, vector<48x64xf32>
    tpu.vector_store %arg6[%c0_10, %c0_11], %13 {strides = array<i32>} : memref<48x64xf32, #tpu.memory_space<vmem>>, vector<48x64xf32>,
    %c0_i32 = arith.constant 0 : i32
    %15 = arith.cmpi eq, %arg0, %c0_i32 : i32
    %16 = arith.extui %15 : i1 to i32
    %c0_i32_12 = arith.constant 0 : i32
    %17 = arith.cmpi ne, %16, %c0_i32_12 : i32
    scf.if %17 {
      %cst_19 = arith.constant 0.000000e+00 : f32
      %27 = vector.broadcast %cst_19 : f32 to vector<2x64xf32>
      %c0_20 = arith.constant 0 : index
      %c0_21 = arith.constant 0 : index
      %28 = vector.load %arg7[%c0_20, %c0_21] : memref<2x64xf32, #tpu.memory_space<vmem>>, vector<2x64xf32>
      tpu.vector_store %arg7[%c0_20, %c0_21], %27 {strides = array<i32>} : memref<2x64xf32, #tpu.memory_space<vmem>>, vector<2x64xf32>,
    } else {
    }
    %c0_13 = arith.constant 0 : index
    %c0_14 = arith.constant 0 : index
    %18 = vector.load %arg7[%c0_13, %c0_14] : memref<2x64xf32, #tpu.memory_space<vmem>>, vector<2x64xf32>
    %cst_15 = arith.constant dense<0.000000e+00> : vector<64xf32>
    %19 = vector.multi_reduction <add>, %13, %cst_15 [0] : vector<48x64xf32> to vector<64xf32>
    %20 = vector.shape_cast %19 : vector<64xf32> to vector<1x64xf32>
    %21 = arith.mulf %13, %13 : vector<48x64xf32>
    %cst_16 = arith.constant dense<0.000000e+00> : vector<64xf32>
    %22 = vector.multi_reduction <add>, %21, %cst_16 [0] : vector<48x64xf32> to vector<64xf32>
    %23 = vector.shape_cast %22 : vector<64xf32> to vector<1x64xf32>
    %24 = tpu.concatenate %20, %23 in 0 : vector<1x64xf32>, vector<1x64xf32> -> vector<2x64xf32>
    %25 = arith.addf %18, %24 : vector<2x64xf32>
    %c0_17 = arith.constant 0 : index
    %c0_18 = arith.constant 0 : index
    %26 = vector.load %arg7[%c0_17, %c0_18] : memref<2x64xf32, #tpu.memory_space<vmem>>, vector<2x64xf32>
    tpu.vector_store %arg7[%c0_17, %c0_18], %25 {strides = array<i32>} : memref<2x64xf32, #tpu.memory_space<vmem>>, vector<2x64xf32>,
    return
  }
  func.func @transform_0(%arg0: i32) -> (i32, i32) {
    %c0_i32 = arith.constant 0 : i32
    %c0_i32_0 = arith.constant 0 : i32
    return %arg0, %c0_i32 : i32, i32
  }
  func.func @transform_1(%arg0: i32) -> (i32, i32) {
    %c0_i32 = arith.constant 0 : i32
    %c0_i32_0 = arith.constant 0 : i32
    %c0_i32_1 = arith.constant 0 : i32
    return %c0_i32, %c0_i32_0 : i32, i32
  }
  func.func @transform_2(%arg0: i32) -> (i32, i32) {
    %c0_i32 = arith.constant 0 : i32
    %c0_i32_0 = arith.constant 0 : i32
    %c0_i32_1 = arith.constant 0 : i32
    return %c0_i32, %c0_i32_0 : i32, i32
  }
  func.func @transform_3(%arg0: i32) -> (i32, i32) {
    %c0_i32 = arith.constant 0 : i32
    %c0_i32_0 = arith.constant 0 : i32
    %c0_i32_1 = arith.constant 0 : i32
    return %c0_i32, %c0_i32_0 : i32, i32
  }
  func.func @transform_4(%arg0: i32) -> (i32, i32) {
    %c0_i32 = arith.constant 0 : i32
    %c0_i32_0 = arith.constant 0 : i32
    %c0_i32_1 = arith.constant 0 : i32
    return %c0_i32, %c0_i32_0 : i32, i32
  }
  func.func @transform_5(%arg0: i32) -> (i32, i32) {
    %c0_i32 = arith.constant 0 : i32
    %c0_i32_0 = arith.constant 0 : i32
    return %arg0, %c0_i32 : i32, i32
  }
  func.func @transform_6(%arg0: i32) -> (i32, i32) {
    %c0_i32 = arith.constant 0 : i32
    %c0_i32_0 = arith.constant 0 : i32
    %c0_i32_1 = arith.constant 0 : i32
    return %c0_i32, %c0_i32_0 : i32, i32
  }
}

module attributes {stable_mosaic.version = 11 : i64} {
  func.func @_td_pool_kernel(%arg0: i32, %arg1: memref<8x256xf32, #tpu.memory_space<vmem>>, %arg2: memref<1x64xf32, #tpu.memory_space<vmem>>, %arg3: memref<1x64xf32, #tpu.memory_space<vmem>>, %arg4: memref<8x64xf32, #tpu.memory_space<vmem>>) attributes {dimension_semantics = [#tpu.dimension_semantics<parallel>], iteration_bounds = array<i64: 3>, scalar_prefetch = 0 : i64, scratch_operands = 0 : i64, tpu.core_type = #tpu.core_type<tc>, window_params = [{transform_indices = @transform_0, window_bounds = array<i64: 8, 256>}, {pipeline_mode = #tpu.pipeline_mode<synchronous>, transform_indices = @transform_1, window_bounds = array<i64: 1, 64>}, {pipeline_mode = #tpu.pipeline_mode<synchronous>, transform_indices = @transform_2, window_bounds = array<i64: 1, 64>}, {transform_indices = @transform_3, window_bounds = array<i64: 8, 64>}]} {
    %c0 = arith.constant 0 : index
    %c0_0 = arith.constant 0 : index
    %0 = vector.load %arg1[%c0, %c0_0] : memref<8x256xf32, #tpu.memory_space<vmem>>, vector<8x256xf32>
    %c0_1 = arith.constant 0 : index
    %c0_2 = arith.constant 0 : index
    %1 = vector.load %arg2[%c0_1, %c0_2] : memref<1x64xf32, #tpu.memory_space<vmem>>, vector<1x64xf32>
    %c0_3 = arith.constant 0 : index
    %c0_4 = arith.constant 0 : index
    %2 = vector.load %arg3[%c0_3, %c0_4] : memref<1x64xf32, #tpu.memory_space<vmem>>, vector<1x64xf32>
    %3 = vector.extract_strided_slice %0 {offsets = [0, 0], sizes = [8, 64], strides = [1, 1]} : vector<8x256xf32> to vector<8x64xf32>
    %4 = vector.broadcast %1 : vector<1x64xf32> to vector<8x64xf32>
    %5 = arith.mulf %3, %4 : vector<8x64xf32>
    %6 = vector.broadcast %2 : vector<1x64xf32> to vector<8x64xf32>
    %7 = arith.addf %5, %6 : vector<8x64xf32>
    %cst = arith.constant 0.000000e+00 : f32
    %8 = vector.broadcast %cst : f32 to vector<8x64xf32>
    %9 = arith.maximumf %7, %8 : vector<8x64xf32>
    %10 = vector.extract_strided_slice %0 {offsets = [0, 64], sizes = [8, 64], strides = [1, 1]} : vector<8x256xf32> to vector<8x64xf32>
    %11 = vector.broadcast %1 : vector<1x64xf32> to vector<8x64xf32>
    %12 = arith.mulf %10, %11 : vector<8x64xf32>
    %13 = vector.broadcast %2 : vector<1x64xf32> to vector<8x64xf32>
    %14 = arith.addf %12, %13 : vector<8x64xf32>
    %cst_5 = arith.constant 0.000000e+00 : f32
    %15 = vector.broadcast %cst_5 : f32 to vector<8x64xf32>
    %16 = arith.maximumf %14, %15 : vector<8x64xf32>
    %17 = arith.maximumf %9, %16 : vector<8x64xf32>
    %18 = vector.extract_strided_slice %0 {offsets = [0, 128], sizes = [8, 64], strides = [1, 1]} : vector<8x256xf32> to vector<8x64xf32>
    %19 = vector.broadcast %1 : vector<1x64xf32> to vector<8x64xf32>
    %20 = arith.mulf %18, %19 : vector<8x64xf32>
    %21 = vector.broadcast %2 : vector<1x64xf32> to vector<8x64xf32>
    %22 = arith.addf %20, %21 : vector<8x64xf32>
    %cst_6 = arith.constant 0.000000e+00 : f32
    %23 = vector.broadcast %cst_6 : f32 to vector<8x64xf32>
    %24 = arith.maximumf %22, %23 : vector<8x64xf32>
    %25 = arith.maximumf %17, %24 : vector<8x64xf32>
    %26 = vector.extract_strided_slice %0 {offsets = [0, 192], sizes = [8, 64], strides = [1, 1]} : vector<8x256xf32> to vector<8x64xf32>
    %27 = vector.broadcast %1 : vector<1x64xf32> to vector<8x64xf32>
    %28 = arith.mulf %26, %27 : vector<8x64xf32>
    %29 = vector.broadcast %2 : vector<1x64xf32> to vector<8x64xf32>
    %30 = arith.addf %28, %29 : vector<8x64xf32>
    %cst_7 = arith.constant 0.000000e+00 : f32
    %31 = vector.broadcast %cst_7 : f32 to vector<8x64xf32>
    %32 = arith.maximumf %30, %31 : vector<8x64xf32>
    %33 = arith.maximumf %25, %32 : vector<8x64xf32>
    %c0_8 = arith.constant 0 : index
    %c0_9 = arith.constant 0 : index
    %34 = vector.load %arg4[%c0_8, %c0_9] : memref<8x64xf32, #tpu.memory_space<vmem>>, vector<8x64xf32>
    tpu.vector_store %arg4[%c0_8, %c0_9], %33 {strides = array<i32>} : memref<8x64xf32, #tpu.memory_space<vmem>>, vector<8x64xf32>,
    return
  }
  func.func @transform_0(%arg0: i32) -> (i32, i32) {
    %c0_i32 = arith.constant 0 : i32
    %c0_i32_0 = arith.constant 0 : i32
    return %arg0, %c0_i32 : i32, i32
  }
  func.func @transform_1(%arg0: i32) -> (i32, i32) {
    %c0_i32 = arith.constant 0 : i32
    %c0_i32_0 = arith.constant 0 : i32
    %c0_i32_1 = arith.constant 0 : i32
    return %c0_i32, %c0_i32_0 : i32, i32
  }
  func.func @transform_2(%arg0: i32) -> (i32, i32) {
    %c0_i32 = arith.constant 0 : i32
    %c0_i32_0 = arith.constant 0 : i32
    %c0_i32_1 = arith.constant 0 : i32
    return %c0_i32, %c0_i32_0 : i32, i32
  }
  func.func @transform_3(%arg0: i32) -> (i32, i32) {
    %c0_i32 = arith.constant 0 : i32
    %c0_i32_0 = arith.constant 0 : i32
    return %arg0, %c0_i32 : i32, i32
  }
}

module attributes {stable_mosaic.version = 11 : i64} {
  func.func @_fc1_qkv_kernel(%arg0: i32, %arg1: memref<8x64xf32, #tpu.memory_space<vmem>>, %arg2: memref<64x32xf32, #tpu.memory_space<vmem>>, %arg3: memref<1x32xf32, #tpu.memory_space<vmem>>, %arg4: memref<32x128xf32, #tpu.memory_space<vmem>>, %arg5: memref<8x128xf32, #tpu.memory_space<vmem>>) attributes {dimension_semantics = [#tpu.dimension_semantics<parallel>], iteration_bounds = array<i64: 3>, scalar_prefetch = 0 : i64, scratch_operands = 0 : i64, tpu.core_type = #tpu.core_type<tc>, window_params = [{transform_indices = @transform_0, window_bounds = array<i64: 8, 64>}, {pipeline_mode = #tpu.pipeline_mode<synchronous>, transform_indices = @transform_1, window_bounds = array<i64: 64, 32>}, {pipeline_mode = #tpu.pipeline_mode<synchronous>, transform_indices = @transform_2, window_bounds = array<i64: 1, 32>}, {pipeline_mode = #tpu.pipeline_mode<synchronous>, transform_indices = @transform_3, window_bounds = array<i64: 32, 128>}, {transform_indices = @transform_4, window_bounds = array<i64: 8, 128>}]} {
    %c0 = arith.constant 0 : index
    %c0_0 = arith.constant 0 : index
    %0 = vector.load %arg1[%c0, %c0_0] : memref<8x64xf32, #tpu.memory_space<vmem>>, vector<8x64xf32>
    %c0_1 = arith.constant 0 : index
    %c0_2 = arith.constant 0 : index
    %1 = vector.load %arg2[%c0_1, %c0_2] : memref<64x32xf32, #tpu.memory_space<vmem>>, vector<64x32xf32>
    %cst = arith.constant dense<0.000000e+00> : vector<8x32xf32>
    %2 = tpu.matmul %0, %1, %cst {dimension_numbers = #tpu.dot_dimension_numbers<[1], [0], [0], [1], [0, 0, 1, 1], [], []>} : vector<8x64xf32>, vector<64x32xf32>, vector<8x32xf32> -> vector<8x32xf32>
    %c0_3 = arith.constant 0 : index
    %c0_4 = arith.constant 0 : index
    %3 = vector.load %arg3[%c0_3, %c0_4] : memref<1x32xf32, #tpu.memory_space<vmem>>, vector<1x32xf32>
    %4 = vector.broadcast %3 : vector<1x32xf32> to vector<8x32xf32>
    %5 = arith.addf %2, %4 : vector<8x32xf32>
    %c0_5 = arith.constant 0 : index
    %c0_6 = arith.constant 0 : index
    %6 = vector.load %arg4[%c0_5, %c0_6] : memref<32x128xf32, #tpu.memory_space<vmem>>, vector<32x128xf32>
    %cst_7 = arith.constant dense<0.000000e+00> : vector<8x128xf32>
    %7 = tpu.matmul %5, %6, %cst_7 {dimension_numbers = #tpu.dot_dimension_numbers<[1], [0], [0], [1], [0, 0, 1, 1], [], []>} : vector<8x32xf32>, vector<32x128xf32>, vector<8x128xf32> -> vector<8x128xf32>
    %c0_8 = arith.constant 0 : index
    %c0_9 = arith.constant 0 : index
    %8 = vector.load %arg5[%c0_8, %c0_9] : memref<8x128xf32, #tpu.memory_space<vmem>>, vector<8x128xf32>
    tpu.vector_store %arg5[%c0_8, %c0_9], %7 {strides = array<i32>} : memref<8x128xf32, #tpu.memory_space<vmem>>, vector<8x128xf32>,
    return
  }
  func.func @transform_0(%arg0: i32) -> (i32, i32) {
    %c0_i32 = arith.constant 0 : i32
    %c0_i32_0 = arith.constant 0 : i32
    return %arg0, %c0_i32 : i32, i32
  }
  func.func @transform_1(%arg0: i32) -> (i32, i32) {
    %c0_i32 = arith.constant 0 : i32
    %c0_i32_0 = arith.constant 0 : i32
    %c0_i32_1 = arith.constant 0 : i32
    return %c0_i32, %c0_i32_0 : i32, i32
  }
  func.func @transform_2(%arg0: i32) -> (i32, i32) {
    %c0_i32 = arith.constant 0 : i32
    %c0_i32_0 = arith.constant 0 : i32
    %c0_i32_1 = arith.constant 0 : i32
    return %c0_i32, %c0_i32_0 : i32, i32
  }
  func.func @transform_3(%arg0: i32) -> (i32, i32) {
    %c0_i32 = arith.constant 0 : i32
    %c0_i32_0 = arith.constant 0 : i32
    %c0_i32_1 = arith.constant 0 : i32
    return %c0_i32, %c0_i32_0 : i32, i32
  }
  func.func @transform_4(%arg0: i32) -> (i32, i32) {
    %c0_i32 = arith.constant 0 : i32
    %c0_i32_0 = arith.constant 0 : i32
    return %arg0, %c0_i32 : i32, i32
  }
}

module attributes {stable_mosaic.version = 11 : i64} {
  func.func @_point_attn_kernel(%arg0: i32, %arg1: memref<8x32xf32, #tpu.memory_space<vmem>>, %arg2: memref<8x128xf32, #tpu.memory_space<vmem>>, %arg3: memref<8x128xf32, #tpu.memory_space<vmem>>, %arg4: memref<8x128xf32, #tpu.memory_space<vmem>>, %arg5: memref<8x64xf32, #tpu.memory_space<vmem>>, %arg6: memref<128x128xf32, #tpu.memory_space<vmem>>, %arg7: memref<1x128xf32, #tpu.memory_space<vmem>>, %arg8: memref<128x128xf32, #tpu.memory_space<vmem>>, %arg9: memref<1x128xf32, #tpu.memory_space<vmem>>, %arg10: memref<32x64xf32, #tpu.memory_space<vmem>>, %arg11: memref<1x64xf32, #tpu.memory_space<vmem>>, %arg12: memref<8x64xf32, #tpu.memory_space<vmem>>) attributes {dimension_semantics = [#tpu.dimension_semantics<parallel>], iteration_bounds = array<i64: 3>, scalar_prefetch = 0 : i64, scratch_operands = 0 : i64, tpu.core_type = #tpu.core_type<tc>, window_params = [{transform_indices = @transform_0, window_bounds = array<i64: 8, 32>}, {transform_indices = @transform_1, window_bounds = array<i64: 8, 128>}, {transform_indices = @transform_2, window_bounds = array<i64: 8, 128>}, {transform_indices = @transform_3, window_bounds = array<i64: 8, 128>}, {transform_indices = @transform_4, window_bounds = array<i64: 8, 64>}, {pipeline_mode = #tpu.pipeline_mode<synchronous>, transform_indices = @transform_5, window_bounds = array<i64: 128, 128>}, {pipeline_mode = #tpu.pipeline_mode<synchronous>, transform_indices = @transform_6, window_bounds = array<i64: 1, 128>}, {pipeline_mode = #tpu.pipeline_mode<synchronous>, transform_indices = @transform_7, window_bounds = array<i64: 128, 128>}, {pipeline_mode = #tpu.pipeline_mode<synchronous>, transform_indices = @transform_8, window_bounds = array<i64: 1, 128>}, {pipeline_mode = #tpu.pipeline_mode<synchronous>, transform_indices = @transform_9, window_bounds = array<i64: 32, 64>}, {pipeline_mode = #tpu.pipeline_mode<synchronous>, transform_indices = @transform_10, window_bounds = array<i64: 1, 64>}, {transform_indices = @transform_11, window_bounds = array<i64: 8, 64>}]} {
    %c0 = arith.constant 0 : index
    %c0_0 = arith.constant 0 : index
    %0 = vector.load %arg1[%c0, %c0_0] : memref<8x32xf32, #tpu.memory_space<vmem>>, vector<8x32xf32>
    %1 = tpu.concatenate %0, %0, %0, %0 in 1 : vector<8x32xf32>, vector<8x32xf32>, vector<8x32xf32>, vector<8x32xf32> -> vector<8x128xf32>
    %c0_1 = arith.constant 0 : index
    %c0_2 = arith.constant 0 : index
    %2 = vector.load %arg4[%c0_1, %c0_2] : memref<8x128xf32, #tpu.memory_space<vmem>>, vector<8x128xf32>
    %c0_3 = arith.constant 0 : index
    %c0_4 = arith.constant 0 : index
    %3 = vector.load %arg2[%c0_3, %c0_4] : memref<8x128xf32, #tpu.memory_space<vmem>>, vector<8x128xf32>
    %4 = arith.subf %1, %3 : vector<8x128xf32>
    %5 = arith.addf %4, %2 : vector<8x128xf32>
    %c0_5 = arith.constant 0 : index
    %c0_6 = arith.constant 0 : index
    %6 = vector.load %arg6[%c0_5, %c0_6] : memref<128x128xf32, #tpu.memory_space<vmem>>, vector<128x128xf32>
    %cst = arith.constant dense<0.000000e+00> : vector<8x128xf32>
    %7 = tpu.matmul %5, %6, %cst {dimension_numbers = #tpu.dot_dimension_numbers<[1], [0], [0], [1], [0, 0, 1, 1], [], []>} : vector<8x128xf32>, vector<128x128xf32>, vector<8x128xf32> -> vector<8x128xf32>
    %c0_7 = arith.constant 0 : index
    %c0_8 = arith.constant 0 : index
    %8 = vector.load %arg7[%c0_7, %c0_8] : memref<1x128xf32, #tpu.memory_space<vmem>>, vector<1x128xf32>
    %9 = vector.broadcast %8 : vector<1x128xf32> to vector<8x128xf32>
    %10 = arith.addf %7, %9 : vector<8x128xf32>
    %cst_9 = arith.constant 0.000000e+00 : f32
    %11 = vector.broadcast %cst_9 : f32 to vector<8x128xf32>
    %12 = arith.maximumf %10, %11 : vector<8x128xf32>
    %c0_10 = arith.constant 0 : index
    %c0_11 = arith.constant 0 : index
    %13 = vector.load %arg8[%c0_10, %c0_11] : memref<128x128xf32, #tpu.memory_space<vmem>>, vector<128x128xf32>
    %cst_12 = arith.constant dense<0.000000e+00> : vector<8x128xf32>
    %14 = tpu.matmul %12, %13, %cst_12 {dimension_numbers = #tpu.dot_dimension_numbers<[1], [0], [0], [1], [0, 0, 1, 1], [], []>} : vector<8x128xf32>, vector<128x128xf32>, vector<8x128xf32> -> vector<8x128xf32>
    %c0_13 = arith.constant 0 : index
    %c0_14 = arith.constant 0 : index
    %15 = vector.load %arg9[%c0_13, %c0_14] : memref<1x128xf32, #tpu.memory_space<vmem>>, vector<1x128xf32>
    %16 = vector.broadcast %15 : vector<1x128xf32> to vector<8x128xf32>
    %17 = arith.addf %14, %16 : vector<8x128xf32>
    %cst_15 = arith.constant 0.176776692 : f32
    %18 = vector.broadcast %cst_15 : f32 to vector<8x128xf32>
    %19 = arith.mulf %17, %18 : vector<8x128xf32>
    %20 = vector.extract_strided_slice %19 {offsets = [0, 0], sizes = [8, 32], strides = [1, 1]} : vector<8x128xf32> to vector<8x32xf32>
    %21 = vector.extract_strided_slice %19 {offsets = [0, 32], sizes = [8, 32], strides = [1, 1]} : vector<8x128xf32> to vector<8x32xf32>
    %22 = arith.maximumf %20, %21 : vector<8x32xf32>
    %23 = vector.extract_strided_slice %19 {offsets = [0, 64], sizes = [8, 32], strides = [1, 1]} : vector<8x128xf32> to vector<8x32xf32>
    %24 = arith.maximumf %22, %23 : vector<8x32xf32>
    %25 = vector.extract_strided_slice %19 {offsets = [0, 96], sizes = [8, 32], strides = [1, 1]} : vector<8x128xf32> to vector<8x32xf32>
    %26 = arith.maximumf %24, %25 : vector<8x32xf32>
    %27 = tpu.concatenate %26, %26, %26, %26 in 1 : vector<8x32xf32>, vector<8x32xf32>, vector<8x32xf32>, vector<8x32xf32> -> vector<8x128xf32>
    %28 = arith.subf %19, %27 : vector<8x128xf32>
    %29 = math.exp %28 : vector<8x128xf32>
    %30 = vector.extract_strided_slice %29 {offsets = [0, 0], sizes = [8, 32], strides = [1, 1]} : vector<8x128xf32> to vector<8x32xf32>
    %31 = vector.extract_strided_slice %29 {offsets = [0, 32], sizes = [8, 32], strides = [1, 1]} : vector<8x128xf32> to vector<8x32xf32>
    %32 = arith.addf %30, %31 : vector<8x32xf32>
    %33 = vector.extract_strided_slice %29 {offsets = [0, 64], sizes = [8, 32], strides = [1, 1]} : vector<8x128xf32> to vector<8x32xf32>
    %34 = arith.addf %32, %33 : vector<8x32xf32>
    %35 = vector.extract_strided_slice %29 {offsets = [0, 96], sizes = [8, 32], strides = [1, 1]} : vector<8x128xf32> to vector<8x32xf32>
    %36 = arith.addf %34, %35 : vector<8x32xf32>
    %37 = tpu.reciprocal %36 {approx = true} : vector<8x32xf32> -> vector<8x32xf32>
    %38 = tpu.concatenate %37, %37, %37, %37 in 1 : vector<8x32xf32>, vector<8x32xf32>, vector<8x32xf32>, vector<8x32xf32> -> vector<8x128xf32>
    %39 = arith.mulf %29, %38 : vector<8x128xf32>
    %c0_16 = arith.constant 0 : index
    %c0_17 = arith.constant 0 : index
    %40 = vector.load %arg3[%c0_16, %c0_17] : memref<8x128xf32, #tpu.memory_space<vmem>>, vector<8x128xf32>
    %41 = arith.addf %40, %2 : vector<8x128xf32>
    %42 = arith.mulf %39, %41 : vector<8x128xf32>
    %43 = vector.extract_strided_slice %42 {offsets = [0, 0], sizes = [8, 32], strides = [1, 1]} : vector<8x128xf32> to vector<8x32xf32>
    %44 = vector.extract_strided_slice %42 {offsets = [0, 32], sizes = [8, 32], strides = [1, 1]} : vector<8x128xf32> to vector<8x32xf32>
    %45 = arith.addf %43, %44 : vector<8x32xf32>
    %46 = vector.extract_strided_slice %42 {offsets = [0, 64], sizes = [8, 32], strides = [1, 1]} : vector<8x128xf32> to vector<8x32xf32>
    %47 = arith.addf %45, %46 : vector<8x32xf32>
    %48 = vector.extract_strided_slice %42 {offsets = [0, 96], sizes = [8, 32], strides = [1, 1]} : vector<8x128xf32> to vector<8x32xf32>
    %49 = arith.addf %47, %48 : vector<8x32xf32>
    %c0_18 = arith.constant 0 : index
    %c0_19 = arith.constant 0 : index
    %50 = vector.load %arg10[%c0_18, %c0_19] : memref<32x64xf32, #tpu.memory_space<vmem>>, vector<32x64xf32>
    %cst_20 = arith.constant dense<0.000000e+00> : vector<8x64xf32>
    %51 = tpu.matmul %49, %50, %cst_20 {dimension_numbers = #tpu.dot_dimension_numbers<[1], [0], [0], [1], [0, 0, 1, 1], [], []>} : vector<8x32xf32>, vector<32x64xf32>, vector<8x64xf32> -> vector<8x64xf32>
    %c0_21 = arith.constant 0 : index
    %c0_22 = arith.constant 0 : index
    %52 = vector.load %arg11[%c0_21, %c0_22] : memref<1x64xf32, #tpu.memory_space<vmem>>, vector<1x64xf32>
    %53 = vector.broadcast %52 : vector<1x64xf32> to vector<8x64xf32>
    %54 = arith.addf %51, %53 : vector<8x64xf32>
    %c0_23 = arith.constant 0 : index
    %c0_24 = arith.constant 0 : index
    %55 = vector.load %arg5[%c0_23, %c0_24] : memref<8x64xf32, #tpu.memory_space<vmem>>, vector<8x64xf32>
    %56 = arith.addf %54, %55 : vector<8x64xf32>
    %c0_25 = arith.constant 0 : index
    %c0_26 = arith.constant 0 : index
    %57 = vector.load %arg12[%c0_25, %c0_26] : memref<8x64xf32, #tpu.memory_space<vmem>>, vector<8x64xf32>
    tpu.vector_store %arg12[%c0_25, %c0_26], %56 {strides = array<i32>} : memref<8x64xf32, #tpu.memory_space<vmem>>, vector<8x64xf32>,
    return
  }
  func.func @transform_0(%arg0: i32) -> (i32, i32) {
    %c0_i32 = arith.constant 0 : i32
    %c0_i32_0 = arith.constant 0 : i32
    return %arg0, %c0_i32 : i32, i32
  }
  func.func @transform_1(%arg0: i32) -> (i32, i32) {
    %c0_i32 = arith.constant 0 : i32
    %c0_i32_0 = arith.constant 0 : i32
    return %arg0, %c0_i32 : i32, i32
  }
  func.func @transform_2(%arg0: i32) -> (i32, i32) {
    %c0_i32 = arith.constant 0 : i32
    %c0_i32_0 = arith.constant 0 : i32
    return %arg0, %c0_i32 : i32, i32
  }
  func.func @transform_3(%arg0: i32) -> (i32, i32) {
    %c0_i32 = arith.constant 0 : i32
    %c0_i32_0 = arith.constant 0 : i32
    return %arg0, %c0_i32 : i32, i32
  }
  func.func @transform_4(%arg0: i32) -> (i32, i32) {
    %c0_i32 = arith.constant 0 : i32
    %c0_i32_0 = arith.constant 0 : i32
    return %arg0, %c0_i32 : i32, i32
  }
  func.func @transform_5(%arg0: i32) -> (i32, i32) {
    %c0_i32 = arith.constant 0 : i32
    %c0_i32_0 = arith.constant 0 : i32
    %c0_i32_1 = arith.constant 0 : i32
    return %c0_i32, %c0_i32_0 : i32, i32
  }
  func.func @transform_6(%arg0: i32) -> (i32, i32) {
    %c0_i32 = arith.constant 0 : i32
    %c0_i32_0 = arith.constant 0 : i32
    %c0_i32_1 = arith.constant 0 : i32
    return %c0_i32, %c0_i32_0 : i32, i32
  }
  func.func @transform_7(%arg0: i32) -> (i32, i32) {
    %c0_i32 = arith.constant 0 : i32
    %c0_i32_0 = arith.constant 0 : i32
    %c0_i32_1 = arith.constant 0 : i32
    return %c0_i32, %c0_i32_0 : i32, i32
  }
  func.func @transform_8(%arg0: i32) -> (i32, i32) {
    %c0_i32 = arith.constant 0 : i32
    %c0_i32_0 = arith.constant 0 : i32
    %c0_i32_1 = arith.constant 0 : i32
    return %c0_i32, %c0_i32_0 : i32, i32
  }
  func.func @transform_9(%arg0: i32) -> (i32, i32) {
    %c0_i32 = arith.constant 0 : i32
    %c0_i32_0 = arith.constant 0 : i32
    %c0_i32_1 = arith.constant 0 : i32
    return %c0_i32, %c0_i32_0 : i32, i32
  }
  func.func @transform_10(%arg0: i32) -> (i32, i32) {
    %c0_i32 = arith.constant 0 : i32
    %c0_i32_0 = arith.constant 0 : i32
    %c0_i32_1 = arith.constant 0 : i32
    return %c0_i32, %c0_i32_0 : i32, i32
  }
  func.func @transform_11(%arg0: i32) -> (i32, i32) {
    %c0_i32 = arith.constant 0 : i32
    %c0_i32_0 = arith.constant 0 : i32
    return %arg0, %c0_i32 : i32, i32
  }
}

module attributes {stable_mosaic.version = 11 : i64} {
  func.func @_mlp2_kernel(%arg0: i32, %arg1: memref<48x3xf32, #tpu.memory_space<vmem>>, %arg2: memref<3x32xf32, #tpu.memory_space<vmem>>, %arg3: memref<1x32xf32, #tpu.memory_space<vmem>>, %arg4: memref<32x32xf32, #tpu.memory_space<vmem>>, %arg5: memref<1x32xf32, #tpu.memory_space<vmem>>, %arg6: memref<48x32xf32, #tpu.memory_space<vmem>>) attributes {dimension_semantics = [#tpu.dimension_semantics<parallel>], iteration_bounds = array<i64: 2>, scalar_prefetch = 0 : i64, scratch_operands = 0 : i64, tpu.core_type = #tpu.core_type<tc>, window_params = [{transform_indices = @transform_0, window_bounds = array<i64: 48, 3>}, {pipeline_mode = #tpu.pipeline_mode<synchronous>, transform_indices = @transform_1, window_bounds = array<i64: 3, 32>}, {pipeline_mode = #tpu.pipeline_mode<synchronous>, transform_indices = @transform_2, window_bounds = array<i64: 1, 32>}, {pipeline_mode = #tpu.pipeline_mode<synchronous>, transform_indices = @transform_3, window_bounds = array<i64: 32, 32>}, {pipeline_mode = #tpu.pipeline_mode<synchronous>, transform_indices = @transform_4, window_bounds = array<i64: 1, 32>}, {transform_indices = @transform_5, window_bounds = array<i64: 48, 32>}]} {
    %c0 = arith.constant 0 : index
    %c0_0 = arith.constant 0 : index
    %0 = vector.load %arg1[%c0, %c0_0] : memref<48x3xf32, #tpu.memory_space<vmem>>, vector<48x3xf32>
    %c0_1 = arith.constant 0 : index
    %c0_2 = arith.constant 0 : index
    %1 = vector.load %arg2[%c0_1, %c0_2] : memref<3x32xf32, #tpu.memory_space<vmem>>, vector<3x32xf32>
    %cst = arith.constant dense<0.000000e+00> : vector<48x32xf32>
    %2 = tpu.matmul %0, %1, %cst {dimension_numbers = #tpu.dot_dimension_numbers<[1], [0], [0], [1], [0, 0, 1, 1], [], []>} : vector<48x3xf32>, vector<3x32xf32>, vector<48x32xf32> -> vector<48x32xf32>
    %c0_3 = arith.constant 0 : index
    %c0_4 = arith.constant 0 : index
    %3 = vector.load %arg3[%c0_3, %c0_4] : memref<1x32xf32, #tpu.memory_space<vmem>>, vector<1x32xf32>
    %4 = vector.broadcast %3 : vector<1x32xf32> to vector<48x32xf32>
    %5 = arith.addf %2, %4 : vector<48x32xf32>
    %cst_5 = arith.constant 0.000000e+00 : f32
    %6 = vector.broadcast %cst_5 : f32 to vector<48x32xf32>
    %7 = arith.maximumf %5, %6 : vector<48x32xf32>
    %c0_6 = arith.constant 0 : index
    %c0_7 = arith.constant 0 : index
    %8 = vector.load %arg4[%c0_6, %c0_7] : memref<32x32xf32, #tpu.memory_space<vmem>>, vector<32x32xf32>
    %cst_8 = arith.constant dense<0.000000e+00> : vector<48x32xf32>
    %9 = tpu.matmul %7, %8, %cst_8 {dimension_numbers = #tpu.dot_dimension_numbers<[1], [0], [0], [1], [0, 0, 1, 1], [], []>} : vector<48x32xf32>, vector<32x32xf32>, vector<48x32xf32> -> vector<48x32xf32>
    %c0_9 = arith.constant 0 : index
    %c0_10 = arith.constant 0 : index
    %10 = vector.load %arg5[%c0_9, %c0_10] : memref<1x32xf32, #tpu.memory_space<vmem>>, vector<1x32xf32>
    %11 = vector.broadcast %10 : vector<1x32xf32> to vector<48x32xf32>
    %12 = arith.addf %9, %11 : vector<48x32xf32>
    %c0_11 = arith.constant 0 : index
    %c0_12 = arith.constant 0 : index
    %13 = vector.load %arg6[%c0_11, %c0_12] : memref<48x32xf32, #tpu.memory_space<vmem>>, vector<48x32xf32>
    tpu.vector_store %arg6[%c0_11, %c0_12], %12 {strides = array<i32>} : memref<48x32xf32, #tpu.memory_space<vmem>>, vector<48x32xf32>,
    return
  }
  func.func @transform_0(%arg0: i32) -> (i32, i32) {
    %c0_i32 = arith.constant 0 : i32
    %c0_i32_0 = arith.constant 0 : i32
    return %arg0, %c0_i32 : i32, i32
  }
  func.func @transform_1(%arg0: i32) -> (i32, i32) {
    %c0_i32 = arith.constant 0 : i32
    %c0_i32_0 = arith.constant 0 : i32
    %c0_i32_1 = arith.constant 0 : i32
    return %c0_i32, %c0_i32_0 : i32, i32
  }
  func.func @transform_2(%arg0: i32) -> (i32, i32) {
    %c0_i32 = arith.constant 0 : i32
    %c0_i32_0 = arith.constant 0 : i32
    %c0_i32_1 = arith.constant 0 : i32
    return %c0_i32, %c0_i32_0 : i32, i32
  }
  func.func @transform_3(%arg0: i32) -> (i32, i32) {
    %c0_i32 = arith.constant 0 : i32
    %c0_i32_0 = arith.constant 0 : i32
    %c0_i32_1 = arith.constant 0 : i32
    return %c0_i32, %c0_i32_0 : i32, i32
  }
  func.func @transform_4(%arg0: i32) -> (i32, i32) {
    %c0_i32 = arith.constant 0 : i32
    %c0_i32_0 = arith.constant 0 : i32
    %c0_i32_1 = arith.constant 0 : i32
    return %c0_i32, %c0_i32_0 : i32, i32
  }
  func.func @transform_5(%arg0: i32) -> (i32, i32) {
    %c0_i32 = arith.constant 0 : i32
    %c0_i32_0 = arith.constant 0 : i32
    return %arg0, %c0_i32 : i32, i32
  }
}

module attributes {stable_mosaic.version = 11 : i64} {
  func.func @_td_stage_kernel(%arg0: i32, %arg1: memref<16x67xf32, #tpu.memory_space<vmem>>, %arg2: memref<1x67xf32, #tpu.memory_space<vmem>>, %arg3: memref<1x67xf32, #tpu.memory_space<vmem>>, %arg4: memref<67x128xf32, #tpu.memory_space<vmem>>, %arg5: memref<1x128xf32, #tpu.memory_space<vmem>>, %arg6: memref<16x128xf32, #tpu.memory_space<vmem>>, %arg7: memref<2x128xf32, #tpu.memory_space<vmem>>) attributes {dimension_semantics = [#tpu.dimension_semantics<arbitrary>], iteration_bounds = array<i64: 2>, scalar_prefetch = 0 : i64, scratch_operands = 0 : i64, tpu.core_type = #tpu.core_type<tc>, window_params = [{transform_indices = @transform_0, window_bounds = array<i64: 16, 67>}, {pipeline_mode = #tpu.pipeline_mode<synchronous>, transform_indices = @transform_1, window_bounds = array<i64: 1, 67>}, {pipeline_mode = #tpu.pipeline_mode<synchronous>, transform_indices = @transform_2, window_bounds = array<i64: 1, 67>}, {pipeline_mode = #tpu.pipeline_mode<synchronous>, transform_indices = @transform_3, window_bounds = array<i64: 67, 128>}, {pipeline_mode = #tpu.pipeline_mode<synchronous>, transform_indices = @transform_4, window_bounds = array<i64: 1, 128>}, {transform_indices = @transform_5, window_bounds = array<i64: 16, 128>}, {pipeline_mode = #tpu.pipeline_mode<synchronous>, transform_indices = @transform_6, window_bounds = array<i64: 2, 128>}]} {
    %c0 = arith.constant 0 : index
    %c0_0 = arith.constant 0 : index
    %0 = vector.load %arg1[%c0, %c0_0] : memref<16x67xf32, #tpu.memory_space<vmem>>, vector<16x67xf32>
    %c0_1 = arith.constant 0 : index
    %c0_2 = arith.constant 0 : index
    %1 = vector.load %arg4[%c0_1, %c0_2] : memref<67x128xf32, #tpu.memory_space<vmem>>, vector<67x128xf32>
    %cst = arith.constant dense<0.000000e+00> : vector<16x128xf32>
    %2 = tpu.matmul %0, %1, %cst {dimension_numbers = #tpu.dot_dimension_numbers<[1], [0], [0], [1], [0, 0, 1, 1], [], []>} : vector<16x67xf32>, vector<67x128xf32>, vector<16x128xf32> -> vector<16x128xf32>
    %c0_3 = arith.constant 0 : index
    %c0_4 = arith.constant 0 : index
    %3 = vector.load %arg5[%c0_3, %c0_4] : memref<1x128xf32, #tpu.memory_space<vmem>>, vector<1x128xf32>
    %4 = vector.broadcast %3 : vector<1x128xf32> to vector<16x128xf32>
    %5 = arith.addf %2, %4 : vector<16x128xf32>
    %c0_5 = arith.constant 0 : index
    %c0_6 = arith.constant 0 : index
    %6 = vector.load %arg6[%c0_5, %c0_6] : memref<16x128xf32, #tpu.memory_space<vmem>>, vector<16x128xf32>
    tpu.vector_store %arg6[%c0_5, %c0_6], %5 {strides = array<i32>} : memref<16x128xf32, #tpu.memory_space<vmem>>, vector<16x128xf32>,
    %c0_i32 = arith.constant 0 : i32
    %7 = arith.cmpi eq, %arg0, %c0_i32 : i32
    %8 = arith.extui %7 : i1 to i32
    %c0_i32_7 = arith.constant 0 : i32
    %9 = arith.cmpi ne, %8, %c0_i32_7 : i32
    scf.if %9 {
      %cst_14 = arith.constant 0.000000e+00 : f32
      %19 = vector.broadcast %cst_14 : f32 to vector<2x128xf32>
      %c0_15 = arith.constant 0 : index
      %c0_16 = arith.constant 0 : index
      %20 = vector.load %arg7[%c0_15, %c0_16] : memref<2x128xf32, #tpu.memory_space<vmem>>, vector<2x128xf32>
      tpu.vector_store %arg7[%c0_15, %c0_16], %19 {strides = array<i32>} : memref<2x128xf32, #tpu.memory_space<vmem>>, vector<2x128xf32>,
    } else {
    }
    %c0_8 = arith.constant 0 : index
    %c0_9 = arith.constant 0 : index
    %10 = vector.load %arg7[%c0_8, %c0_9] : memref<2x128xf32, #tpu.memory_space<vmem>>, vector<2x128xf32>
    %cst_10 = arith.constant dense<0.000000e+00> : vector<128xf32>
    %11 = vector.multi_reduction <add>, %5, %cst_10 [0] : vector<16x128xf32> to vector<128xf32>
    %12 = vector.shape_cast %11 : vector<128xf32> to vector<1x128xf32>
    %13 = arith.mulf %5, %5 : vector<16x128xf32>
    %cst_11 = arith.constant dense<0.000000e+00> : vector<128xf32>
    %14 = vector.multi_reduction <add>, %13, %cst_11 [0] : vector<16x128xf32> to vector<128xf32>
    %15 = vector.shape_cast %14 : vector<128xf32> to vector<1x128xf32>
    %16 = tpu.concatenate %12, %15 in 0 : vector<1x128xf32>, vector<1x128xf32> -> vector<2x128xf32>
    %17 = arith.addf %10, %16 : vector<2x128xf32>
    %c0_12 = arith.constant 0 : index
    %c0_13 = arith.constant 0 : index
    %18 = vector.load %arg7[%c0_12, %c0_13] : memref<2x128xf32, #tpu.memory_space<vmem>>, vector<2x128xf32>
    tpu.vector_store %arg7[%c0_12, %c0_13], %17 {strides = array<i32>} : memref<2x128xf32, #tpu.memory_space<vmem>>, vector<2x128xf32>,
    return
  }
  func.func @transform_0(%arg0: i32) -> (i32, i32) {
    %c0_i32 = arith.constant 0 : i32
    %c0_i32_0 = arith.constant 0 : i32
    return %arg0, %c0_i32 : i32, i32
  }
  func.func @transform_1(%arg0: i32) -> (i32, i32) {
    %c0_i32 = arith.constant 0 : i32
    %c0_i32_0 = arith.constant 0 : i32
    %c0_i32_1 = arith.constant 0 : i32
    return %c0_i32, %c0_i32_0 : i32, i32
  }
  func.func @transform_2(%arg0: i32) -> (i32, i32) {
    %c0_i32 = arith.constant 0 : i32
    %c0_i32_0 = arith.constant 0 : i32
    %c0_i32_1 = arith.constant 0 : i32
    return %c0_i32, %c0_i32_0 : i32, i32
  }
  func.func @transform_3(%arg0: i32) -> (i32, i32) {
    %c0_i32 = arith.constant 0 : i32
    %c0_i32_0 = arith.constant 0 : i32
    %c0_i32_1 = arith.constant 0 : i32
    return %c0_i32, %c0_i32_0 : i32, i32
  }
  func.func @transform_4(%arg0: i32) -> (i32, i32) {
    %c0_i32 = arith.constant 0 : i32
    %c0_i32_0 = arith.constant 0 : i32
    %c0_i32_1 = arith.constant 0 : i32
    return %c0_i32, %c0_i32_0 : i32, i32
  }
  func.func @transform_5(%arg0: i32) -> (i32, i32) {
    %c0_i32 = arith.constant 0 : i32
    %c0_i32_0 = arith.constant 0 : i32
    return %arg0, %c0_i32 : i32, i32
  }
  func.func @transform_6(%arg0: i32) -> (i32, i32) {
    %c0_i32 = arith.constant 0 : i32
    %c0_i32_0 = arith.constant 0 : i32
    %c0_i32_1 = arith.constant 0 : i32
    return %c0_i32, %c0_i32_0 : i32, i32
  }
}

module attributes {stable_mosaic.version = 11 : i64} {
  func.func @_td_stage_kernel(%arg0: i32, %arg1: memref<16x128xf32, #tpu.memory_space<vmem>>, %arg2: memref<1x128xf32, #tpu.memory_space<vmem>>, %arg3: memref<1x128xf32, #tpu.memory_space<vmem>>, %arg4: memref<128x128xf32, #tpu.memory_space<vmem>>, %arg5: memref<1x128xf32, #tpu.memory_space<vmem>>, %arg6: memref<16x128xf32, #tpu.memory_space<vmem>>, %arg7: memref<2x128xf32, #tpu.memory_space<vmem>>) attributes {dimension_semantics = [#tpu.dimension_semantics<arbitrary>], iteration_bounds = array<i64: 2>, scalar_prefetch = 0 : i64, scratch_operands = 0 : i64, tpu.core_type = #tpu.core_type<tc>, window_params = [{transform_indices = @transform_0, window_bounds = array<i64: 16, 128>}, {pipeline_mode = #tpu.pipeline_mode<synchronous>, transform_indices = @transform_1, window_bounds = array<i64: 1, 128>}, {pipeline_mode = #tpu.pipeline_mode<synchronous>, transform_indices = @transform_2, window_bounds = array<i64: 1, 128>}, {pipeline_mode = #tpu.pipeline_mode<synchronous>, transform_indices = @transform_3, window_bounds = array<i64: 128, 128>}, {pipeline_mode = #tpu.pipeline_mode<synchronous>, transform_indices = @transform_4, window_bounds = array<i64: 1, 128>}, {transform_indices = @transform_5, window_bounds = array<i64: 16, 128>}, {pipeline_mode = #tpu.pipeline_mode<synchronous>, transform_indices = @transform_6, window_bounds = array<i64: 2, 128>}]} {
    %c0 = arith.constant 0 : index
    %c0_0 = arith.constant 0 : index
    %0 = vector.load %arg1[%c0, %c0_0] : memref<16x128xf32, #tpu.memory_space<vmem>>, vector<16x128xf32>
    %c0_1 = arith.constant 0 : index
    %c0_2 = arith.constant 0 : index
    %1 = vector.load %arg2[%c0_1, %c0_2] : memref<1x128xf32, #tpu.memory_space<vmem>>, vector<1x128xf32>
    %2 = vector.broadcast %1 : vector<1x128xf32> to vector<16x128xf32>
    %3 = arith.mulf %0, %2 : vector<16x128xf32>
    %c0_3 = arith.constant 0 : index
    %c0_4 = arith.constant 0 : index
    %4 = vector.load %arg3[%c0_3, %c0_4] : memref<1x128xf32, #tpu.memory_space<vmem>>, vector<1x128xf32>
    %5 = vector.broadcast %4 : vector<1x128xf32> to vector<16x128xf32>
    %6 = arith.addf %3, %5 : vector<16x128xf32>
    %cst = arith.constant 0.000000e+00 : f32
    %7 = vector.broadcast %cst : f32 to vector<16x128xf32>
    %8 = arith.maximumf %6, %7 : vector<16x128xf32>
    %c0_5 = arith.constant 0 : index
    %c0_6 = arith.constant 0 : index
    %9 = vector.load %arg4[%c0_5, %c0_6] : memref<128x128xf32, #tpu.memory_space<vmem>>, vector<128x128xf32>
    %cst_7 = arith.constant dense<0.000000e+00> : vector<16x128xf32>
    %10 = tpu.matmul %8, %9, %cst_7 {dimension_numbers = #tpu.dot_dimension_numbers<[1], [0], [0], [1], [0, 0, 1, 1], [], []>} : vector<16x128xf32>, vector<128x128xf32>, vector<16x128xf32> -> vector<16x128xf32>
    %c0_8 = arith.constant 0 : index
    %c0_9 = arith.constant 0 : index
    %11 = vector.load %arg5[%c0_8, %c0_9] : memref<1x128xf32, #tpu.memory_space<vmem>>, vector<1x128xf32>
    %12 = vector.broadcast %11 : vector<1x128xf32> to vector<16x128xf32>
    %13 = arith.addf %10, %12 : vector<16x128xf32>
    %c0_10 = arith.constant 0 : index
    %c0_11 = arith.constant 0 : index
    %14 = vector.load %arg6[%c0_10, %c0_11] : memref<16x128xf32, #tpu.memory_space<vmem>>, vector<16x128xf32>
    tpu.vector_store %arg6[%c0_10, %c0_11], %13 {strides = array<i32>} : memref<16x128xf32, #tpu.memory_space<vmem>>, vector<16x128xf32>,
    %c0_i32 = arith.constant 0 : i32
    %15 = arith.cmpi eq, %arg0, %c0_i32 : i32
    %16 = arith.extui %15 : i1 to i32
    %c0_i32_12 = arith.constant 0 : i32
    %17 = arith.cmpi ne, %16, %c0_i32_12 : i32
    scf.if %17 {
      %cst_19 = arith.constant 0.000000e+00 : f32
      %27 = vector.broadcast %cst_19 : f32 to vector<2x128xf32>
      %c0_20 = arith.constant 0 : index
      %c0_21 = arith.constant 0 : index
      %28 = vector.load %arg7[%c0_20, %c0_21] : memref<2x128xf32, #tpu.memory_space<vmem>>, vector<2x128xf32>
      tpu.vector_store %arg7[%c0_20, %c0_21], %27 {strides = array<i32>} : memref<2x128xf32, #tpu.memory_space<vmem>>, vector<2x128xf32>,
    } else {
    }
    %c0_13 = arith.constant 0 : index
    %c0_14 = arith.constant 0 : index
    %18 = vector.load %arg7[%c0_13, %c0_14] : memref<2x128xf32, #tpu.memory_space<vmem>>, vector<2x128xf32>
    %cst_15 = arith.constant dense<0.000000e+00> : vector<128xf32>
    %19 = vector.multi_reduction <add>, %13, %cst_15 [0] : vector<16x128xf32> to vector<128xf32>
    %20 = vector.shape_cast %19 : vector<128xf32> to vector<1x128xf32>
    %21 = arith.mulf %13, %13 : vector<16x128xf32>
    %cst_16 = arith.constant dense<0.000000e+00> : vector<128xf32>
    %22 = vector.multi_reduction <add>, %21, %cst_16 [0] : vector<16x128xf32> to vector<128xf32>
    %23 = vector.shape_cast %22 : vector<128xf32> to vector<1x128xf32>
    %24 = tpu.concatenate %20, %23 in 0 : vector<1x128xf32>, vector<1x128xf32> -> vector<2x128xf32>
    %25 = arith.addf %18, %24 : vector<2x128xf32>
    %c0_17 = arith.constant 0 : index
    %c0_18 = arith.constant 0 : index
    %26 = vector.load %arg7[%c0_17, %c0_18] : memref<2x128xf32, #tpu.memory_space<vmem>>, vector<2x128xf32>
    tpu.vector_store %arg7[%c0_17, %c0_18], %25 {strides = array<i32>} : memref<2x128xf32, #tpu.memory_space<vmem>>, vector<2x128xf32>,
    return
  }
  func.func @transform_0(%arg0: i32) -> (i32, i32) {
    %c0_i32 = arith.constant 0 : i32
    %c0_i32_0 = arith.constant 0 : i32
    return %arg0, %c0_i32 : i32, i32
  }
  func.func @transform_1(%arg0: i32) -> (i32, i32) {
    %c0_i32 = arith.constant 0 : i32
    %c0_i32_0 = arith.constant 0 : i32
    %c0_i32_1 = arith.constant 0 : i32
    return %c0_i32, %c0_i32_0 : i32, i32
  }
  func.func @transform_2(%arg0: i32) -> (i32, i32) {
    %c0_i32 = arith.constant 0 : i32
    %c0_i32_0 = arith.constant 0 : i32
    %c0_i32_1 = arith.constant 0 : i32
    return %c0_i32, %c0_i32_0 : i32, i32
  }
  func.func @transform_3(%arg0: i32) -> (i32, i32) {
    %c0_i32 = arith.constant 0 : i32
    %c0_i32_0 = arith.constant 0 : i32
    %c0_i32_1 = arith.constant 0 : i32
    return %c0_i32, %c0_i32_0 : i32, i32
  }
  func.func @transform_4(%arg0: i32) -> (i32, i32) {
    %c0_i32 = arith.constant 0 : i32
    %c0_i32_0 = arith.constant 0 : i32
    %c0_i32_1 = arith.constant 0 : i32
    return %c0_i32, %c0_i32_0 : i32, i32
  }
  func.func @transform_5(%arg0: i32) -> (i32, i32) {
    %c0_i32 = arith.constant 0 : i32
    %c0_i32_0 = arith.constant 0 : i32
    return %arg0, %c0_i32 : i32, i32
  }
  func.func @transform_6(%arg0: i32) -> (i32, i32) {
    %c0_i32 = arith.constant 0 : i32
    %c0_i32_0 = arith.constant 0 : i32
    %c0_i32_1 = arith.constant 0 : i32
    return %c0_i32, %c0_i32_0 : i32, i32
  }
}

module attributes {stable_mosaic.version = 11 : i64} {
  func.func @_td_pool_kernel(%arg0: i32, %arg1: memref<8x512xf32, #tpu.memory_space<vmem>>, %arg2: memref<1x128xf32, #tpu.memory_space<vmem>>, %arg3: memref<1x128xf32, #tpu.memory_space<vmem>>, %arg4: memref<8x128xf32, #tpu.memory_space<vmem>>) attributes {dimension_semantics = [#tpu.dimension_semantics<parallel>], iteration_bounds = array<i64: 1>, scalar_prefetch = 0 : i64, scratch_operands = 0 : i64, tpu.core_type = #tpu.core_type<tc>, window_params = [{transform_indices = @transform_0, window_bounds = array<i64: 8, 512>}, {pipeline_mode = #tpu.pipeline_mode<synchronous>, transform_indices = @transform_1, window_bounds = array<i64: 1, 128>}, {pipeline_mode = #tpu.pipeline_mode<synchronous>, transform_indices = @transform_2, window_bounds = array<i64: 1, 128>}, {transform_indices = @transform_3, window_bounds = array<i64: 8, 128>}]} {
    %c0 = arith.constant 0 : index
    %c0_0 = arith.constant 0 : index
    %0 = vector.load %arg1[%c0, %c0_0] : memref<8x512xf32, #tpu.memory_space<vmem>>, vector<8x512xf32>
    %c0_1 = arith.constant 0 : index
    %c0_2 = arith.constant 0 : index
    %1 = vector.load %arg2[%c0_1, %c0_2] : memref<1x128xf32, #tpu.memory_space<vmem>>, vector<1x128xf32>
    %c0_3 = arith.constant 0 : index
    %c0_4 = arith.constant 0 : index
    %2 = vector.load %arg3[%c0_3, %c0_4] : memref<1x128xf32, #tpu.memory_space<vmem>>, vector<1x128xf32>
    %3 = vector.extract_strided_slice %0 {offsets = [0, 0], sizes = [8, 128], strides = [1, 1]} : vector<8x512xf32> to vector<8x128xf32>
    %4 = vector.broadcast %1 : vector<1x128xf32> to vector<8x128xf32>
    %5 = arith.mulf %3, %4 : vector<8x128xf32>
    %6 = vector.broadcast %2 : vector<1x128xf32> to vector<8x128xf32>
    %7 = arith.addf %5, %6 : vector<8x128xf32>
    %cst = arith.constant 0.000000e+00 : f32
    %8 = vector.broadcast %cst : f32 to vector<8x128xf32>
    %9 = arith.maximumf %7, %8 : vector<8x128xf32>
    %10 = vector.extract_strided_slice %0 {offsets = [0, 128], sizes = [8, 128], strides = [1, 1]} : vector<8x512xf32> to vector<8x128xf32>
    %11 = vector.broadcast %1 : vector<1x128xf32> to vector<8x128xf32>
    %12 = arith.mulf %10, %11 : vector<8x128xf32>
    %13 = vector.broadcast %2 : vector<1x128xf32> to vector<8x128xf32>
    %14 = arith.addf %12, %13 : vector<8x128xf32>
    %cst_5 = arith.constant 0.000000e+00 : f32
    %15 = vector.broadcast %cst_5 : f32 to vector<8x128xf32>
    %16 = arith.maximumf %14, %15 : vector<8x128xf32>
    %17 = arith.maximumf %9, %16 : vector<8x128xf32>
    %18 = vector.extract_strided_slice %0 {offsets = [0, 256], sizes = [8, 128], strides = [1, 1]} : vector<8x512xf32> to vector<8x128xf32>
    %19 = vector.broadcast %1 : vector<1x128xf32> to vector<8x128xf32>
    %20 = arith.mulf %18, %19 : vector<8x128xf32>
    %21 = vector.broadcast %2 : vector<1x128xf32> to vector<8x128xf32>
    %22 = arith.addf %20, %21 : vector<8x128xf32>
    %cst_6 = arith.constant 0.000000e+00 : f32
    %23 = vector.broadcast %cst_6 : f32 to vector<8x128xf32>
    %24 = arith.maximumf %22, %23 : vector<8x128xf32>
    %25 = arith.maximumf %17, %24 : vector<8x128xf32>
    %26 = vector.extract_strided_slice %0 {offsets = [0, 384], sizes = [8, 128], strides = [1, 1]} : vector<8x512xf32> to vector<8x128xf32>
    %27 = vector.broadcast %1 : vector<1x128xf32> to vector<8x128xf32>
    %28 = arith.mulf %26, %27 : vector<8x128xf32>
    %29 = vector.broadcast %2 : vector<1x128xf32> to vector<8x128xf32>
    %30 = arith.addf %28, %29 : vector<8x128xf32>
    %cst_7 = arith.constant 0.000000e+00 : f32
    %31 = vector.broadcast %cst_7 : f32 to vector<8x128xf32>
    %32 = arith.maximumf %30, %31 : vector<8x128xf32>
    %33 = arith.maximumf %25, %32 : vector<8x128xf32>
    %c0_8 = arith.constant 0 : index
    %c0_9 = arith.constant 0 : index
    %34 = vector.load %arg4[%c0_8, %c0_9] : memref<8x128xf32, #tpu.memory_space<vmem>>, vector<8x128xf32>
    tpu.vector_store %arg4[%c0_8, %c0_9], %33 {strides = array<i32>} : memref<8x128xf32, #tpu.memory_space<vmem>>, vector<8x128xf32>,
    return
  }
  func.func @transform_0(%arg0: i32) -> (i32, i32) {
    %c0_i32 = arith.constant 0 : i32
    %c0_i32_0 = arith.constant 0 : i32
    return %arg0, %c0_i32 : i32, i32
  }
  func.func @transform_1(%arg0: i32) -> (i32, i32) {
    %c0_i32 = arith.constant 0 : i32
    %c0_i32_0 = arith.constant 0 : i32
    %c0_i32_1 = arith.constant 0 : i32
    return %c0_i32, %c0_i32_0 : i32, i32
  }
  func.func @transform_2(%arg0: i32) -> (i32, i32) {
    %c0_i32 = arith.constant 0 : i32
    %c0_i32_0 = arith.constant 0 : i32
    %c0_i32_1 = arith.constant 0 : i32
    return %c0_i32, %c0_i32_0 : i32, i32
  }
  func.func @transform_3(%arg0: i32) -> (i32, i32) {
    %c0_i32 = arith.constant 0 : i32
    %c0_i32_0 = arith.constant 0 : i32
    return %arg0, %c0_i32 : i32, i32
  }
}

module attributes {stable_mosaic.version = 11 : i64} {
  func.func @_fc1_qkv_kernel(%arg0: i32, %arg1: memref<8x128xf32, #tpu.memory_space<vmem>>, %arg2: memref<128x32xf32, #tpu.memory_space<vmem>>, %arg3: memref<1x32xf32, #tpu.memory_space<vmem>>, %arg4: memref<32x128xf32, #tpu.memory_space<vmem>>, %arg5: memref<8x128xf32, #tpu.memory_space<vmem>>) attributes {dimension_semantics = [#tpu.dimension_semantics<parallel>], iteration_bounds = array<i64: 1>, scalar_prefetch = 0 : i64, scratch_operands = 0 : i64, tpu.core_type = #tpu.core_type<tc>, window_params = [{transform_indices = @transform_0, window_bounds = array<i64: 8, 128>}, {pipeline_mode = #tpu.pipeline_mode<synchronous>, transform_indices = @transform_1, window_bounds = array<i64: 128, 32>}, {pipeline_mode = #tpu.pipeline_mode<synchronous>, transform_indices = @transform_2, window_bounds = array<i64: 1, 32>}, {pipeline_mode = #tpu.pipeline_mode<synchronous>, transform_indices = @transform_3, window_bounds = array<i64: 32, 128>}, {transform_indices = @transform_4, window_bounds = array<i64: 8, 128>}]} {
    %c0 = arith.constant 0 : index
    %c0_0 = arith.constant 0 : index
    %0 = vector.load %arg1[%c0, %c0_0] : memref<8x128xf32, #tpu.memory_space<vmem>>, vector<8x128xf32>
    %c0_1 = arith.constant 0 : index
    %c0_2 = arith.constant 0 : index
    %1 = vector.load %arg2[%c0_1, %c0_2] : memref<128x32xf32, #tpu.memory_space<vmem>>, vector<128x32xf32>
    %cst = arith.constant dense<0.000000e+00> : vector<8x32xf32>
    %2 = tpu.matmul %0, %1, %cst {dimension_numbers = #tpu.dot_dimension_numbers<[1], [0], [0], [1], [0, 0, 1, 1], [], []>} : vector<8x128xf32>, vector<128x32xf32>, vector<8x32xf32> -> vector<8x32xf32>
    %c0_3 = arith.constant 0 : index
    %c0_4 = arith.constant 0 : index
    %3 = vector.load %arg3[%c0_3, %c0_4] : memref<1x32xf32, #tpu.memory_space<vmem>>, vector<1x32xf32>
    %4 = vector.broadcast %3 : vector<1x32xf32> to vector<8x32xf32>
    %5 = arith.addf %2, %4 : vector<8x32xf32>
    %c0_5 = arith.constant 0 : index
    %c0_6 = arith.constant 0 : index
    %6 = vector.load %arg4[%c0_5, %c0_6] : memref<32x128xf32, #tpu.memory_space<vmem>>, vector<32x128xf32>
    %cst_7 = arith.constant dense<0.000000e+00> : vector<8x128xf32>
    %7 = tpu.matmul %5, %6, %cst_7 {dimension_numbers = #tpu.dot_dimension_numbers<[1], [0], [0], [1], [0, 0, 1, 1], [], []>} : vector<8x32xf32>, vector<32x128xf32>, vector<8x128xf32> -> vector<8x128xf32>
    %c0_8 = arith.constant 0 : index
    %c0_9 = arith.constant 0 : index
    %8 = vector.load %arg5[%c0_8, %c0_9] : memref<8x128xf32, #tpu.memory_space<vmem>>, vector<8x128xf32>
    tpu.vector_store %arg5[%c0_8, %c0_9], %7 {strides = array<i32>} : memref<8x128xf32, #tpu.memory_space<vmem>>, vector<8x128xf32>,
    return
  }
  func.func @transform_0(%arg0: i32) -> (i32, i32) {
    %c0_i32 = arith.constant 0 : i32
    %c0_i32_0 = arith.constant 0 : i32
    return %arg0, %c0_i32 : i32, i32
  }
  func.func @transform_1(%arg0: i32) -> (i32, i32) {
    %c0_i32 = arith.constant 0 : i32
    %c0_i32_0 = arith.constant 0 : i32
    %c0_i32_1 = arith.constant 0 : i32
    return %c0_i32, %c0_i32_0 : i32, i32
  }
  func.func @transform_2(%arg0: i32) -> (i32, i32) {
    %c0_i32 = arith.constant 0 : i32
    %c0_i32_0 = arith.constant 0 : i32
    %c0_i32_1 = arith.constant 0 : i32
    return %c0_i32, %c0_i32_0 : i32, i32
  }
  func.func @transform_3(%arg0: i32) -> (i32, i32) {
    %c0_i32 = arith.constant 0 : i32
    %c0_i32_0 = arith.constant 0 : i32
    %c0_i32_1 = arith.constant 0 : i32
    return %c0_i32, %c0_i32_0 : i32, i32
  }
  func.func @transform_4(%arg0: i32) -> (i32, i32) {
    %c0_i32 = arith.constant 0 : i32
    %c0_i32_0 = arith.constant 0 : i32
    return %arg0, %c0_i32 : i32, i32
  }
}

module attributes {stable_mosaic.version = 11 : i64} {
  func.func @_point_attn_kernel(%arg0: i32, %arg1: memref<8x32xf32, #tpu.memory_space<vmem>>, %arg2: memref<8x128xf32, #tpu.memory_space<vmem>>, %arg3: memref<8x128xf32, #tpu.memory_space<vmem>>, %arg4: memref<8x128xf32, #tpu.memory_space<vmem>>, %arg5: memref<8x128xf32, #tpu.memory_space<vmem>>, %arg6: memref<128x128xf32, #tpu.memory_space<vmem>>, %arg7: memref<1x128xf32, #tpu.memory_space<vmem>>, %arg8: memref<128x128xf32, #tpu.memory_space<vmem>>, %arg9: memref<1x128xf32, #tpu.memory_space<vmem>>, %arg10: memref<32x128xf32, #tpu.memory_space<vmem>>, %arg11: memref<1x128xf32, #tpu.memory_space<vmem>>, %arg12: memref<8x128xf32, #tpu.memory_space<vmem>>) attributes {dimension_semantics = [#tpu.dimension_semantics<parallel>], iteration_bounds = array<i64: 1>, scalar_prefetch = 0 : i64, scratch_operands = 0 : i64, tpu.core_type = #tpu.core_type<tc>, window_params = [{transform_indices = @transform_0, window_bounds = array<i64: 8, 32>}, {transform_indices = @transform_1, window_bounds = array<i64: 8, 128>}, {transform_indices = @transform_2, window_bounds = array<i64: 8, 128>}, {transform_indices = @transform_3, window_bounds = array<i64: 8, 128>}, {transform_indices = @transform_4, window_bounds = array<i64: 8, 128>}, {pipeline_mode = #tpu.pipeline_mode<synchronous>, transform_indices = @transform_5, window_bounds = array<i64: 128, 128>}, {pipeline_mode = #tpu.pipeline_mode<synchronous>, transform_indices = @transform_6, window_bounds = array<i64: 1, 128>}, {pipeline_mode = #tpu.pipeline_mode<synchronous>, transform_indices = @transform_7, window_bounds = array<i64: 128, 128>}, {pipeline_mode = #tpu.pipeline_mode<synchronous>, transform_indices = @transform_8, window_bounds = array<i64: 1, 128>}, {pipeline_mode = #tpu.pipeline_mode<synchronous>, transform_indices = @transform_9, window_bounds = array<i64: 32, 128>}, {pipeline_mode = #tpu.pipeline_mode<synchronous>, transform_indices = @transform_10, window_bounds = array<i64: 1, 128>}, {transform_indices = @transform_11, window_bounds = array<i64: 8, 128>}]} {
    %c0 = arith.constant 0 : index
    %c0_0 = arith.constant 0 : index
    %0 = vector.load %arg1[%c0, %c0_0] : memref<8x32xf32, #tpu.memory_space<vmem>>, vector<8x32xf32>
    %1 = tpu.concatenate %0, %0, %0, %0 in 1 : vector<8x32xf32>, vector<8x32xf32>, vector<8x32xf32>, vector<8x32xf32> -> vector<8x128xf32>
    %c0_1 = arith.constant 0 : index
    %c0_2 = arith.constant 0 : index
    %2 = vector.load %arg4[%c0_1, %c0_2] : memref<8x128xf32, #tpu.memory_space<vmem>>, vector<8x128xf32>
    %c0_3 = arith.constant 0 : index
    %c0_4 = arith.constant 0 : index
    %3 = vector.load %arg2[%c0_3, %c0_4] : memref<8x128xf32, #tpu.memory_space<vmem>>, vector<8x128xf32>
    %4 = arith.subf %1, %3 : vector<8x128xf32>
    %5 = arith.addf %4, %2 : vector<8x128xf32>
    %c0_5 = arith.constant 0 : index
    %c0_6 = arith.constant 0 : index
    %6 = vector.load %arg6[%c0_5, %c0_6] : memref<128x128xf32, #tpu.memory_space<vmem>>, vector<128x128xf32>
    %cst = arith.constant dense<0.000000e+00> : vector<8x128xf32>
    %7 = tpu.matmul %5, %6, %cst {dimension_numbers = #tpu.dot_dimension_numbers<[1], [0], [0], [1], [0, 0, 1, 1], [], []>} : vector<8x128xf32>, vector<128x128xf32>, vector<8x128xf32> -> vector<8x128xf32>
    %c0_7 = arith.constant 0 : index
    %c0_8 = arith.constant 0 : index
    %8 = vector.load %arg7[%c0_7, %c0_8] : memref<1x128xf32, #tpu.memory_space<vmem>>, vector<1x128xf32>
    %9 = vector.broadcast %8 : vector<1x128xf32> to vector<8x128xf32>
    %10 = arith.addf %7, %9 : vector<8x128xf32>
    %cst_9 = arith.constant 0.000000e+00 : f32
    %11 = vector.broadcast %cst_9 : f32 to vector<8x128xf32>
    %12 = arith.maximumf %10, %11 : vector<8x128xf32>
    %c0_10 = arith.constant 0 : index
    %c0_11 = arith.constant 0 : index
    %13 = vector.load %arg8[%c0_10, %c0_11] : memref<128x128xf32, #tpu.memory_space<vmem>>, vector<128x128xf32>
    %cst_12 = arith.constant dense<0.000000e+00> : vector<8x128xf32>
    %14 = tpu.matmul %12, %13, %cst_12 {dimension_numbers = #tpu.dot_dimension_numbers<[1], [0], [0], [1], [0, 0, 1, 1], [], []>} : vector<8x128xf32>, vector<128x128xf32>, vector<8x128xf32> -> vector<8x128xf32>
    %c0_13 = arith.constant 0 : index
    %c0_14 = arith.constant 0 : index
    %15 = vector.load %arg9[%c0_13, %c0_14] : memref<1x128xf32, #tpu.memory_space<vmem>>, vector<1x128xf32>
    %16 = vector.broadcast %15 : vector<1x128xf32> to vector<8x128xf32>
    %17 = arith.addf %14, %16 : vector<8x128xf32>
    %cst_15 = arith.constant 0.176776692 : f32
    %18 = vector.broadcast %cst_15 : f32 to vector<8x128xf32>
    %19 = arith.mulf %17, %18 : vector<8x128xf32>
    %20 = vector.extract_strided_slice %19 {offsets = [0, 0], sizes = [8, 32], strides = [1, 1]} : vector<8x128xf32> to vector<8x32xf32>
    %21 = vector.extract_strided_slice %19 {offsets = [0, 32], sizes = [8, 32], strides = [1, 1]} : vector<8x128xf32> to vector<8x32xf32>
    %22 = arith.maximumf %20, %21 : vector<8x32xf32>
    %23 = vector.extract_strided_slice %19 {offsets = [0, 64], sizes = [8, 32], strides = [1, 1]} : vector<8x128xf32> to vector<8x32xf32>
    %24 = arith.maximumf %22, %23 : vector<8x32xf32>
    %25 = vector.extract_strided_slice %19 {offsets = [0, 96], sizes = [8, 32], strides = [1, 1]} : vector<8x128xf32> to vector<8x32xf32>
    %26 = arith.maximumf %24, %25 : vector<8x32xf32>
    %27 = tpu.concatenate %26, %26, %26, %26 in 1 : vector<8x32xf32>, vector<8x32xf32>, vector<8x32xf32>, vector<8x32xf32> -> vector<8x128xf32>
    %28 = arith.subf %19, %27 : vector<8x128xf32>
    %29 = math.exp %28 : vector<8x128xf32>
    %30 = vector.extract_strided_slice %29 {offsets = [0, 0], sizes = [8, 32], strides = [1, 1]} : vector<8x128xf32> to vector<8x32xf32>
    %31 = vector.extract_strided_slice %29 {offsets = [0, 32], sizes = [8, 32], strides = [1, 1]} : vector<8x128xf32> to vector<8x32xf32>
    %32 = arith.addf %30, %31 : vector<8x32xf32>
    %33 = vector.extract_strided_slice %29 {offsets = [0, 64], sizes = [8, 32], strides = [1, 1]} : vector<8x128xf32> to vector<8x32xf32>
    %34 = arith.addf %32, %33 : vector<8x32xf32>
    %35 = vector.extract_strided_slice %29 {offsets = [0, 96], sizes = [8, 32], strides = [1, 1]} : vector<8x128xf32> to vector<8x32xf32>
    %36 = arith.addf %34, %35 : vector<8x32xf32>
    %37 = tpu.reciprocal %36 {approx = true} : vector<8x32xf32> -> vector<8x32xf32>
    %38 = tpu.concatenate %37, %37, %37, %37 in 1 : vector<8x32xf32>, vector<8x32xf32>, vector<8x32xf32>, vector<8x32xf32> -> vector<8x128xf32>
    %39 = arith.mulf %29, %38 : vector<8x128xf32>
    %c0_16 = arith.constant 0 : index
    %c0_17 = arith.constant 0 : index
    %40 = vector.load %arg3[%c0_16, %c0_17] : memref<8x128xf32, #tpu.memory_space<vmem>>, vector<8x128xf32>
    %41 = arith.addf %40, %2 : vector<8x128xf32>
    %42 = arith.mulf %39, %41 : vector<8x128xf32>
    %43 = vector.extract_strided_slice %42 {offsets = [0, 0], sizes = [8, 32], strides = [1, 1]} : vector<8x128xf32> to vector<8x32xf32>
    %44 = vector.extract_strided_slice %42 {offsets = [0, 32], sizes = [8, 32], strides = [1, 1]} : vector<8x128xf32> to vector<8x32xf32>
    %45 = arith.addf %43, %44 : vector<8x32xf32>
    %46 = vector.extract_strided_slice %42 {offsets = [0, 64], sizes = [8, 32], strides = [1, 1]} : vector<8x128xf32> to vector<8x32xf32>
    %47 = arith.addf %45, %46 : vector<8x32xf32>
    %48 = vector.extract_strided_slice %42 {offsets = [0, 96], sizes = [8, 32], strides = [1, 1]} : vector<8x128xf32> to vector<8x32xf32>
    %49 = arith.addf %47, %48 : vector<8x32xf32>
    %c0_18 = arith.constant 0 : index
    %c0_19 = arith.constant 0 : index
    %50 = vector.load %arg10[%c0_18, %c0_19] : memref<32x128xf32, #tpu.memory_space<vmem>>, vector<32x128xf32>
    %cst_20 = arith.constant dense<0.000000e+00> : vector<8x128xf32>
    %51 = tpu.matmul %49, %50, %cst_20 {dimension_numbers = #tpu.dot_dimension_numbers<[1], [0], [0], [1], [0, 0, 1, 1], [], []>} : vector<8x32xf32>, vector<32x128xf32>, vector<8x128xf32> -> vector<8x128xf32>
    %c0_21 = arith.constant 0 : index
    %c0_22 = arith.constant 0 : index
    %52 = vector.load %arg11[%c0_21, %c0_22] : memref<1x128xf32, #tpu.memory_space<vmem>>, vector<1x128xf32>
    %53 = vector.broadcast %52 : vector<1x128xf32> to vector<8x128xf32>
    %54 = arith.addf %51, %53 : vector<8x128xf32>
    %c0_23 = arith.constant 0 : index
    %c0_24 = arith.constant 0 : index
    %55 = vector.load %arg5[%c0_23, %c0_24] : memref<8x128xf32, #tpu.memory_space<vmem>>, vector<8x128xf32>
    %56 = arith.addf %54, %55 : vector<8x128xf32>
    %c0_25 = arith.constant 0 : index
    %c0_26 = arith.constant 0 : index
    %57 = vector.load %arg12[%c0_25, %c0_26] : memref<8x128xf32, #tpu.memory_space<vmem>>, vector<8x128xf32>
    tpu.vector_store %arg12[%c0_25, %c0_26], %56 {strides = array<i32>} : memref<8x128xf32, #tpu.memory_space<vmem>>, vector<8x128xf32>,
    return
  }
  func.func @transform_0(%arg0: i32) -> (i32, i32) {
    %c0_i32 = arith.constant 0 : i32
    %c0_i32_0 = arith.constant 0 : i32
    return %arg0, %c0_i32 : i32, i32
  }
  func.func @transform_1(%arg0: i32) -> (i32, i32) {
    %c0_i32 = arith.constant 0 : i32
    %c0_i32_0 = arith.constant 0 : i32
    return %arg0, %c0_i32 : i32, i32
  }
  func.func @transform_2(%arg0: i32) -> (i32, i32) {
    %c0_i32 = arith.constant 0 : i32
    %c0_i32_0 = arith.constant 0 : i32
    return %arg0, %c0_i32 : i32, i32
  }
  func.func @transform_3(%arg0: i32) -> (i32, i32) {
    %c0_i32 = arith.constant 0 : i32
    %c0_i32_0 = arith.constant 0 : i32
    return %arg0, %c0_i32 : i32, i32
  }
  func.func @transform_4(%arg0: i32) -> (i32, i32) {
    %c0_i32 = arith.constant 0 : i32
    %c0_i32_0 = arith.constant 0 : i32
    return %arg0, %c0_i32 : i32, i32
  }
  func.func @transform_5(%arg0: i32) -> (i32, i32) {
    %c0_i32 = arith.constant 0 : i32
    %c0_i32_0 = arith.constant 0 : i32
    %c0_i32_1 = arith.constant 0 : i32
    return %c0_i32, %c0_i32_0 : i32, i32
  }
  func.func @transform_6(%arg0: i32) -> (i32, i32) {
    %c0_i32 = arith.constant 0 : i32
    %c0_i32_0 = arith.constant 0 : i32
    %c0_i32_1 = arith.constant 0 : i32
    return %c0_i32, %c0_i32_0 : i32, i32
  }
  func.func @transform_7(%arg0: i32) -> (i32, i32) {
    %c0_i32 = arith.constant 0 : i32
    %c0_i32_0 = arith.constant 0 : i32
    %c0_i32_1 = arith.constant 0 : i32
    return %c0_i32, %c0_i32_0 : i32, i32
  }
  func.func @transform_8(%arg0: i32) -> (i32, i32) {
    %c0_i32 = arith.constant 0 : i32
    %c0_i32_0 = arith.constant 0 : i32
    %c0_i32_1 = arith.constant 0 : i32
    return %c0_i32, %c0_i32_0 : i32, i32
  }
  func.func @transform_9(%arg0: i32) -> (i32, i32) {
    %c0_i32 = arith.constant 0 : i32
    %c0_i32_0 = arith.constant 0 : i32
    %c0_i32_1 = arith.constant 0 : i32
    return %c0_i32, %c0_i32_0 : i32, i32
  }
  func.func @transform_10(%arg0: i32) -> (i32, i32) {
    %c0_i32 = arith.constant 0 : i32
    %c0_i32_0 = arith.constant 0 : i32
    %c0_i32_1 = arith.constant 0 : i32
    return %c0_i32, %c0_i32_0 : i32, i32
  }
  func.func @transform_11(%arg0: i32) -> (i32, i32) {
    %c0_i32 = arith.constant 0 : i32
    %c0_i32_0 = arith.constant 0 : i32
    return %arg0, %c0_i32 : i32, i32
  }
}

module attributes {stable_mosaic.version = 11 : i64} {
  func.func @_mlp2_kernel(%arg0: i32, %arg1: memref<16x3xf32, #tpu.memory_space<vmem>>, %arg2: memref<3x32xf32, #tpu.memory_space<vmem>>, %arg3: memref<1x32xf32, #tpu.memory_space<vmem>>, %arg4: memref<32x32xf32, #tpu.memory_space<vmem>>, %arg5: memref<1x32xf32, #tpu.memory_space<vmem>>, %arg6: memref<16x32xf32, #tpu.memory_space<vmem>>) attributes {dimension_semantics = [#tpu.dimension_semantics<parallel>], iteration_bounds = array<i64: 2>, scalar_prefetch = 0 : i64, scratch_operands = 0 : i64, tpu.core_type = #tpu.core_type<tc>, window_params = [{transform_indices = @transform_0, window_bounds = array<i64: 16, 3>}, {pipeline_mode = #tpu.pipeline_mode<synchronous>, transform_indices = @transform_1, window_bounds = array<i64: 3, 32>}, {pipeline_mode = #tpu.pipeline_mode<synchronous>, transform_indices = @transform_2, window_bounds = array<i64: 1, 32>}, {pipeline_mode = #tpu.pipeline_mode<synchronous>, transform_indices = @transform_3, window_bounds = array<i64: 32, 32>}, {pipeline_mode = #tpu.pipeline_mode<synchronous>, transform_indices = @transform_4, window_bounds = array<i64: 1, 32>}, {transform_indices = @transform_5, window_bounds = array<i64: 16, 32>}]} {
    %c0 = arith.constant 0 : index
    %c0_0 = arith.constant 0 : index
    %0 = vector.load %arg1[%c0, %c0_0] : memref<16x3xf32, #tpu.memory_space<vmem>>, vector<16x3xf32>
    %c0_1 = arith.constant 0 : index
    %c0_2 = arith.constant 0 : index
    %1 = vector.load %arg2[%c0_1, %c0_2] : memref<3x32xf32, #tpu.memory_space<vmem>>, vector<3x32xf32>
    %cst = arith.constant dense<0.000000e+00> : vector<16x32xf32>
    %2 = tpu.matmul %0, %1, %cst {dimension_numbers = #tpu.dot_dimension_numbers<[1], [0], [0], [1], [0, 0, 1, 1], [], []>} : vector<16x3xf32>, vector<3x32xf32>, vector<16x32xf32> -> vector<16x32xf32>
    %c0_3 = arith.constant 0 : index
    %c0_4 = arith.constant 0 : index
    %3 = vector.load %arg3[%c0_3, %c0_4] : memref<1x32xf32, #tpu.memory_space<vmem>>, vector<1x32xf32>
    %4 = vector.broadcast %3 : vector<1x32xf32> to vector<16x32xf32>
    %5 = arith.addf %2, %4 : vector<16x32xf32>
    %cst_5 = arith.constant 0.000000e+00 : f32
    %6 = vector.broadcast %cst_5 : f32 to vector<16x32xf32>
    %7 = arith.maximumf %5, %6 : vector<16x32xf32>
    %c0_6 = arith.constant 0 : index
    %c0_7 = arith.constant 0 : index
    %8 = vector.load %arg4[%c0_6, %c0_7] : memref<32x32xf32, #tpu.memory_space<vmem>>, vector<32x32xf32>
    %cst_8 = arith.constant dense<0.000000e+00> : vector<16x32xf32>
    %9 = tpu.matmul %7, %8, %cst_8 {dimension_numbers = #tpu.dot_dimension_numbers<[1], [0], [0], [1], [0, 0, 1, 1], [], []>} : vector<16x32xf32>, vector<32x32xf32>, vector<16x32xf32> -> vector<16x32xf32>
    %c0_9 = arith.constant 0 : index
    %c0_10 = arith.constant 0 : index
    %10 = vector.load %arg5[%c0_9, %c0_10] : memref<1x32xf32, #tpu.memory_space<vmem>>, vector<1x32xf32>
    %11 = vector.broadcast %10 : vector<1x32xf32> to vector<16x32xf32>
    %12 = arith.addf %9, %11 : vector<16x32xf32>
    %c0_11 = arith.constant 0 : index
    %c0_12 = arith.constant 0 : index
    %13 = vector.load %arg6[%c0_11, %c0_12] : memref<16x32xf32, #tpu.memory_space<vmem>>, vector<16x32xf32>
    tpu.vector_store %arg6[%c0_11, %c0_12], %12 {strides = array<i32>} : memref<16x32xf32, #tpu.memory_space<vmem>>, vector<16x32xf32>,
    return
  }
  func.func @transform_0(%arg0: i32) -> (i32, i32) {
    %c0_i32 = arith.constant 0 : i32
    %c0_i32_0 = arith.constant 0 : i32
    return %arg0, %c0_i32 : i32, i32
  }
  func.func @transform_1(%arg0: i32) -> (i32, i32) {
    %c0_i32 = arith.constant 0 : i32
    %c0_i32_0 = arith.constant 0 : i32
    %c0_i32_1 = arith.constant 0 : i32
    return %c0_i32, %c0_i32_0 : i32, i32
  }
  func.func @transform_2(%arg0: i32) -> (i32, i32) {
    %c0_i32 = arith.constant 0 : i32
    %c0_i32_0 = arith.constant 0 : i32
    %c0_i32_1 = arith.constant 0 : i32
    return %c0_i32, %c0_i32_0 : i32, i32
  }
  func.func @transform_3(%arg0: i32) -> (i32, i32) {
    %c0_i32 = arith.constant 0 : i32
    %c0_i32_0 = arith.constant 0 : i32
    %c0_i32_1 = arith.constant 0 : i32
    return %c0_i32, %c0_i32_0 : i32, i32
  }
  func.func @transform_4(%arg0: i32) -> (i32, i32) {
    %c0_i32 = arith.constant 0 : i32
    %c0_i32_0 = arith.constant 0 : i32
    %c0_i32_1 = arith.constant 0 : i32
    return %c0_i32, %c0_i32_0 : i32, i32
  }
  func.func @transform_5(%arg0: i32) -> (i32, i32) {
    %c0_i32 = arith.constant 0 : i32
    %c0_i32_0 = arith.constant 0 : i32
    return %arg0, %c0_i32 : i32, i32
  }
}

module attributes {stable_mosaic.version = 11 : i64} {
  func.func @_mlp2_pool_kernel(%arg0: i32, %arg1: memref<1x4x128xf32, #tpu.memory_space<vmem>>, %arg2: memref<128x256xf32, #tpu.memory_space<vmem>>, %arg3: memref<1x256xf32, #tpu.memory_space<vmem>>, %arg4: memref<256x16xf32, #tpu.memory_space<vmem>>, %arg5: memref<1x16xf32, #tpu.memory_space<vmem>>, %arg6: memref<1x1x16xf32, #tpu.memory_space<vmem>>) attributes {dimension_semantics = [#tpu.dimension_semantics<parallel>], iteration_bounds = array<i64: 2>, scalar_prefetch = 0 : i64, scratch_operands = 0 : i64, tpu.core_type = #tpu.core_type<tc>, window_params = [{transform_indices = @transform_0, window_bounds = array<i64: 1, 4, 128>}, {pipeline_mode = #tpu.pipeline_mode<synchronous>, transform_indices = @transform_1, window_bounds = array<i64: 128, 256>}, {pipeline_mode = #tpu.pipeline_mode<synchronous>, transform_indices = @transform_2, window_bounds = array<i64: 1, 256>}, {pipeline_mode = #tpu.pipeline_mode<synchronous>, transform_indices = @transform_3, window_bounds = array<i64: 256, 16>}, {pipeline_mode = #tpu.pipeline_mode<synchronous>, transform_indices = @transform_4, window_bounds = array<i64: 1, 16>}, {transform_indices = @transform_5, window_bounds = array<i64: 1, 1, 16>}]} {
    %c0 = arith.constant 0 : index
    %c0_0 = arith.constant 0 : index
    %c0_1 = arith.constant 0 : index
    %0 = vector.load %arg1[%c0, %c0_0, %c0_1] : memref<1x4x128xf32, #tpu.memory_space<vmem>>, vector<1x4x128xf32>
    %1 = vector.shape_cast %0 : vector<1x4x128xf32> to vector<4x128xf32>
    %c0_2 = arith.constant 0 : index
    %c0_3 = arith.constant 0 : index
    %2 = vector.load %arg2[%c0_2, %c0_3] : memref<128x256xf32, #tpu.memory_space<vmem>>, vector<128x256xf32>
    %cst = arith.constant dense<0.000000e+00> : vector<4x256xf32>
    %3 = tpu.matmul %1, %2, %cst {dimension_numbers = #tpu.dot_dimension_numbers<[1], [0], [0], [1], [0, 0, 1, 1], [], []>} : vector<4x128xf32>, vector<128x256xf32>, vector<4x256xf32> -> vector<4x256xf32>
    %c0_4 = arith.constant 0 : index
    %c0_5 = arith.constant 0 : index
    %4 = vector.load %arg3[%c0_4, %c0_5] : memref<1x256xf32, #tpu.memory_space<vmem>>, vector<1x256xf32>
    %5 = vector.broadcast %4 : vector<1x256xf32> to vector<4x256xf32>
    %6 = arith.addf %3, %5 : vector<4x256xf32>
    %cst_6 = arith.constant 0.000000e+00 : f32
    %7 = vector.broadcast %cst_6 : f32 to vector<4x256xf32>
    %8 = arith.maximumf %6, %7 : vector<4x256xf32>
    %c0_7 = arith.constant 0 : index
    %c0_8 = arith.constant 0 : index
    %9 = vector.load %arg4[%c0_7, %c0_8] : memref<256x16xf32, #tpu.memory_space<vmem>>, vector<256x16xf32>
    %cst_9 = arith.constant dense<0.000000e+00> : vector<4x16xf32>
    %10 = tpu.matmul %8, %9, %cst_9 {dimension_numbers = #tpu.dot_dimension_numbers<[1], [0], [0], [1], [0, 0, 1, 1], [], []>} : vector<4x256xf32>, vector<256x16xf32>, vector<4x16xf32> -> vector<4x16xf32>
    %c0_10 = arith.constant 0 : index
    %c0_11 = arith.constant 0 : index
    %11 = vector.load %arg5[%c0_10, %c0_11] : memref<1x16xf32, #tpu.memory_space<vmem>>, vector<1x16xf32>
    %12 = vector.broadcast %11 : vector<1x16xf32> to vector<4x16xf32>
    %13 = arith.addf %10, %12 : vector<4x16xf32>
    %cst_12 = arith.constant dense<0xFF800000> : vector<16xf32>
    %14 = vector.multi_reduction <maximumf>, %13, %cst_12 [0] : vector<4x16xf32> to vector<16xf32>
    %15 = vector.shape_cast %14 : vector<16xf32> to vector<1x16xf32>
    %16 = vector.shape_cast %15 : vector<1x16xf32> to vector<1x1x16xf32>
    %c0_13 = arith.constant 0 : index
    %c0_14 = arith.constant 0 : index
    %c0_15 = arith.constant 0 : index
    %17 = vector.load %arg6[%c0_13, %c0_14, %c0_15] : memref<1x1x16xf32, #tpu.memory_space<vmem>>, vector<1x1x16xf32>
    tpu.vector_store %arg6[%c0_13, %c0_14, %c0_15], %16 {strides = array<i32>} : memref<1x1x16xf32, #tpu.memory_space<vmem>>, vector<1x1x16xf32>,
    return
  }
  func.func @transform_0(%arg0: i32) -> (i32, i32, i32) {
    %c0_i32 = arith.constant 0 : i32
    %c0_i32_0 = arith.constant 0 : i32
    %c0_i32_1 = arith.constant 0 : i32
    return %arg0, %c0_i32, %c0_i32_0 : i32, i32, i32
  }
  func.func @transform_1(%arg0: i32) -> (i32, i32) {
    %c0_i32 = arith.constant 0 : i32
    %c0_i32_0 = arith.constant 0 : i32
    %c0_i32_1 = arith.constant 0 : i32
    return %c0_i32, %c0_i32_0 : i32, i32
  }
  func.func @transform_2(%arg0: i32) -> (i32, i32) {
    %c0_i32 = arith.constant 0 : i32
    %c0_i32_0 = arith.constant 0 : i32
    %c0_i32_1 = arith.constant 0 : i32
    return %c0_i32, %c0_i32_0 : i32, i32
  }
  func.func @transform_3(%arg0: i32) -> (i32, i32) {
    %c0_i32 = arith.constant 0 : i32
    %c0_i32_0 = arith.constant 0 : i32
    %c0_i32_1 = arith.constant 0 : i32
    return %c0_i32, %c0_i32_0 : i32, i32
  }
  func.func @transform_4(%arg0: i32) -> (i32, i32) {
    %c0_i32 = arith.constant 0 : i32
    %c0_i32_0 = arith.constant 0 : i32
    %c0_i32_1 = arith.constant 0 : i32
    return %c0_i32, %c0_i32_0 : i32, i32
  }
  func.func @transform_5(%arg0: i32) -> (i32, i32, i32) {
    %c0_i32 = arith.constant 0 : i32
    %c0_i32_0 = arith.constant 0 : i32
    %c0_i32_1 = arith.constant 0 : i32
    return %arg0, %c0_i32, %c0_i32_0 : i32, i32, i32
  }
}

</mosaic_0001>

<llo_original>
// kernel: neg.5
$region0: #{neg.5}
  #allocation0 [shape = 's32[1]{0}', space=sflag, size = 0x4, scoped, tag = 'scoped memory for neg.5']
  %s0 = inlined_call_operand.vmem [shape: f32[2,36,36], index: 0, kind: input, shape index: {}]
  %s1 = inlined_call_operand.vmem [shape: f32[2,36,36], index: 1, kind: output, shape index: {}]
  %v2 = vld [vmem:[%s0] sm:$0x3]
  %3 = xla_tuple %v2
  %4 = xla_tuple %3
  %v5 = vxor.u32 %v2, 2147483648
  %6 = xla_tuple %v5
  %7 = vst [vmem:[%s1] sm:$0x3] %v5
  %s8 = scalar_lea.vmem %s0, 2
  %v9 = vld [vmem:[%s8] sm:$0x3]
  %10 = xla_tuple %v9
  %11 = xla_tuple %10
  %v12 = vxor.u32 %v9, 2147483648
  %13 = xla_tuple %v12
  %s14 = scalar_lea.vmem %s1, 2
  %15 = vst [vmem:[%s14] sm:$0x3] %v12
  %s16 = scalar_lea.vmem %s0, 4
  %v17 = vld [vmem:[%s16] sm:$0x3]
  %18 = xla_tuple %v17
  %19 = xla_tuple %18
  %v20 = vxor.u32 %v17, 2147483648
  %21 = xla_tuple %v20
  %s22 = scalar_lea.vmem %s1, 4
  %23 = vst [vmem:[%s22] sm:$0x3] %v20
  %s24 = scalar_lea.vmem %s0, 6
  %v25 = vld [vmem:[%s24] sm:$0x3]
  %26 = xla_tuple %v25
  %27 = xla_tuple %26
  %v28 = vxor.u32 %v25, 2147483648
  %29 = xla_tuple %v28
  %s30 = scalar_lea.vmem %s1, 6
  %31 = vst [vmem:[%s30] sm:$0x3] %v28
  %s32 = scalar_lea.vmem %s0, 8
  %v33 = vld [vmem:[%s32] sm:$0x3]
  %34 = xla_tuple %v33
  %35 = xla_tuple %34
  %v36 = vxor.u32 %v33, 2147483648
  %37 = xla_tuple %v36
  %s38 = scalar_lea.vmem %s1, 8
  %39 = vst [vmem:[%s38] sm:$0x3] %v36
  %s40 = scalar_lea.vmem %s0, 10
  %v41 = vld [vmem:[%s40] sm:$0x3]
  %42 = xla_tuple %v41
  %43 = xla_tuple %42
  %v44 = vxor.u32 %v41, 2147483648
  %45 = xla_tuple %v44
  %s46 = scalar_lea.vmem %s1, 10
  %47 = vst [vmem:[%s46] sm:$0x3] %v44
  %s48 = scalar_lea.vmem %s0, 12
  %v49 = vld [vmem:[%s48] sm:$0x3]
  %50 = xla_tuple %v49
  %51 = xla_tuple %50
  %v52 = vxor.u32 %v49, 2147483648
  %53 = xla_tuple %v52
  %s54 = scalar_lea.vmem %s1, 12
  %55 = vst [vmem:[%s54] sm:$0x3] %v52
  %s56 = scalar_lea.vmem %s0, 14
  %v57 = vld [vmem:[%s56] sm:$0x3]
  %58 = xla_tuple %v57
  %59 = xla_tuple %58
  %v60 = vxor.u32 %v57, 2147483648
  %61 = xla_tuple %v60
  %s62 = scalar_lea.vmem %s1, 14
  %63 = vst [vmem:[%s62] sm:$0x3] %v60
  %s64 = scalar_lea.vmem %s0, 16
  %v65 = vld [vmem:[%s64] sm:$0x3]
  %66 = xla_tuple %v65
  %67 = xla_tuple %66
  %v68 = vxor.u32 %v65, 2147483648
  %69 = xla_tuple %v68
  %s70 = scalar_lea.vmem %s1, 16
  %71 = vst [vmem:[%s70] sm:$0x3] %v68
  %s72 = scalar_lea.vmem %s0, 18
  %v73 = vld [vmem:[%s72] sm:$0x3]
  %74 = xla_tuple %v73
  %75 = xla_tuple %74
  %v76 = vxor.u32 %v73, 2147483648
  %77 = xla_tuple %v76
  %s78 = scalar_lea.vmem %s1, 18
  %79 = vst [vmem:[%s78] sm:$0x3] %v76
  %s80 = scalar_lea.vmem %s0, 20
  %v81 = vld [vmem:[%s80] sm:$0x3]
  %82 = xla_tuple %v81
  %83 = xla_tuple %82
  %v84 = vxor.u32 %v81, 2147483648
  %85 = xla_tuple %v84
  %s86 = scalar_lea.vmem %s1, 20
  %87 = vst [vmem:[%s86] sm:$0x3] %v84
  %s88 = scalar_lea.vmem %s0, 22
  %v89 = vld [vmem:[%s88] sm:$0x3]
  %90 = xla_tuple %v89
  %91 = xla_tuple %90
  %v92 = vxor.u32 %v89, 2147483648
  %93 = xla_tuple %v92
  %s94 = scalar_lea.vmem %s1, 22
  %95 = vst [vmem:[%s94] sm:$0x3] %v92
  %s96 = scalar_lea.vmem %s0, 24
  %v97 = vld [vmem:[%s96] sm:$0x3]
  %98 = xla_tuple %v97
  %99 = xla_tuple %98
  %v100 = vxor.u32 %v97, 2147483648
  %101 = xla_tuple %v100
  %s102 = scalar_lea.vmem %s1, 24
  %103 = vst [vmem:[%s102] sm:$0x3] %v100
  %s104 = scalar_lea.vmem %s0, 26
  %v105 = vld [vmem:[%s104] sm:$0x3]
  %106 = xla_tuple %v105
  %107 = xla_tuple %106
  %v108 = vxor.u32 %v105, 2147483648
  %109 = xla_tuple %v108
  %s110 = scalar_lea.vmem %s1, 26
  %111 = vst [vmem:[%s110] sm:$0x3] %v108
  %s112 = scalar_lea.vmem %s0, 28
  %v113 = vld [vmem:[%s112] sm:$0x3]
  %114 = xla_tuple %v113
  %115 = xla_tuple %114
  %v116 = vxor.u32 %v113, 2147483648
  %117 = xla_tuple %v116
  %s118 = scalar_lea.vmem %s1, 28
  %119 = vst [vmem:[%s118] sm:$0x3] %v116
  %s120 = scalar_lea.vmem %s0, 30
  %v121 = vld [vmem:[%s120] sm:$0x3]
  %122 = xla_tuple %v121
  %123 = xla_tuple %122
  %v124 = vxor.u32 %v121, 2147483648
  %125 = xla_tuple %v124
  %s126 = scalar_lea.vmem %s1, 30
  %127 = vst [vmem:[%s126] sm:$0x3] %v124
  %s128 = scalar_lea.vmem %s0, 32
  %v129 = vld [vmem:[%s128] sm:$0x3]
  %130 = xla_tuple %v129
  %131 = xla_tuple %130
  %v132 = vxor.u32 %v129, 2147483648
  %133 = xla_tuple %v132
  %s134 = scalar_lea.vmem %s1, 32
  %135 = vst [vmem:[%s134] sm:$0x3] %v132
  %s136 = scalar_lea.vmem %s0, 34
  %v137 = vld [vmem:[%s136] sm:$0x3]
  %138 = xla_tuple %v137
  %139 = xla_tuple %138
  %v140 = vxor.u32 %v137, 2147483648
  %141 = xla_tuple %v140
  %s142 = scalar_lea.vmem %s1, 34
  %143 = vst [vmem:[%s142] sm:$0x3] %v140
  %s144 = scalar_lea.vmem %s0, 36
  %v145 = vld [vmem:[%s144] sm:$0x3]
  %146 = xla_tuple %v145
  %147 = xla_tuple %146
  %v148 = vxor.u32 %v145, 2147483648
  %149 = xla_tuple %v148
  %s150 = scalar_lea.vmem %s1, 36
  %151 = vst [vmem:[%s150] sm:$0x3] %v148
  %s152 = scalar_lea.vmem %s0, 38
  %v153 = vld [vmem:[%s152] sm:$0x3]
  %154 = xla_tuple %v153
  %155 = xla_tuple %154
  %v156 = vxor.u32 %v153, 2147483648
  %157 = xla_tuple %v156
  %s158 = scalar_lea.vmem %s1, 38
  %159 = vst [vmem:[%s158] sm:$0x3] %v156
  %s160 = scalar_lea.vmem %s0, 40
  %v161 = vld [vmem:[%s160] sm:$0x3]
  %162 = xla_tuple %v161
  %163 = xla_tuple %162
  %v164 = vxor.u32 %v161, 2147483648
  %165 = xla_tuple %v164
  %s166 = scalar_lea.vmem %s1, 40
  %167 = vst [vmem:[%s166] sm:$0x3] %v164
  %s168 = scalar_lea.vmem %s0, 42
  %v169 = vld [vmem:[%s168] sm:$0x3]
  %170 = xla_tuple %v169
  %171 = xla_tuple %170
  %v172 = vxor.u32 %v169, 2147483648
  %173 = xla_tuple %v172
  %s174 = scalar_lea.vmem %s1, 42
  %175 = vst [vmem:[%s174] sm:$0x3] %v172
  %s176 = scalar_lea.vmem %s0, 44
  %v177 = vld [vmem:[%s176] sm:$0x3]
  %178 = xla_tuple %v177
  %179 = xla_tuple %178
  %v180 = vxor.u32 %v177, 2147483648
  %181 = xla_tuple %v180
  %s182 = scalar_lea.vmem %s1, 44
  %183 = vst [vmem:[%s182] sm:$0x3] %v180
  %s184 = scalar_lea.vmem %s0, 46
  %v185 = vld [vmem:[%s184] sm:$0x3]
  %186 = xla_tuple %v185
  %187 = xla_tuple %186
  %v188 = vxor.u32 %v185, 2147483648
  %189 = xla_tuple %v188
  %s190 = scalar_lea.vmem %s1, 46
  %191 = vst [vmem:[%s190] sm:$0x3] %v188
  %s192 = scalar_lea.vmem %s0, 48
  %v193 = vld [vmem:[%s192] sm:$0x3]
  %194 = xla_tuple %v193
  %195 = xla_tuple %194
  %v196 = vxor.u32 %v193, 2147483648
  %197 = xla_tuple %v196
  %s198 = scalar_lea.vmem %s1, 48
  %199 = vst [vmem:[%s198] sm:$0x3] %v196
  %s200 = scalar_lea.vmem %s0, 50
  %v201 = vld [vmem:[%s200] sm:$0x3]
  %202 = xla_tuple %v201
  %203 = xla_tuple %202
  %v204 = vxor.u32 %v201, 2147483648
  %205 = xla_tuple %v204
  %s206 = scalar_lea.vmem %s1, 50
  %207 = vst [vmem:[%s206] sm:$0x3] %v204
  %s208 = scalar_lea.vmem %s0, 52
  %v209 = vld [vmem:[%s208] sm:$0x3]
  %210 = xla_tuple %v209
  %211 = xla_tuple %210
  %v212 = vxor.u32 %v209, 2147483648
  %213 = xla_tuple %v212
  %s214 = scalar_lea.vmem %s1, 52
  %215 = vst [vmem:[%s214] sm:$0x3] %v212
  %s216 = scalar_lea.vmem %s0, 54
  %v217 = vld [vmem:[%s216] sm:$0x3]
  %218 = xla_tuple %v217
  %219 = xla_tuple %218
  %v220 = vxor.u32 %v217, 2147483648
  %221 = xla_tuple %v220
  %s222 = scalar_lea.vmem %s1, 54
  %223 = vst [vmem:[%s222] sm:$0x3] %v220
  %s224 = scalar_lea.vmem %s0, 56
  %v225 = vld [vmem:[%s224] sm:$0x3]
  %226 = xla_tuple %v225
  %227 = xla_tuple %226
  %v228 = vxor.u32 %v225, 2147483648
  %229 = xla_tuple %v228
  %s230 = scalar_lea.vmem %s1, 56
  %231 = vst [vmem:[%s230] sm:$0x3] %v228
  %s232 = scalar_lea.vmem %s0, 58
  %v233 = vld [vmem:[%s232] sm:$0x3]
  %234 = xla_tuple %v233
  %235 = xla_tuple %234
  %v236 = vxor.u32 %v233, 2147483648
  %237 = xla_tuple %v236
  %s238 = scalar_lea.vmem %s1, 58
  %239 = vst [vmem:[%s238] sm:$0x3] %v236
  %s240 = scalar_lea.vmem %s0, 60
  %v241 = vld [vmem:[%s240] sm:$0x3]
  %242 = xla_tuple %v241
  %243 = xla_tuple %242
  %v244 = vxor.u32 %v241, 2147483648
  %245 = xla_tuple %v244
  %s246 = scalar_lea.vmem %s1, 60
  %247 = vst [vmem:[%s246] sm:$0x3] %v244
  %s248 = scalar_lea.vmem %s0, 62
  %v249 = vld [vmem:[%s248] sm:$0x3]
  %250 = xla_tuple %v249
  %251 = xla_tuple %250
  %v252 = vxor.u32 %v249, 2147483648
  %253 = xla_tuple %v252
  %s254 = scalar_lea.vmem %s1, 62
  %255 = vst [vmem:[%s254] sm:$0x3] %v252
  %s256 = scalar_lea.vmem %s0, 64
  %v257 = vld [vmem:[%s256] sm:$0x3]
  %258 = xla_tuple %v257
  %259 = xla_tuple %258
  %v260 = vxor.u32 %v257, 2147483648
  %261 = xla_tuple %v260
  %s262 = scalar_lea.vmem %s1, 64
  %263 = vst [vmem:[%s262] sm:$0x3] %v260
  %s264 = scalar_lea.vmem %s0, 66
  %v265 = vld [vmem:[%s264] sm:$0x3]
  %266 = xla_tuple %v265
  %267 = xla_tuple %266
  %v268 = vxor.u32 %v265, 2147483648
  %269 = xla_tuple %v268
  %s270 = scalar_lea.vmem %s1, 66
  %271 = vst [vmem:[%s270] sm:$0x3] %v268
  %s272 = scalar_lea.vmem %s0, 68
  %v273 = vld [vmem:[%s272] sm:$0x3]
  %274 = xla_tuple %v273
  %275 = xla_tuple %274
  %v276 = vxor.u32 %v273, 2147483648
  %277 = xla_tuple %v276
  %s278 = scalar_lea.vmem %s1, 68
  %279 = vst [vmem:[%s278] sm:$0x3] %v276
  %s280 = scalar_lea.vmem %s0, 70
  %v281 = vld [vmem:[%s280] sm:$0x3]
  %282 = xla_tuple %v281
  %283 = xla_tuple %282
  %v284 = vxor.u32 %v281, 2147483648
  %285 = xla_tuple %v284
  %s286 = scalar_lea.vmem %s1, 70
  %287 = vst [vmem:[%s286] sm:$0x3] %v284

// kernel: encoder_forward.18
$region0: #{encoder_forward.18}
  #allocation0 [shape = 'u32[]', space=smem, size = 0x4, offset = 0x4, fixed_abs, tag = 'smem constant byte address 0x4 - core index']
  #allocation1 [shape = 'u32[72,128]{1,0:T(1,128)}', space=vmem, size = 0x9000, scoped, tag = 'internal scratch']
  %s0 = inlined_call_operand.vmem [shape: f32[72,32], index: 0, kind: input, shape index: {}]
  %s1 = inlined_call_operand.vmem [shape: f32[32,32], index: 1, kind: input, shape index: {}]
  %s2 = inlined_call_operand.vmem [shape: f32[1,32], index: 2, kind: input, shape index: {}]
  %s3 = inlined_call_operand.vmem [shape: f32[32,128], index: 3, kind: input, shape index: {}]
  %s4 = inlined_call_operand.vmem [shape: f32[72,128], index: 4, kind: output, shape index: {}]
  %s5 = sld [smem:[#allocation0]]
  $region49: #{encoder_forward.18} parent=0
    _
  %s7 = ssub.s32 1, %s5
  %s8 = scalar_select 0, %s7, %s5
  loop: start=0, step=1, limit=5
  $region2: #{encoder_forward.18} parent=0 // loop_pre_header
    _
  $region3: #{encoder_forward.18} parent=0 // loop_header
    %s10 = sphi 0, %s14
    %p11 = scmp.ge.s32.totalorder %s10, 5
    %s20 = sphi 0, %s22
    %s23 = sphi 0, %s20
    %s24 = sphi 0, %s23
    %s40 = sphi 0, %s24
    %s44 = sphi 0, %s44
    %s46 = sphi 0, %s44
    %s47 = sphi 0, %s46
    %s61 = sphi 0, %s47
    %s65 = sphi 0, %s65
    %s67 = sphi 0, %s65
    %s68 = sphi 0, %s67
    %s82 = sphi 0, %s68
    %s86 = sphi 0, %s86
    %s88 = sphi 0, %s86
    %s89 = sphi 0, %s88
    %s103 = sphi 0, %s89
    %s109 = sphi 0, %s111
    %s112 = sphi 0, %s109
    %s113 = sphi 0, %s112
    %s129 = sphi 0, %s113
  $region4: #{encoder_forward.18} parent=0 // loop_header_branch
    %13 = sbr.rel (%p11) target = $region8
  $region5: #{encoder_forward.18} parent=0 // loop_body
    %s15 = ssub.s32 %s10, 1
    %s16 = ssub.s32 %s10, 2
    %s17 = sadd.s32 %s10, 1
    %s18 = ssub.s32 %s10, %s17
    %p19 = scmp.eq.s32.totalorder %s18, 0
    %s21 = sadd.s32 %s20, 1
    %s22 = scalar_select %p19, %s20, %s21
    %p25 = pneg %p19
    %p26 = scmp.eq.s32.totalorder %s10, 2
    %p27 = por %p25, %p26
    %p28 = scmp.ne.s32.totalorder %s20, %s23
    %p29 = scmp.eq.s32.totalorder %s10, 0
    %p30 = por %p28, %p29
    %p31 = scmp.ne.s32.totalorder %s20, %s23
    %p32 = scmp.eq.s32.totalorder %s15, 2
    %p33 = por %p31, %p32
    %p34 = scmp.ne.s32.totalorder %s23, %s24
    %p35 = scmp.eq.s32.totalorder %s15, 0
    %p36 = por %p34, %p35
    %p37 = scmp.ne.s32.totalorder %s23, %s24
    %p38 = scmp.eq.s32.totalorder %s16, 2
    %p39 = por %p37, %p38
    %p41 = scmp.ne.s32.totalorder %s24, %s40
    %p42 = scmp.eq.s32.totalorder %s16, 0
    %p43 = por %p41, %p42
    %s45 = sadd.s32 %s44, 1
    %p48 = scmp.eq.s32.totalorder %s10, 2
    %p49 = scmp.ne.s32.totalorder %s44, %s46
    %p50 = scmp.eq.s32.totalorder %s10, 0
    %p51 = por %p49, %p50
    %p52 = scmp.ne.s32.totalorder %s44, %s46
    %p53 = scmp.eq.s32.totalorder %s15, 2
    %p54 = por %p52, %p53
    %p55 = scmp.ne.s32.totalorder %s46, %s47
    %p56 = scmp.eq.s32.totalorder %s15, 0
    %p57 = por %p55, %p56
    %p58 = scmp.ne.s32.totalorder %s46, %s47
    %p59 = scmp.eq.s32.totalorder %s16, 2
    %p60 = por %p58, %p59
    %p62 = scmp.ne.s32.totalorder %s47, %s61
    %p63 = scmp.eq.s32.totalorder %s16, 0
    %p64 = por %p62, %p63
    %s66 = sadd.s32 %s65, 1
    %p69 = scmp.eq.s32.totalorder %s10, 2
    %p70 = scmp.ne.s32.totalorder %s65, %s67
    %p71 = scmp.eq.s32.totalorder %s10, 0
    %p72 = por %p70, %p71
    %p73 = scmp.ne.s32.totalorder %s65, %s67
    %p74 = scmp.eq.s32.totalorder %s15, 2
    %p75 = por %p73, %p74
    %p76 = scmp.ne.s32.totalorder %s67, %s68
    %p77 = scmp.eq.s32.totalorder %s15, 0
    %p78 = por %p76, %p77
    %p79 = scmp.ne.s32.totalorder %s67, %s68
    %p80 = scmp.eq.s32.totalorder %s16, 2
    %p81 = por %p79, %p80
    %p83 = scmp.ne.s32.totalorder %s68, %s82
    %p84 = scmp.eq.s32.totalorder %s16, 0
    %p85 = por %p83, %p84
    %s87 = sadd.s32 %s86, 1
    %p90 = scmp.eq.s32.totalorder %s10, 2
    %p91 = scmp.ne.s32.totalorder %s86, %s88
    %p92 = scmp.eq.s32.totalorder %s10, 0
    %p93 = por %p91, %p92
    %p94 = scmp.ne.s32.totalorder %s86, %s88
    %p95 = scmp.eq.s32.totalorder %s15, 2
    %p96 = por %p94, %p95
    %p97 = scmp.ne.s32.totalorder %s88, %s89
    %p98 = scmp.eq.s32.totalorder %s15, 0
    %p99 = por %p97, %p98
    %p100 = scmp.ne.s32.totalorder %s88, %s89
    %p101 = scmp.eq.s32.totalorder %s16, 2
    %p102 = por %p100, %p101
    %p104 = scmp.ne.s32.totalorder %s89, %s103
    %p105 = scmp.eq.s32.totalorder %s16, 0
    %p106 = por %p104, %p105
    %s107 = ssub.s32 %s10, %s17
    %p108 = scmp.eq.s32.totalorder %s107, 0
    %s110 = sadd.s32 %s109, 1
    %s111 = scalar_select %p108, %s109, %s110
    %p114 = pneg %p108
    %p115 = scmp.eq.s32.totalorder %s10, 2
    %p116 = por %p114, %p115
    %p117 = scmp.ne.s32.totalorder %s109, %s112
    %p118 = scmp.eq.s32.totalorder %s10, 0
    %p119 = por %p117, %p118
    %p120 = scmp.ne.s32.totalorder %s109, %s112
    %p121 = scmp.eq.s32.totalorder %s15, 2
    %p122 = por %p120, %p121
    %p123 = scmp.ne.s32.totalorder %s112, %s113
    %p124 = scmp.eq.s32.totalorder %s15, 0
    %p125 = por %p123, %p124
    %p126 = scmp.ne.s32.totalorder %s112, %s113
    %p127 = scmp.eq.s32.totalorder %s16, 2
    %p128 = por %p126, %p127
    %p130 = scmp.ne.s32.totalorder %s113, %s129
    %p131 = scmp.eq.s32.totalorder %s16, 0
    %p132 = por %p130, %p131
    %p133 = scmp.le.s32.totalorder 1, %s10
    %p134 = scmp.lt.s32.totalorder %s10, 4
    %p135 = pnand %p133, %p134
    %p136 = pneg %p135
    // Predicated region
    $region9: #{encoder_forward.18} parent=5 // pred_check
      _
    $region10: #{encoder_forward.18} parent=5 // pred_check_branch
      %138 = sbr.rel (%p135) target = $region12
    $region11: #{encoder_forward.18} parent=5 // pred_region
      %s139 = ssub.s32 %s10, 1
      // Predicated region
      $region13: #{encoder_forward.18} parent=11 // pred_check
        %p140 = pneg %p57
      $region14: #{encoder_forward.18} parent=11 // pred_check_branch
        %142 = sbr.rel (%p140) target = $region16
      $region15: #{encoder_forward.18} parent=11 // pred_region
        _
      $region16: #{encoder_forward.18} parent=11 // pred_fallthru
        _
      // Predicated region
      $region17: #{encoder_forward.18} parent=11 // pred_check
        %p143 = pneg %p78
      $region18: #{encoder_forward.18} parent=11 // pred_check_branch
        %145 = sbr.rel (%p143) target = $region20
      $region19: #{encoder_forward.18} parent=11 // pred_region
        _
      $region20: #{encoder_forward.18} parent=11 // pred_fallthru
        _
      // Predicated region
      $region21: #{encoder_forward.18} parent=11 // pred_check
        %p146 = pneg %p99
      $region22: #{encoder_forward.18} parent=11 // pred_check_branch
        %148 = sbr.rel (%p146) target = $region24
      $region23: #{encoder_forward.18} parent=11 // pred_region
        _
      $region24: #{encoder_forward.18} parent=11 // pred_fallthru
        _
    $region12: #{encoder_forward.18} parent=5 // pred_fallthru
      _
    %p149 = scmp.lt.s32.totalorder %s10, 3
    // Predicated region
    $region25: #{encoder_forward.18} parent=5 // pred_check
      %p150 = pneg %p149
    $region26: #{encoder_forward.18} parent=5 // pred_check_branch
      %152 = sbr.rel (%p150) target = $region28
    $region27: #{encoder_forward.18} parent=5 // pred_region
      // Predicated region
      $region29: #{encoder_forward.18} parent=27 // pred_check
        %p153 = pneg %p30
      $region30: #{encoder_forward.18} parent=27 // pred_check_branch
        %155 = sbr.rel (%p153) target = $region32
      $region31: #{encoder_forward.18} parent=27 // pred_region
        %s156 = smul.u32 3, %s10
        %p157 = scmp.lt.s32.totalorder %s156, 8
        %s158 = scalar_select %p157, %s156, 8
        %s159 = smul.addr %s158, 8
        %s160 = scalar_lea.vmem %s0, %s159
        %s161 = smul.u32 3, %s10
      $region32: #{encoder_forward.18} parent=27 // pred_fallthru
        _
    $region28: #{encoder_forward.18} parent=5 // pred_fallthru
      _
    %p162 = scmp.le.s32.totalorder 1, %s10
    %p163 = scmp.lt.s32.totalorder %s10, 4
    %p164 = pnand %p162, %p163
    %p165 = pneg %p164
    // Predicated region
    $region33: #{encoder_forward.18} parent=5 // pred_check
      _
    $region34: #{encoder_forward.18} parent=5 // pred_check_branch
      %167 = sbr.rel (%p164) target = $region36
    $region35: #{encoder_forward.18} parent=5 // pred_region
      %s168 = ssub.s32 %s10, 1
      %s169 = smul.u32 3, %s15
      %p170 = scmp.lt.s32.totalorder %s169, 8
      %s171 = scalar_select %p170, %s169, 8
      %s172 = smul.addr %s171, 8
      %s173 = scalar_lea.vmem %s0, %s172
      %p174 = pneg %p36
      %p175 = pneg %p33
      %p176 = pneg %p57
      %p177 = pneg %p54
      %p178 = pneg %p78
      %p179 = pneg %p75
      %p180 = pneg %p99
      %p181 = pneg %p96
      %p182 = pneg %p125
      %p183 = pneg %p122
      %s184 = smul.u32 3, %s15
      %p185 = scmp.lt.s32.totalorder %s184, 8
      %s186 = scalar_select %p185, %s184, 8
      %s187 = smul.addr %s186, 8
      %s188 = scalar_lea.vmem %s4, %s187
      %s189 = smul.u32 3, %s15
      %p190 = scmp.lt.s32.totalorder %s189, 8
      %s191 = scalar_select %p190, %s189, 8
      %s192 = smul.addr %s191, 8
      %s193 = scalar_lea.vmem %s0, %s192
      %s194 = smul.u32 3, %s15
      %s195 = smul.u32 3, %s15
      %p196 = scmp.lt.s32.totalorder %s195, 8
      %s197 = scalar_select %p196, %s195, 8
      %s198 = smul.addr %s197, 8
      %s199 = scalar_lea.vmem %s4, %s198
      %s200 = smul.u32 3, %s15
      %v201 = vld [vmem:[%s193] sm:$0xff]
      %v202 = vld [vmem:[%s193 + $0x8] sm:$0xff]
      %v203 = vld [vmem:[%s193 + $0x10] sm:$0xff]
      %v204 = vld [vmem:[%s1] sm:$0xff]
      %v205 = vld [vmem:[%s1 + $0x8] sm:$0xff]
      %v206 = vld [vmem:[%s1 + $0x10] sm:$0xff]
      %v207 = vld [vmem:[%s1 + $0x18] sm:$0xff]
      %v208 = vld [vmem:[%s2] sm:$0x1]
      %v210 = vperm.slane %v208, 0
      %vm212 = vcmask 261120
      %v214 = vsel %vm212, %v201, 0
      %v217 = vsel %vm212, %v202, 0
      %v220 = vsel %vm212, %v203, 0
      %222 = vmatpush.msra.mxu0 0.0
      %223 = vmatpush.msra.mxu0 0.0
      %224 = vmatpush.msra.mxu0 0.0
      %225 = vmatpush.msra.mxu0 0.0
      %226 = vmatpush.msra.mxu0 0.0
      %227 = vmatpush.msra.mxu0 0.0
      %228 = vmatpush.msra.mxu0 0.0
      %229 = vmatpush.msra.mxu0 0.0
      %230 = vmatpush.msra.mxu0 0.0
      %231 = vmatpush.msra.mxu0 0.0
      %232 = vmatpush.msra.mxu0 0.0
      %233 = vmatpush.msra.mxu0 0.0
      %234 = vmatpush.msra.mxu0 %v207
      %235 = vmatpush.msra.mxu0 %v206
      %236 = vmatpush.msra.mxu0 %v205
      %237 = vmatpush.msra.mxu0 %v204
      %238 = vmatmul.f32.gmra.mxu0 %v214
      %v239 = vpop.f32.mrf.mxu0
      %v240 = vadd.f32 %v210, %v239
      %241 = vmatmul.f32.gmra.mxu0 %v217
      %v242 = vpop.f32.mrf.mxu0
      %v243 = vadd.f32 %v210, %v242
      %244 = vmatmul.f32.gmra.mxu0 %v220
      %v245 = vpop.f32.mrf.mxu0
      %v246 = vadd.f32 %v210, %v245
      %247 = vdwg.mxu0
      %v248 = vld [vmem:[%s3] sm:$0xff]
      %v249 = vld [vmem:[%s3 + $0x8] sm:$0xff]
      %v250 = vld [vmem:[%s3 + $0x10] sm:$0xff]
      %v251 = vld [vmem:[%s3 + $0x18] sm:$0xff]
      %v253 = vsel %vm212, %v240, 0
      %v256 = vsel %vm212, %v243, 0
      %v259 = vsel %vm212, %v246, 0
      %261 = vmatpush.msra.mxu0 0.0
      %262 = vmatpush.msra.mxu0 0.0
      %263 = vmatpush.msra.mxu0 0.0
      %264 = vmatpush.msra.mxu0 0.0
      %265 = vmatpush.msra.mxu0 0.0
      %266 = vmatpush.msra.mxu0 0.0
      %267 = vmatpush.msra.mxu0 0.0
      %268 = vmatpush.msra.mxu0 0.0
      %269 = vmatpush.msra.mxu0 0.0
      %270 = vmatpush.msra.mxu0 0.0
      %271 = vmatpush.msra.mxu0 0.0
      %272 = vmatpush.msra.mxu0 0.0
      %273 = vmatpush.msra.mxu0 %v251
      %274 = vmatpush.msra.mxu0 %v250
      %275 = vmatpush.msra.mxu0 %v249
      %276 = vmatpush.msra.mxu0 %v248
      %277 = vmatmul.f32.gmra.mxu0 %v253
      %v278 = vpop.f32.mrf.mxu0
      %v279 = vadd.f32 0.0, %v278
      %280 = vmatmul.f32.gmra.mxu0 %v256
      %v281 = vpop.f32.mrf.mxu0
      %v282 = vadd.f32 0.0, %v281
      %283 = vmatmul.f32.gmra.mxu0 %v259
      %v284 = vpop.f32.mrf.mxu0
      %v285 = vadd.f32 0.0, %v284
      %286 = vdwg.mxu0
      %287 = vst [vmem:[%s199] sm:$0xff] %v279
      %288 = vst [vmem:[%s199 + $0x8] sm:$0xff] %v282
      %289 = vst [vmem:[%s199 + $0x10] sm:$0xff] %v285
      %s290 = smul.u32 3, %s15
      %p291 = scmp.lt.s32.totalorder %s290, 8
      %s292 = scalar_select %p291, %s290, 8
      %s293 = smul.addr %s292, 8
      %s294 = scalar_lea.vmem %s4, %s293
      // Predicated region
      $region37: #{encoder_forward.18} parent=35 // pred_check
        %p295 = pneg %p122
      $region38: #{encoder_forward.18} parent=35 // pred_check_branch
        %297 = sbr.rel (%p295) target = $region40
      $region39: #{encoder_forward.18} parent=35 // pred_region
        %s298 = smul.u32 3, %s15
      $region40: #{encoder_forward.18} parent=35 // pred_fallthru
        _
    $region36: #{encoder_forward.18} parent=5 // pred_fallthru
      _
    %p299 = scmp.le.s32.totalorder 2, %s10
    // Predicated region
    $region41: #{encoder_forward.18} parent=5 // pred_check
      %p300 = pneg %p299
    $region42: #{encoder_forward.18} parent=5 // pred_check_branch
      %302 = sbr.rel (%p300) target = $region44
    $region43: #{encoder_forward.18} parent=5 // pred_region
      %s303 = ssub.s32 %s10, 2
      // Predicated region
      $region45: #{encoder_forward.18} parent=43 // pred_check
        %p304 = pneg %p128
      $region46: #{encoder_forward.18} parent=43 // pred_check_branch
        %306 = sbr.rel (%p304) target = $region48
      $region47: #{encoder_forward.18} parent=43 // pred_region
        %s307 = smul.u32 3, %s16
        %p308 = scmp.lt.s32.totalorder %s307, 8
        %s309 = scalar_select %p308, %s307, 8
        %s310 = smul.addr %s309, 8
        %s311 = scalar_lea.vmem %s4, %s310
      $region48: #{encoder_forward.18} parent=43 // pred_fallthru
        _
    $region44: #{encoder_forward.18} parent=5 // pred_fallthru
      _
  $region6: #{encoder_forward.18} parent=0 // loop_footer
    %s14 = sadd.s32 1, %s10
  $region7: #{encoder_forward.18} parent=0 // loop_footer_branch
    %9 = sbr.rel target = $region3
  $region8: #{encoder_forward.18} parent=0 // loop_exit
    _

// kernel: encoder_forward.17
$region0: #{encoder_forward.17}
  #allocation0 [shape = 'u32[]', space=smem, size = 0x4, offset = 0x4, fixed_abs, tag = 'smem constant byte address 0x4 - core index']
  #allocation1 [shape = 'u32[72,128]{1,0:T(1,128)}', space=vmem, size = 0x9000, scoped, tag = 'internal scratch']
  %s0 = inlined_call_operand.vmem [shape: f32[72,6], index: 0, kind: input, shape index: {}]
  %s1 = inlined_call_operand.hbm [shape: f32[6,32], index: 1, kind: input, shape index: {}]
  %s2 = inlined_call_operand.hbm [shape: f32[1,32], index: 2, kind: input, shape index: {}]
  %s3 = inlined_call_operand.hbm [shape: f32[32,32], index: 3, kind: input, shape index: {}]
  %s4 = inlined_call_operand.hbm [shape: f32[1,32], index: 4, kind: input, shape index: {}]
  %s5 = inlined_call_operand.vmem [shape: f32[72,32], index: 5, kind: output, shape index: {}]
  %s6 = sld [smem:[#allocation0]]
  $region69: #{encoder_forward.17} parent=0
    _
  %s8 = ssub.s32 1, %s6
  %s9 = scalar_select 0, %s8, %s6
  $region1: #{encoder_forward.17} parent=0
    #allocation2 [shape = 'u8[4096]{0}', space=vmem, size = 0x1000, scoped, tag = 'input window, operand 1, single buffered']
    #allocation3 [shape = 's32[2]{0}', space=sflag, size = 0x8, scoped, tag = 'scoped memory for encoder_forward.17']
    #allocation4 [shape = 'u8[512]{0}', space=vmem, size = 0x400, scoped, tag = 'input window, operand 2, single buffered']
    #allocation5 [shape = 's32[1]{0}', space=sflag, size = 0x4, scoped, tag = 'scoped memory for encoder_forward.17']
    #allocation6 [shape = 'u8[16384]{0}', space=vmem, size = 0x4000, scoped, tag = 'input window, operand 3, single buffered']
    #allocation7 [shape = 'u8[512]{0}', space=vmem, size = 0x400, scoped, tag = 'input window, operand 4, single buffered']
    #allocation8 [shape = 's32[1]{0}', space=sflag, size = 0x4, scoped, tag = 'scoped memory for encoder_forward.17']
    %10 = vsyncpa [#allocation3], 0
    %11 = vsyncpa [#allocation5], 0
    %12 = vsyncpa [#allocation8], 0
    loop: start=0, step=1, limit=5
    $region2: #{encoder_forward.17} parent=1 // loop_pre_header
      _
    $region3: #{encoder_forward.17} parent=1 // loop_header
      %s14 = sphi 0, %s18
      %p15 = scmp.ge.s32.totalorder %s14, 5
      %s24 = sphi 0, %s26
      %s27 = sphi 0, %s24
      %s28 = sphi 0, %s27
      %s44 = sphi 0, %s28
      %s48 = sphi 0, %s48
      %s50 = sphi 0, %s48
      %s51 = sphi 0, %s50
      %s65 = sphi 0, %s51
      %s69 = sphi 0, %s69
      %s71 = sphi 0, %s69
      %s72 = sphi 0, %s71
      %s86 = sphi 0, %s72
      %s90 = sphi 0, %s90
      %s92 = sphi 0, %s90
      %s93 = sphi 0, %s92
      %s107 = sphi 0, %s93
      %s111 = sphi 0, %s111
      %s113 = sphi 0, %s111
      %s114 = sphi 0, %s113
      %s128 = sphi 0, %s114
      %s134 = sphi 0, %s136
      %s137 = sphi 0, %s134
      %s138 = sphi 0, %s137
      %s154 = sphi 0, %s138
    $region4: #{encoder_forward.17} parent=1 // loop_header_branch
      %17 = sbr.rel (%p15) target = $region8
    $region5: #{encoder_forward.17} parent=1 // loop_body
      %s19 = ssub.s32 %s14, 1
      %s20 = ssub.s32 %s14, 2
      %s21 = sadd.s32 %s14, 1
      %s22 = ssub.s32 %s14, %s21
      %p23 = scmp.eq.s32.totalorder %s22, 0
      %s25 = sadd.s32 %s24, 1
      %s26 = scalar_select %p23, %s24, %s25
      %p29 = pneg %p23
      %p30 = scmp.eq.s32.totalorder %s14, 2
      %p31 = por %p29, %p30
      %p32 = scmp.ne.s32.totalorder %s24, %s27
      %p33 = scmp.eq.s32.totalorder %s14, 0
      %p34 = por %p32, %p33
      %p35 = scmp.ne.s32.totalorder %s24, %s27
      %p36 = scmp.eq.s32.totalorder %s19, 2
      %p37 = por %p35, %p36
      %p38 = scmp.ne.s32.totalorder %s27, %s28
      %p39 = scmp.eq.s32.totalorder %s19, 0
      %p40 = por %p38, %p39
      %p41 = scmp.ne.s32.totalorder %s27, %s28
      %p42 = scmp.eq.s32.totalorder %s20, 2
      %p43 = por %p41, %p42
      %p45 = scmp.ne.s32.totalorder %s28, %s44
      %p46 = scmp.eq.s32.totalorder %s20, 0
      %p47 = por %p45, %p46
      %s49 = sadd.s32 %s48, 1
      %p52 = scmp.eq.s32.totalorder %s14, 2
      %p53 = scmp.ne.s32.totalorder %s48, %s50
      %p54 = scmp.eq.s32.totalorder %s14, 0
      %p55 = por %p53, %p54
      %p56 = scmp.ne.s32.totalorder %s48, %s50
      %p57 = scmp.eq.s32.totalorder %s19, 2
      %p58 = por %p56, %p57
      %p59 = scmp.ne.s32.totalorder %s50, %s51
      %p60 = scmp.eq.s32.totalorder %s19, 0
      %p61 = por %p59, %p60
      %p62 = scmp.ne.s32.totalorder %s50, %s51
      %p63 = scmp.eq.s32.totalorder %s20, 2
      %p64 = por %p62, %p63
      %p66 = scmp.ne.s32.totalorder %s51, %s65
      %p67 = scmp.eq.s32.totalorder %s20, 0
      %p68 = por %p66, %p67
      %s70 = sadd.s32 %s69, 1
      %p73 = scmp.eq.s32.totalorder %s14, 2
      %p74 = scmp.ne.s32.totalorder %s69, %s71
      %p75 = scmp.eq.s32.totalorder %s14, 0
      %p76 = por %p74, %p75
      %p77 = scmp.ne.s32.totalorder %s69, %s71
      %p78 = scmp.eq.s32.totalorder %s19, 2
      %p79 = por %p77, %p78
      %p80 = scmp.ne.s32.totalorder %s71, %s72
      %p81 = scmp.eq.s32.totalorder %s19, 0
      %p82 = por %p80, %p81
      %p83 = scmp.ne.s32.totalorder %s71, %s72
      %p84 = scmp.eq.s32.totalorder %s20, 2
      %p85 = por %p83, %p84
      %p87 = scmp.ne.s32.totalorder %s72, %s86
      %p88 = scmp.eq.s32.totalorder %s20, 0
      %p89 = por %p87, %p88
      %s91 = sadd.s32 %s90, 1
      %p94 = scmp.eq.s32.totalorder %s14, 2
      %p95 = scmp.ne.s32.totalorder %s90, %s92
      %p96 = scmp.eq.s32.totalorder %s14, 0
      %p97 = por %p95, %p96
      %p98 = scmp.ne.s32.totalorder %s90, %s92
      %p99 = scmp.eq.s32.totalorder %s19, 2
      %p100 = por %p98, %p99
      %p101 = scmp.ne.s32.totalorder %s92, %s93
      %p102 = scmp.eq.s32.totalorder %s19, 0
      %p103 = por %p101, %p102
      %p104 = scmp.ne.s32.totalorder %s92, %s93
      %p105 = scmp.eq.s32.totalorder %s20, 2
      %p106 = por %p104, %p105
      %p108 = scmp.ne.s32.totalorder %s93, %s107
      %p109 = scmp.eq.s32.totalorder %s20, 0
      %p110 = por %p108, %p109
      %s112 = sadd.s32 %s111, 1
      %p115 = scmp.eq.s32.totalorder %s14, 2
      %p116 = scmp.ne.s32.totalorder %s111, %s113
      %p117 = scmp.eq.s32.totalorder %s14, 0
      %p118 = por %p116, %p117
      %p119 = scmp.ne.s32.totalorder %s111, %s113
      %p120 = scmp.eq.s32.totalorder %s19, 2
      %p121 = por %p119, %p120
      %p122 = scmp.ne.s32.totalorder %s113, %s114
      %p123 = scmp.eq.s32.totalorder %s19, 0
      %p124 = por %p122, %p123
      %p125 = scmp.ne.s32.totalorder %s113, %s114
      %p126 = scmp.eq.s32.totalorder %s20, 2
      %p127 = por %p125, %p126
      %p129 = scmp.ne.s32.totalorder %s114, %s128
      %p130 = scmp.eq.s32.totalorder %s20, 0
      %p131 = por %p129, %p130
      %s132 = ssub.s32 %s14, %s21
      %p133 = scmp.eq.s32.totalorder %s132, 0
      %s135 = sadd.s32 %s134, 1
      %s136 = scalar_select %p133, %s134, %s135
      %p139 = pneg %p133
      %p140 = scmp.eq.s32.totalorder %s14, 2
      %p141 = por %p139, %p140
      %p142 = scmp.ne.s32.totalorder %s134, %s137
      %p143 = scmp.eq.s32.totalorder %s14, 0
      %p144 = por %p142, %p143
      %p145 = scmp.ne.s32.totalorder %s134, %s137
      %p146 = scmp.eq.s32.totalorder %s19, 2
      %p147 = por %p145, %p146
      %p148 = scmp.ne.s32.totalorder %s137, %s138
      %p149 = scmp.eq.s32.totalorder %s19, 0
      %p150 = por %p148, %p149
      %p151 = scmp.ne.s32.totalorder %s137, %s138
      %p152 = scmp.eq.s32.totalorder %s20, 2
      %p153 = por %p151, %p152
      %p155 = scmp.ne.s32.totalorder %s138, %s154
      %p156 = scmp.eq.s32.totalorder %s20, 0
      %p157 = por %p155, %p156
      %p158 = scmp.le.s32.totalorder 1, %s14
      %p159 = scmp.lt.s32.totalorder %s14, 4
      %p160 = pnand %p158, %p159
      %p161 = pneg %p160
      // Predicated region
      $region9: #{encoder_forward.17} parent=5 // pred_check
        _
      $region10: #{encoder_forward.17} parent=5 // pred_check_branch
        %163 = sbr.rel (%p160) target = $region12
      $region11: #{encoder_forward.17} parent=5 // pred_region
        %s164 = ssub.s32 %s14, 1
        // Predicated region
        $region13: #{encoder_forward.17} parent=11 // pred_check
          %p165 = pneg %p61
        $region14: #{encoder_forward.17} parent=11 // pred_check_branch
          %167 = sbr.rel (%p165) target = $region16
        $region15: #{encoder_forward.17} parent=11 // pred_region
          %169 = vsyncadd [#allocation3], 0
          %s171 = sshll.u32 %s1, 4
          %s172 = int_to_ptr.hbm [resolvable:$true] %s171
          %s173 = sshll.u32 [#allocation2], 4
          %s174 = int_to_ptr.vmem [resolvable:$true] %s173
          %176 = dma.hbm_to_vmem [thread:$0]  %s172, 128, %s174, [#allocation3]
        $region16: #{encoder_forward.17} parent=11 // pred_fallthru
          _
        // Predicated region
        $region17: #{encoder_forward.17} parent=11 // pred_check
          %p177 = pneg %p82
        $region18: #{encoder_forward.17} parent=11 // pred_check_branch
          %179 = sbr.rel (%p177) target = $region20
        $region19: #{encoder_forward.17} parent=11 // pred_region
          %181 = vsyncadd [#allocation5], 0
          %s183 = sshll.u32 %s2, 4
          %s184 = int_to_ptr.hbm [resolvable:$true] %s183
          %s185 = sshll.u32 [#allocation4], 4
          %s186 = int_to_ptr.vmem [resolvable:$true] %s185
          %188 = dma.hbm_to_vmem [thread:$0]  %s184, 16, %s186, [#allocation5]
        $region20: #{encoder_forward.17} parent=11 // pred_fallthru
          _
        // Predicated region
        $region21: #{encoder_forward.17} parent=11 // pred_check
          %p189 = pneg %p103
        $region22: #{encoder_forward.17} parent=11 // pred_check_branch
          %191 = sbr.rel (%p189) target = $region24
        $region23: #{encoder_forward.17} parent=11 // pred_region
          %193 = vsyncadd [#allocation5], 0
          %s194 = sshll.u32 %s3, 4
          %s195 = int_to_ptr.hbm [resolvable:$true] %s194
          %s196 = sshll.u32 [#allocation6], 4
          %s197 = int_to_ptr.vmem [resolvable:$true] %s196
          %202 = dma.hbm_to_vmem [thread:$0]  %s195, 512, %s197, [#allocation5], 128, 128, 8
        $region24: #{encoder_forward.17} parent=11 // pred_fallthru
          _
        // Predicated region
        $region25: #{encoder_forward.17} parent=11 // pred_check
          %p203 = pneg %p124
        $region26: #{encoder_forward.17} parent=11 // pred_check_branch
          %205 = sbr.rel (%p203) target = $region28
        $region27: #{encoder_forward.17} parent=11 // pred_region
          %207 = vsyncadd [#allocation8], 0
          %s209 = sshll.u32 %s4, 4
          %s210 = int_to_ptr.hbm [resolvable:$true] %s209
          %s211 = sshll.u32 [#allocation7], 4
          %s212 = int_to_ptr.vmem [resolvable:$true] %s211
          %214 = dma.hbm_to_vmem [thread:$0]  %s210, 16, %s212, [#allocation8]
        $region28: #{encoder_forward.17} parent=11 // pred_fallthru
          _
      $region12: #{encoder_forward.17} parent=5 // pred_fallthru
        _
      %p215 = scmp.lt.s32.totalorder %s14, 3
      // Predicated region
      $region29: #{encoder_forward.17} parent=5 // pred_check
        %p216 = pneg %p215
      $region30: #{encoder_forward.17} parent=5 // pred_check_branch
        %218 = sbr.rel (%p216) target = $region32
      $region31: #{encoder_forward.17} parent=5 // pred_region
        // Predicated region
        $region33: #{encoder_forward.17} parent=31 // pred_check
          %p219 = pneg %p34
        $region34: #{encoder_forward.17} parent=31 // pred_check_branch
          %221 = sbr.rel (%p219) target = $region36
        $region35: #{encoder_forward.17} parent=31 // pred_region
          %s222 = smul.u32 3, %s14
          %p223 = scmp.lt.s32.totalorder %s222, 8
          %s224 = scalar_select %p223, %s222, 8
          %s225 = smul.addr %s224, 8
          %s226 = scalar_lea.vmem %s0, %s225
          %s227 = smul.u32 3, %s14
        $region36: #{encoder_forward.17} parent=31 // pred_fallthru
          _
      $region32: #{encoder_forward.17} parent=5 // pred_fallthru
        _
      %p228 = scmp.le.s32.totalorder 1, %s14
      %p229 = scmp.lt.s32.totalorder %s14, 4
      %p230 = pnand %p228, %p229
      %p231 = pneg %p230
      // Predicated region
      $region37: #{encoder_forward.17} parent=5 // pred_check
        _
      $region38: #{encoder_forward.17} parent=5 // pred_check_branch
        %233 = sbr.rel (%p230) target = $region40
      $region39: #{encoder_forward.17} parent=5 // pred_region
        %s234 = ssub.s32 %s14, 1
        // Predicated region
        $region41: #{encoder_forward.17} parent=39 // pred_check
          %p235 = pneg %p61
        $region42: #{encoder_forward.17} parent=39 // pred_check_branch
          %237 = sbr.rel (%p235) target = $region44
        $region43: #{encoder_forward.17} parent=39 // pred_region
          %239 = dma.done [#allocation3], 128
        $region44: #{encoder_forward.17} parent=39 // pred_fallthru
          _
        // Predicated region
        $region45: #{encoder_forward.17} parent=39 // pred_check
          %p240 = pneg %p82
        $region46: #{encoder_forward.17} parent=39 // pred_check_branch
          %242 = sbr.rel (%p240) target = $region48
        $region47: #{encoder_forward.17} parent=39 // pred_region
          %244 = dma.done [#allocation5], 16
        $region48: #{encoder_forward.17} parent=39 // pred_fallthru
          _
        // Predicated region
        $region49: #{encoder_forward.17} parent=39 // pred_check
          %p245 = pneg %p103
        $region50: #{encoder_forward.17} parent=39 // pred_check_branch
          %247 = sbr.rel (%p245) target = $region52
        $region51: #{encoder_forward.17} parent=39 // pred_region
          %249 = dma.done [#allocation5], 512
        $region52: #{encoder_forward.17} parent=39 // pred_fallthru
          _
        // Predicated region
        $region53: #{encoder_forward.17} parent=39 // pred_check
          %p250 = pneg %p124
        $region54: #{encoder_forward.17} parent=39 // pred_check_branch
          %252 = sbr.rel (%p250) target = $region56
        $region55: #{encoder_forward.17} parent=39 // pred_region
          %254 = dma.done [#allocation8], 16
        $region56: #{encoder_forward.17} parent=39 // pred_fallthru
          _
        %s255 = smul.u32 3, %s19
        %p256 = scmp.lt.s32.totalorder %s255, 8
        %s257 = scalar_select %p256, %s255, 8
        %s258 = smul.addr %s257, 8
        %s259 = scalar_lea.vmem %s0, %s258
        %p260 = pneg %p40
        %p261 = pneg %p37
        %p262 = pneg %p61
        %p263 = pneg %p58
        %p264 = pneg %p82
        %p265 = pneg %p79
        %p266 = pneg %p103
        %p267 = pneg %p100
        %p268 = pneg %p124
        %p269 = pneg %p121
        %p270 = pneg %p150
        %p271 = pneg %p147
        %s272 = smul.u32 3, %s19
        %p273 = scmp.lt.s32.totalorder %s272, 8
        %s274 = scalar_select %p273, %s272, 8
        %s275 = smul.addr %s274, 8
        %s276 = scalar_lea.vmem %s5, %s275
        %s277 = smul.u32 3, %s19
        %p278 = scmp.lt.s32.totalorder %s277, 8
        %s279 = scalar_select %p278, %s277, 8
        %s280 = smul.addr %s279, 8
        %s281 = scalar_lea.vmem %s0, %s280
        %s282 = smul.u32 3, %s19
        %s283 = smul.u32 3, %s19
        %p284 = scmp.lt.s32.totalorder %s283, 8
        %s285 = scalar_select %p284, %s283, 8
        %s286 = smul.addr %s285, 8
        %s287 = scalar_lea.vmem %s5, %s286
        %s288 = smul.u32 3, %s19
        %v289 = vld [vmem:[%s281] sm:$0xff]
        %v290 = vld [vmem:[%s281 + $0x8] sm:$0xff]
        %v291 = vld [vmem:[%s281 + $0x10] sm:$0xff]
        %v292 = vld [vmem:[#allocation2] sm:$0x3f]
        %v293 = vld [vmem:[#allocation4] sm:$0x1]
        %v295 = vperm.slane %v293, 0
        %vm297 = vcmask 48128
        %v299 = vsel %vm297, %v289, 0
        %v302 = vsel %vm297, %v290, 0
        %v305 = vsel %vm297, %v291, 0
        %vm307 = vcmask 1045504
        %v309 = vsel %vm307, %v292, 0
        %311 = vmatpush.msra.mxu0 0.0
        %312 = vmatpush.msra.mxu0 0.0
        %313 = vmatpush.msra.mxu0 0.0
        %314 = vmatpush.msra.mxu0 0.0
        %315 = vmatpush.msra.mxu0 0.0
        %316 = vmatpush.msra.mxu0 0.0
        %317 = vmatpush.msra.mxu0 0.0
        %318 = vmatpush.msra.mxu0 0.0
        %319 = vmatpush.msra.mxu0 0.0
        %320 = vmatpush.msra.mxu0 0.0
        %321 = vmatpush.msra.mxu0 0.0
        %322 = vmatpush.msra.mxu0 0.0
        %323 = vmatpush.msra.mxu0 0.0
        %324 = vmatpush.msra.mxu0 0.0
        %325 = vmatpush.msra.mxu0 0.0
        %326 = vmatpush.msra.mxu0 %v309
        %327 = vmatmul.f32.gmra.mxu0 %v299
        %v328 = vpop.f32.mrf.mxu0
        %v329 = vadd.f32 %v295, %v328
        %330 = vmatmul.f32.gmra.mxu0 %v302
        %v331 = vpop.f32.mrf.mxu0
        %v332 = vadd.f32 %v295, %v331
        %333 = vmatmul.f32.gmra.mxu0 %v305
        %v334 = vpop.f32.mrf.mxu0
        %v335 = vadd.f32 %v295, %v334
        %336 = vdwg.mxu0
        %v337 = vmax.f32 %v329, 0.0
        %v338 = vmax.f32 %v332, 0.0
        %v339 = vmax.f32 %v335, 0.0
        %v340 = vld [vmem:[#allocation6] sm:$0xff]
        %v341 = vld [vmem:[#allocation6 + $0x8] sm:$0xff]
        %v342 = vld [vmem:[#allocation6 + $0x10] sm:$0xff]
        %v343 = vld [vmem:[#allocation6 + $0x18] sm:$0xff]
        %v344 = vld [vmem:[#allocation7] sm:$0x1]
        %v346 = vperm.slane %v344, 0
        %vm348 = vcmask 261120
        %v350 = vsel %vm348, %v337, 0
        %v353 = vsel %vm348, %v338, 0
        %v356 = vsel %vm348, %v339, 0
        %358 = vmatpush.msra.mxu0 0.0
        %359 = vmatpush.msra.mxu0 0.0
        %360 = vmatpush.msra.mxu0 0.0
        %361 = vmatpush.msra.mxu0 0.0
        %362 = vmatpush.msra.mxu0 0.0
        %363 = vmatpush.msra.mxu0 0.0
        %364 = vmatpush.msra.mxu0 0.0
        %365 = vmatpush.msra.mxu0 0.0
        %366 = vmatpush.msra.mxu0 0.0
        %367 = vmatpush.msra.mxu0 0.0
        %368 = vmatpush.msra.mxu0 0.0
        %369 = vmatpush.msra.mxu0 0.0
        %370 = vmatpush.msra.mxu0 %v343
        %371 = vmatpush.msra.mxu0 %v342
        %372 = vmatpush.msra.mxu0 %v341
        %373 = vmatpush.msra.mxu0 %v340
        %374 = vmatmul.f32.gmra.mxu0 %v350
        %v375 = vpop.f32.mrf.mxu0
        %v376 = vadd.f32 %v346, %v375
        %377 = vmatmul.f32.gmra.mxu0 %v353
        %v378 = vpop.f32.mrf.mxu0
        %v379 = vadd.f32 %v346, %v378
        %380 = vmatmul.f32.gmra.mxu0 %v356
        %v381 = vpop.f32.mrf.mxu0
        %v382 = vadd.f32 %v346, %v381
        %383 = vdwg.mxu0
        %384 = vst.msk [vmem:[%s287] sm:$0xff] %vm348, %v376
        %385 = vst.msk [vmem:[%s287 + $0x8] sm:$0xff] %vm348, %v379
        %386 = vst.msk [vmem:[%s287 + $0x10] sm:$0xff] %vm348, %v382
        %s387 = smul.u32 3, %s19
        %p388 = scmp.lt.s32.totalorder %s387, 8
        %s389 = scalar_select %p388, %s387, 8
        %s390 = smul.addr %s389, 8
        %s391 = scalar_lea.vmem %s5, %s390
        // Predicated region
        $region57: #{encoder_forward.17} parent=39 // pred_check
          %p392 = pneg %p147
        $region58: #{encoder_forward.17} parent=39 // pred_check_branch
          %394 = sbr.rel (%p392) target = $region60
        $region59: #{encoder_forward.17} parent=39 // pred_region
          %s395 = smul.u32 3, %s19
        $region60: #{encoder_forward.17} parent=39 // pred_fallthru
          _
      $region40: #{encoder_forward.17} parent=5 // pred_fallthru
        _
      %p396 = scmp.le.s32.totalorder 2, %s14
      // Predicated region
      $region61: #{encoder_forward.17} parent=5 // pred_check
        %p397 = pneg %p396
      $region62: #{encoder_forward.17} parent=5 // pred_check_branch
        %399 = sbr.rel (%p397) target = $region64
      $region63: #{encoder_forward.17} parent=5 // pred_region
        %s400 = ssub.s32 %s14, 2
        // Predicated region
        $region65: #{encoder_forward.17} parent=63 // pred_check
          %p401 = pneg %p153
        $region66: #{encoder_forward.17} parent=63 // pred_check_branch
          %403 = sbr.rel (%p401) target = $region68
        $region67: #{encoder_forward.17} parent=63 // pred_region
          %s404 = smul.u32 3, %s20
          %p405 = scmp.lt.s32.totalorder %s404, 8
          %s406 = scalar_select %p405, %s404, 8
          %s407 = smul.addr %s406, 8
          %s408 = scalar_lea.vmem %s5, %s407
        $region68: #{encoder_forward.17} parent=63 // pred_fallthru
          _
      $region64: #{encoder_forward.17} parent=5 // pred_fallthru
        _
    $region6: #{encoder_forward.17} parent=1 // loop_footer
      %s18 = sadd.s32 1, %s14
    $region7: #{encoder_forward.17} parent=1 // loop_footer_branch
      %13 = sbr.rel target = $region3
    $region8: #{encoder_forward.17} parent=1 // loop_exit
      _
    %409 = vsyncpa [#allocation3], 1
    %s410 = scalar_lea.sflag [#allocation3], 1
    %411 = vsyncpa %s410, 1
    %412 = vsyncpa [#allocation5], 1
    %413 = vsyncpa [#allocation8], 1

// kernel: encoder_forward.19
$region0: #{encoder_forward.19}
  #allocation0 [shape = 'u32[]', space=smem, size = 0x4, offset = 0x4, fixed_abs, tag = 'smem constant byte address 0x4 - core index']
  #allocation1 [shape = 'u32[72,128]{1,0:T(1,128)}', space=vmem, size = 0x9000, scoped, tag = 'internal scratch']
  %s0 = inlined_call_operand.vmem [shape: f32[288,3], index: 0, kind: input, shape index: {}]
  %s1 = inlined_call_operand.vmem [shape: f32[3,32], index: 1, kind: input, shape index: {}]
  %s2 = inlined_call_operand.vmem [shape: f32[1,32], index: 2, kind: input, shape index: {}]
  %s3 = inlined_call_operand.vmem [shape: f32[32,32], index: 3, kind: input, shape index: {}]
  %s4 = inlined_call_operand.vmem [shape: f32[1,32], index: 4, kind: input, shape index: {}]
  %s5 = inlined_call_operand.vmem [shape: f32[288,32], index: 5, kind: output, shape index: {}]
  %s6 = sld [smem:[#allocation0]]
  $region53: #{encoder_forward.19} parent=0
    _
  %s8 = ssub.s32 1, %s6
  %s9 = scalar_select 0, %s8, %s6
  loop: start=0, step=1, limit=4
  $region2: #{encoder_forward.19} parent=0 // loop_pre_header
    _
  $region3: #{encoder_forward.19} parent=0 // loop_header
    %s11 = sphi 0, %s15
    %p12 = scmp.ge.s32.totalorder %s11, 4
    %s21 = sphi 0, %s23
    %s24 = sphi 0, %s21
    %s25 = sphi 0, %s24
    %s41 = sphi 0, %s25
    %s45 = sphi 0, %s45
    %s47 = sphi 0, %s45
    %s48 = sphi 0, %s47
    %s62 = sphi 0, %s48
    %s66 = sphi 0, %s66
    %s68 = sphi 0, %s66
    %s69 = sphi 0, %s68
    %s83 = sphi 0, %s69
    %s87 = sphi 0, %s87
    %s89 = sphi 0, %s87
    %s90 = sphi 0, %s89
    %s104 = sphi 0, %s90
    %s108 = sphi 0, %s108
    %s110 = sphi 0, %s108
    %s111 = sphi 0, %s110
    %s125 = sphi 0, %s111
    %s131 = sphi 0, %s133
    %s134 = sphi 0, %s131
    %s135 = sphi 0, %s134
    %s151 = sphi 0, %s135
  $region4: #{encoder_forward.19} parent=0 // loop_header_branch
    %14 = sbr.rel (%p12) target = $region8
  $region5: #{encoder_forward.19} parent=0 // loop_body
    %s16 = ssub.s32 %s11, 1
    %s17 = ssub.s32 %s11, 2
    %s18 = sadd.s32 %s11, 1
    %s19 = ssub.s32 %s11, %s18
    %p20 = scmp.eq.s32.totalorder %s19, 0
    %s22 = sadd.s32 %s21, 1
    %s23 = scalar_select %p20, %s21, %s22
    %p26 = pneg %p20
    %p27 = scmp.eq.s32.totalorder %s11, 1
    %p28 = por %p26, %p27
    %p29 = scmp.ne.s32.totalorder %s21, %s24
    %p30 = scmp.eq.s32.totalorder %s11, 0
    %p31 = por %p29, %p30
    %p32 = scmp.ne.s32.totalorder %s21, %s24
    %p33 = scmp.eq.s32.totalorder %s16, 1
    %p34 = por %p32, %p33
    %p35 = scmp.ne.s32.totalorder %s24, %s25
    %p36 = scmp.eq.s32.totalorder %s16, 0
    %p37 = por %p35, %p36
    %p38 = scmp.ne.s32.totalorder %s24, %s25
    %p39 = scmp.eq.s32.totalorder %s17, 1
    %p40 = por %p38, %p39
    %p42 = scmp.ne.s32.totalorder %s25, %s41
    %p43 = scmp.eq.s32.totalorder %s17, 0
    %p44 = por %p42, %p43
    %s46 = sadd.s32 %s45, 1
    %p49 = scmp.eq.s32.totalorder %s11, 1
    %p50 = scmp.ne.s32.totalorder %s45, %s47
    %p51 = scmp.eq.s32.totalorder %s11, 0
    %p52 = por %p50, %p51
    %p53 = scmp.ne.s32.totalorder %s45, %s47
    %p54 = scmp.eq.s32.totalorder %s16, 1
    %p55 = por %p53, %p54
    %p56 = scmp.ne.s32.totalorder %s47, %s48
    %p57 = scmp.eq.s32.totalorder %s16, 0
    %p58 = por %p56, %p57
    %p59 = scmp.ne.s32.totalorder %s47, %s48
    %p60 = scmp.eq.s32.totalorder %s17, 1
    %p61 = por %p59, %p60
    %p63 = scmp.ne.s32.totalorder %s48, %s62
    %p64 = scmp.eq.s32.totalorder %s17, 0
    %p65 = por %p63, %p64
    %s67 = sadd.s32 %s66, 1
    %p70 = scmp.eq.s32.totalorder %s11, 1
    %p71 = scmp.ne.s32.totalorder %s66, %s68
    %p72 = scmp.eq.s32.totalorder %s11, 0
    %p73 = por %p71, %p72
    %p74 = scmp.ne.s32.totalorder %s66, %s68
    %p75 = scmp.eq.s32.totalorder %s16, 1
    %p76 = por %p74, %p75
    %p77 = scmp.ne.s32.totalorder %s68, %s69
    %p78 = scmp.eq.s32.totalorder %s16, 0
    %p79 = por %p77, %p78
    %p80 = scmp.ne.s32.totalorder %s68, %s69
    %p81 = scmp.eq.s32.totalorder %s17, 1
    %p82 = por %p80, %p81
    %p84 = scmp.ne.s32.totalorder %s69, %s83
    %p85 = scmp.eq.s32.totalorder %s17, 0
    %p86 = por %p84, %p85
    %s88 = sadd.s32 %s87, 1
    %p91 = scmp.eq.s32.totalorder %s11, 1
    %p92 = scmp.ne.s32.totalorder %s87, %s89
    %p93 = scmp.eq.s32.totalorder %s11, 0
    %p94 = por %p92, %p93
    %p95 = scmp.ne.s32.totalorder %s87, %s89
    %p96 = scmp.eq.s32.totalorder %s16, 1
    %p97 = por %p95, %p96
    %p98 = scmp.ne.s32.totalorder %s89, %s90
    %p99 = scmp.eq.s32.totalorder %s16, 0
    %p100 = por %p98, %p99
    %p101 = scmp.ne.s32.totalorder %s89, %s90
    %p102 = scmp.eq.s32.totalorder %s17, 1
    %p103 = por %p101, %p102
    %p105 = scmp.ne.s32.totalorder %s90, %s104
    %p106 = scmp.eq.s32.totalorder %s17, 0
    %p107 = por %p105, %p106
    %s109 = sadd.s32 %s108, 1
    %p112 = scmp.eq.s32.totalorder %s11, 1
    %p113 = scmp.ne.s32.totalorder %s108, %s110
    %p114 = scmp.eq.s32.totalorder %s11, 0
    %p115 = por %p113, %p114
    %p116 = scmp.ne.s32.totalorder %s108, %s110
    %p117 = scmp.eq.s32.totalorder %s16, 1
    %p118 = por %p116, %p117
    %p119 = scmp.ne.s32.totalorder %s110, %s111
    %p120 = scmp.eq.s32.totalorder %s16, 0
    %p121 = por %p119, %p120
    %p122 = scmp.ne.s32.totalorder %s110, %s111
    %p123 = scmp.eq.s32.totalorder %s17, 1
    %p124 = por %p122, %p123
    %p126 = scmp.ne.s32.totalorder %s111, %s125
    %p127 = scmp.eq.s32.totalorder %s17, 0
    %p128 = por %p126, %p127
    %s129 = ssub.s32 %s11, %s18
    %p130 = scmp.eq.s32.totalorder %s129, 0
    %s132 = sadd.s32 %s131, 1
    %s133 = scalar_select %p130, %s131, %s132
    %p136 = pneg %p130
    %p137 = scmp.eq.s32.totalorder %s11, 1
    %p138 = por %p136, %p137
    %p139 = scmp.ne.s32.totalorder %s131, %s134
    %p140 = scmp.eq.s32.totalorder %s11, 0
    %p141 = por %p139, %p140
    %p142 = scmp.ne.s32.totalorder %s131, %s134
    %p143 = scmp.eq.s32.totalorder %s16, 1
    %p144 = por %p142, %p143
    %p145 = scmp.ne.s32.totalorder %s134, %s135
    %p146 = scmp.eq.s32.totalorder %s16, 0
    %p147 = por %p145, %p146
    %p148 = scmp.ne.s32.totalorder %s134, %s135
    %p149 = scmp.eq.s32.totalorder %s17, 1
    %p150 = por %p148, %p149
    %p152 = scmp.ne.s32.totalorder %s135, %s151
    %p153 = scmp.eq.s32.totalorder %s17, 0
    %p154 = por %p152, %p153
    %p155 = scmp.le.s32.totalorder 1, %s11
    %p156 = scmp.lt.s32.totalorder %s11, 3
    %p157 = pnand %p155, %p156
    %p158 = pneg %p157
    // Predicated region
    $region9: #{encoder_forward.19} parent=5 // pred_check
      _
    $region10: #{encoder_forward.19} parent=5 // pred_check_branch
      %160 = sbr.rel (%p157) target = $region12
    $region11: #{encoder_forward.19} parent=5 // pred_region
      %s161 = ssub.s32 %s11, 1
      // Predicated region
      $region13: #{encoder_forward.19} parent=11 // pred_check
        %p162 = pneg %p58
      $region14: #{encoder_forward.19} parent=11 // pred_check_branch
        %164 = sbr.rel (%p162) target = $region16
      $region15: #{encoder_forward.19} parent=11 // pred_region
        _
      $region16: #{encoder_forward.19} parent=11 // pred_fallthru
        _
      // Predicated region
      $region17: #{encoder_forward.19} parent=11 // pred_check
        %p165 = pneg %p79
      $region18: #{encoder_forward.19} parent=11 // pred_check_branch
        %167 = sbr.rel (%p165) target = $region20
      $region19: #{encoder_forward.19} parent=11 // pred_region
        _
      $region20: #{encoder_forward.19} parent=11 // pred_fallthru
        _
      // Predicated region
      $region21: #{encoder_forward.19} parent=11 // pred_check
        %p168 = pneg %p100
      $region22: #{encoder_forward.19} parent=11 // pred_check_branch
        %170 = sbr.rel (%p168) target = $region24
      $region23: #{encoder_forward.19} parent=11 // pred_region
        _
      $region24: #{encoder_forward.19} parent=11 // pred_fallthru
        _
      // Predicated region
      $region25: #{encoder_forward.19} parent=11 // pred_check
        %p171 = pneg %p121
      $region26: #{encoder_forward.19} parent=11 // pred_check_branch
        %173 = sbr.rel (%p171) target = $region28
      $region27: #{encoder_forward.19} parent=11 // pred_region
        _
      $region28: #{encoder_forward.19} parent=11 // pred_fallthru
        _
    $region12: #{encoder_forward.19} parent=5 // pred_fallthru
      _
    %p174 = scmp.lt.s32.totalorder %s11, 2
    // Predicated region
    $region29: #{encoder_forward.19} parent=5 // pred_check
      %p175 = pneg %p174
    $region30: #{encoder_forward.19} parent=5 // pred_check_branch
      %177 = sbr.rel (%p175) target = $region32
    $region31: #{encoder_forward.19} parent=5 // pred_region
      // Predicated region
      $region33: #{encoder_forward.19} parent=31 // pred_check
        %p178 = pneg %p31
      $region34: #{encoder_forward.19} parent=31 // pred_check_branch
        %180 = sbr.rel (%p178) target = $region36
      $region35: #{encoder_forward.19} parent=31 // pred_region
        %s181 = smul.u32 18, %s11
        %p182 = scmp.lt.s32.totalorder %s181, 35
        %s183 = scalar_select %p182, %s181, 35
        %s184 = smul.addr %s183, 8
        %s185 = scalar_lea.vmem %s0, %s184
        %s186 = smul.u32 18, %s11
      $region36: #{encoder_forward.19} parent=31 // pred_fallthru
        _
    $region32: #{encoder_forward.19} parent=5 // pred_fallthru
      _
    %p187 = scmp.le.s32.totalorder 1, %s11
    %p188 = scmp.lt.s32.totalorder %s11, 3
    %p189 = pnand %p187, %p188
    %p190 = pneg %p189
    // Predicated region
    $region37: #{encoder_forward.19} parent=5 // pred_check
      _
    $region38: #{encoder_forward.19} parent=5 // pred_check_branch
      %192 = sbr.rel (%p189) target = $region40
    $region39: #{encoder_forward.19} parent=5 // pred_region
      %s193 = ssub.s32 %s11, 1
      %s194 = smul.u32 18, %s16
      %p195 = scmp.lt.s32.totalorder %s194, 35
      %s196 = scalar_select %p195, %s194, 35
      %s197 = smul.addr %s196, 8
      %s198 = scalar_lea.vmem %s0, %s197
      %p199 = pneg %p37
      %p200 = pneg %p34
      %p201 = pneg %p58
      %p202 = pneg %p55
      %p203 = pneg %p79
      %p204 = pneg %p76
      %p205 = pneg %p100
      %p206 = pneg %p97
      %p207 = pneg %p121
      %p208 = pneg %p118
      %p209 = pneg %p147
      %p210 = pneg %p144
      %s211 = smul.u32 18, %s16
      %p212 = scmp.lt.s32.totalorder %s211, 35
      %s213 = scalar_select %p212, %s211, 35
      %s214 = smul.addr %s213, 8
      %s215 = scalar_lea.vmem %s5, %s214
      %s216 = smul.u32 18, %s16
      %p217 = scmp.lt.s32.totalorder %s216, 35
      %s218 = scalar_select %p217, %s216, 35
      %s219 = smul.addr %s218, 8
      %s220 = scalar_lea.vmem %s0, %s219
      %s221 = smul.u32 18, %s16
      %s222 = smul.u32 18, %s16
      %p223 = scmp.lt.s32.totalorder %s222, 35
      %s224 = scalar_select %p223, %s222, 35
      %s225 = smul.addr %s224, 8
      %s226 = scalar_lea.vmem %s5, %s225
      %s227 = smul.u32 18, %s16
      %v228 = vld [vmem:[%s220] sm:$0xff]
      %v229 = vld [vmem:[%s220 + $0x8] sm:$0xff]
      %v230 = vld [vmem:[%s220 + $0x10] sm:$0xff]
      %v231 = vld [vmem:[%s220 + $0x18] sm:$0xff]
      %v232 = vld [vmem:[%s220 + $0x20] sm:$0xff]
      %v233 = vld [vmem:[%s220 + $0x28] sm:$0xff]
      %v234 = vld [vmem:[%s220 + $0x30] sm:$0xff]
      %v235 = vld [vmem:[%s220 + $0x38] sm:$0xff]
      %v236 = vld [vmem:[%s220 + $0x40] sm:$0xff]
      %v237 = vld [vmem:[%s220 + $0x48] sm:$0xff]
      %v238 = vld [vmem:[%s220 + $0x50] sm:$0xff]
      %v239 = vld [vmem:[%s220 + $0x58] sm:$0xff]
      %v240 = vld [vmem:[%s220 + $0x60] sm:$0xff]
      %v241 = vld [vmem:[%s220 + $0x68] sm:$0xff]
      %v242 = vld [vmem:[%s220 + $0x70] sm:$0xff]
      %v243 = vld [vmem:[%s220 + $0x78] sm:$0xff]
      %v244 = vld [vmem:[%s220 + $0x80] sm:$0xff]
      %v245 = vld [vmem:[%s220 + $0x88] sm:$0xff]
      %v246 = vld [vmem:[%s1] sm:$0x7]
      %v247 = vld [vmem:[%s2] sm:$0x1]
      %v249 = vperm.slane %v247, 0
      %vm251 = vcmask 23552
      %v253 = vsel %vm251, %v228, 0
      %v256 = vsel %vm251, %v229, 0
      %v259 = vsel %vm251, %v230, 0
      %v262 = vsel %vm251, %v231, 0
      %v265 = vsel %vm251, %v232, 0
      %v268 = vsel %vm251, %v233, 0
      %v271 = vsel %vm251, %v234, 0
      %v274 = vsel %vm251, %v235, 0
      %v277 = vsel %vm251, %v236, 0
      %v280 = vsel %vm251, %v237, 0
      %v283 = vsel %vm251, %v238, 0
      %v286 = vsel %vm251, %v239, 0
      %v289 = vsel %vm251, %v240, 0
      %v292 = vsel %vm251, %v241, 0
      %v295 = vsel %vm251, %v242, 0
      %v298 = vsel %vm251, %v243, 0
      %v301 = vsel %vm251, %v244, 0
      %v304 = vsel %vm251, %v245, 0
      %vm306 = vcmask 1042432
      %v308 = vsel %vm306, %v246, 0
      %310 = vmatpush.msra.mxu0 0.0
      %311 = vmatpush.msra.mxu0 0.0
      %312 = vmatpush.msra.mxu0 0.0
      %313 = vmatpush.msra.mxu0 0.0
      %314 = vmatpush.msra.mxu0 0.0
      %315 = vmatpush.msra.mxu0 0.0
      %316 = vmatpush.msra.mxu0 0.0
      %317 = vmatpush.msra.mxu0 0.0
      %318 = vmatpush.msra.mxu0 0.0
      %319 = vmatpush.msra.mxu0 0.0
      %320 = vmatpush.msra.mxu0 0.0
      %321 = vmatpush.msra.mxu0 0.0
      %322 = vmatpush.msra.mxu0 0.0
      %323 = vmatpush.msra.mxu0 0.0
      %324 = vmatpush.msra.mxu0 0.0
      %325 = vmatpush.msra.mxu0 %v308
      %326 = vmatmul.f32.gmra.mxu0 %v253
      %v327 = vpop.f32.mrf.mxu0
      %v328 = vadd.f32 %v249, %v327
      %329 = vmatmul.f32.gmra.mxu0 %v256
      %v330 = vpop.f32.mrf.mxu0
      %v331 = vadd.f32 %v249, %v330
      %332 = vmatmul.f32.gmra.mxu0 %v259
      %v333 = vpop.f32.mrf.mxu0
      %v334 = vadd.f32 %v249, %v333
      %335 = vmatmul.f32.gmra.mxu0 %v262
      %v336 = vpop.f32.mrf.mxu0
      %v337 = vadd.f32 %v249, %v336
      %338 = vmatmul.f32.gmra.mxu0 %v265
      %v339 = vpop.f32.mrf.mxu0
      %v340 = vadd.f32 %v249, %v339
      %341 = vmatmul.f32.gmra.mxu0 %v268
      %v342 = vpop.f32.mrf.mxu0
      %v343 = vadd.f32 %v249, %v342
      %344 = vmatmul.f32.gmra.mxu0 %v271
      %v345 = vpop.f32.mrf.mxu0
      %v346 = vadd.f32 %v249, %v345
      %347 = vmatmul.f32.gmra.mxu0 %v274
      %v348 = vpop.f32.mrf.mxu0
      %v349 = vadd.f32 %v249, %v348
      %350 = vmatmul.f32.gmra.mxu0 %v277
      %v351 = vpop.f32.mrf.mxu0
      %v352 = vadd.f32 %v249, %v351
      %353 = vmatmul.f32.gmra.mxu0 %v280
      %v354 = vpop.f32.mrf.mxu0
      %v355 = vadd.f32 %v249, %v354
      %356 = vmatmul.f32.gmra.mxu0 %v283
      %v357 = vpop.f32.mrf.mxu0
      %v358 = vadd.f32 %v249, %v357
      %359 = vmatmul.f32.gmra.mxu0 %v286
      %v360 = vpop.f32.mrf.mxu0
      %v361 = vadd.f32 %v249, %v360
      %362 = vmatmul.f32.gmra.mxu0 %v289
      %v363 = vpop.f32.mrf.mxu0
      %v364 = vadd.f32 %v249, %v363
      %365 = vmatmul.f32.gmra.mxu0 %v292
      %v366 = vpop.f32.mrf.mxu0
      %v367 = vadd.f32 %v249, %v366
      %368 = vmatmul.f32.gmra.mxu0 %v295
      %v369 = vpop.f32.mrf.mxu0
      %v370 = vadd.f32 %v249, %v369
      %371 = vmatmul.f32.gmra.mxu0 %v298
      %v372 = vpop.f32.mrf.mxu0
      %v373 = vadd.f32 %v249, %v372
      %374 = vmatmul.f32.gmra.mxu0 %v301
      %v375 = vpop.f32.mrf.mxu0
      %v376 = vadd.f32 %v249, %v375
      %377 = vmatmul.f32.gmra.mxu0 %v304
      %v378 = vpop.f32.mrf.mxu0
      %v379 = vadd.f32 %v249, %v378
      %380 = vdwg.mxu0
      %v381 = vmax.f32 %v328, 0.0
      %v382 = vmax.f32 %v331, 0.0
      %v383 = vmax.f32 %v334, 0.0
      %v384 = vmax.f32 %v337, 0.0
      %v385 = vmax.f32 %v340, 0.0
      %v386 = vmax.f32 %v343, 0.0
      %v387 = vmax.f32 %v346, 0.0
      %v388 = vmax.f32 %v349, 0.0
      %v389 = vmax.f32 %v352, 0.0
      %v390 = vmax.f32 %v355, 0.0
      %v391 = vmax.f32 %v358, 0.0
      %v392 = vmax.f32 %v361, 0.0
      %v393 = vmax.f32 %v364, 0.0
      %v394 = vmax.f32 %v367, 0.0
      %v395 = vmax.f32 %v370, 0.0
      %v396 = vmax.f32 %v373, 0.0
      %v397 = vmax.f32 %v376, 0.0
      %v398 = vmax.f32 %v379, 0.0
      %v399 = vld [vmem:[%s3] sm:$0xff]
      %v400 = vld [vmem:[%s3 + $0x8] sm:$0xff]
      %v401 = vld [vmem:[%s3 + $0x10] sm:$0xff]
      %v402 = vld [vmem:[%s3 + $0x18] sm:$0xff]
      %v403 = vld [vmem:[%s4] sm:$0x1]
      %v405 = vperm.slane %v403, 0
      %vm407 = vcmask 261120
      %v409 = vsel %vm407, %v381, 0
      %v412 = vsel %vm407, %v382, 0
      %v415 = vsel %vm407, %v383, 0
      %v418 = vsel %vm407, %v384, 0
      %v421 = vsel %vm407, %v385, 0
      %v424 = vsel %vm407, %v386, 0
      %v427 = vsel %vm407, %v387, 0
      %v430 = vsel %vm407, %v388, 0
      %v433 = vsel %vm407, %v389, 0
      %v436 = vsel %vm407, %v390, 0
      %v439 = vsel %vm407, %v391, 0
      %v442 = vsel %vm407, %v392, 0
      %v445 = vsel %vm407, %v393, 0
      %v448 = vsel %vm407, %v394, 0
      %v451 = vsel %vm407, %v395, 0
      %v454 = vsel %vm407, %v396, 0
      %v457 = vsel %vm407, %v397, 0
      %v460 = vsel %vm407, %v398, 0
      %462 = vmatpush.msra.mxu0 0.0
      %463 = vmatpush.msra.mxu0 0.0
      %464 = vmatpush.msra.mxu0 0.0
      %465 = vmatpush.msra.mxu0 0.0
      %466 = vmatpush.msra.mxu0 0.0
      %467 = vmatpush.msra.mxu0 0.0
      %468 = vmatpush.msra.mxu0 0.0
      %469 = vmatpush.msra.mxu0 0.0
      %470 = vmatpush.msra.mxu0 0.0
      %471 = vmatpush.msra.mxu0 0.0
      %472 = vmatpush.msra.mxu0 0.0
      %473 = vmatpush.msra.mxu0 0.0
      %474 = vmatpush.msra.mxu0 %v402
      %475 = vmatpush.msra.mxu0 %v401
      %476 = vmatpush.msra.mxu0 %v400
      %477 = vmatpush.msra.mxu0 %v399
      %478 = vmatmul.f32.gmra.mxu0 %v409
      %v479 = vpop.f32.mrf.mxu0
      %v480 = vadd.f32 %v405, %v479
      %481 = vmatmul.f32.gmra.mxu0 %v412
      %v482 = vpop.f32.mrf.mxu0
      %v483 = vadd.f32 %v405, %v482
      %484 = vmatmul.f32.gmra.mxu0 %v415
      %v485 = vpop.f32.mrf.mxu0
      %v486 = vadd.f32 %v405, %v485
      %487 = vmatmul.f32.gmra.mxu0 %v418
      %v488 = vpop.f32.mrf.mxu0
      %v489 = vadd.f32 %v405, %v488
      %490 = vmatmul.f32.gmra.mxu0 %v421
      %v491 = vpop.f32.mrf.mxu0
      %v492 = vadd.f32 %v405, %v491
      %493 = vmatmul.f32.gmra.mxu0 %v424
      %v494 = vpop.f32.mrf.mxu0
      %v495 = vadd.f32 %v405, %v494
      %496 = vmatmul.f32.gmra.mxu0 %v427
      %v497 = vpop.f32.mrf.mxu0
      %v498 = vadd.f32 %v405, %v497
      %499 = vmatmul.f32.gmra.mxu0 %v430
      %v500 = vpop.f32.mrf.mxu0
      %v501 = vadd.f32 %v405, %v500
      %502 = vmatmul.f32.gmra.mxu0 %v433
      %v503 = vpop.f32.mrf.mxu0
      %v504 = vadd.f32 %v405, %v503
      %505 = vmatmul.f32.gmra.mxu0 %v436
      %v506 = vpop.f32.mrf.mxu0
      %v507 = vadd.f32 %v405, %v506
      %508 = vmatmul.f32.gmra.mxu0 %v439
      %v509 = vpop.f32.mrf.mxu0
      %v510 = vadd.f32 %v405, %v509
      %511 = vmatmul.f32.gmra.mxu0 %v442
      %v512 = vpop.f32.mrf.mxu0
      %v513 = vadd.f32 %v405, %v512
      %514 = vmatmul.f32.gmra.mxu0 %v445
      %v515 = vpop.f32.mrf.mxu0
      %v516 = vadd.f32 %v405, %v515
      %517 = vmatmul.f32.gmra.mxu0 %v448
      %v518 = vpop.f32.mrf.mxu0
      %v519 = vadd.f32 %v405, %v518
      %520 = vmatmul.f32.gmra.mxu0 %v451
      %v521 = vpop.f32.mrf.mxu0
      %v522 = vadd.f32 %v405, %v521
      %523 = vmatmul.f32.gmra.mxu0 %v454
      %v524 = vpop.f32.mrf.mxu0
      %v525 = vadd.f32 %v405, %v524
      %526 = vmatmul.f32.gmra.mxu0 %v457
      %v527 = vpop.f32.mrf.mxu0
      %v528 = vadd.f32 %v405, %v527
      %529 = vmatmul.f32.gmra.mxu0 %v460
      %v530 = vpop.f32.mrf.mxu0
      %v531 = vadd.f32 %v405, %v530
      %532 = vdwg.mxu0
      %533 = vst.msk [vmem:[%s226] sm:$0xff] %vm407, %v480
      %534 = vst.msk [vmem:[%s226 + $0x8] sm:$0xff] %vm407, %v483
      %535 = vst.msk [vmem:[%s226 + $0x10] sm:$0xff] %vm407, %v486
      %536 = vst.msk [vmem:[%s226 + $0x18] sm:$0xff] %vm407, %v489
      %537 = vst.msk [vmem:[%s226 + $0x20] sm:$0xff] %vm407, %v492
      %538 = vst.msk [vmem:[%s226 + $0x28] sm:$0xff] %vm407, %v495
      %539 = vst.msk [vmem:[%s226 + $0x30] sm:$0xff] %vm407, %v498
      %540 = vst.msk [vmem:[%s226 + $0x38] sm:$0xff] %vm407, %v501
      %541 = vst.msk [vmem:[%s226 + $0x40] sm:$0xff] %vm407, %v504
      %542 = vst.msk [vmem:[%s226 + $0x48] sm:$0xff] %vm407, %v507
      %543 = vst.msk [vmem:[%s226 + $0x50] sm:$0xff] %vm407, %v510
      %544 = vst.msk [vmem:[%s226 + $0x58] sm:$0xff] %vm407, %v513
      %545 = vst.msk [vmem:[%s226 + $0x60] sm:$0xff] %vm407, %v516
      %546 = vst.msk [vmem:[%s226 + $0x68] sm:$0xff] %vm407, %v519
      %547 = vst.msk [vmem:[%s226 + $0x70] sm:$0xff] %vm407, %v522
      %548 = vst.msk [vmem:[%s226 + $0x78] sm:$0xff] %vm407, %v525
      %549 = vst.msk [vmem:[%s226 + $0x80] sm:$0xff] %vm407, %v528
      %550 = vst.msk [vmem:[%s226 + $0x88] sm:$0xff] %vm407, %v531
      %s551 = smul.u32 18, %s16
      %p552 = scmp.lt.s32.totalorder %s551, 35
      %s553 = scalar_select %p552, %s551, 35
      %s554 = smul.addr %s553, 8
      %s555 = scalar_lea.vmem %s5, %s554
      // Predicated region
      $region41: #{encoder_forward.19} parent=39 // pred_check
        %p556 = pneg %p144
      $region42: #{encoder_forward.19} parent=39 // pred_check_branch
        %558 = sbr.rel (%p556) target = $region44
      $region43: #{encoder_forward.19} parent=39 // pred_region
        %s559 = smul.u32 18, %s16
      $region44: #{encoder_forward.19} parent=39 // pred_fallthru
        _
    $region40: #{encoder_forward.19} parent=5 // pred_fallthru
      _
    %p560 = scmp.le.s32.totalorder 2, %s11
    // Predicated region
    $region45: #{encoder_forward.19} parent=5 // pred_check
      %p561 = pneg %p560
    $region46: #{encoder_forward.19} parent=5 // pred_check_branch
      %563 = sbr.rel (%p561) target = $region48
    $region47: #{encoder_forward.19} parent=5 // pred_region
      %s564 = ssub.s32 %s11, 2
      // Predicated region
      $region49: #{encoder_forward.19} parent=47 // pred_check
        %p565 = pneg %p150
      $region50: #{encoder_forward.19} parent=47 // pred_check_branch
        %567 = sbr.rel (%p565) target = $region52
      $region51: #{encoder_forward.19} parent=47 // pred_region
        %s568 = smul.u32 18, %s17
        %p569 = scmp.lt.s32.totalorder %s568, 35
        %s570 = scalar_select %p569, %s568, 35
        %s571 = smul.addr %s570, 8
        %s572 = scalar_lea.vmem %s5, %s571
      $region52: #{encoder_forward.19} parent=47 // pred_fallthru
        _
    $region48: #{encoder_forward.19} parent=5 // pred_fallthru
      _
  $region6: #{encoder_forward.19} parent=0 // loop_footer
    %s15 = sadd.s32 1, %s11
  $region7: #{encoder_forward.19} parent=0 // loop_footer_branch
    %10 = sbr.rel target = $region3
  $region8: #{encoder_forward.19} parent=0 // loop_exit
    _

// kernel: custom-call.34
$region0: #{custom-call.34}
  %s0 = inlined_call_operand.vmem [shape: f32[2,36], index: 0, kind: output, shape index: {}]

// kernel: encoder_forward.20
$region0: #{encoder_forward.20}
  #allocation0 [shape = 'u32[]', space=smem, size = 0x4, offset = 0x4, fixed_abs, tag = 'smem constant byte address 0x4 - core index']
  #allocation1 [shape = 'u32[72,128]{1,0:T(1,128)}', space=vmem, size = 0x9000, scoped, tag = 'internal scratch']
  %s0 = inlined_call_operand.vmem [shape: f32[72,32], index: 0, kind: input, shape index: {}]
  %s1 = inlined_call_operand.vmem [shape: f32[72,128], index: 1, kind: input, shape index: {}]
  %s2 = inlined_call_operand.vmem [shape: f32[72,128], index: 2, kind: input, shape index: {}]
  %s3 = inlined_call_operand.vmem [shape: f32[72,128], index: 3, kind: input, shape index: {}]
  %s4 = inlined_call_operand.vmem [shape: f32[72,32], index: 4, kind: input, shape index: {}]
  %s5 = inlined_call_operand.vmem [shape: f32[128,128], index: 5, kind: input, shape index: {}]
  %s6 = inlined_call_operand.vmem [shape: f32[1,128], index: 6, kind: input, shape index: {}]
  %s7 = inlined_call_operand.vmem [shape: f32[128,128], index: 7, kind: input, shape index: {}]
  %s8 = inlined_call_operand.vmem [shape: f32[1,128], index: 8, kind: input, shape index: {}]
  %s9 = inlined_call_operand.vmem [shape: f32[32,32], index: 9, kind: input, shape index: {}]
  %s10 = inlined_call_operand.vmem [shape: f32[1,32], index: 10, kind: input, shape index: {}]
  %s11 = inlined_call_operand.vmem [shape: f32[72,32], index: 11, kind: output, shape index: {}]
  %s12 = sld [smem:[#allocation0]]
  $region77: #{encoder_forward.20} parent=0
    _
  %s14 = ssub.s32 1, %s12
  %s15 = scalar_select 0, %s14, %s12
  loop: start=0, step=1, limit=5
  $region2: #{encoder_forward.20} parent=0 // loop_pre_header
    _
  $region3: #{encoder_forward.20} parent=0 // loop_header
    %s17 = sphi 0, %s21
    %p18 = scmp.ge.s32.totalorder %s17, 5
    %s27 = sphi 0, %s29
    %s30 = sphi 0, %s27
    %s31 = sphi 0, %s30
    %s47 = sphi 0, %s31
    %s53 = sphi 0, %s55
    %s56 = sphi 0, %s53
    %s57 = sphi 0, %s56
    %s73 = sphi 0, %s57
    %s79 = sphi 0, %s81
    %s82 = sphi 0, %s79
    %s83 = sphi 0, %s82
    %s99 = sphi 0, %s83
    %s105 = sphi 0, %s107
    %s108 = sphi 0, %s105
    %s109 = sphi 0, %s108
    %s125 = sphi 0, %s109
    %s131 = sphi 0, %s133
    %s134 = sphi 0, %s131
    %s135 = sphi 0, %s134
    %s151 = sphi 0, %s135
    %s155 = sphi 0, %s155
    %s157 = sphi 0, %s155
    %s158 = sphi 0, %s157
    %s172 = sphi 0, %s158
    %s176 = sphi 0, %s176
    %s178 = sphi 0, %s176
    %s179 = sphi 0, %s178
    %s193 = sphi 0, %s179
    %s197 = sphi 0, %s197
    %s199 = sphi 0, %s197
    %s200 = sphi 0, %s199
    %s214 = sphi 0, %s200
    %s218 = sphi 0, %s218
    %s220 = sphi 0, %s218
    %s221 = sphi 0, %s220
    %s235 = sphi 0, %s221
    %s239 = sphi 0, %s239
    %s241 = sphi 0, %s239
    %s242 = sphi 0, %s241
    %s256 = sphi 0, %s242
    %s260 = sphi 0, %s260
    %s262 = sphi 0, %s260
    %s263 = sphi 0, %s262
    %s277 = sphi 0, %s263
    %s283 = sphi 0, %s285
    %s286 = sphi 0, %s283
    %s287 = sphi 0, %s286
    %s303 = sphi 0, %s287
  $region4: #{encoder_forward.20} parent=0 // loop_header_branch
    %20 = sbr.rel (%p18) target = $region8
  $region5: #{encoder_forward.20} parent=0 // loop_body
    %s22 = ssub.s32 %s17, 1
    %s23 = ssub.s32 %s17, 2
    %s24 = sadd.s32 %s17, 1
    %s25 = ssub.s32 %s17, %s24
    %p26 = scmp.eq.s32.totalorder %s25, 0
    %s28 = sadd.s32 %s27, 1
    %s29 = scalar_select %p26, %s27, %s28
    %p32 = pneg %p26
    %p33 = scmp.eq.s32.totalorder %s17, 2
    %p34 = por %p32, %p33
    %p35 = scmp.ne.s32.totalorder %s27, %s30
    %p36 = scmp.eq.s32.totalorder %s17, 0
    %p37 = por %p35, %p36
    %p38 = scmp.ne.s32.totalorder %s27, %s30
    %p39 = scmp.eq.s32.totalorder %s22, 2
    %p40 = por %p38, %p39
    %p41 = scmp.ne.s32.totalorder %s30, %s31
    %p42 = scmp.eq.s32.totalorder %s22, 0
    %p43 = por %p41, %p42
    %p44 = scmp.ne.s32.totalorder %s30, %s31
    %p45 = scmp.eq.s32.totalorder %s23, 2
    %p46 = por %p44, %p45
    %p48 = scmp.ne.s32.totalorder %s31, %s47
    %p49 = scmp.eq.s32.totalorder %s23, 0
    %p50 = por %p48, %p49
    %s51 = ssub.s32 %s17, %s24
    %p52 = scmp.eq.s32.totalorder %s51, 0
    %s54 = sadd.s32 %s53, 1
    %s55 = scalar_select %p52, %s53, %s54
    %p58 = pneg %p52
    %p59 = scmp.eq.s32.totalorder %s17, 2
    %p60 = por %p58, %p59
    %p61 = scmp.ne.s32.totalorder %s53, %s56
    %p62 = scmp.eq.s32.totalorder %s17, 0
    %p63 = por %p61, %p62
    %p64 = scmp.ne.s32.totalorder %s53, %s56
    %p65 = scmp.eq.s32.totalorder %s22, 2
    %p66 = por %p64, %p65
    %p67 = scmp.ne.s32.totalorder %s56, %s57
    %p68 = scmp.eq.s32.totalorder %s22, 0
    %p69 = por %p67, %p68
    %p70 = scmp.ne.s32.totalorder %s56, %s57
    %p71 = scmp.eq.s32.totalorder %s23, 2
    %p72 = por %p70, %p71
    %p74 = scmp.ne.s32.totalorder %s57, %s73
    %p75 = scmp.eq.s32.totalorder %s23, 0
    %p76 = por %p74, %p75
    %s77 = ssub.s32 %s17, %s24
    %p78 = scmp.eq.s32.totalorder %s77, 0
    %s80 = sadd.s32 %s79, 1
    %s81 = scalar_select %p78, %s79, %s80
    %p84 = pneg %p78
    %p85 = scmp.eq.s32.totalorder %s17, 2
    %p86 = por %p84, %p85
    %p87 = scmp.ne.s32.totalorder %s79, %s82
    %p88 = scmp.eq.s32.totalorder %s17, 0
    %p89 = por %p87, %p88
    %p90 = scmp.ne.s32.totalorder %s79, %s82
    %p91 = scmp.eq.s32.totalorder %s22, 2
    %p92 = por %p90, %p91
    %p93 = scmp.ne.s32.totalorder %s82, %s83
    %p94 = scmp.eq.s32.totalorder %s22, 0
    %p95 = por %p93, %p94
    %p96 = scmp.ne.s32.totalorder %s82, %s83
    %p97 = scmp.eq.s32.totalorder %s23, 2
    %p98 = por %p96, %p97
    %p100 = scmp.ne.s32.totalorder %s83, %s99
    %p101 = scmp.eq.s32.totalorder %s23, 0
    %p102 = por %p100, %p101
    %s103 = ssub.s32 %s17, %s24
    %p104 = scmp.eq.s32.totalorder %s103, 0
    %s106 = sadd.s32 %s105, 1
    %s107 = scalar_select %p104, %s105, %s106
    %p110 = pneg %p104
    %p111 = scmp.eq.s32.totalorder %s17, 2
    %p112 = por %p110, %p111
    %p113 = scmp.ne.s32.totalorder %s105, %s108
    %p114 = scmp.eq.s32.totalorder %s17, 0
    %p115 = por %p113, %p114
    %p116 = scmp.ne.s32.totalorder %s105, %s108
    %p117 = scmp.eq.s32.totalorder %s22, 2
    %p118 = por %p116, %p117
    %p119 = scmp.ne.s32.totalorder %s108, %s109
    %p120 = scmp.eq.s32.totalorder %s22, 0
    %p121 = por %p119, %p120
    %p122 = scmp.ne.s32.totalorder %s108, %s109
    %p123 = scmp.eq.s32.totalorder %s23, 2
    %p124 = por %p122, %p123
    %p126 = scmp.ne.s32.totalorder %s109, %s125
    %p127 = scmp.eq.s32.totalorder %s23, 0
    %p128 = por %p126, %p127
    %s129 = ssub.s32 %s17, %s24
    %p130 = scmp.eq.s32.totalorder %s129, 0
    %s132 = sadd.s32 %s131, 1
    %s133 = scalar_select %p130, %s131, %s132
    %p136 = pneg %p130
    %p137 = scmp.eq.s32.totalorder %s17, 2
    %p138 = por %p136, %p137
    %p139 = scmp.ne.s32.totalorder %s131, %s134
    %p140 = scmp.eq.s32.totalorder %s17, 0
    %p141 = por %p139, %p140
    %p142 = scmp.ne.s32.totalorder %s131, %s134
    %p143 = scmp.eq.s32.totalorder %s22, 2
    %p144 = por %p142, %p143
    %p145 = scmp.ne.s32.totalorder %s134, %s135
    %p146 = scmp.eq.s32.totalorder %s22, 0
    %p147 = por %p145, %p146
    %p148 = scmp.ne.s32.totalorder %s134, %s135
    %p149 = scmp.eq.s32.totalorder %s23, 2
    %p150 = por %p148, %p149
    %p152 = scmp.ne.s32.totalorder %s135, %s151
    %p153 = scmp.eq.s32.totalorder %s23, 0
    %p154 = por %p152, %p153
    %s156 = sadd.s32 %s155, 1
    %p159 = scmp.eq.s32.totalorder %s17, 2
    %p160 = scmp.ne.s32.totalorder %s155, %s157
    %p161 = scmp.eq.s32.totalorder %s17, 0
    %p162 = por %p160, %p161
    %p163 = scmp.ne.s32.totalorder %s155, %s157
    %p164 = scmp.eq.s32.totalorder %s22, 2
    %p165 = por %p163, %p164
    %p166 = scmp.ne.s32.totalorder %s157, %s158
    %p167 = scmp.eq.s32.totalorder %s22, 0
    %p168 = por %p166, %p167
    %p169 = scmp.ne.s32.totalorder %s157, %s158
    %p170 = scmp.eq.s32.totalorder %s23, 2
    %p171 = por %p169, %p170
    %p173 = scmp.ne.s32.totalorder %s158, %s172
    %p174 = scmp.eq.s32.totalorder %s23, 0
    %p175 = por %p173, %p174
    %s177 = sadd.s32 %s176, 1
    %p180 = scmp.eq.s32.totalorder %s17, 2
    %p181 = scmp.ne.s32.totalorder %s176, %s178
    %p182 = scmp.eq.s32.totalorder %s17, 0
    %p183 = por %p181, %p182
    %p184 = scmp.ne.s32.totalorder %s176, %s178
    %p185 = scmp.eq.s32.totalorder %s22, 2
    %p186 = por %p184, %p185
    %p187 = scmp.ne.s32.totalorder %s178, %s179
    %p188 = scmp.eq.s32.totalorder %s22, 0
    %p189 = por %p187, %p188
    %p190 = scmp.ne.s32.totalorder %s178, %s179
    %p191 = scmp.eq.s32.totalorder %s23, 2
    %p192 = por %p190, %p191
    %p194 = scmp.ne.s32.totalorder %s179, %s193
    %p195 = scmp.eq.s32.totalorder %s23, 0
    %p196 = por %p194, %p195
    %s198 = sadd.s32 %s197, 1
    %p201 = scmp.eq.s32.totalorder %s17, 2
    %p202 = scmp.ne.s32.totalorder %s197, %s199
    %p203 = scmp.eq.s32.totalorder %s17, 0
    %p204 = por %p202, %p203
    %p205 = scmp.ne.s32.totalorder %s197, %s199
    %p206 = scmp.eq.s32.totalorder %s22, 2
    %p207 = por %p205, %p206
    %p208 = scmp.ne.s32.totalorder %s199, %s200
    %p209 = scmp.eq.s32.totalorder %s22, 0
    %p210 = por %p208, %p209
    %p211 = scmp.ne.s32.totalorder %s199, %s200
    %p212 = scmp.eq.s32.totalorder %s23, 2
    %p213 = por %p211, %p212
    %p215 = scmp.ne.s32.totalorder %s200, %s214
    %p216 = scmp.eq.s32.totalorder %s23, 0
    %p217 = por %p215, %p216
    %s219 = sadd.s32 %s218, 1
    %p222 = scmp.eq.s32.totalorder %s17, 2
    %p223 = scmp.ne.s32.totalorder %s218, %s220
    %p224 = scmp.eq.s32.totalorder %s17, 0
    %p225 = por %p223, %p224
    %p226 = scmp.ne.s32.totalorder %s218, %s220
    %p227 = scmp.eq.s32.totalorder %s22, 2
    %p228 = por %p226, %p227
    %p229 = scmp.ne.s32.totalorder %s220, %s221
    %p230 = scmp.eq.s32.totalorder %s22, 0
    %p231 = por %p229, %p230
    %p232 = scmp.ne.s32.totalorder %s220, %s221
    %p233 = scmp.eq.s32.totalorder %s23, 2
    %p234 = por %p232, %p233
    %p236 = scmp.ne.s32.totalorder %s221, %s235
    %p237 = scmp.eq.s32.totalorder %s23, 0
    %p238 = por %p236, %p237
    %s240 = sadd.s32 %s239, 1
    %p243 = scmp.eq.s32.totalorder %s17, 2
    %p244 = scmp.ne.s32.totalorder %s239, %s241
    %p245 = scmp.eq.s32.totalorder %s17, 0
    %p246 = por %p244, %p245
    %p247 = scmp.ne.s32.totalorder %s239, %s241
    %p248 = scmp.eq.s32.totalorder %s22, 2
    %p249 = por %p247, %p248
    %p250 = scmp.ne.s32.totalorder %s241, %s242
    %p251 = scmp.eq.s32.totalorder %s22, 0
    %p252 = por %p250, %p251
    %p253 = scmp.ne.s32.totalorder %s241, %s242
    %p254 = scmp.eq.s32.totalorder %s23, 2
    %p255 = por %p253, %p254
    %p257 = scmp.ne.s32.totalorder %s242, %s256
    %p258 = scmp.eq.s32.totalorder %s23, 0
    %p259 = por %p257, %p258
    %s261 = sadd.s32 %s260, 1
    %p264 = scmp.eq.s32.totalorder %s17, 2
    %p265 = scmp.ne.s32.totalorder %s260, %s262
    %p266 = scmp.eq.s32.totalorder %s17, 0
    %p267 = por %p265, %p266
    %p268 = scmp.ne.s32.totalorder %s260, %s262
    %p269 = scmp.eq.s32.totalorder %s22, 2
    %p270 = por %p268, %p269
    %p271 = scmp.ne.s32.totalorder %s262, %s263
    %p272 = scmp.eq.s32.totalorder %s22, 0
    %p273 = por %p271, %p272
    %p274 = scmp.ne.s32.totalorder %s262, %s263
    %p275 = scmp.eq.s32.totalorder %s23, 2
    %p276 = por %p274, %p275
    %p278 = scmp.ne.s32.totalorder %s263, %s277
    %p279 = scmp.eq.s32.totalorder %s23, 0
    %p280 = por %p278, %p279
    %s281 = ssub.s32 %s17, %s24
    %p282 = scmp.eq.s32.totalorder %s281, 0
    %s284 = sadd.s32 %s283, 1
    %s285 = scalar_select %p282, %s283, %s284
    %p288 = pneg %p282
    %p289 = scmp.eq.s32.totalorder %s17, 2
    %p290 = por %p288, %p289
    %p291 = scmp.ne.s32.totalorder %s283, %s286
    %p292 = scmp.eq.s32.totalorder %s17, 0
    %p293 = por %p291, %p292
    %p294 = scmp.ne.s32.totalorder %s283, %s286
    %p295 = scmp.eq.s32.totalorder %s22, 2
    %p296 = por %p294, %p295
    %p297 = scmp.ne.s32.totalorder %s286, %s287
    %p298 = scmp.eq.s32.totalorder %s22, 0
    %p299 = por %p297, %p298
    %p300 = scmp.ne.s32.totalorder %s286, %s287
    %p301 = scmp.eq.s32.totalorder %s23, 2
    %p302 = por %p300, %p301
    %p304 = scmp.ne.s32.totalorder %s287, %s303
    %p305 = scmp.eq.s32.totalorder %s23, 0
    %p306 = por %p304, %p305
    %p307 = scmp.le.s32.totalorder 1, %s17
    %p308 = scmp.lt.s32.totalorder %s17, 4
    %p309 = pnand %p307, %p308
    %p310 = pneg %p309
    // Predicated region
    $region9: #{encoder_forward.20} parent=5 // pred_check
      _
    $region10: #{encoder_forward.20} parent=5 // pred_check_branch
      %312 = sbr.rel (%p309) target = $region12
    $region11: #{encoder_forward.20} parent=5 // pred_region
      %s313 = ssub.s32 %s17, 1
      // Predicated region
      $region13: #{encoder_forward.20} parent=11 // pred_check
        %p314 = pneg %p168
      $region14: #{encoder_forward.20} parent=11 // pred_check_branch
        %316 = sbr.rel (%p314) target = $region16
      $region15: #{encoder_forward.20} parent=11 // pred_region
        _
      $region16: #{encoder_forward.20} parent=11 // pred_fallthru
        _
      // Predicated region
      $region17: #{encoder_forward.20} parent=11 // pred_check
        %p317 = pneg %p189
      $region18: #{encoder_forward.20} parent=11 // pred_check_branch
        %319 = sbr.rel (%p317) target = $region20
      $region19: #{encoder_forward.20} parent=11 // pred_region
        _
      $region20: #{encoder_forward.20} parent=11 // pred_fallthru
        _
      // Predicated region
      $region21: #{encoder_forward.20} parent=11 // pred_check
        %p320 = pneg %p210
      $region22: #{encoder_forward.20} parent=11 // pred_check_branch
        %322 = sbr.rel (%p320) target = $region24
      $region23: #{encoder_forward.20} parent=11 // pred_region
        _
      $region24: #{encoder_forward.20} parent=11 // pred_fallthru
        _
      // Predicated region
      $region25: #{encoder_forward.20} parent=11 // pred_check
        %p323 = pneg %p231
      $region26: #{encoder_forward.20} parent=11 // pred_check_branch
        %325 = sbr.rel (%p323) target = $region28
      $region27: #{encoder_forward.20} parent=11 // pred_region
        _
      $region28: #{encoder_forward.20} parent=11 // pred_fallthru
        _
      // Predicated region
      $region29: #{encoder_forward.20} parent=11 // pred_check
        %p326 = pneg %p252
      $region30: #{encoder_forward.20} parent=11 // pred_check_branch
        %328 = sbr.rel (%p326) target = $region32
      $region31: #{encoder_forward.20} parent=11 // pred_region
        _
      $region32: #{encoder_forward.20} parent=11 // pred_fallthru
        _
      // Predicated region
      $region33: #{encoder_forward.20} parent=11 // pred_check
        %p329 = pneg %p273
      $region34: #{encoder_forward.20} parent=11 // pred_check_branch
        %331 = sbr.rel (%p329) target = $region36
      $region35: #{encoder_forward.20} parent=11 // pred_region
        _
      $region36: #{encoder_forward.20} parent=11 // pred_fallthru
        _
    $region12: #{encoder_forward.20} parent=5 // pred_fallthru
      _
    %p332 = scmp.lt.s32.totalorder %s17, 3
    // Predicated region
    $region37: #{encoder_forward.20} parent=5 // pred_check
      %p333 = pneg %p332
    $region38: #{encoder_forward.20} parent=5 // pred_check_branch
      %335 = sbr.rel (%p333) target = $region40
    $region39: #{encoder_forward.20} parent=5 // pred_region
      // Predicated region
      $region41: #{encoder_forward.20} parent=39 // pred_check
        %p336 = pneg %p37
      $region42: #{encoder_forward.20} parent=39 // pred_check_branch
        %338 = sbr.rel (%p336) target = $region44
      $region43: #{encoder_forward.20} parent=39 // pred_region
        %s339 = smul.u32 3, %s17
        %p340 = scmp.lt.s32.totalorder %s339, 8
        %s341 = scalar_select %p340, %s339, 8
        %s342 = smul.addr %s341, 8
        %s343 = scalar_lea.vmem %s0, %s342
        %s344 = smul.u32 3, %s17
      $region44: #{encoder_forward.20} parent=39 // pred_fallthru
        _
      // Predicated region
      $region45: #{encoder_forward.20} parent=39 // pred_check
        %p345 = pneg %p63
      $region46: #{encoder_forward.20} parent=39 // pred_check_branch
        %347 = sbr.rel (%p345) target = $region48
      $region47: #{encoder_forward.20} parent=39 // pred_region
        %s348 = smul.u32 3, %s17
        %p349 = scmp.lt.s32.totalorder %s348, 8
        %s350 = scalar_select %p349, %s348, 8
        %s351 = smul.addr %s350, 8
        %s352 = scalar_lea.vmem %s1, %s351
        %s353 = smul.u32 3, %s17
      $region48: #{encoder_forward.20} parent=39 // pred_fallthru
        _
      // Predicated region
      $region49: #{encoder_forward.20} parent=39 // pred_check
        %p354 = pneg %p89
      $region50: #{encoder_forward.20} parent=39 // pred_check_branch
        %356 = sbr.rel (%p354) target = $region52
      $region51: #{encoder_forward.20} parent=39 // pred_region
        %s357 = smul.u32 3, %s17
        %p358 = scmp.lt.s32.totalorder %s357, 8
        %s359 = scalar_select %p358, %s357, 8
        %s360 = smul.addr %s359, 8
        %s361 = scalar_lea.vmem %s2, %s360
        %s362 = smul.u32 3, %s17
      $region52: #{encoder_forward.20} parent=39 // pred_fallthru
        _
      // Predicated region
      $region53: #{encoder_forward.20} parent=39 // pred_check
        %p363 = pneg %p115
      $region54: #{encoder_forward.20} parent=39 // pred_check_branch
        %365 = sbr.rel (%p363) target = $region56
      $region55: #{encoder_forward.20} parent=39 // pred_region
        %s366 = smul.u32 3, %s17
        %p367 = scmp.lt.s32.totalorder %s366, 8
        %s368 = scalar_select %p367, %s366, 8
        %s369 = smul.addr %s368, 8
        %s370 = scalar_lea.vmem %s3, %s369
        %s371 = smul.u32 3, %s17
      $region56: #{encoder_forward.20} parent=39 // pred_fallthru
        _
      // Predicated region
      $region57: #{encoder_forward.20} parent=39 // pred_check
        %p372 = pneg %p141
      $region58: #{encoder_forward.20} parent=39 // pred_check_branch
        %374 = sbr.rel (%p372) target = $region60
      $region59: #{encoder_forward.20} parent=39 // pred_region
        %s375 = smul.u32 3, %s17
        %p376 = scmp.lt.s32.totalorder %s375, 8
        %s377 = scalar_select %p376, %s375, 8
        %s378 = smul.addr %s377, 8
        %s379 = scalar_lea.vmem %s4, %s378
        %s380 = smul.u32 3, %s17
      $region60: #{encoder_forward.20} parent=39 // pred_fallthru
        _
    $region40: #{encoder_forward.20} parent=5 // pred_fallthru
      _
    %p381 = scmp.le.s32.totalorder 1, %s17
    %p382 = scmp.lt.s32.totalorder %s17, 4
    %p383 = pnand %p381, %p382
    %p384 = pneg %p383
    // Predicated region
    $region61: #{encoder_forward.20} parent=5 // pred_check
      _
    $region62: #{encoder_forward.20} parent=5 // pred_check_branch
      %386 = sbr.rel (%p383) target = $region64
    $region63: #{encoder_forward.20} parent=5 // pred_region
      %s387 = ssub.s32 %s17, 1
      %s388 = smul.u32 3, %s22
      %p389 = scmp.lt.s32.totalorder %s388, 8
      %s390 = scalar_select %p389, %s388, 8
      %s391 = smul.addr %s390, 8
      %s392 = scalar_lea.vmem %s0, %s391
      %p393 = pneg %p43
      %p394 = pneg %p40
      %s395 = smul.u32 3, %s22
      %p396 = scmp.lt.s32.totalorder %s395, 8
      %s397 = scalar_select %p396, %s395, 8
      %s398 = smul.addr %s397, 8
      %s399 = scalar_lea.vmem %s1, %s398
      %p400 = pneg %p69
      %p401 = pneg %p66
      %s402 = smul.u32 3, %s22
      %p403 = scmp.lt.s32.totalorder %s402, 8
      %s404 = scalar_select %p403, %s402, 8
      %s405 = smul.addr %s404, 8
      %s406 = scalar_lea.vmem %s2, %s405
      %p407 = pneg %p95
      %p408 = pneg %p92
      %s409 = smul.u32 3, %s22
      %p410 = scmp.lt.s32.totalorder %s409, 8
      %s411 = scalar_select %p410, %s409, 8
      %s412 = smul.addr %s411, 8
      %s413 = scalar_lea.vmem %s3, %s412
      %p414 = pneg %p121
      %p415 = pneg %p118
      %s416 = smul.u32 3, %s22
      %p417 = scmp.lt.s32.totalorder %s416, 8
      %s418 = scalar_select %p417, %s416, 8
      %s419 = smul.addr %s418, 8
      %s420 = scalar_lea.vmem %s4, %s419
      %p421 = pneg %p147
      %p422 = pneg %p144
      %p423 = pneg %p168
      %p424 = pneg %p165
      %p425 = pneg %p189
      %p426 = pneg %p186
      %p427 = pneg %p210
      %p428 = pneg %p207
      %p429 = pneg %p231
      %p430 = pneg %p228
      %p431 = pneg %p252
      %p432 = pneg %p249
      %p433 = pneg %p273
      %p434 = pneg %p270
      %p435 = pneg %p299
      %p436 = pneg %p296
      %s437 = smul.u32 3, %s22
      %p438 = scmp.lt.s32.totalorder %s437, 8
      %s439 = scalar_select %p438, %s437, 8
      %s440 = smul.addr %s439, 8
      %s441 = scalar_lea.vmem %s11, %s440
      %s442 = smul.u32 3, %s22
      %p443 = scmp.lt.s32.totalorder %s442, 8
      %s444 = scalar_select %p443, %s442, 8
      %s445 = smul.addr %s444, 8
      %s446 = scalar_lea.vmem %s0, %s445
      %s447 = smul.u32 3, %s22
      %s448 = smul.u32 3, %s22
      %p449 = scmp.lt.s32.totalorder %s448, 8
      %s450 = scalar_select %p449, %s448, 8
      %s451 = smul.addr %s450, 8
      %s452 = scalar_lea.vmem %s1, %s451
      %s453 = smul.u32 3, %s22
      %s454 = smul.u32 3, %s22
      %p455 = scmp.lt.s32.totalorder %s454, 8
      %s456 = scalar_select %p455, %s454, 8
      %s457 = smul.addr %s456, 8
      %s458 = scalar_lea.vmem %s2, %s457
      %s459 = smul.u32 3, %s22
      %s460 = smul.u32 3, %s22
      %p461 = scmp.lt.s32.totalorder %s460, 8
      %s462 = scalar_select %p461, %s460, 8
      %s463 = smul.addr %s462, 8
      %s464 = scalar_lea.vmem %s3, %s463
      %s465 = smul.u32 3, %s22
      %s466 = smul.u32 3, %s22
      %p467 = scmp.lt.s32.totalorder %s466, 8
      %s468 = scalar_select %p467, %s466, 8
      %s469 = smul.addr %s468, 8
      %s470 = scalar_lea.vmem %s4, %s469
      %s471 = smul.u32 3, %s22
      %s472 = smul.u32 3, %s22
      %p473 = scmp.lt.s32.totalorder %s472, 8
      %s474 = scalar_select %p473, %s472, 8
      %s475 = smul.addr %s474, 8
      %s476 = scalar_lea.vmem %s11, %s475
      %s477 = smul.u32 3, %s22
      %v478 = vld [vmem:[%s446] sm:$0xff]
      %v479 = vld [vmem:[%s446 + $0x8] sm:$0xff]
      %v480 = vld [vmem:[%s446 + $0x10] sm:$0xff]
      %484 = vrot.lane.b32.xlu0 %v478, 32
      %v485 = vpop.permute.xlu0 %484
      %486 = vrot.lane.b32.xlu0 %v479, 32
      %v487 = vpop.permute.xlu0 %486
      %488 = vrot.lane.b32.xlu0 %v480, 32
      %v489 = vpop.permute.xlu0 %488
      %493 = vrot.lane.b32.xlu0 %v478, 64
      %v494 = vpop.permute.xlu0 %493
      %495 = vrot.lane.b32.xlu0 %v479, 64
      %v496 = vpop.permute.xlu0 %495
      %497 = vrot.lane.b32.xlu0 %v480, 64
      %v498 = vpop.permute.xlu0 %497
      %502 = vrot.lane.b32.xlu0 %v478, 96
      %v503 = vpop.permute.xlu0 %502
      %504 = vrot.lane.b32.xlu0 %v479, 96
      %v505 = vpop.permute.xlu0 %504
      %506 = vrot.lane.b32.xlu0 %v480, 96
      %v507 = vpop.permute.xlu0 %506
      %vm511 = vcmask 261120
      %v512 = vsel %vm511, %v478, %v485
      %v513 = vsel %vm511, %v479, %v487
      %v514 = vsel %vm511, %v480, %v489
      %vm515 = vcmask 523264
      %v516 = vsel %vm515, %v512, %v494
      %v517 = vsel %vm515, %v513, %v496
      %v518 = vsel %vm515, %v514, %v498
      %vm519 = vcmask 785408
      %v520 = vsel %vm519, %v516, %v503
      %v521 = vsel %vm519, %v517, %v505
      %v522 = vsel %vm519, %v518, %v507
      %v523 = vld [vmem:[%s464] sm:$0xff]
      %v524 = vld [vmem:[%s464 + $0x8] sm:$0xff]
      %v525 = vld [vmem:[%s464 + $0x10] sm:$0xff]
      %v526 = vld [vmem:[%s452] sm:$0xff]
      %v527 = vld [vmem:[%s452 + $0x8] sm:$0xff]
      %v528 = vld [vmem:[%s452 + $0x10] sm:$0xff]
      %v529 = vsub.f32 %v520, %v526
      %v530 = vsub.f32 %v521, %v527
      %v531 = vsub.f32 %v522, %v528
      %v532 = vadd.f32 %v529, %v523
      %v533 = vadd.f32 %v530, %v524
      %v534 = vadd.f32 %v531, %v525
      %v535 = vld [vmem:[%s5] sm:$0xff]
      %v536 = vld [vmem:[%s5 + $0x8] sm:$0xff]
      %v537 = vld [vmem:[%s5 + $0x10] sm:$0xff]
      %v538 = vld [vmem:[%s5 + $0x18] sm:$0xff]
      %v539 = vld [vmem:[%s5 + $0x20] sm:$0xff]
      %v540 = vld [vmem:[%s5 + $0x28] sm:$0xff]
      %v541 = vld [vmem:[%s5 + $0x30] sm:$0xff]
      %v542 = vld [vmem:[%s5 + $0x38] sm:$0xff]
      %v543 = vld [vmem:[%s5 + $0x40] sm:$0xff]
      %v544 = vld [vmem:[%s5 + $0x48] sm:$0xff]
      %v545 = vld [vmem:[%s5 + $0x50] sm:$0xff]
      %v546 = vld [vmem:[%s5 + $0x58] sm:$0xff]
      %v547 = vld [vmem:[%s5 + $0x60] sm:$0xff]
      %v548 = vld [vmem:[%s5 + $0x68] sm:$0xff]
      %v549 = vld [vmem:[%s5 + $0x70] sm:$0xff]
      %v550 = vld [vmem:[%s5 + $0x78] sm:$0xff]
      %v551 = vld [vmem:[%s6] sm:$0x1]
      %v553 = vperm.slane %v551, 0
      %555 = vmatpush.msra.mxu0 %v550
      %556 = vmatpush.msra.mxu0 %v549
      %557 = vmatpush.msra.mxu0 %v548
      %558 = vmatpush.msra.mxu0 %v547
      %559 = vmatpush.msra.mxu0 %v546
      %560 = vmatpush.msra.mxu0 %v545
      %561 = vmatpush.msra.mxu0 %v544
      %562 = vmatpush.msra.mxu0 %v543
      %563 = vmatpush.msra.mxu0 %v542
      %564 = vmatpush.msra.mxu0 %v541
      %565 = vmatpush.msra.mxu0 %v540
      %566 = vmatpush.msra.mxu0 %v539
      %567 = vmatpush.msra.mxu0 %v538
      %568 = vmatpush.msra.mxu0 %v537
      %569 = vmatpush.msra.mxu0 %v536
      %570 = vmatpush.msra.mxu0 %v535
      %571 = vmatmul.f32.gmra.mxu0 %v532
      %v572 = vpop.f32.mrf.mxu0
      %v573 = vadd.f32 %v553, %v572
      %574 = vmatmul.f32.gmra.mxu0 %v533
      %v575 = vpop.f32.mrf.mxu0
      %v576 = vadd.f32 %v553, %v575
      %577 = vmatmul.f32.gmra.mxu0 %v534
      %v578 = vpop.f32.mrf.mxu0
      %v579 = vadd.f32 %v553, %v578
      %580 = vdwg.mxu0
      %v581 = vmax.f32 %v573, 0.0
      %v582 = vmax.f32 %v576, 0.0
      %v583 = vmax.f32 %v579, 0.0
      %v584 = vld [vmem:[%s7] sm:$0xff]
      %v585 = vld [vmem:[%s7 + $0x8] sm:$0xff]
      %v586 = vld [vmem:[%s7 + $0x10] sm:$0xff]
      %v587 = vld [vmem:[%s7 + $0x18] sm:$0xff]
      %v588 = vld [vmem:[%s7 + $0x20] sm:$0xff]
      %v589 = vld [vmem:[%s7 + $0x28] sm:$0xff]
      %v590 = vld [vmem:[%s7 + $0x30] sm:$0xff]
      %v591 = vld [vmem:[%s7 + $0x38] sm:$0xff]
      %v592 = vld [vmem:[%s7 + $0x40] sm:$0xff]
      %v593 = vld [vmem:[%s7 + $0x48] sm:$0xff]
      %v594 = vld [vmem:[%s7 + $0x50] sm:$0xff]
      %v595 = vld [vmem:[%s7 + $0x58] sm:$0xff]
      %v596 = vld [vmem:[%s7 + $0x60] sm:$0xff]
      %v597 = vld [vmem:[%s7 + $0x68] sm:$0xff]
      %v598 = vld [vmem:[%s7 + $0x70] sm:$0xff]
      %v599 = vld [vmem:[%s7 + $0x78] sm:$0xff]
      %v600 = vld [vmem:[%s8] sm:$0x1]
      %v602 = vperm.slane %v600, 0
      %604 = vmatpush.msra.mxu0 %v599
      %605 = vmatpush.msra.mxu0 %v598
      %606 = vmatpush.msra.mxu0 %v597
      %607 = vmatpush.msra.mxu0 %v596
      %608 = vmatpush.msra.mxu0 %v595
      %609 = vmatpush.msra.mxu0 %v594
      %610 = vmatpush.msra.mxu0 %v593
      %611 = vmatpush.msra.mxu0 %v592
      %612 = vmatpush.msra.mxu0 %v591
      %613 = vmatpush.msra.mxu0 %v590
      %614 = vmatpush.msra.mxu0 %v589
      %615 = vmatpush.msra.mxu0 %v588
      %616 = vmatpush.msra.mxu0 %v587
      %617 = vmatpush.msra.mxu0 %v586
      %618 = vmatpush.msra.mxu0 %v585
      %619 = vmatpush.msra.mxu0 %v584
      %620 = vmatmul.f32.gmra.mxu0 %v581
      %v621 = vpop.f32.mrf.mxu0
      %v622 = vadd.f32 %v602, %v621
      %623 = vmatmul.f32.gmra.mxu0 %v582
      %v624 = vpop.f32.mrf.mxu0
      %v625 = vadd.f32 %v602, %v624
      %626 = vmatmul.f32.gmra.mxu0 %v583
      %v627 = vpop.f32.mrf.mxu0
      %v628 = vadd.f32 %v602, %v627
      %629 = vdwg.mxu0
      %v630 = vmul.f32 %v622, 0.17677669
      %v631 = vmul.f32 %v625, 0.17677669
      %v632 = vmul.f32 %v628, 0.17677669
      %636 = vrot.lane.b32.xlu0 %v630, 96
      %v637 = vpop.permute.xlu0 %636
      %638 = vrot.lane.b32.xlu0 %v631, 96
      %v639 = vpop.permute.xlu0 %638
      %640 = vrot.lane.b32.xlu0 %v632, 96
      %v641 = vpop.permute.xlu0 %640
      %v645 = vmax.f32 %v630, %v637
      %v646 = vmax.f32 %v631, %v639
      %v647 = vmax.f32 %v632, %v641
      %648 = vrot.lane.b32.xlu0 %v630, 64
      %v649 = vpop.permute.xlu0 %648
      %650 = vrot.lane.b32.xlu0 %v631, 64
      %v651 = vpop.permute.xlu0 %650
      %652 = vrot.lane.b32.xlu0 %v632, 64
      %v653 = vpop.permute.xlu0 %652
      %v657 = vmax.f32 %v645, %v649
      %v658 = vmax.f32 %v646, %v651
      %v659 = vmax.f32 %v647, %v653
      %660 = vrot.lane.b32.xlu0 %v630, 32
      %v661 = vpop.permute.xlu0 %660
      %662 = vrot.lane.b32.xlu0 %v631, 32
      %v663 = vpop.permute.xlu0 %662
      %664 = vrot.lane.b32.xlu0 %v632, 32
      %v665 = vpop.permute.xlu0 %664
      %v669 = vmax.f32 %v657, %v661
      %v670 = vmax.f32 %v658, %v663
      %v671 = vmax.f32 %v659, %v665
      %675 = vrot.lane.b32.xlu0 %v669, 32
      %v676 = vpop.permute.xlu0 %675
      %677 = vrot.lane.b32.xlu0 %v670, 32
      %v678 = vpop.permute.xlu0 %677
      %679 = vrot.lane.b32.xlu0 %v671, 32
      %v680 = vpop.permute.xlu0 %679
      %684 = vrot.lane.b32.xlu0 %v669, 64
      %v685 = vpop.permute.xlu0 %684
      %686 = vrot.lane.b32.xlu0 %v670, 64
      %v687 = vpop.permute.xlu0 %686
      %688 = vrot.lane.b32.xlu0 %v671, 64
      %v689 = vpop.permute.xlu0 %688
      %693 = vrot.lane.b32.xlu0 %v669, 96
      %v694 = vpop.permute.xlu0 %693
      %695 = vrot.lane.b32.xlu0 %v670, 96
      %v696 = vpop.permute.xlu0 %695
      %697 = vrot.lane.b32.xlu0 %v671, 96
      %v698 = vpop.permute.xlu0 %697
      %v702 = vsel %vm511, %v669, %v676
      %v703 = vsel %vm511, %v670, %v678
      %v704 = vsel %vm511, %v671, %v680
      %v705 = vsel %vm515, %v702, %v685
      %v706 = vsel %vm515, %v703, %v687
      %v707 = vsel %vm515, %v704, %v689
      %v708 = vsel %vm519, %v705, %v694
      %v709 = vsel %vm519, %v706, %v696
      %v710 = vsel %vm519, %v707, %v698
      %v711 = vsub.f32 %v630, %v708
      %v712 = vsub.f32 %v631, %v709
      %v713 = vsub.f32 %v632, %v710
      %v714 = vmul.f32 %v711, 1.442695
      %v715 = vpow.pop %v714
      %v716 = vmul.f32 %v712, 1.442695
      %v717 = vpow.pop %v716
      %v718 = vmul.f32 %v713, 1.442695
      %v719 = vpow.pop %v718
      %723 = vrot.lane.b32.xlu0 %v715, 96
      %v724 = vpop.permute.xlu0 %723
      %725 = vrot.lane.b32.xlu0 %v717, 96
      %v726 = vpop.permute.xlu0 %725
      %727 = vrot.lane.b32.xlu0 %v719, 96
      %v728 = vpop.permute.xlu0 %727
      %v732 = vadd.f32 %v715, %v724
      %v733 = vadd.f32 %v717, %v726
      %v734 = vadd.f32 %v719, %v728
      %735 = vrot.lane.b32.xlu0 %v715, 64
      %v736 = vpop.permute.xlu0 %735
      %737 = vrot.lane.b32.xlu0 %v717, 64
      %v738 = vpop.permute.xlu0 %737
      %739 = vrot.lane.b32.xlu0 %v719, 64
      %v740 = vpop.permute.xlu0 %739
      %v744 = vadd.f32 %v732, %v736
      %v745 = vadd.f32 %v733, %v738
      %v746 = vadd.f32 %v734, %v740
      %747 = vrot.lane.b32.xlu0 %v715, 32
      %v748 = vpop.permute.xlu0 %747
      %749 = vrot.lane.b32.xlu0 %v717, 32
      %v750 = vpop.permute.xlu0 %749
      %751 = vrot.lane.b32.xlu0 %v719, 32
      %v752 = vpop.permute.xlu0 %751
      %v756 = vadd.f32 %v744, %v748
      %v757 = vadd.f32 %v745, %v750
      %v758 = vadd.f32 %v746, %v752
      %v759 = vrcp.pop %v756
      %v760 = vrcp.pop %v757
      %v761 = vrcp.pop %v758
      %765 = vrot.lane.b32.xlu0 %v759, 32
      %v766 = vpop.permute.xlu0 %765
      %767 = vrot.lane.b32.xlu0 %v760, 32
      %v768 = vpop.permute.xlu0 %767
      %769 = vrot.lane.b32.xlu0 %v761, 32
      %v770 = vpop.permute.xlu0 %769
      %774 = vrot.lane.b32.xlu0 %v759, 64
      %v775 = vpop.permute.xlu0 %774
      %776 = vrot.lane.b32.xlu0 %v760, 64
      %v777 = vpop.permute.xlu0 %776
      %778 = vrot.lane.b32.xlu0 %v761, 64
      %v779 = vpop.permute.xlu0 %778
      %783 = vrot.lane.b32.xlu0 %v759, 96
      %v784 = vpop.permute.xlu0 %783
      %785 = vrot.lane.b32.xlu0 %v760, 96
      %v786 = vpop.permute.xlu0 %785
      %787 = vrot.lane.b32.xlu0 %v761, 96
      %v788 = vpop.permute.xlu0 %787
      %v792 = vsel %vm511, %v759, %v766
      %v793 = vsel %vm511, %v760, %v768
      %v794 = vsel %vm511, %v761, %v770
      %v795 = vsel %vm515, %v792, %v775
      %v796 = vsel %vm515, %v793, %v777
      %v797 = vsel %vm515, %v794, %v779
      %v798 = vsel %vm519, %v795, %v784
      %v799 = vsel %vm519, %v796, %v786
      %v800 = vsel %vm519, %v797, %v788
      %v801 = vmul.f32 %v715, %v798
      %v802 = vmul.f32 %v717, %v799
      %v803 = vmul.f32 %v719, %v800
      %v804 = vld [vmem:[%s458] sm:$0xff]
      %v805 = vld [vmem:[%s458 + $0x8] sm:$0xff]
      %v806 = vld [vmem:[%s458 + $0x10] sm:$0xff]
      %v807 = vadd.f32 %v804, %v523
      %v808 = vadd.f32 %v805, %v524
      %v809 = vadd.f32 %v806, %v525
      %v810 = vmul.f32 %v801, %v807
      %v811 = vmul.f32 %v802, %v808
      %v812 = vmul.f32 %v803, %v809
      %816 = vrot.lane.b32.xlu0 %v810, 96
      %v817 = vpop.permute.xlu0 %816
      %818 = vrot.lane.b32.xlu0 %v811, 96
      %v819 = vpop.permute.xlu0 %818
      %820 = vrot.lane.b32.xlu0 %v812, 96
      %v821 = vpop.permute.xlu0 %820
      %v825 = vadd.f32 %v810, %v817
      %v826 = vadd.f32 %v811, %v819
      %v827 = vadd.f32 %v812, %v821
      %828 = vrot.lane.b32.xlu0 %v810, 64
      %v829 = vpop.permute.xlu0 %828
      %830 = vrot.lane.b32.xlu0 %v811, 64
      %v831 = vpop.permute.xlu0 %830
      %832 = vrot.lane.b32.xlu0 %v812, 64
      %v833 = vpop.permute.xlu0 %832
      %v837 = vadd.f32 %v825, %v829
      %v838 = vadd.f32 %v826, %v831
      %v839 = vadd.f32 %v827, %v833
      %840 = vrot.lane.b32.xlu0 %v810, 32
      %v841 = vpop.permute.xlu0 %840
      %842 = vrot.lane.b32.xlu0 %v811, 32
      %v843 = vpop.permute.xlu0 %842
      %844 = vrot.lane.b32.xlu0 %v812, 32
      %v845 = vpop.permute.xlu0 %844
      %v849 = vadd.f32 %v837, %v841
      %v850 = vadd.f32 %v838, %v843
      %v851 = vadd.f32 %v839, %v845
      %v852 = vld [vmem:[%s9] sm:$0xff]
      %v853 = vld [vmem:[%s9 + $0x8] sm:$0xff]
      %v854 = vld [vmem:[%s9 + $0x10] sm:$0xff]
      %v855 = vld [vmem:[%s9 + $0x18] sm:$0xff]
      %v856 = vld [vmem:[%s10] sm:$0x1]
      %v858 = vperm.slane %v856, 0
      %v861 = vsel %vm511, %v849, 0
      %v864 = vsel %vm511, %v850, 0
      %v867 = vsel %vm511, %v851, 0
      %869 = vmatpush.msra.mxu0 0.0
      %870 = vmatpush.msra.mxu0 0.0
      %871 = vmatpush.msra.mxu0 0.0
      %872 = vmatpush.msra.mxu0 0.0
      %873 = vmatpush.msra.mxu0 0.0
      %874 = vmatpush.msra.mxu0 0.0
      %875 = vmatpush.msra.mxu0 0.0
      %876 = vmatpush.msra.mxu0 0.0
      %877 = vmatpush.msra.mxu0 0.0
      %878 = vmatpush.msra.mxu0 0.0
      %879 = vmatpush.msra.mxu0 0.0
      %880 = vmatpush.msra.mxu0 0.0
      %881 = vmatpush.msra.mxu0 %v855
      %882 = vmatpush.msra.mxu0 %v854
      %883 = vmatpush.msra.mxu0 %v853
      %884 = vmatpush.msra.mxu0 %v852
      %885 = vmatmul.f32.gmra.mxu0 %v861
      %v886 = vpop.f32.mrf.mxu0
      %v887 = vadd.f32 %v858, %v886
      %888 = vmatmul.f32.gmra.mxu0 %v864
      %v889 = vpop.f32.mrf.mxu0
      %v890 = vadd.f32 %v858, %v889
      %891 = vmatmul.f32.gmra.mxu0 %v867
      %v892 = vpop.f32.mrf.mxu0
      %v893 = vadd.f32 %v858, %v892
      %894 = vdwg.mxu0
      %v895 = vld [vmem:[%s470] sm:$0xff]
      %v896 = vld [vmem:[%s470 + $0x8] sm:$0xff]
      %v897 = vld [vmem:[%s470 + $0x10] sm:$0xff]
      %v898 = vadd.f32 %v887, %v895
      %v899 = vadd.f32 %v890, %v896
      %v900 = vadd.f32 %v893, %v897
      %901 = vst.msk [vmem:[%s476] sm:$0xff] %vm511, %v898
      %902 = vst.msk [vmem:[%s476 + $0x8] sm:$0xff] %vm511, %v899
      %903 = vst.msk [vmem:[%s476 + $0x10] sm:$0xff] %vm511, %v900
      %s904 = smul.u32 3, %s22
      %p905 = scmp.lt.s32.totalorder %s904, 8
      %s906 = scalar_select %p905, %s904, 8
      %s907 = smul.addr %s906, 8
      %s908 = scalar_lea.vmem %s11, %s907
      // Predicated region
      $region65: #{encoder_forward.20} parent=63 // pred_check
        %p909 = pneg %p296
      $region66: #{encoder_forward.20} parent=63 // pred_check_branch
        %911 = sbr.rel (%p909) target = $region68
      $region67: #{encoder_forward.20} parent=63 // pred_region
        %s912 = smul.u32 3, %s22
      $region68: #{encoder_forward.20} parent=63 // pred_fallthru
        _
    $region64: #{encoder_forward.20} parent=5 // pred_fallthru
      _
    %p913 = scmp.le.s32.totalorder 2, %s17
    // Predicated region
    $region69: #{encoder_forward.20} parent=5 // pred_check
      %p914 = pneg %p913
    $region70: #{encoder_forward.20} parent=5 // pred_check_branch
      %916 = sbr.rel (%p914) target = $region72
    $region71: #{encoder_forward.20} parent=5 // pred_region
      %s917 = ssub.s32 %s17, 2
      // Predicated region
      $region73: #{encoder_forward.20} parent=71 // pred_check
        %p918 = pneg %p302
      $region74: #{encoder_forward.20} parent=71 // pred_check_branch
        %920 = sbr.rel (%p918) target = $region76
      $region75: #{encoder_forward.20} parent=71 // pred_region
        %s921 = smul.u32 3, %s23
        %p922 = scmp.lt.s32.totalorder %s921, 8
        %s923 = scalar_select %p922, %s921, 8
        %s924 = smul.addr %s923, 8
        %s925 = scalar_lea.vmem %s11, %s924
      $region76: #{encoder_forward.20} parent=71 // pred_fallthru
        _
    $region72: #{encoder_forward.20} parent=5 // pred_fallthru
      _
  $region6: #{encoder_forward.20} parent=0 // loop_footer
    %s21 = sadd.s32 1, %s17
  $region7: #{encoder_forward.20} parent=0 // loop_footer_branch
    %16 = sbr.rel target = $region3
  $region8: #{encoder_forward.20} parent=0 // loop_exit
    _

// kernel: neg.6
$region0: #{neg.6}
  #allocation0 [shape = 's32[1]{0}', space=sflag, size = 0x4, scoped, tag = 'scoped memory for neg.6']
  %s0 = inlined_call_operand.vmem [shape: f32[2,12,36], index: 0, kind: input, shape index: {}]
  %s1 = inlined_call_operand.vmem [shape: f32[2,12,36], index: 1, kind: output, shape index: {}]
  %v2 = vld [vmem:[%s0] sm:$0x3]
  %3 = xla_tuple %v2
  %4 = xla_tuple %3
  %v5 = vxor.u32 %v2, 2147483648
  %6 = xla_tuple %v5
  %7 = vst [vmem:[%s1] sm:$0x3] %v5
  %s8 = scalar_lea.vmem %s0, 2
  %v9 = vld [vmem:[%s8] sm:$0x3]
  %10 = xla_tuple %v9
  %11 = xla_tuple %10
  %v12 = vxor.u32 %v9, 2147483648
  %13 = xla_tuple %v12
  %s14 = scalar_lea.vmem %s1, 2
  %15 = vst [vmem:[%s14] sm:$0x3] %v12
  %s16 = scalar_lea.vmem %s0, 4
  %v17 = vld [vmem:[%s16] sm:$0x3]
  %18 = xla_tuple %v17
  %19 = xla_tuple %18
  %v20 = vxor.u32 %v17, 2147483648
  %21 = xla_tuple %v20
  %s22 = scalar_lea.vmem %s1, 4
  %23 = vst [vmem:[%s22] sm:$0x3] %v20
  %s24 = scalar_lea.vmem %s0, 6
  %v25 = vld [vmem:[%s24] sm:$0x3]
  %26 = xla_tuple %v25
  %27 = xla_tuple %26
  %v28 = vxor.u32 %v25, 2147483648
  %29 = xla_tuple %v28
  %s30 = scalar_lea.vmem %s1, 6
  %31 = vst [vmem:[%s30] sm:$0x3] %v28
  %s32 = scalar_lea.vmem %s0, 8
  %v33 = vld [vmem:[%s32] sm:$0x3]
  %34 = xla_tuple %v33
  %35 = xla_tuple %34
  %v36 = vxor.u32 %v33, 2147483648
  %37 = xla_tuple %v36
  %s38 = scalar_lea.vmem %s1, 8
  %39 = vst [vmem:[%s38] sm:$0x3] %v36
  %s40 = scalar_lea.vmem %s0, 10
  %v41 = vld [vmem:[%s40] sm:$0x3]
  %42 = xla_tuple %v41
  %43 = xla_tuple %42
  %v44 = vxor.u32 %v41, 2147483648
  %45 = xla_tuple %v44
  %s46 = scalar_lea.vmem %s1, 10
  %47 = vst [vmem:[%s46] sm:$0x3] %v44
  %s48 = scalar_lea.vmem %s0, 12
  %v49 = vld [vmem:[%s48] sm:$0x3]
  %50 = xla_tuple %v49
  %51 = xla_tuple %50
  %v52 = vxor.u32 %v49, 2147483648
  %53 = xla_tuple %v52
  %s54 = scalar_lea.vmem %s1, 12
  %55 = vst [vmem:[%s54] sm:$0x3] %v52
  %s56 = scalar_lea.vmem %s0, 14
  %v57 = vld [vmem:[%s56] sm:$0x3]
  %58 = xla_tuple %v57
  %59 = xla_tuple %58
  %v60 = vxor.u32 %v57, 2147483648
  %61 = xla_tuple %v60
  %s62 = scalar_lea.vmem %s1, 14
  %63 = vst [vmem:[%s62] sm:$0x3] %v60
  %s64 = scalar_lea.vmem %s0, 16
  %v65 = vld [vmem:[%s64] sm:$0x3]
  %66 = xla_tuple %v65
  %67 = xla_tuple %66
  %v68 = vxor.u32 %v65, 2147483648
  %69 = xla_tuple %v68
  %s70 = scalar_lea.vmem %s1, 16
  %71 = vst [vmem:[%s70] sm:$0x3] %v68
  %s72 = scalar_lea.vmem %s0, 18
  %v73 = vld [vmem:[%s72] sm:$0x3]
  %74 = xla_tuple %v73
  %75 = xla_tuple %74
  %v76 = vxor.u32 %v73, 2147483648
  %77 = xla_tuple %v76
  %s78 = scalar_lea.vmem %s1, 18
  %79 = vst [vmem:[%s78] sm:$0x3] %v76
  %s80 = scalar_lea.vmem %s0, 20
  %v81 = vld [vmem:[%s80] sm:$0x3]
  %82 = xla_tuple %v81
  %83 = xla_tuple %82
  %v84 = vxor.u32 %v81, 2147483648
  %85 = xla_tuple %v84
  %s86 = scalar_lea.vmem %s1, 20
  %87 = vst [vmem:[%s86] sm:$0x3] %v84
  %s88 = scalar_lea.vmem %s0, 22
  %v89 = vld [vmem:[%s88] sm:$0x3]
  %90 = xla_tuple %v89
  %91 = xla_tuple %90
  %v92 = vxor.u32 %v89, 2147483648
  %93 = xla_tuple %v92
  %s94 = scalar_lea.vmem %s1, 22
  %95 = vst [vmem:[%s94] sm:$0x3] %v92

// kernel: neg.7
$region0: #{neg.7}
  #allocation0 [shape = 's32[1]{0}', space=sflag, size = 0x4, scoped, tag = 'scoped memory for neg.7']
  %s0 = inlined_call_operand.vmem [shape: f32[2,12,12], index: 0, kind: input, shape index: {}]
  %s1 = inlined_call_operand.vmem [shape: f32[2,12,12], index: 1, kind: output, shape index: {}]
  %v2 = vld [vmem:[%s0] sm:$0x3]
  %3 = xla_tuple %v2
  %4 = xla_tuple %3
  %v5 = vxor.u32 %v2, 2147483648
  %6 = xla_tuple %v5
  %7 = vst [vmem:[%s1] sm:$0x3] %v5
  %s8 = scalar_lea.vmem %s0, 2
  %v9 = vld [vmem:[%s8] sm:$0x3]
  %10 = xla_tuple %v9
  %11 = xla_tuple %10
  %v12 = vxor.u32 %v9, 2147483648
  %13 = xla_tuple %v12
  %s14 = scalar_lea.vmem %s1, 2
  %15 = vst [vmem:[%s14] sm:$0x3] %v12
  %s16 = scalar_lea.vmem %s0, 4
  %v17 = vld [vmem:[%s16] sm:$0x3]
  %18 = xla_tuple %v17
  %19 = xla_tuple %18
  %v20 = vxor.u32 %v17, 2147483648
  %21 = xla_tuple %v20
  %s22 = scalar_lea.vmem %s1, 4
  %23 = vst [vmem:[%s22] sm:$0x3] %v20
  %s24 = scalar_lea.vmem %s0, 6
  %v25 = vld [vmem:[%s24] sm:$0x3]
  %26 = xla_tuple %v25
  %27 = xla_tuple %26
  %v28 = vxor.u32 %v25, 2147483648
  %29 = xla_tuple %v28
  %s30 = scalar_lea.vmem %s1, 6
  %31 = vst [vmem:[%s30] sm:$0x3] %v28
  %s32 = scalar_lea.vmem %s0, 8
  %v33 = vld [vmem:[%s32] sm:$0x3]
  %34 = xla_tuple %v33
  %35 = xla_tuple %34
  %v36 = vxor.u32 %v33, 2147483648
  %37 = xla_tuple %v36
  %s38 = scalar_lea.vmem %s1, 8
  %39 = vst [vmem:[%s38] sm:$0x3] %v36
  %s40 = scalar_lea.vmem %s0, 10
  %v41 = vld [vmem:[%s40] sm:$0x3]
  %42 = xla_tuple %v41
  %43 = xla_tuple %42
  %v44 = vxor.u32 %v41, 2147483648
  %45 = xla_tuple %v44
  %s46 = scalar_lea.vmem %s1, 10
  %47 = vst [vmem:[%s46] sm:$0x3] %v44
  %s48 = scalar_lea.vmem %s0, 12
  %v49 = vld [vmem:[%s48] sm:$0x3]
  %50 = xla_tuple %v49
  %51 = xla_tuple %50
  %v52 = vxor.u32 %v49, 2147483648
  %53 = xla_tuple %v52
  %s54 = scalar_lea.vmem %s1, 12
  %55 = vst [vmem:[%s54] sm:$0x3] %v52
  %s56 = scalar_lea.vmem %s0, 14
  %v57 = vld [vmem:[%s56] sm:$0x3]
  %58 = xla_tuple %v57
  %59 = xla_tuple %58
  %v60 = vxor.u32 %v57, 2147483648
  %61 = xla_tuple %v60
  %s62 = scalar_lea.vmem %s1, 14
  %63 = vst [vmem:[%s62] sm:$0x3] %v60
  %s64 = scalar_lea.vmem %s0, 16
  %v65 = vld [vmem:[%s64] sm:$0x3]
  %66 = xla_tuple %v65
  %67 = xla_tuple %66
  %v68 = vxor.u32 %v65, 2147483648
  %69 = xla_tuple %v68
  %s70 = scalar_lea.vmem %s1, 16
  %71 = vst [vmem:[%s70] sm:$0x3] %v68
  %s72 = scalar_lea.vmem %s0, 18
  %v73 = vld [vmem:[%s72] sm:$0x3]
  %74 = xla_tuple %v73
  %75 = xla_tuple %74
  %v76 = vxor.u32 %v73, 2147483648
  %77 = xla_tuple %v76
  %s78 = scalar_lea.vmem %s1, 18
  %79 = vst [vmem:[%s78] sm:$0x3] %v76
  %s80 = scalar_lea.vmem %s0, 20
  %v81 = vld [vmem:[%s80] sm:$0x3]
  %82 = xla_tuple %v81
  %83 = xla_tuple %82
  %v84 = vxor.u32 %v81, 2147483648
  %85 = xla_tuple %v84
  %s86 = scalar_lea.vmem %s1, 20
  %87 = vst [vmem:[%s86] sm:$0x3] %v84
  %s88 = scalar_lea.vmem %s0, 22
  %v89 = vld [vmem:[%s88] sm:$0x3]
  %90 = xla_tuple %v89
  %91 = xla_tuple %90
  %v92 = vxor.u32 %v89, 2147483648
  %93 = xla_tuple %v92
  %s94 = scalar_lea.vmem %s1, 22
  %95 = vst [vmem:[%s94] sm:$0x3] %v92

// kernel: encoder_forward.21
$region0: #{encoder_forward.21}
  #allocation0 [shape = 'u32[]', space=smem, size = 0x4, offset = 0x4, fixed_abs, tag = 'smem constant byte address 0x4 - core index']
  #allocation1 [shape = 'u32[72,128]{1,0:T(1,128)}', space=vmem, size = 0x9000, scoped, tag = 'internal scratch']
  %s0 = inlined_call_operand.vmem [shape: f32[96,35], index: 0, kind: input, shape index: {}]
  %s1 = inlined_call_operand.vmem [shape: f32[1,35], index: 1, kind: input, shape index: {}]
  %s2 = inlined_call_operand.vmem [shape: f32[1,35], index: 2, kind: input, shape index: {}]
  %s3 = inlined_call_operand.vmem [shape: f32[35,64], index: 3, kind: input, shape index: {}]
  %s4 = inlined_call_operand.vmem [shape: f32[1,64], index: 4, kind: input, shape index: {}]
  %s5 = inlined_call_operand.vmem [shape: f32[96,64], index: 5, kind: output, shape index: {0}]
  %s6 = inlined_call_operand.vmem [shape: f32[2,64], index: 6, kind: output, shape index: {1}]
  %7 = xla_tuple %s5, %s6
  %s8 = sld [smem:[#allocation0]]
  $region65: #{encoder_forward.21} parent=0
    _
  %s10 = ssub.s32 1, %s8
  %s11 = scalar_select 0, %s10, %s8
  loop: start=0, step=1, limit=4
  $region2: #{encoder_forward.21} parent=0 // loop_pre_header
    _
  $region3: #{encoder_forward.21} parent=0 // loop_header
    %s13 = sphi 0, %s17
    %p14 = scmp.ge.s32.totalorder %s13, 4
    %s23 = sphi 0, %s25
    %s26 = sphi 0, %s23
    %s27 = sphi 0, %s26
    %s43 = sphi 0, %s27
    %s47 = sphi 0, %s47
    %s49 = sphi 0, %s47
    %s50 = sphi 0, %s49
    %s64 = sphi 0, %s50
    %s68 = sphi 0, %s68
    %s70 = sphi 0, %s68
    %s71 = sphi 0, %s70
    %s85 = sphi 0, %s71
    %s89 = sphi 0, %s89
    %s91 = sphi 0, %s89
    %s92 = sphi 0, %s91
    %s106 = sphi 0, %s92
    %s110 = sphi 0, %s110
    %s112 = sphi 0, %s110
    %s113 = sphi 0, %s112
    %s127 = sphi 0, %s113
    %s133 = sphi 0, %s135
    %s136 = sphi 0, %s133
    %s137 = sphi 0, %s136
    %s153 = sphi 0, %s137
    %s157 = sphi 0, %s157
    %s159 = sphi 0, %s157
    %s160 = sphi 0, %s159
    %s174 = sphi 0, %s160
  $region4: #{encoder_forward.21} parent=0 // loop_header_branch
    %16 = sbr.rel (%p14) target = $region8
  $region5: #{encoder_forward.21} parent=0 // loop_body
    %s18 = ssub.s32 %s13, 1
    %s19 = ssub.s32 %s13, 2
    %s20 = sadd.s32 %s13, 1
    %s21 = ssub.s32 %s13, %s20
    %p22 = scmp.eq.s32.totalorder %s21, 0
    %s24 = sadd.s32 %s23, 1
    %s25 = scalar_select %p22, %s23, %s24
    %p28 = pneg %p22
    %p29 = scmp.eq.s32.totalorder %s13, 1
    %p30 = por %p28, %p29
    %p31 = scmp.ne.s32.totalorder %s23, %s26
    %p32 = scmp.eq.s32.totalorder %s13, 0
    %p33 = por %p31, %p32
    %p34 = scmp.ne.s32.totalorder %s23, %s26
    %p35 = scmp.eq.s32.totalorder %s18, 1
    %p36 = por %p34, %p35
    %p37 = scmp.ne.s32.totalorder %s26, %s27
    %p38 = scmp.eq.s32.totalorder %s18, 0
    %p39 = por %p37, %p38
    %p40 = scmp.ne.s32.totalorder %s26, %s27
    %p41 = scmp.eq.s32.totalorder %s19, 1
    %p42 = por %p40, %p41
    %p44 = scmp.ne.s32.totalorder %s27, %s43
    %p45 = scmp.eq.s32.totalorder %s19, 0
    %p46 = por %p44, %p45
    %s48 = sadd.s32 %s47, 1
    %p51 = scmp.eq.s32.totalorder %s13, 1
    %p52 = scmp.ne.s32.totalorder %s47, %s49
    %p53 = scmp.eq.s32.totalorder %s13, 0
    %p54 = por %p52, %p53
    %p55 = scmp.ne.s32.totalorder %s47, %s49
    %p56 = scmp.eq.s32.totalorder %s18, 1
    %p57 = por %p55, %p56
    %p58 = scmp.ne.s32.totalorder %s49, %s50
    %p59 = scmp.eq.s32.totalorder %s18, 0
    %p60 = por %p58, %p59
    %p61 = scmp.ne.s32.totalorder %s49, %s50
    %p62 = scmp.eq.s32.totalorder %s19, 1
    %p63 = por %p61, %p62
    %p65 = scmp.ne.s32.totalorder %s50, %s64
    %p66 = scmp.eq.s32.totalorder %s19, 0
    %p67 = por %p65, %p66
    %s69 = sadd.s32 %s68, 1
    %p72 = scmp.eq.s32.totalorder %s13, 1
    %p73 = scmp.ne.s32.totalorder %s68, %s70
    %p74 = scmp.eq.s32.totalorder %s13, 0
    %p75 = por %p73, %p74
    %p76 = scmp.ne.s32.totalorder %s68, %s70
    %p77 = scmp.eq.s32.totalorder %s18, 1
    %p78 = por %p76, %p77
    %p79 = scmp.ne.s32.totalorder %s70, %s71
    %p80 = scmp.eq.s32.totalorder %s18, 0
    %p81 = por %p79, %p80
    %p82 = scmp.ne.s32.totalorder %s70, %s71
    %p83 = scmp.eq.s32.totalorder %s19, 1
    %p84 = por %p82, %p83
    %p86 = scmp.ne.s32.totalorder %s71, %s85
    %p87 = scmp.eq.s32.totalorder %s19, 0
    %p88 = por %p86, %p87
    %s90 = sadd.s32 %s89, 1
    %p93 = scmp.eq.s32.totalorder %s13, 1
    %p94 = scmp.ne.s32.totalorder %s89, %s91
    %p95 = scmp.eq.s32.totalorder %s13, 0
    %p96 = por %p94, %p95
    %p97 = scmp.ne.s32.totalorder %s89, %s91
    %p98 = scmp.eq.s32.totalorder %s18, 1
    %p99 = por %p97, %p98
    %p100 = scmp.ne.s32.totalorder %s91, %s92
    %p101 = scmp.eq.s32.totalorder %s18, 0
    %p102 = por %p100, %p101
    %p103 = scmp.ne.s32.totalorder %s91, %s92
    %p104 = scmp.eq.s32.totalorder %s19, 1
    %p105 = por %p103, %p104
    %p107 = scmp.ne.s32.totalorder %s92, %s106
    %p108 = scmp.eq.s32.totalorder %s19, 0
    %p109 = por %p107, %p108
    %s111 = sadd.s32 %s110, 1
    %p114 = scmp.eq.s32.totalorder %s13, 1
    %p115 = scmp.ne.s32.totalorder %s110, %s112
    %p116 = scmp.eq.s32.totalorder %s13, 0
    %p117 = por %p115, %p116
    %p118 = scmp.ne.s32.totalorder %s110, %s112
    %p119 = scmp.eq.s32.totalorder %s18, 1
    %p120 = por %p118, %p119
    %p121 = scmp.ne.s32.totalorder %s112, %s113
    %p122 = scmp.eq.s32.totalorder %s18, 0
    %p123 = por %p121, %p122
    %p124 = scmp.ne.s32.totalorder %s112, %s113
    %p125 = scmp.eq.s32.totalorder %s19, 1
    %p126 = por %p124, %p125
    %p128 = scmp.ne.s32.totalorder %s113, %s127
    %p129 = scmp.eq.s32.totalorder %s19, 0
    %p130 = por %p128, %p129
    %s131 = ssub.s32 %s13, %s20
    %p132 = scmp.eq.s32.totalorder %s131, 0
    %s134 = sadd.s32 %s133, 1
    %s135 = scalar_select %p132, %s133, %s134
    %p138 = pneg %p132
    %p139 = scmp.eq.s32.totalorder %s13, 1
    %p140 = por %p138, %p139
    %p141 = scmp.ne.s32.totalorder %s133, %s136
    %p142 = scmp.eq.s32.totalorder %s13, 0
    %p143 = por %p141, %p142
    %p144 = scmp.ne.s32.totalorder %s133, %s136
    %p145 = scmp.eq.s32.totalorder %s18, 1
    %p146 = por %p144, %p145
    %p147 = scmp.ne.s32.totalorder %s136, %s137
    %p148 = scmp.eq.s32.totalorder %s18, 0
    %p149 = por %p147, %p148
    %p150 = scmp.ne.s32.totalorder %s136, %s137
    %p151 = scmp.eq.s32.totalorder %s19, 1
    %p152 = por %p150, %p151
    %p154 = scmp.ne.s32.totalorder %s137, %s153
    %p155 = scmp.eq.s32.totalorder %s19, 0
    %p156 = por %p154, %p155
    %s158 = sadd.s32 %s157, 1
    %p161 = scmp.eq.s32.totalorder %s13, 1
    %p162 = scmp.ne.s32.totalorder %s157, %s159
    %p163 = scmp.eq.s32.totalorder %s13, 0
    %p164 = por %p162, %p163
    %p165 = scmp.ne.s32.totalorder %s157, %s159
    %p166 = scmp.eq.s32.totalorder %s18, 1
    %p167 = por %p165, %p166
    %p168 = scmp.ne.s32.totalorder %s159, %s160
    %p169 = scmp.eq.s32.totalorder %s18, 0
    %p170 = por %p168, %p169
    %p171 = scmp.ne.s32.totalorder %s159, %s160
    %p172 = scmp.eq.s32.totalorder %s19, 1
    %p173 = por %p171, %p172
    %p175 = scmp.ne.s32.totalorder %s160, %s174
    %p176 = scmp.eq.s32.totalorder %s19, 0
    %p177 = por %p175, %p176
    %p178 = scmp.le.s32.totalorder 1, %s13
    %p179 = scmp.lt.s32.totalorder %s13, 3
    %p180 = pnand %p178, %p179
    %p181 = pneg %p180
    // Predicated region
    $region9: #{encoder_forward.21} parent=5 // pred_check
      _
    $region10: #{encoder_forward.21} parent=5 // pred_check_branch
      %183 = sbr.rel (%p180) target = $region12
    $region11: #{encoder_forward.21} parent=5 // pred_region
      %s184 = ssub.s32 %s13, 1
      // Predicated region
      $region13: #{encoder_forward.21} parent=11 // pred_check
        %p185 = pneg %p60
      $region14: #{encoder_forward.21} parent=11 // pred_check_branch
        %187 = sbr.rel (%p185) target = $region16
      $region15: #{encoder_forward.21} parent=11 // pred_region
        _
      $region16: #{encoder_forward.21} parent=11 // pred_fallthru
        _
      // Predicated region
      $region17: #{encoder_forward.21} parent=11 // pred_check
        %p188 = pneg %p81
      $region18: #{encoder_forward.21} parent=11 // pred_check_branch
        %190 = sbr.rel (%p188) target = $region20
      $region19: #{encoder_forward.21} parent=11 // pred_region
        _
      $region20: #{encoder_forward.21} parent=11 // pred_fallthru
        _
      // Predicated region
      $region21: #{encoder_forward.21} parent=11 // pred_check
        %p191 = pneg %p102
      $region22: #{encoder_forward.21} parent=11 // pred_check_branch
        %193 = sbr.rel (%p191) target = $region24
      $region23: #{encoder_forward.21} parent=11 // pred_region
        _
      $region24: #{encoder_forward.21} parent=11 // pred_fallthru
        _
      // Predicated region
      $region25: #{encoder_forward.21} parent=11 // pred_check
        %p194 = pneg %p123
      $region26: #{encoder_forward.21} parent=11 // pred_check_branch
        %196 = sbr.rel (%p194) target = $region28
      $region27: #{encoder_forward.21} parent=11 // pred_region
        _
      $region28: #{encoder_forward.21} parent=11 // pred_fallthru
        _
    $region12: #{encoder_forward.21} parent=5 // pred_fallthru
      _
    %p197 = scmp.lt.s32.totalorder %s13, 2
    // Predicated region
    $region29: #{encoder_forward.21} parent=5 // pred_check
      %p198 = pneg %p197
    $region30: #{encoder_forward.21} parent=5 // pred_check_branch
      %200 = sbr.rel (%p198) target = $region32
    $region31: #{encoder_forward.21} parent=5 // pred_region
      // Predicated region
      $region33: #{encoder_forward.21} parent=31 // pred_check
        %p201 = pneg %p33
      $region34: #{encoder_forward.21} parent=31 // pred_check_branch
        %203 = sbr.rel (%p201) target = $region36
      $region35: #{encoder_forward.21} parent=31 // pred_region
        %s204 = smul.u32 6, %s13
        %p205 = scmp.lt.s32.totalorder %s204, 11
        %s206 = scalar_select %p205, %s204, 11
        %s207 = smul.addr %s206, 8
        %s208 = scalar_lea.vmem %s0, %s207
        %s209 = smul.u32 6, %s13
      $region36: #{encoder_forward.21} parent=31 // pred_fallthru
        _
    $region32: #{encoder_forward.21} parent=5 // pred_fallthru
      _
    %p210 = scmp.le.s32.totalorder 1, %s13
    %p211 = scmp.lt.s32.totalorder %s13, 3
    %p212 = pnand %p210, %p211
    %p213 = pneg %p212
    // Predicated region
    $region37: #{encoder_forward.21} parent=5 // pred_check
      _
    $region38: #{encoder_forward.21} parent=5 // pred_check_branch
      %215 = sbr.rel (%p212) target = $region40
    $region39: #{encoder_forward.21} parent=5 // pred_region
      %s216 = ssub.s32 %s13, 1
      %s217 = smul.u32 6, %s18
      %p218 = scmp.lt.s32.totalorder %s217, 11
      %s219 = scalar_select %p218, %s217, 11
      %s220 = smul.addr %s219, 8
      %s221 = scalar_lea.vmem %s0, %s220
      %p222 = pneg %p39
      %p223 = pneg %p36
      %p224 = pneg %p60
      %p225 = pneg %p57
      %p226 = pneg %p81
      %p227 = pneg %p78
      %p228 = pneg %p102
      %p229 = pneg %p99
      %p230 = pneg %p123
      %p231 = pneg %p120
      %p232 = pneg %p149
      %p233 = pneg %p146
      %s234 = smul.u32 6, %s18
      %p235 = scmp.lt.s32.totalorder %s234, 11
      %s236 = scalar_select %p235, %s234, 11
      %s237 = smul.addr %s236, 8
      %s238 = scalar_lea.vmem %s5, %s237
      %p239 = pneg %p170
      %p240 = pneg %p167
      %s241 = smul.u32 6, %s18
      %p242 = scmp.lt.s32.totalorder %s241, 11
      %s243 = scalar_select %p242, %s241, 11
      %s244 = smul.addr %s243, 8
      %s245 = scalar_lea.vmem %s0, %s244
      %s246 = smul.u32 6, %s18
      %s247 = smul.u32 6, %s18
      %p248 = scmp.lt.s32.totalorder %s247, 11
      %s249 = scalar_select %p248, %s247, 11
      %s250 = smul.addr %s249, 8
      %s251 = scalar_lea.vmem %s5, %s250
      %s252 = smul.u32 6, %s18
      %v253 = vld [vmem:[%s245] sm:$0xff]
      %v254 = vld [vmem:[%s245 + $0x8] sm:$0xff]
      %v255 = vld [vmem:[%s245 + $0x10] sm:$0xff]
      %v256 = vld [vmem:[%s245 + $0x18] sm:$0xff]
      %v257 = vld [vmem:[%s245 + $0x20] sm:$0xff]
      %v258 = vld [vmem:[%s245 + $0x28] sm:$0xff]
      %v259 = vld [vmem:[%s3] sm:$0xff]
      %v260 = vld [vmem:[%s3 + $0x8] sm:$0xff]
      %v261 = vld [vmem:[%s3 + $0x10] sm:$0xff]
      %v262 = vld [vmem:[%s3 + $0x18] sm:$0xff]
      %v263 = vld [vmem:[%s3 + $0x20] sm:$0x7]
      %v264 = vld [vmem:[%s4] sm:$0x1]
      %v266 = vperm.slane %v264, 0
      %vm268 = vcmask 285696
      %v270 = vsel %vm268, %v253, 0
      %v273 = vsel %vm268, %v254, 0
      %v276 = vsel %vm268, %v255, 0
      %v279 = vsel %vm268, %v256, 0
      %v282 = vsel %vm268, %v257, 0
      %v285 = vsel %vm268, %v258, 0
      %vm287 = vcmask 1042432
      %v289 = vsel %vm287, %v263, 0
      %291 = vmatpush.msra.mxu0 0.0
      %292 = vmatpush.msra.mxu0 0.0
      %293 = vmatpush.msra.mxu0 0.0
      %294 = vmatpush.msra.mxu0 0.0
      %295 = vmatpush.msra.mxu0 0.0
      %296 = vmatpush.msra.mxu0 0.0
      %297 = vmatpush.msra.mxu0 0.0
      %298 = vmatpush.msra.mxu0 0.0
      %299 = vmatpush.msra.mxu0 0.0
      %300 = vmatpush.msra.mxu0 0.0
      %301 = vmatpush.msra.mxu0 0.0
      %302 = vmatpush.msra.mxu0 %v289
      %303 = vmatpush.msra.mxu0 %v262
      %304 = vmatpush.msra.mxu0 %v261
      %305 = vmatpush.msra.mxu0 %v260
      %306 = vmatpush.msra.mxu0 %v259
      %307 = vmatmul.f32.gmra.mxu0 %v270
      %v308 = vpop.f32.mrf.mxu0
      %v309 = vadd.f32 %v266, %v308
      %310 = vmatmul.f32.gmra.mxu0 %v273
      %v311 = vpop.f32.mrf.mxu0
      %v312 = vadd.f32 %v266, %v311
      %313 = vmatmul.f32.gmra.mxu0 %v276
      %v314 = vpop.f32.mrf.mxu0
      %v315 = vadd.f32 %v266, %v314
      %316 = vmatmul.f32.gmra.mxu0 %v279
      %v317 = vpop.f32.mrf.mxu0
      %v318 = vadd.f32 %v266, %v317
      %319 = vmatmul.f32.gmra.mxu0 %v282
      %v320 = vpop.f32.mrf.mxu0
      %v321 = vadd.f32 %v266, %v320
      %322 = vmatmul.f32.gmra.mxu0 %v285
      %v323 = vpop.f32.mrf.mxu0
      %v324 = vadd.f32 %v266, %v323
      %325 = vdwg.mxu0
      %vm326 = vcmask 523264
      %327 = vst.msk [vmem:[%s251] sm:$0xff] %vm326, %v309
      %328 = vst.msk [vmem:[%s251 + $0x8] sm:$0xff] %vm326, %v312
      %329 = vst.msk [vmem:[%s251 + $0x10] sm:$0xff] %vm326, %v315
      %330 = vst.msk [vmem:[%s251 + $0x18] sm:$0xff] %vm326, %v318
      %331 = vst.msk [vmem:[%s251 + $0x20] sm:$0xff] %vm326, %v321
      %332 = vst.msk [vmem:[%s251 + $0x28] sm:$0xff] %vm326, %v324
      %p333 = scmp.eq.s32.totalorder %s18, 0
      // Predicated region
      $region41: #{encoder_forward.21} parent=39 // pred_check
        %p334 = pneg %p333
      $region42: #{encoder_forward.21} parent=39 // pred_check_branch
        %336 = sbr.rel (%p334) target = $region44
      $region43: #{encoder_forward.21} parent=39 // pred_region
        %vm337 = vcmask 517120
        %338 = vst.msk [vmem:[%s6] sm:$0x3] %vm337, 0.0
      $region44: #{encoder_forward.21} parent=39 // pred_fallthru
        _
      %v339 = vld [vmem:[%s6] sm:$0x3]
      %v340 = vsel %vm326, %v309, 0.0
      %v341 = vsel %vm326, %v312, 0.0
      %v342 = vadd.f32 %v340, %v341
      %v343 = vsel %vm326, %v315, 0.0
      %v344 = vadd.f32 %v342, %v343
      %v345 = vsel %vm326, %v318, 0.0
      %v346 = vadd.f32 %v344, %v345
      %v347 = vsel %vm326, %v321, 0.0
      %v348 = vadd.f32 %v346, %v347
      %v349 = vsel %vm326, %v324, 0.0
      %v350 = vadd.f32 %v348, %v349
      %v351 = vrot.slane %v350, 4
      %v352 = vadd.f32 %v350, %v351
      %v353 = vrot.slane %v352, 2
      %v354 = vadd.f32 %v352, %v353
      %v355 = vrot.slane %v354, 1
      %v356 = vadd.f32 %v354, %v355
      %v357 = vmul.f32 %v309, %v309
      %v358 = vmul.f32 %v312, %v312
      %v359 = vmul.f32 %v315, %v315
      %v360 = vmul.f32 %v318, %v318
      %v361 = vmul.f32 %v321, %v321
      %v362 = vmul.f32 %v324, %v324
      %v363 = vsel %vm326, %v357, 0.0
      %v364 = vsel %vm326, %v358, 0.0
      %v365 = vadd.f32 %v363, %v364
      %v366 = vsel %vm326, %v359, 0.0
      %v367 = vadd.f32 %v365, %v366
      %v368 = vsel %vm326, %v360, 0.0
      %v369 = vadd.f32 %v367, %v368
      %v370 = vsel %vm326, %v361, 0.0
      %v371 = vadd.f32 %v369, %v370
      %v372 = vsel %vm326, %v362, 0.0
      %v373 = vadd.f32 %v371, %v372
      %v374 = vrot.slane %v373, 4
      %v375 = vadd.f32 %v373, %v374
      %v376 = vrot.slane %v375, 2
      %v377 = vadd.f32 %v375, %v376
      %v378 = vrot.slane %v377, 1
      %v379 = vadd.f32 %v377, %v378
      %vm380 = vcmask 1040384
      %v381 = vsel %vm380, %v356, %v379
      %v382 = vadd.f32 %v339, %v381
      %vm383 = vcmask 517120
      %384 = vst.msk [vmem:[%s6] sm:$0x3] %vm383, %v382
      %s385 = smul.u32 6, %s18
      %p386 = scmp.lt.s32.totalorder %s385, 11
      %s387 = scalar_select %p386, %s385, 11
      %s388 = smul.addr %s387, 8
      %s389 = scalar_lea.vmem %s5, %s388
      // Predicated region
      $region45: #{encoder_forward.21} parent=39 // pred_check
        %p390 = pneg %p146
      $region46: #{encoder_forward.21} parent=39 // pred_check_branch
        %392 = sbr.rel (%p390) target = $region48
      $region47: #{encoder_forward.21} parent=39 // pred_region
        %s393 = smul.u32 6, %s18
      $region48: #{encoder_forward.21} parent=39 // pred_fallthru
        _
      // Predicated region
      $region49: #{encoder_forward.21} parent=39 // pred_check
        %p394 = pneg %p167
      $region50: #{encoder_forward.21} parent=39 // pred_check_branch
        %396 = sbr.rel (%p394) target = $region52
      $region51: #{encoder_forward.21} parent=39 // pred_region
        _
      $region52: #{encoder_forward.21} parent=39 // pred_fallthru
        _
      // Predicated region
      $region53: #{encoder_forward.21} parent=39 // pred_check
        %p397 = pneg %p167
      $region54: #{encoder_forward.21} parent=39 // pred_check_branch
        %399 = sbr.rel (%p397) target = $region56
      $region55: #{encoder_forward.21} parent=39 // pred_region
        _
      $region56: #{encoder_forward.21} parent=39 // pred_fallthru
        _
    $region40: #{encoder_forward.21} parent=5 // pred_fallthru
      _
    %p400 = scmp.le.s32.totalorder 2, %s13
    // Predicated region
    $region57: #{encoder_forward.21} parent=5 // pred_check
      %p401 = pneg %p400
    $region58: #{encoder_forward.21} parent=5 // pred_check_branch
      %403 = sbr.rel (%p401) target = $region60
    $region59: #{encoder_forward.21} parent=5 // pred_region
      %s404 = ssub.s32 %s13, 2
      // Predicated region
      $region61: #{encoder_forward.21} parent=59 // pred_check
        %p405 = pneg %p152
      $region62: #{encoder_forward.21} parent=59 // pred_check_branch
        %407 = sbr.rel (%p405) target = $region64
      $region63: #{encoder_forward.21} parent=59 // pred_region
        %s408 = smul.u32 6, %s19
        %p409 = scmp.lt.s32.totalorder %s408, 11
        %s410 = scalar_select %p409, %s408, 11
        %s411 = smul.addr %s410, 8
        %s412 = scalar_lea.vmem %s5, %s411
      $region64: #{encoder_forward.21} parent=59 // pred_fallthru
        _
    $region60: #{encoder_forward.21} parent=5 // pred_fallthru
      _
  $region6: #{encoder_forward.21} parent=0 // loop_footer
    %s17 = sadd.s32 1, %s13
  $region7: #{encoder_forward.21} parent=0 // loop_footer_branch
    %12 = sbr.rel target = $region3
  $region8: #{encoder_forward.21} parent=0 // loop_exit
    _

// kernel: encoder_forward.23
$region0: #{encoder_forward.23}
  #allocation0 [shape = 'u32[]', space=smem, size = 0x4, offset = 0x4, fixed_abs, tag = 'smem constant byte address 0x4 - core index']
  #allocation1 [shape = 'u32[72,128]{1,0:T(1,128)}', space=vmem, size = 0x9000, scoped, tag = 'internal scratch']
  %s0 = inlined_call_operand.vmem [shape: f32[24,256], index: 0, kind: input, shape index: {}]
  %s1 = inlined_call_operand.vmem [shape: f32[1,64], index: 1, kind: input, shape index: {}]
  %s2 = inlined_call_operand.vmem [shape: f32[1,64], index: 2, kind: input, shape index: {}]
  %s3 = inlined_call_operand.vmem [shape: f32[24,64], index: 3, kind: output, shape index: {}]
  %s4 = sld [smem:[#allocation0]]
  $region45: #{encoder_forward.23} parent=0
    _
  %s6 = ssub.s32 1, %s4
  %s7 = scalar_select 0, %s6, %s4
  loop: start=0, step=1, limit=5
  $region2: #{encoder_forward.23} parent=0 // loop_pre_header
    _
  $region3: #{encoder_forward.23} parent=0 // loop_header
    %s9 = sphi 0, %s13
    %p10 = scmp.ge.s32.totalorder %s9, 5
    %s19 = sphi 0, %s21
    %s22 = sphi 0, %s19
    %s23 = sphi 0, %s22
    %s39 = sphi 0, %s23
    %s43 = sphi 0, %s43
    %s45 = sphi 0, %s43
    %s46 = sphi 0, %s45
    %s60 = sphi 0, %s46
    %s64 = sphi 0, %s64
    %s66 = sphi 0, %s64
    %s67 = sphi 0, %s66
    %s81 = sphi 0, %s67
    %s87 = sphi 0, %s89
    %s90 = sphi 0, %s87
    %s91 = sphi 0, %s90
    %s107 = sphi 0, %s91
  $region4: #{encoder_forward.23} parent=0 // loop_header_branch
    %12 = sbr.rel (%p10) target = $region8
  $region5: #{encoder_forward.23} parent=0 // loop_body
    %s14 = ssub.s32 %s9, 1
    %s15 = ssub.s32 %s9, 2
    %s16 = sadd.s32 %s9, 1
    %s17 = ssub.s32 %s9, %s16
    %p18 = scmp.eq.s32.totalorder %s17, 0
    %s20 = sadd.s32 %s19, 1
    %s21 = scalar_select %p18, %s19, %s20
    %p24 = pneg %p18
    %p25 = scmp.eq.s32.totalorder %s9, 2
    %p26 = por %p24, %p25
    %p27 = scmp.ne.s32.totalorder %s19, %s22
    %p28 = scmp.eq.s32.totalorder %s9, 0
    %p29 = por %p27, %p28
    %p30 = scmp.ne.s32.totalorder %s19, %s22
    %p31 = scmp.eq.s32.totalorder %s14, 2
    %p32 = por %p30, %p31
    %p33 = scmp.ne.s32.totalorder %s22, %s23
    %p34 = scmp.eq.s32.totalorder %s14, 0
    %p35 = por %p33, %p34
    %p36 = scmp.ne.s32.totalorder %s22, %s23
    %p37 = scmp.eq.s32.totalorder %s15, 2
    %p38 = por %p36, %p37
    %p40 = scmp.ne.s32.totalorder %s23, %s39
    %p41 = scmp.eq.s32.totalorder %s15, 0
    %p42 = por %p40, %p41
    %s44 = sadd.s32 %s43, 1
    %p47 = scmp.eq.s32.totalorder %s9, 2
    %p48 = scmp.ne.s32.totalorder %s43, %s45
    %p49 = scmp.eq.s32.totalorder %s9, 0
    %p50 = por %p48, %p49
    %p51 = scmp.ne.s32.totalorder %s43, %s45
    %p52 = scmp.eq.s32.totalorder %s14, 2
    %p53 = por %p51, %p52
    %p54 = scmp.ne.s32.totalorder %s45, %s46
    %p55 = scmp.eq.s32.totalorder %s14, 0
    %p56 = por %p54, %p55
    %p57 = scmp.ne.s32.totalorder %s45, %s46
    %p58 = scmp.eq.s32.totalorder %s15, 2
    %p59 = por %p57, %p58
    %p61 = scmp.ne.s32.totalorder %s46, %s60
    %p62 = scmp.eq.s32.totalorder %s15, 0
    %p63 = por %p61, %p62
    %s65 = sadd.s32 %s64, 1
    %p68 = scmp.eq.s32.totalorder %s9, 2
    %p69 = scmp.ne.s32.totalorder %s64, %s66
    %p70 = scmp.eq.s32.totalorder %s9, 0
    %p71 = por %p69, %p70
    %p72 = scmp.ne.s32.totalorder %s64, %s66
    %p73 = scmp.eq.s32.totalorder %s14, 2
    %p74 = por %p72, %p73
    %p75 = scmp.ne.s32.totalorder %s66, %s67
    %p76 = scmp.eq.s32.totalorder %s14, 0
    %p77 = por %p75, %p76
    %p78 = scmp.ne.s32.totalorder %s66, %s67
    %p79 = scmp.eq.s32.totalorder %s15, 2
    %p80 = por %p78, %p79
    %p82 = scmp.ne.s32.totalorder %s67, %s81
    %p83 = scmp.eq.s32.totalorder %s15, 0
    %p84 = por %p82, %p83
    %s85 = ssub.s32 %s9, %s16
    %p86 = scmp.eq.s32.totalorder %s85, 0
    %s88 = sadd.s32 %s87, 1
    %s89 = scalar_select %p86, %s87, %s88
    %p92 = pneg %p86
    %p93 = scmp.eq.s32.totalorder %s9, 2
    %p94 = por %p92, %p93
    %p95 = scmp.ne.s32.totalorder %s87, %s90
    %p96 = scmp.eq.s32.totalorder %s9, 0
    %p97 = por %p95, %p96
    %p98 = scmp.ne.s32.totalorder %s87, %s90
    %p99 = scmp.eq.s32.totalorder %s14, 2
    %p100 = por %p98, %p99
    %p101 = scmp.ne.s32.totalorder %s90, %s91
    %p102 = scmp.eq.s32.totalorder %s14, 0
    %p103 = por %p101, %p102
    %p104 = scmp.ne.s32.totalorder %s90, %s91
    %p105 = scmp.eq.s32.totalorder %s15, 2
    %p106 = por %p104, %p105
    %p108 = scmp.ne.s32.totalorder %s91, %s107
    %p109 = scmp.eq.s32.totalorder %s15, 0
    %p110 = por %p108, %p109
    %p111 = scmp.le.s32.totalorder 1, %s9
    %p112 = scmp.lt.s32.totalorder %s9, 4
    %p113 = pnand %p111, %p112
    %p114 = pneg %p113
    // Predicated region
    $region9: #{encoder_forward.23} parent=5 // pred_check
      _
    $region10: #{encoder_forward.23} parent=5 // pred_check_branch
      %116 = sbr.rel (%p113) target = $region12
    $region11: #{encoder_forward.23} parent=5 // pred_region
      %s117 = ssub.s32 %s9, 1
      // Predicated region
      $region13: #{encoder_forward.23} parent=11 // pred_check
        %p118 = pneg %p56
      $region14: #{encoder_forward.23} parent=11 // pred_check_branch
        %120 = sbr.rel (%p118) target = $region16
      $region15: #{encoder_forward.23} parent=11 // pred_region
        _
      $region16: #{encoder_forward.23} parent=11 // pred_fallthru
        _
      // Predicated region
      $region17: #{encoder_forward.23} parent=11 // pred_check
        %p121 = pneg %p77
      $region18: #{encoder_forward.23} parent=11 // pred_check_branch
        %123 = sbr.rel (%p121) target = $region20
      $region19: #{encoder_forward.23} parent=11 // pred_region
        _
      $region20: #{encoder_forward.23} parent=11 // pred_fallthru
        _
    $region12: #{encoder_forward.23} parent=5 // pred_fallthru
      _
    %p124 = scmp.lt.s32.totalorder %s9, 3
    // Predicated region
    $region21: #{encoder_forward.23} parent=5 // pred_check
      %p125 = pneg %p124
    $region22: #{encoder_forward.23} parent=5 // pred_check_branch
      %127 = sbr.rel (%p125) target = $region24
    $region23: #{encoder_forward.23} parent=5 // pred_region
      // Predicated region
      $region25: #{encoder_forward.23} parent=23 // pred_check
        %p128 = pneg %p29
      $region26: #{encoder_forward.23} parent=23 // pred_check_branch
        %130 = sbr.rel (%p128) target = $region28
      $region27: #{encoder_forward.23} parent=23 // pred_region
        %p131 = scmp.lt.s32.totalorder %s9, 2
        %s132 = scalar_select %p131, %s9, 2
        %s133 = smul.addr %s132, 2
        %s134 = smul.addr %s133, 8
        %s135 = scalar_lea.vmem %s0, %s134
      $region28: #{encoder_forward.23} parent=23 // pred_fallthru
        _
    $region24: #{encoder_forward.23} parent=5 // pred_fallthru
      _
    %p136 = scmp.le.s32.totalorder 1, %s9
    %p137 = scmp.lt.s32.totalorder %s9, 4
    %p138 = pnand %p136, %p137
    %p139 = pneg %p138
    // Predicated region
    $region29: #{encoder_forward.23} parent=5 // pred_check
      _
    $region30: #{encoder_forward.23} parent=5 // pred_check_branch
      %141 = sbr.rel (%p138) target = $region32
    $region31: #{encoder_forward.23} parent=5 // pred_region
      %s142 = ssub.s32 %s9, 1
      %p143 = scmp.lt.s32.totalorder %s14, 2
      %s144 = scalar_select %p143, %s14, 2
      %s145 = smul.addr %s144, 2
      %s146 = smul.addr %s145, 8
      %s147 = scalar_lea.vmem %s0, %s146
      %p148 = pneg %p35
      %p149 = pneg %p32
      %p150 = pneg %p56
      %p151 = pneg %p53
      %p152 = pneg %p77
      %p153 = pneg %p74
      %p154 = pneg %p103
      %p155 = pneg %p100
      %p156 = scmp.lt.s32.totalorder %s14, 2
      %s157 = scalar_select %p156, %s14, 2
      %s158 = smul.addr %s157, 8
      %s159 = scalar_lea.vmem %s3, %s158
      %p160 = scmp.lt.s32.totalorder %s14, 2
      %s161 = scalar_select %p160, %s14, 2
      %s162 = smul.addr %s161, 2
      %s163 = smul.addr %s162, 8
      %s164 = scalar_lea.vmem %s0, %s163
      %p165 = scmp.lt.s32.totalorder %s14, 2
      %s166 = scalar_select %p165, %s14, 2
      %s167 = smul.addr %s166, 8
      %s168 = scalar_lea.vmem %s3, %s167
      %v169 = vld [vmem:[%s164] sm:$0xff]
      %v170 = vld [vmem:[%s164 + $0x8] sm:$0xff]
      %v171 = vld [vmem:[%s1] sm:$0x1]
      %v172 = vld [vmem:[%s2] sm:$0x1]
      %v174 = vperm.slane %v171, 0
      %v176 = vmul.f32 %v169, %v174
      %v178 = vperm.slane %v172, 0
      %v180 = vadd.f32 %v176, %v178
      %v181 = vmax.f32 %v180, 0.0
      %182 = vrot.lane.b32.xlu0 %v174, 64
      %v183 = vpop.permute.xlu0 %182
      %v185 = vmul.f32 %v169, %v183
      %186 = vrot.lane.b32.xlu0 %v178, 64
      %v187 = vpop.permute.xlu0 %186
      %v189 = vadd.f32 %v185, %v187
      %v190 = vmax.f32 %v189, 0.0
      %192 = vrot.lane.b32.xlu0 %v190, 64
      %v193 = vpop.permute.xlu0 %192
      %v195 = vmax.f32 %v181, %v193
      %v196 = vmul.f32 %v170, %v174
      %v197 = vadd.f32 %v196, %v178
      %v198 = vmax.f32 %v197, 0.0
      %v199 = vmax.f32 %v195, %v198
      %v200 = vmul.f32 %v170, %v183
      %v201 = vadd.f32 %v200, %v187
      %v202 = vmax.f32 %v201, 0.0
      %204 = vrot.lane.b32.xlu0 %v202, 64
      %v205 = vpop.permute.xlu0 %204
      %v207 = vmax.f32 %v199, %v205
      %vm208 = vcmask 523264
      %209 = vst.msk [vmem:[%s168] sm:$0xff] %vm208, %v207
      %p210 = scmp.lt.s32.totalorder %s14, 2
      %s211 = scalar_select %p210, %s14, 2
      %s212 = smul.addr %s211, 8
      %s213 = scalar_lea.vmem %s3, %s212
      // Predicated region
      $region33: #{encoder_forward.23} parent=31 // pred_check
        %p214 = pneg %p100
      $region34: #{encoder_forward.23} parent=31 // pred_check_branch
        %216 = sbr.rel (%p214) target = $region36
      $region35: #{encoder_forward.23} parent=31 // pred_region
        _
      $region36: #{encoder_forward.23} parent=31 // pred_fallthru
        _
    $region32: #{encoder_forward.23} parent=5 // pred_fallthru
      _
    %p217 = scmp.le.s32.totalorder 2, %s9
    // Predicated region
    $region37: #{encoder_forward.23} parent=5 // pred_check
      %p218 = pneg %p217
    $region38: #{encoder_forward.23} parent=5 // pred_check_branch
      %220 = sbr.rel (%p218) target = $region40
    $region39: #{encoder_forward.23} parent=5 // pred_region
      %s221 = ssub.s32 %s9, 2
      // Predicated region
      $region41: #{encoder_forward.23} parent=39 // pred_check
        %p222 = pneg %p106
      $region42: #{encoder_forward.23} parent=39 // pred_check_branch
        %224 = sbr.rel (%p222) target = $region44
      $region43: #{encoder_forward.23} parent=39 // pred_region
        %p225 = scmp.lt.s32.totalorder %s15, 2
        %s226 = scalar_select %p225, %s15, 2
        %s227 = smul.addr %s226, 8
        %s228 = scalar_lea.vmem %s3, %s227
      $region44: #{encoder_forward.23} parent=39 // pred_fallthru
        _
    $region40: #{encoder_forward.23} parent=5 // pred_fallthru
      _
  $region6: #{encoder_forward.23} parent=0 // loop_footer
    %s13 = sadd.s32 1, %s9
  $region7: #{encoder_forward.23} parent=0 // loop_footer_branch
    %8 = sbr.rel target = $region3
  $region8: #{encoder_forward.23} parent=0 // loop_exit
    _

// kernel: encoder_forward.22
$region0: #{encoder_forward.22}
  #allocation0 [shape = 'u32[]', space=smem, size = 0x4, offset = 0x4, fixed_abs, tag = 'smem constant byte address 0x4 - core index']
  #allocation1 [shape = 'u32[72,128]{1,0:T(1,128)}', space=vmem, size = 0x9000, scoped, tag = 'internal scratch']
  %s0 = inlined_call_operand.vmem [shape: f32[96,64], index: 0, kind: input, shape index: {}]
  %s1 = inlined_call_operand.vmem [shape: f32[1,64], index: 1, kind: input, shape index: {}]
  %s2 = inlined_call_operand.vmem [shape: f32[1,64], index: 2, kind: input, shape index: {}]
  %s3 = inlined_call_operand.vmem [shape: f32[64,64], index: 3, kind: input, shape index: {}]
  %s4 = inlined_call_operand.vmem [shape: f32[1,64], index: 4, kind: input, shape index: {}]
  %s5 = inlined_call_operand.vmem [shape: f32[96,64], index: 5, kind: output, shape index: {0}]
  %s6 = inlined_call_operand.vmem [shape: f32[2,64], index: 6, kind: output, shape index: {1}]
  %7 = xla_tuple %s5, %s6
  %s8 = sld [smem:[#allocation0]]
  $region65: #{encoder_forward.22} parent=0
    _
  %s10 = ssub.s32 1, %s8
  %s11 = scalar_select 0, %s10, %s8
  loop: start=0, step=1, limit=4
  $region2: #{encoder_forward.22} parent=0 // loop_pre_header
    _
  $region3: #{encoder_forward.22} parent=0 // loop_header
    %s13 = sphi 0, %s17
    %p14 = scmp.ge.s32.totalorder %s13, 4
    %s23 = sphi 0, %s25
    %s26 = sphi 0, %s23
    %s27 = sphi 0, %s26
    %s43 = sphi 0, %s27
    %s47 = sphi 0, %s47
    %s49 = sphi 0, %s47
    %s50 = sphi 0, %s49
    %s64 = sphi 0, %s50
    %s68 = sphi 0, %s68
    %s70 = sphi 0, %s68
    %s71 = sphi 0, %s70
    %s85 = sphi 0, %s71
    %s89 = sphi 0, %s89
    %s91 = sphi 0, %s89
    %s92 = sphi 0, %s91
    %s106 = sphi 0, %s92
    %s110 = sphi 0, %s110
    %s112 = sphi 0, %s110
    %s113 = sphi 0, %s112
    %s127 = sphi 0, %s113
    %s133 = sphi 0, %s135
    %s136 = sphi 0, %s133
    %s137 = sphi 0, %s136
    %s153 = sphi 0, %s137
    %s157 = sphi 0, %s157
    %s159 = sphi 0, %s157
    %s160 = sphi 0, %s159
    %s174 = sphi 0, %s160
  $region4: #{encoder_forward.22} parent=0 // loop_header_branch
    %16 = sbr.rel (%p14) target = $region8
  $region5: #{encoder_forward.22} parent=0 // loop_body
    %s18 = ssub.s32 %s13, 1
    %s19 = ssub.s32 %s13, 2
    %s20 = sadd.s32 %s13, 1
    %s21 = ssub.s32 %s13, %s20
    %p22 = scmp.eq.s32.totalorder %s21, 0
    %s24 = sadd.s32 %s23, 1
    %s25 = scalar_select %p22, %s23, %s24
    %p28 = pneg %p22
    %p29 = scmp.eq.s32.totalorder %s13, 1
    %p30 = por %p28, %p29
    %p31 = scmp.ne.s32.totalorder %s23, %s26
    %p32 = scmp.eq.s32.totalorder %s13, 0
    %p33 = por %p31, %p32
    %p34 = scmp.ne.s32.totalorder %s23, %s26
    %p35 = scmp.eq.s32.totalorder %s18, 1
    %p36 = por %p34, %p35
    %p37 = scmp.ne.s32.totalorder %s26, %s27
    %p38 = scmp.eq.s32.totalorder %s18, 0
    %p39 = por %p37, %p38
    %p40 = scmp.ne.s32.totalorder %s26, %s27
    %p41 = scmp.eq.s32.totalorder %s19, 1
    %p42 = por %p40, %p41
    %p44 = scmp.ne.s32.totalorder %s27, %s43
    %p45 = scmp.eq.s32.totalorder %s19, 0
    %p46 = por %p44, %p45
    %s48 = sadd.s32 %s47, 1
    %p51 = scmp.eq.s32.totalorder %s13, 1
    %p52 = scmp.ne.s32.totalorder %s47, %s49
    %p53 = scmp.eq.s32.totalorder %s13, 0
    %p54 = por %p52, %p53
    %p55 = scmp.ne.s32.totalorder %s47, %s49
    %p56 = scmp.eq.s32.totalorder %s18, 1
    %p57 = por %p55, %p56
    %p58 = scmp.ne.s32.totalorder %s49, %s50
    %p59 = scmp.eq.s32.totalorder %s18, 0
    %p60 = por %p58, %p59
    %p61 = scmp.ne.s32.totalorder %s49, %s50
    %p62 = scmp.eq.s32.totalorder %s19, 1
    %p63 = por %p61, %p62
    %p65 = scmp.ne.s32.totalorder %s50, %s64
    %p66 = scmp.eq.s32.totalorder %s19, 0
    %p67 = por %p65, %p66
    %s69 = sadd.s32 %s68, 1
    %p72 = scmp.eq.s32.totalorder %s13, 1
    %p73 = scmp.ne.s32.totalorder %s68, %s70
    %p74 = scmp.eq.s32.totalorder %s13, 0
    %p75 = por %p73, %p74
    %p76 = scmp.ne.s32.totalorder %s68, %s70
    %p77 = scmp.eq.s32.totalorder %s18, 1
    %p78 = por %p76, %p77
    %p79 = scmp.ne.s32.totalorder %s70, %s71
    %p80 = scmp.eq.s32.totalorder %s18, 0
    %p81 = por %p79, %p80
    %p82 = scmp.ne.s32.totalorder %s70, %s71
    %p83 = scmp.eq.s32.totalorder %s19, 1
    %p84 = por %p82, %p83
    %p86 = scmp.ne.s32.totalorder %s71, %s85
    %p87 = scmp.eq.s32.totalorder %s19, 0
    %p88 = por %p86, %p87
    %s90 = sadd.s32 %s89, 1
    %p93 = scmp.eq.s32.totalorder %s13, 1
    %p94 = scmp.ne.s32.totalorder %s89, %s91
    %p95 = scmp.eq.s32.totalorder %s13, 0
    %p96 = por %p94, %p95
    %p97 = scmp.ne.s32.totalorder %s89, %s91
    %p98 = scmp.eq.s32.totalorder %s18, 1
    %p99 = por %p97, %p98
    %p100 = scmp.ne.s32.totalorder %s91, %s92
    %p101 = scmp.eq.s32.totalorder %s18, 0
    %p102 = por %p100, %p101
    %p103 = scmp.ne.s32.totalorder %s91, %s92
    %p104 = scmp.eq.s32.totalorder %s19, 1
    %p105 = por %p103, %p104
    %p107 = scmp.ne.s32.totalorder %s92, %s106
    %p108 = scmp.eq.s32.totalorder %s19, 0
    %p109 = por %p107, %p108
    %s111 = sadd.s32 %s110, 1
    %p114 = scmp.eq.s32.totalorder %s13, 1
    %p115 = scmp.ne.s32.totalorder %s110, %s112
    %p116 = scmp.eq.s32.totalorder %s13, 0
    %p117 = por %p115, %p116
    %p118 = scmp.ne.s32.totalorder %s110, %s112
    %p119 = scmp.eq.s32.totalorder %s18, 1
    %p120 = por %p118, %p119
    %p121 = scmp.ne.s32.totalorder %s112, %s113
    %p122 = scmp.eq.s32.totalorder %s18, 0
    %p123 = por %p121, %p122
    %p124 = scmp.ne.s32.totalorder %s112, %s113
    %p125 = scmp.eq.s32.totalorder %s19, 1
    %p126 = por %p124, %p125
    %p128 = scmp.ne.s32.totalorder %s113, %s127
    %p129 = scmp.eq.s32.totalorder %s19, 0
    %p130 = por %p128, %p129
    %s131 = ssub.s32 %s13, %s20
    %p132 = scmp.eq.s32.totalorder %s131, 0
    %s134 = sadd.s32 %s133, 1
    %s135 = scalar_select %p132, %s133, %s134
    %p138 = pneg %p132
    %p139 = scmp.eq.s32.totalorder %s13, 1
    %p140 = por %p138, %p139
    %p141 = scmp.ne.s32.totalorder %s133, %s136
    %p142 = scmp.eq.s32.totalorder %s13, 0
    %p143 = por %p141, %p142
    %p144 = scmp.ne.s32.totalorder %s133, %s136
    %p145 = scmp.eq.s32.totalorder %s18, 1
    %p146 = por %p144, %p145
    %p147 = scmp.ne.s32.totalorder %s136, %s137
    %p148 = scmp.eq.s32.totalorder %s18, 0
    %p149 = por %p147, %p148
    %p150 = scmp.ne.s32.totalorder %s136, %s137
    %p151 = scmp.eq.s32.totalorder %s19, 1
    %p152 = por %p150, %p151
    %p154 = scmp.ne.s32.totalorder %s137, %s153
    %p155 = scmp.eq.s32.totalorder %s19, 0
    %p156 = por %p154, %p155
    %s158 = sadd.s32 %s157, 1
    %p161 = scmp.eq.s32.totalorder %s13, 1
    %p162 = scmp.ne.s32.totalorder %s157, %s159
    %p163 = scmp.eq.s32.totalorder %s13, 0
    %p164 = por %p162, %p163
    %p165 = scmp.ne.s32.totalorder %s157, %s159
    %p166 = scmp.eq.s32.totalorder %s18, 1
    %p167 = por %p165, %p166
    %p168 = scmp.ne.s32.totalorder %s159, %s160
    %p169 = scmp.eq.s32.totalorder %s18, 0
    %p170 = por %p168, %p169
    %p171 = scmp.ne.s32.totalorder %s159, %s160
    %p172 = scmp.eq.s32.totalorder %s19, 1
    %p173 = por %p171, %p172
    %p175 = scmp.ne.s32.totalorder %s160, %s174
    %p176 = scmp.eq.s32.totalorder %s19, 0
    %p177 = por %p175, %p176
    %p178 = scmp.le.s32.totalorder 1, %s13
    %p179 = scmp.lt.s32.totalorder %s13, 3
    %p180 = pnand %p178, %p179
    %p181 = pneg %p180
    // Predicated region
    $region9: #{encoder_forward.22} parent=5 // pred_check
      _
    $region10: #{encoder_forward.22} parent=5 // pred_check_branch
      %183 = sbr.rel (%p180) target = $region12
    $region11: #{encoder_forward.22} parent=5 // pred_region
      %s184 = ssub.s32 %s13, 1
      // Predicated region
      $region13: #{encoder_forward.22} parent=11 // pred_check
        %p185 = pneg %p60
      $region14: #{encoder_forward.22} parent=11 // pred_check_branch
        %187 = sbr.rel (%p185) target = $region16
      $region15: #{encoder_forward.22} parent=11 // pred_region
        _
      $region16: #{encoder_forward.22} parent=11 // pred_fallthru
        _
      // Predicated region
      $region17: #{encoder_forward.22} parent=11 // pred_check
        %p188 = pneg %p81
      $region18: #{encoder_forward.22} parent=11 // pred_check_branch
        %190 = sbr.rel (%p188) target = $region20
      $region19: #{encoder_forward.22} parent=11 // pred_region
        _
      $region20: #{encoder_forward.22} parent=11 // pred_fallthru
        _
      // Predicated region
      $region21: #{encoder_forward.22} parent=11 // pred_check
        %p191 = pneg %p102
      $region22: #{encoder_forward.22} parent=11 // pred_check_branch
        %193 = sbr.rel (%p191) target = $region24
      $region23: #{encoder_forward.22} parent=11 // pred_region
        _
      $region24: #{encoder_forward.22} parent=11 // pred_fallthru
        _
      // Predicated region
      $region25: #{encoder_forward.22} parent=11 // pred_check
        %p194 = pneg %p123
      $region26: #{encoder_forward.22} parent=11 // pred_check_branch
        %196 = sbr.rel (%p194) target = $region28
      $region27: #{encoder_forward.22} parent=11 // pred_region
        _
      $region28: #{encoder_forward.22} parent=11 // pred_fallthru
        _
    $region12: #{encoder_forward.22} parent=5 // pred_fallthru
      _
    %p197 = scmp.lt.s32.totalorder %s13, 2
    // Predicated region
    $region29: #{encoder_forward.22} parent=5 // pred_check
      %p198 = pneg %p197
    $region30: #{encoder_forward.22} parent=5 // pred_check_branch
      %200 = sbr.rel (%p198) target = $region32
    $region31: #{encoder_forward.22} parent=5 // pred_region
      // Predicated region
      $region33: #{encoder_forward.22} parent=31 // pred_check
        %p201 = pneg %p33
      $region34: #{encoder_forward.22} parent=31 // pred_check_branch
        %203 = sbr.rel (%p201) target = $region36
      $region35: #{encoder_forward.22} parent=31 // pred_region
        %s204 = smul.u32 6, %s13
        %p205 = scmp.lt.s32.totalorder %s204, 11
        %s206 = scalar_select %p205, %s204, 11
        %s207 = smul.addr %s206, 8
        %s208 = scalar_lea.vmem %s0, %s207
        %s209 = smul.u32 6, %s13
      $region36: #{encoder_forward.22} parent=31 // pred_fallthru
        _
    $region32: #{encoder_forward.22} parent=5 // pred_fallthru
      _
    %p210 = scmp.le.s32.totalorder 1, %s13
    %p211 = scmp.lt.s32.totalorder %s13, 3
    %p212 = pnand %p210, %p211
    %p213 = pneg %p212
    // Predicated region
    $region37: #{encoder_forward.22} parent=5 // pred_check
      _
    $region38: #{encoder_forward.22} parent=5 // pred_check_branch
      %215 = sbr.rel (%p212) target = $region40
    $region39: #{encoder_forward.22} parent=5 // pred_region
      %s216 = ssub.s32 %s13, 1
      %s217 = smul.u32 6, %s18
      %p218 = scmp.lt.s32.totalorder %s217, 11
      %s219 = scalar_select %p218, %s217, 11
      %s220 = smul.addr %s219, 8
      %s221 = scalar_lea.vmem %s0, %s220
      %p222 = pneg %p39
      %p223 = pneg %p36
      %p224 = pneg %p60
      %p225 = pneg %p57
      %p226 = pneg %p81
      %p227 = pneg %p78
      %p228 = pneg %p102
      %p229 = pneg %p99
      %p230 = pneg %p123
      %p231 = pneg %p120
      %p232 = pneg %p149
      %p233 = pneg %p146
      %s234 = smul.u32 6, %s18
      %p235 = scmp.lt.s32.totalorder %s234, 11
      %s236 = scalar_select %p235, %s234, 11
      %s237 = smul.addr %s236, 8
      %s238 = scalar_lea.vmem %s5, %s237
      %p239 = pneg %p170
      %p240 = pneg %p167
      %s241 = smul.u32 6, %s18
      %p242 = scmp.lt.s32.totalorder %s241, 11
      %s243 = scalar_select %p242, %s241, 11
      %s244 = smul.addr %s243, 8
      %s245 = scalar_lea.vmem %s0, %s244
      %s246 = smul.u32 6, %s18
      %s247 = smul.u32 6, %s18
      %p248 = scmp.lt.s32.totalorder %s247, 11
      %s249 = scalar_select %p248, %s247, 11
      %s250 = smul.addr %s249, 8
      %s251 = scalar_lea.vmem %s5, %s250
      %s252 = smul.u32 6, %s18
      %v253 = vld [vmem:[%s245] sm:$0xff]
      %v254 = vld [vmem:[%s245 + $0x8] sm:$0xff]
      %v255 = vld [vmem:[%s245 + $0x10] sm:$0xff]
      %v256 = vld [vmem:[%s245 + $0x18] sm:$0xff]
      %v257 = vld [vmem:[%s245 + $0x20] sm:$0xff]
      %v258 = vld [vmem:[%s245 + $0x28] sm:$0xff]
      %v259 = vld [vmem:[%s1] sm:$0x1]
      %v261 = vperm.slane %v259, 0
      %v263 = vmul.f32 %v253, %v261
      %v264 = vmul.f32 %v254, %v261
      %v265 = vmul.f32 %v255, %v261
      %v266 = vmul.f32 %v256, %v261
      %v267 = vmul.f32 %v257, %v261
      %v268 = vmul.f32 %v258, %v261
      %v269 = vld [vmem:[%s2] sm:$0x1]
      %v271 = vperm.slane %v269, 0
      %v273 = vadd.f32 %v263, %v271
      %v274 = vadd.f32 %v264, %v271
      %v275 = vadd.f32 %v265, %v271
      %v276 = vadd.f32 %v266, %v271
      %v277 = vadd.f32 %v267, %v271
      %v278 = vadd.f32 %v268, %v271
      %v279 = vmax.f32 %v273, 0.0
      %v280 = vmax.f32 %v274, 0.0
      %v281 = vmax.f32 %v275, 0.0
      %v282 = vmax.f32 %v276, 0.0
      %v283 = vmax.f32 %v277, 0.0
      %v284 = vmax.f32 %v278, 0.0
      %v285 = vld [vmem:[%s3] sm:$0xff]
      %v286 = vld [vmem:[%s3 + $0x8] sm:$0xff]
      %v287 = vld [vmem:[%s3 + $0x10] sm:$0xff]
      %v288 = vld [vmem:[%s3 + $0x18] sm:$0xff]
      %v289 = vld [vmem:[%s3 + $0x20] sm:$0xff]
      %v290 = vld [vmem:[%s3 + $0x28] sm:$0xff]
      %v291 = vld [vmem:[%s3 + $0x30] sm:$0xff]
      %v292 = vld [vmem:[%s3 + $0x38] sm:$0xff]
      %v293 = vld [vmem:[%s4] sm:$0x1]
      %v295 = vperm.slane %v293, 0
      %vm297 = vcmask 523264
      %v299 = vsel %vm297, %v279, 0
      %v302 = vsel %vm297, %v280, 0
      %v305 = vsel %vm297, %v281, 0
      %v308 = vsel %vm297, %v282, 0
      %v311 = vsel %vm297, %v283, 0
      %v314 = vsel %vm297, %v284, 0
      %316 = vmatpush.msra.mxu0 0.0
      %317 = vmatpush.msra.mxu0 0.0
      %318 = vmatpush.msra.mxu0 0.0
      %319 = vmatpush.msra.mxu0 0.0
      %320 = vmatpush.msra.mxu0 0.0
      %321 = vmatpush.msra.mxu0 0.0
      %322 = vmatpush.msra.mxu0 0.0
      %323 = vmatpush.msra.mxu0 0.0
      %324 = vmatpush.msra.mxu0 %v292
      %325 = vmatpush.msra.mxu0 %v291
      %326 = vmatpush.msra.mxu0 %v290
      %327 = vmatpush.msra.mxu0 %v289
      %328 = vmatpush.msra.mxu0 %v288
      %329 = vmatpush.msra.mxu0 %v287
      %330 = vmatpush.msra.mxu0 %v286
      %331 = vmatpush.msra.mxu0 %v285
      %332 = vmatmul.f32.gmra.mxu0 %v299
      %v333 = vpop.f32.mrf.mxu0
      %v334 = vadd.f32 %v295, %v333
      %335 = vmatmul.f32.gmra.mxu0 %v302
      %v336 = vpop.f32.mrf.mxu0
      %v337 = vadd.f32 %v295, %v336
      %338 = vmatmul.f32.gmra.mxu0 %v305
      %v339 = vpop.f32.mrf.mxu0
      %v340 = vadd.f32 %v295, %v339
      %341 = vmatmul.f32.gmra.mxu0 %v308
      %v342 = vpop.f32.mrf.mxu0
      %v343 = vadd.f32 %v295, %v342
      %344 = vmatmul.f32.gmra.mxu0 %v311
      %v345 = vpop.f32.mrf.mxu0
      %v346 = vadd.f32 %v295, %v345
      %347 = vmatmul.f32.gmra.mxu0 %v314
      %v348 = vpop.f32.mrf.mxu0
      %v349 = vadd.f32 %v295, %v348
      %350 = vdwg.mxu0
      %351 = vst.msk [vmem:[%s251] sm:$0xff] %vm297, %v334
      %352 = vst.msk [vmem:[%s251 + $0x8] sm:$0xff] %vm297, %v337
      %353 = vst.msk [vmem:[%s251 + $0x10] sm:$0xff] %vm297, %v340
      %354 = vst.msk [vmem:[%s251 + $0x18] sm:$0xff] %vm297, %v343
      %355 = vst.msk [vmem:[%s251 + $0x20] sm:$0xff] %vm297, %v346
      %356 = vst.msk [vmem:[%s251 + $0x28] sm:$0xff] %vm297, %v349
      %p357 = scmp.eq.s32.totalorder %s18, 0
      // Predicated region
      $region41: #{encoder_forward.22} parent=39 // pred_check
        %p358 = pneg %p357
      $region42: #{encoder_forward.22} parent=39 // pred_check_branch
        %360 = sbr.rel (%p358) target = $region44
      $region43: #{encoder_forward.22} parent=39 // pred_region
        %vm361 = vcmask 517120
        %362 = vst.msk [vmem:[%s6] sm:$0x3] %vm361, 0.0
      $region44: #{encoder_forward.22} parent=39 // pred_fallthru
        _
      %v363 = vld [vmem:[%s6] sm:$0x3]
      %v364 = vsel %vm297, %v334, 0.0
      %v365 = vsel %vm297, %v337, 0.0
      %v366 = vadd.f32 %v364, %v365
      %v367 = vsel %vm297, %v340, 0.0
      %v368 = vadd.f32 %v366, %v367
      %v369 = vsel %vm297, %v343, 0.0
      %v370 = vadd.f32 %v368, %v369
      %v371 = vsel %vm297, %v346, 0.0
      %v372 = vadd.f32 %v370, %v371
      %v373 = vsel %vm297, %v349, 0.0
      %v374 = vadd.f32 %v372, %v373
      %v375 = vrot.slane %v374, 4
      %v376 = vadd.f32 %v374, %v375
      %v377 = vrot.slane %v376, 2
      %v378 = vadd.f32 %v376, %v377
      %v379 = vrot.slane %v378, 1
      %v380 = vadd.f32 %v378, %v379
      %v381 = vmul.f32 %v334, %v334
      %v382 = vmul.f32 %v337, %v337
      %v383 = vmul.f32 %v340, %v340
      %v384 = vmul.f32 %v343, %v343
      %v385 = vmul.f32 %v346, %v346
      %v386 = vmul.f32 %v349, %v349
      %v387 = vsel %vm297, %v381, 0.0
      %v388 = vsel %vm297, %v382, 0.0
      %v389 = vadd.f32 %v387, %v388
      %v390 = vsel %vm297, %v383, 0.0
      %v391 = vadd.f32 %v389, %v390
      %v392 = vsel %vm297, %v384, 0.0
      %v393 = vadd.f32 %v391, %v392
      %v394 = vsel %vm297, %v385, 0.0
      %v395 = vadd.f32 %v393, %v394
      %v396 = vsel %vm297, %v386, 0.0
      %v397 = vadd.f32 %v395, %v396
      %v398 = vrot.slane %v397, 4
      %v399 = vadd.f32 %v397, %v398
      %v400 = vrot.slane %v399, 2
      %v401 = vadd.f32 %v399, %v400
      %v402 = vrot.slane %v401, 1
      %v403 = vadd.f32 %v401, %v402
      %vm404 = vcmask 1040384
      %v405 = vsel %vm404, %v380, %v403
      %v406 = vadd.f32 %v363, %v405
      %vm407 = vcmask 517120
      %408 = vst.msk [vmem:[%s6] sm:$0x3] %vm407, %v406
      %s409 = smul.u32 6, %s18
      %p410 = scmp.lt.s32.totalorder %s409, 11
      %s411 = scalar_select %p410, %s409, 11
      %s412 = smul.addr %s411, 8
      %s413 = scalar_lea.vmem %s5, %s412
      // Predicated region
      $region45: #{encoder_forward.22} parent=39 // pred_check
        %p414 = pneg %p146
      $region46: #{encoder_forward.22} parent=39 // pred_check_branch
        %416 = sbr.rel (%p414) target = $region48
      $region47: #{encoder_forward.22} parent=39 // pred_region
        %s417 = smul.u32 6, %s18
      $region48: #{encoder_forward.22} parent=39 // pred_fallthru
        _
      // Predicated region
      $region49: #{encoder_forward.22} parent=39 // pred_check
        %p418 = pneg %p167
      $region50: #{encoder_forward.22} parent=39 // pred_check_branch
        %420 = sbr.rel (%p418) target = $region52
      $region51: #{encoder_forward.22} parent=39 // pred_region
        _
      $region52: #{encoder_forward.22} parent=39 // pred_fallthru
        _
      // Predicated region
      $region53: #{encoder_forward.22} parent=39 // pred_check
        %p421 = pneg %p167
      $region54: #{encoder_forward.22} parent=39 // pred_check_branch
        %423 = sbr.rel (%p421) target = $region56
      $region55: #{encoder_forward.22} parent=39 // pred_region
        _
      $region56: #{encoder_forward.22} parent=39 // pred_fallthru
        _
    $region40: #{encoder_forward.22} parent=5 // pred_fallthru
      _
    %p424 = scmp.le.s32.totalorder 2, %s13
    // Predicated region
    $region57: #{encoder_forward.22} parent=5 // pred_check
      %p425 = pneg %p424
    $region58: #{encoder_forward.22} parent=5 // pred_check_branch
      %427 = sbr.rel (%p425) target = $region60
    $region59: #{encoder_forward.22} parent=5 // pred_region
      %s428 = ssub.s32 %s13, 2
      // Predicated region
      $region61: #{encoder_forward.22} parent=59 // pred_check
        %p429 = pneg %p152
      $region62: #{encoder_forward.22} parent=59 // pred_check_branch
        %431 = sbr.rel (%p429) target = $region64
      $region63: #{encoder_forward.22} parent=59 // pred_region
        %s432 = smul.u32 6, %s19
        %p433 = scmp.lt.s32.totalorder %s432, 11
        %s434 = scalar_select %p433, %s432, 11
        %s435 = smul.addr %s434, 8
        %s436 = scalar_lea.vmem %s5, %s435
      $region64: #{encoder_forward.22} parent=59 // pred_fallthru
        _
    $region60: #{encoder_forward.22} parent=5 // pred_fallthru
      _
  $region6: #{encoder_forward.22} parent=0 // loop_footer
    %s17 = sadd.s32 1, %s13
  $region7: #{encoder_forward.22} parent=0 // loop_footer_branch
    %12 = sbr.rel target = $region3
  $region8: #{encoder_forward.22} parent=0 // loop_exit
    _

// kernel: encoder_forward.24
$region0: #{encoder_forward.24}
  #allocation0 [shape = 'u32[]', space=smem, size = 0x4, offset = 0x4, fixed_abs, tag = 'smem constant byte address 0x4 - core index']
  #allocation1 [shape = 'u32[72,128]{1,0:T(1,128)}', space=vmem, size = 0x9000, scoped, tag = 'internal scratch']
  %s0 = inlined_call_operand.vmem [shape: f32[24,64], index: 0, kind: input, shape index: {}]
  %s1 = inlined_call_operand.vmem [shape: f32[64,32], index: 1, kind: input, shape index: {}]
  %s2 = inlined_call_operand.vmem [shape: f32[1,32], index: 2, kind: input, shape index: {}]
  %s3 = inlined_call_operand.vmem [shape: f32[32,128], index: 3, kind: input, shape index: {}]
  %s4 = inlined_call_operand.vmem [shape: f32[24,128], index: 4, kind: output, shape index: {}]
  %s5 = sld [smem:[#allocation0]]
  $region49: #{encoder_forward.24} parent=0
    _
  %s7 = ssub.s32 1, %s5
  %s8 = scalar_select 0, %s7, %s5
  loop: start=0, step=1, limit=5
  $region2: #{encoder_forward.24} parent=0 // loop_pre_header
    _
  $region3: #{encoder_forward.24} parent=0 // loop_header
    %s10 = sphi 0, %s14
    %p11 = scmp.ge.s32.totalorder %s10, 5
    %s20 = sphi 0, %s22
    %s23 = sphi 0, %s20
    %s24 = sphi 0, %s23
    %s40 = sphi 0, %s24
    %s44 = sphi 0, %s44
    %s46 = sphi 0, %s44
    %s47 = sphi 0, %s46
    %s61 = sphi 0, %s47
    %s65 = sphi 0, %s65
    %s67 = sphi 0, %s65
    %s68 = sphi 0, %s67
    %s82 = sphi 0, %s68
    %s86 = sphi 0, %s86
    %s88 = sphi 0, %s86
    %s89 = sphi 0, %s88
    %s103 = sphi 0, %s89
    %s109 = sphi 0, %s111
    %s112 = sphi 0, %s109
    %s113 = sphi 0, %s112
    %s129 = sphi 0, %s113
  $region4: #{encoder_forward.24} parent=0 // loop_header_branch
    %13 = sbr.rel (%p11) target = $region8
  $region5: #{encoder_forward.24} parent=0 // loop_body
    %s15 = ssub.s32 %s10, 1
    %s16 = ssub.s32 %s10, 2
    %s17 = sadd.s32 %s10, 1
    %s18 = ssub.s32 %s10, %s17
    %p19 = scmp.eq.s32.totalorder %s18, 0
    %s21 = sadd.s32 %s20, 1
    %s22 = scalar_select %p19, %s20, %s21
    %p25 = pneg %p19
    %p26 = scmp.eq.s32.totalorder %s10, 2
    %p27 = por %p25, %p26
    %p28 = scmp.ne.s32.totalorder %s20, %s23
    %p29 = scmp.eq.s32.totalorder %s10, 0
    %p30 = por %p28, %p29
    %p31 = scmp.ne.s32.totalorder %s20, %s23
    %p32 = scmp.eq.s32.totalorder %s15, 2
    %p33 = por %p31, %p32
    %p34 = scmp.ne.s32.totalorder %s23, %s24
    %p35 = scmp.eq.s32.totalorder %s15, 0
    %p36 = por %p34, %p35
    %p37 = scmp.ne.s32.totalorder %s23, %s24
    %p38 = scmp.eq.s32.totalorder %s16, 2
    %p39 = por %p37, %p38
    %p41 = scmp.ne.s32.totalorder %s24, %s40
    %p42 = scmp.eq.s32.totalorder %s16, 0
    %p43 = por %p41, %p42
    %s45 = sadd.s32 %s44, 1
    %p48 = scmp.eq.s32.totalorder %s10, 2
    %p49 = scmp.ne.s32.totalorder %s44, %s46
    %p50 = scmp.eq.s32.totalorder %s10, 0
    %p51 = por %p49, %p50
    %p52 = scmp.ne.s32.totalorder %s44, %s46
    %p53 = scmp.eq.s32.totalorder %s15, 2
    %p54 = por %p52, %p53
    %p55 = scmp.ne.s32.totalorder %s46, %s47
    %p56 = scmp.eq.s32.totalorder %s15, 0
    %p57 = por %p55, %p56
    %p58 = scmp.ne.s32.totalorder %s46, %s47
    %p59 = scmp.eq.s32.totalorder %s16, 2
    %p60 = por %p58, %p59
    %p62 = scmp.ne.s32.totalorder %s47, %s61
    %p63 = scmp.eq.s32.totalorder %s16, 0
    %p64 = por %p62, %p63
    %s66 = sadd.s32 %s65, 1
    %p69 = scmp.eq.s32.totalorder %s10, 2
    %p70 = scmp.ne.s32.totalorder %s65, %s67
    %p71 = scmp.eq.s32.totalorder %s10, 0
    %p72 = por %p70, %p71
    %p73 = scmp.ne.s32.totalorder %s65, %s67
    %p74 = scmp.eq.s32.totalorder %s15, 2
    %p75 = por %p73, %p74
    %p76 = scmp.ne.s32.totalorder %s67, %s68
    %p77 = scmp.eq.s32.totalorder %s15, 0
    %p78 = por %p76, %p77
    %p79 = scmp.ne.s32.totalorder %s67, %s68
    %p80 = scmp.eq.s32.totalorder %s16, 2
    %p81 = por %p79, %p80
    %p83 = scmp.ne.s32.totalorder %s68, %s82
    %p84 = scmp.eq.s32.totalorder %s16, 0
    %p85 = por %p83, %p84
    %s87 = sadd.s32 %s86, 1
    %p90 = scmp.eq.s32.totalorder %s10, 2
    %p91 = scmp.ne.s32.totalorder %s86, %s88
    %p92 = scmp.eq.s32.totalorder %s10, 0
    %p93 = por %p91, %p92
    %p94 = scmp.ne.s32.totalorder %s86, %s88
    %p95 = scmp.eq.s32.totalorder %s15, 2
    %p96 = por %p94, %p95
    %p97 = scmp.ne.s32.totalorder %s88, %s89
    %p98 = scmp.eq.s32.totalorder %s15, 0
    %p99 = por %p97, %p98
    %p100 = scmp.ne.s32.totalorder %s88, %s89
    %p101 = scmp.eq.s32.totalorder %s16, 2
    %p102 = por %p100, %p101
    %p104 = scmp.ne.s32.totalorder %s89, %s103
    %p105 = scmp.eq.s32.totalorder %s16, 0
    %p106 = por %p104, %p105
    %s107 = ssub.s32 %s10, %s17
    %p108 = scmp.eq.s32.totalorder %s107, 0
    %s110 = sadd.s32 %s109, 1
    %s111 = scalar_select %p108, %s109, %s110
    %p114 = pneg %p108
    %p115 = scmp.eq.s32.totalorder %s10, 2
    %p116 = por %p114, %p115
    %p117 = scmp.ne.s32.totalorder %s109, %s112
    %p118 = scmp.eq.s32.totalorder %s10, 0
    %p119 = por %p117, %p118
    %p120 = scmp.ne.s32.totalorder %s109, %s112
    %p121 = scmp.eq.s32.totalorder %s15, 2
    %p122 = por %p120, %p121
    %p123 = scmp.ne.s32.totalorder %s112, %s113
    %p124 = scmp.eq.s32.totalorder %s15, 0
    %p125 = por %p123, %p124
    %p126 = scmp.ne.s32.totalorder %s112, %s113
    %p127 = scmp.eq.s32.totalorder %s16, 2
    %p128 = por %p126, %p127
    %p130 = scmp.ne.s32.totalorder %s113, %s129
    %p131 = scmp.eq.s32.totalorder %s16, 0
    %p132 = por %p130, %p131
    %p133 = scmp.le.s32.totalorder 1, %s10
    %p134 = scmp.lt.s32.totalorder %s10, 4
    %p135 = pnand %p133, %p134
    %p136 = pneg %p135
    // Predicated region
    $region9: #{encoder_forward.24} parent=5 // pred_check
      _
    $region10: #{encoder_forward.24} parent=5 // pred_check_branch
      %138 = sbr.rel (%p135) target = $region12
    $region11: #{encoder_forward.24} parent=5 // pred_region
      %s139 = ssub.s32 %s10, 1
      // Predicated region
      $region13: #{encoder_forward.24} parent=11 // pred_check
        %p140 = pneg %p57
      $region14: #{encoder_forward.24} parent=11 // pred_check_branch
        %142 = sbr.rel (%p140) target = $region16
      $region15: #{encoder_forward.24} parent=11 // pred_region
        _
      $region16: #{encoder_forward.24} parent=11 // pred_fallthru
        _
      // Predicated region
      $region17: #{encoder_forward.24} parent=11 // pred_check
        %p143 = pneg %p78
      $region18: #{encoder_forward.24} parent=11 // pred_check_branch
        %145 = sbr.rel (%p143) target = $region20
      $region19: #{encoder_forward.24} parent=11 // pred_region
        _
      $region20: #{encoder_forward.24} parent=11 // pred_fallthru
        _
      // Predicated region
      $region21: #{encoder_forward.24} parent=11 // pred_check
        %p146 = pneg %p99
      $region22: #{encoder_forward.24} parent=11 // pred_check_branch
        %148 = sbr.rel (%p146) target = $region24
      $region23: #{encoder_forward.24} parent=11 // pred_region
        _
      $region24: #{encoder_forward.24} parent=11 // pred_fallthru
        _
    $region12: #{encoder_forward.24} parent=5 // pred_fallthru
      _
    %p149 = scmp.lt.s32.totalorder %s10, 3
    // Predicated region
    $region25: #{encoder_forward.24} parent=5 // pred_check
      %p150 = pneg %p149
    $region26: #{encoder_forward.24} parent=5 // pred_check_branch
      %152 = sbr.rel (%p150) target = $region28
    $region27: #{encoder_forward.24} parent=5 // pred_region
      // Predicated region
      $region29: #{encoder_forward.24} parent=27 // pred_check
        %p153 = pneg %p30
      $region30: #{encoder_forward.24} parent=27 // pred_check_branch
        %155 = sbr.rel (%p153) target = $region32
      $region31: #{encoder_forward.24} parent=27 // pred_region
        %p156 = scmp.lt.s32.totalorder %s10, 2
        %s157 = scalar_select %p156, %s10, 2
        %s158 = smul.addr %s157, 8
        %s159 = scalar_lea.vmem %s0, %s158
      $region32: #{encoder_forward.24} parent=27 // pred_fallthru
        _
    $region28: #{encoder_forward.24} parent=5 // pred_fallthru
      _
    %p160 = scmp.le.s32.totalorder 1, %s10
    %p161 = scmp.lt.s32.totalorder %s10, 4
    %p162 = pnand %p160, %p161
    %p163 = pneg %p162
    // Predicated region
    $region33: #{encoder_forward.24} parent=5 // pred_check
      _
    $region34: #{encoder_forward.24} parent=5 // pred_check_branch
      %165 = sbr.rel (%p162) target = $region36
    $region35: #{encoder_forward.24} parent=5 // pred_region
      %s166 = ssub.s32 %s10, 1
      %p167 = scmp.lt.s32.totalorder %s15, 2
      %s168 = scalar_select %p167, %s15, 2
      %s169 = smul.addr %s168, 8
      %s170 = scalar_lea.vmem %s0, %s169
      %p171 = pneg %p36
      %p172 = pneg %p33
      %p173 = pneg %p57
      %p174 = pneg %p54
      %p175 = pneg %p78
      %p176 = pneg %p75
      %p177 = pneg %p99
      %p178 = pneg %p96
      %p179 = pneg %p125
      %p180 = pneg %p122
      %p181 = scmp.lt.s32.totalorder %s15, 2
      %s182 = scalar_select %p181, %s15, 2
      %s183 = smul.addr %s182, 8
      %s184 = scalar_lea.vmem %s4, %s183
      %p185 = scmp.lt.s32.totalorder %s15, 2
      %s186 = scalar_select %p185, %s15, 2
      %s187 = smul.addr %s186, 8
      %s188 = scalar_lea.vmem %s0, %s187
      %p189 = scmp.lt.s32.totalorder %s15, 2
      %s190 = scalar_select %p189, %s15, 2
      %s191 = smul.addr %s190, 8
      %s192 = scalar_lea.vmem %s4, %s191
      %v193 = vld [vmem:[%s188] sm:$0xff]
      %v194 = vld [vmem:[%s1] sm:$0xff]
      %v195 = vld [vmem:[%s1 + $0x8] sm:$0xff]
      %v196 = vld [vmem:[%s1 + $0x10] sm:$0xff]
      %v197 = vld [vmem:[%s1 + $0x18] sm:$0xff]
      %v198 = vld [vmem:[%s1 + $0x20] sm:$0xff]
      %v199 = vld [vmem:[%s1 + $0x28] sm:$0xff]
      %v200 = vld [vmem:[%s1 + $0x30] sm:$0xff]
      %v201 = vld [vmem:[%s1 + $0x38] sm:$0xff]
      %v202 = vld [vmem:[%s2] sm:$0x1]
      %v204 = vperm.slane %v202, 0
      %vm206 = vcmask 523264
      %v208 = vsel %vm206, %v193, 0
      %210 = vmatpush.msra.mxu0 0.0
      %211 = vmatpush.msra.mxu0 0.0
      %212 = vmatpush.msra.mxu0 0.0
      %213 = vmatpush.msra.mxu0 0.0
      %214 = vmatpush.msra.mxu0 0.0
      %215 = vmatpush.msra.mxu0 0.0
      %216 = vmatpush.msra.mxu0 0.0
      %217 = vmatpush.msra.mxu0 0.0
      %218 = vmatpush.msra.mxu0 %v201
      %219 = vmatpush.msra.mxu0 %v200
      %220 = vmatpush.msra.mxu0 %v199
      %221 = vmatpush.msra.mxu0 %v198
      %222 = vmatpush.msra.mxu0 %v197
      %223 = vmatpush.msra.mxu0 %v196
      %224 = vmatpush.msra.mxu0 %v195
      %225 = vmatpush.msra.mxu0 %v194
      %226 = vmatmul.f32.gmra.mxu0 %v208
      %v227 = vpop.f32.mrf.mxu0
      %v228 = vadd.f32 %v204, %v227
      %229 = vdwg.mxu0
      %v230 = vld [vmem:[%s3] sm:$0xff]
      %v231 = vld [vmem:[%s3 + $0x8] sm:$0xff]
      %v232 = vld [vmem:[%s3 + $0x10] sm:$0xff]
      %v233 = vld [vmem:[%s3 + $0x18] sm:$0xff]
      %vm234 = vcmask 261120
      %v236 = vsel %vm234, %v228, 0
      %238 = vmatpush.msra.mxu0 0.0
      %239 = vmatpush.msra.mxu0 0.0
      %240 = vmatpush.msra.mxu0 0.0
      %241 = vmatpush.msra.mxu0 0.0
      %242 = vmatpush.msra.mxu0 0.0
      %243 = vmatpush.msra.mxu0 0.0
      %244 = vmatpush.msra.mxu0 0.0
      %245 = vmatpush.msra.mxu0 0.0
      %246 = vmatpush.msra.mxu0 0.0
      %247 = vmatpush.msra.mxu0 0.0
      %248 = vmatpush.msra.mxu0 0.0
      %249 = vmatpush.msra.mxu0 0.0
      %250 = vmatpush.msra.mxu0 %v233
      %251 = vmatpush.msra.mxu0 %v232
      %252 = vmatpush.msra.mxu0 %v231
      %253 = vmatpush.msra.mxu0 %v230
      %254 = vmatmul.f32.gmra.mxu0 %v236
      %v255 = vpop.f32.mrf.mxu0
      %v256 = vadd.f32 0.0, %v255
      %257 = vdwg.mxu0
      %258 = vst [vmem:[%s192] sm:$0xff] %v256
      %p259 = scmp.lt.s32.totalorder %s15, 2
      %s260 = scalar_select %p259, %s15, 2
      %s261 = smul.addr %s260, 8
      %s262 = scalar_lea.vmem %s4, %s261
      // Predicated region
      $region37: #{encoder_forward.24} parent=35 // pred_check
        %p263 = pneg %p122
      $region38: #{encoder_forward.24} parent=35 // pred_check_branch
        %265 = sbr.rel (%p263) target = $region40
      $region39: #{encoder_forward.24} parent=35 // pred_region
        _
      $region40: #{encoder_forward.24} parent=35 // pred_fallthru
        _
    $region36: #{encoder_forward.24} parent=5 // pred_fallthru
      _
    %p266 = scmp.le.s32.totalorder 2, %s10
    // Predicated region
    $region41: #{encoder_forward.24} parent=5 // pred_check
      %p267 = pneg %p266
    $region42: #{encoder_forward.24} parent=5 // pred_check_branch
      %269 = sbr.rel (%p267) target = $region44
    $region43: #{encoder_forward.24} parent=5 // pred_region
      %s270 = ssub.s32 %s10, 2
      // Predicated region
      $region45: #{encoder_forward.24} parent=43 // pred_check
        %p271 = pneg %p128
      $region46: #{encoder_forward.24} parent=43 // pred_check_branch
        %273 = sbr.rel (%p271) target = $region48
      $region47: #{encoder_forward.24} parent=43 // pred_region
        %p274 = scmp.lt.s32.totalorder %s16, 2
        %s275 = scalar_select %p274, %s16, 2
        %s276 = smul.addr %s275, 8
        %s277 = scalar_lea.vmem %s4, %s276
      $region48: #{encoder_forward.24} parent=43 // pred_fallthru
        _
    $region44: #{encoder_forward.24} parent=5 // pred_fallthru
      _
  $region6: #{encoder_forward.24} parent=0 // loop_footer
    %s14 = sadd.s32 1, %s10
  $region7: #{encoder_forward.24} parent=0 // loop_footer_branch
    %9 = sbr.rel target = $region3
  $region8: #{encoder_forward.24} parent=0 // loop_exit
    _

// kernel: custom-call.35
$region0: #{custom-call.35}
  %s0 = inlined_call_operand.vmem [shape: f32[2,12], index: 0, kind: output, shape index: {}]

// kernel: encoder_forward.25
$region0: #{encoder_forward.25}
  #allocation0 [shape = 'u32[]', space=smem, size = 0x4, offset = 0x4, fixed_abs, tag = 'smem constant byte address 0x4 - core index']
  #allocation1 [shape = 'u32[72,128]{1,0:T(1,128)}', space=vmem, size = 0x9000, scoped, tag = 'internal scratch']
  %s0 = inlined_call_operand.vmem [shape: f32[96,3], index: 0, kind: input, shape index: {}]
  %s1 = inlined_call_operand.vmem [shape: f32[3,32], index: 1, kind: input, shape index: {}]
  %s2 = inlined_call_operand.vmem [shape: f32[1,32], index: 2, kind: input, shape index: {}]
  %s3 = inlined_call_operand.vmem [shape: f32[32,32], index: 3, kind: input, shape index: {}]
  %s4 = inlined_call_operand.vmem [shape: f32[1,32], index: 4, kind: input, shape index: {}]
  %s5 = inlined_call_operand.vmem [shape: f32[96,32], index: 5, kind: output, shape index: {}]
  %s6 = sld [smem:[#allocation0]]
  $region53: #{encoder_forward.25} parent=0
    _
  %s8 = ssub.s32 1, %s6
  %s9 = scalar_select 0, %s8, %s6
  loop: start=0, step=1, limit=4
  $region2: #{encoder_forward.25} parent=0 // loop_pre_header
    _
  $region3: #{encoder_forward.25} parent=0 // loop_header
    %s11 = sphi 0, %s15
    %p12 = scmp.ge.s32.totalorder %s11, 4
    %s21 = sphi 0, %s23
    %s24 = sphi 0, %s21
    %s25 = sphi 0, %s24
    %s41 = sphi 0, %s25
    %s45 = sphi 0, %s45
    %s47 = sphi 0, %s45
    %s48 = sphi 0, %s47
    %s62 = sphi 0, %s48
    %s66 = sphi 0, %s66
    %s68 = sphi 0, %s66
    %s69 = sphi 0, %s68
    %s83 = sphi 0, %s69
    %s87 = sphi 0, %s87
    %s89 = sphi 0, %s87
    %s90 = sphi 0, %s89
    %s104 = sphi 0, %s90
    %s108 = sphi 0, %s108
    %s110 = sphi 0, %s108
    %s111 = sphi 0, %s110
    %s125 = sphi 0, %s111
    %s131 = sphi 0, %s133
    %s134 = sphi 0, %s131
    %s135 = sphi 0, %s134
    %s151 = sphi 0, %s135
  $region4: #{encoder_forward.25} parent=0 // loop_header_branch
    %14 = sbr.rel (%p12) target = $region8
  $region5: #{encoder_forward.25} parent=0 // loop_body
    %s16 = ssub.s32 %s11, 1
    %s17 = ssub.s32 %s11, 2
    %s18 = sadd.s32 %s11, 1
    %s19 = ssub.s32 %s11, %s18
    %p20 = scmp.eq.s32.totalorder %s19, 0
    %s22 = sadd.s32 %s21, 1
    %s23 = scalar_select %p20, %s21, %s22
    %p26 = pneg %p20
    %p27 = scmp.eq.s32.totalorder %s11, 1
    %p28 = por %p26, %p27
    %p29 = scmp.ne.s32.totalorder %s21, %s24
    %p30 = scmp.eq.s32.totalorder %s11, 0
    %p31 = por %p29, %p30
    %p32 = scmp.ne.s32.totalorder %s21, %s24
    %p33 = scmp.eq.s32.totalorder %s16, 1
    %p34 = por %p32, %p33
    %p35 = scmp.ne.s32.totalorder %s24, %s25
    %p36 = scmp.eq.s32.totalorder %s16, 0
    %p37 = por %p35, %p36
    %p38 = scmp.ne.s32.totalorder %s24, %s25
    %p39 = scmp.eq.s32.totalorder %s17, 1
    %p40 = por %p38, %p39
    %p42 = scmp.ne.s32.totalorder %s25, %s41
    %p43 = scmp.eq.s32.totalorder %s17, 0
    %p44 = por %p42, %p43
    %s46 = sadd.s32 %s45, 1
    %p49 = scmp.eq.s32.totalorder %s11, 1
    %p50 = scmp.ne.s32.totalorder %s45, %s47
    %p51 = scmp.eq.s32.totalorder %s11, 0
    %p52 = por %p50, %p51
    %p53 = scmp.ne.s32.totalorder %s45, %s47
    %p54 = scmp.eq.s32.totalorder %s16, 1
    %p55 = por %p53, %p54
    %p56 = scmp.ne.s32.totalorder %s47, %s48
    %p57 = scmp.eq.s32.totalorder %s16, 0
    %p58 = por %p56, %p57
    %p59 = scmp.ne.s32.totalorder %s47, %s48
    %p60 = scmp.eq.s32.totalorder %s17, 1
    %p61 = por %p59, %p60
    %p63 = scmp.ne.s32.totalorder %s48, %s62
    %p64 = scmp.eq.s32.totalorder %s17, 0
    %p65 = por %p63, %p64
    %s67 = sadd.s32 %s66, 1
    %p70 = scmp.eq.s32.totalorder %s11, 1
    %p71 = scmp.ne.s32.totalorder %s66, %s68
    %p72 = scmp.eq.s32.totalorder %s11, 0
    %p73 = por %p71, %p72
    %p74 = scmp.ne.s32.totalorder %s66, %s68
    %p75 = scmp.eq.s32.totalorder %s16, 1
    %p76 = por %p74, %p75
    %p77 = scmp.ne.s32.totalorder %s68, %s69
    %p78 = scmp.eq.s32.totalorder %s16, 0
    %p79 = por %p77, %p78
    %p80 = scmp.ne.s32.totalorder %s68, %s69
    %p81 = scmp.eq.s32.totalorder %s17, 1
    %p82 = por %p80, %p81
    %p84 = scmp.ne.s32.totalorder %s69, %s83
    %p85 = scmp.eq.s32.totalorder %s17, 0
    %p86 = por %p84, %p85
    %s88 = sadd.s32 %s87, 1
    %p91 = scmp.eq.s32.totalorder %s11, 1
    %p92 = scmp.ne.s32.totalorder %s87, %s89
    %p93 = scmp.eq.s32.totalorder %s11, 0
    %p94 = por %p92, %p93
    %p95 = scmp.ne.s32.totalorder %s87, %s89
    %p96 = scmp.eq.s32.totalorder %s16, 1
    %p97 = por %p95, %p96
    %p98 = scmp.ne.s32.totalorder %s89, %s90
    %p99 = scmp.eq.s32.totalorder %s16, 0
    %p100 = por %p98, %p99
    %p101 = scmp.ne.s32.totalorder %s89, %s90
    %p102 = scmp.eq.s32.totalorder %s17, 1
    %p103 = por %p101, %p102
    %p105 = scmp.ne.s32.totalorder %s90, %s104
    %p106 = scmp.eq.s32.totalorder %s17, 0
    %p107 = por %p105, %p106
    %s109 = sadd.s32 %s108, 1
    %p112 = scmp.eq.s32.totalorder %s11, 1
    %p113 = scmp.ne.s32.totalorder %s108, %s110
    %p114 = scmp.eq.s32.totalorder %s11, 0
    %p115 = por %p113, %p114
    %p116 = scmp.ne.s32.totalorder %s108, %s110
    %p117 = scmp.eq.s32.totalorder %s16, 1
    %p118 = por %p116, %p117
    %p119 = scmp.ne.s32.totalorder %s110, %s111
    %p120 = scmp.eq.s32.totalorder %s16, 0
    %p121 = por %p119, %p120
    %p122 = scmp.ne.s32.totalorder %s110, %s111
    %p123 = scmp.eq.s32.totalorder %s17, 1
    %p124 = por %p122, %p123
    %p126 = scmp.ne.s32.totalorder %s111, %s125
    %p127 = scmp.eq.s32.totalorder %s17, 0
    %p128 = por %p126, %p127
    %s129 = ssub.s32 %s11, %s18
    %p130 = scmp.eq.s32.totalorder %s129, 0
    %s132 = sadd.s32 %s131, 1
    %s133 = scalar_select %p130, %s131, %s132
    %p136 = pneg %p130
    %p137 = scmp.eq.s32.totalorder %s11, 1
    %p138 = por %p136, %p137
    %p139 = scmp.ne.s32.totalorder %s131, %s134
    %p140 = scmp.eq.s32.totalorder %s11, 0
    %p141 = por %p139, %p140
    %p142 = scmp.ne.s32.totalorder %s131, %s134
    %p143 = scmp.eq.s32.totalorder %s16, 1
    %p144 = por %p142, %p143
    %p145 = scmp.ne.s32.totalorder %s134, %s135
    %p146 = scmp.eq.s32.totalorder %s16, 0
    %p147 = por %p145, %p146
    %p148 = scmp.ne.s32.totalorder %s134, %s135
    %p149 = scmp.eq.s32.totalorder %s17, 1
    %p150 = por %p148, %p149
    %p152 = scmp.ne.s32.totalorder %s135, %s151
    %p153 = scmp.eq.s32.totalorder %s17, 0
    %p154 = por %p152, %p153
    %p155 = scmp.le.s32.totalorder 1, %s11
    %p156 = scmp.lt.s32.totalorder %s11, 3
    %p157 = pnand %p155, %p156
    %p158 = pneg %p157
    // Predicated region
    $region9: #{encoder_forward.25} parent=5 // pred_check
      _
    $region10: #{encoder_forward.25} parent=5 // pred_check_branch
      %160 = sbr.rel (%p157) target = $region12
    $region11: #{encoder_forward.25} parent=5 // pred_region
      %s161 = ssub.s32 %s11, 1
      // Predicated region
      $region13: #{encoder_forward.25} parent=11 // pred_check
        %p162 = pneg %p58
      $region14: #{encoder_forward.25} parent=11 // pred_check_branch
        %164 = sbr.rel (%p162) target = $region16
      $region15: #{encoder_forward.25} parent=11 // pred_region
        _
      $region16: #{encoder_forward.25} parent=11 // pred_fallthru
        _
      // Predicated region
      $region17: #{encoder_forward.25} parent=11 // pred_check
        %p165 = pneg %p79
      $region18: #{encoder_forward.25} parent=11 // pred_check_branch
        %167 = sbr.rel (%p165) target = $region20
      $region19: #{encoder_forward.25} parent=11 // pred_region
        _
      $region20: #{encoder_forward.25} parent=11 // pred_fallthru
        _
      // Predicated region
      $region21: #{encoder_forward.25} parent=11 // pred_check
        %p168 = pneg %p100
      $region22: #{encoder_forward.25} parent=11 // pred_check_branch
        %170 = sbr.rel (%p168) target = $region24
      $region23: #{encoder_forward.25} parent=11 // pred_region
        _
      $region24: #{encoder_forward.25} parent=11 // pred_fallthru
        _
      // Predicated region
      $region25: #{encoder_forward.25} parent=11 // pred_check
        %p171 = pneg %p121
      $region26: #{encoder_forward.25} parent=11 // pred_check_branch
        %173 = sbr.rel (%p171) target = $region28
      $region27: #{encoder_forward.25} parent=11 // pred_region
        _
      $region28: #{encoder_forward.25} parent=11 // pred_fallthru
        _
    $region12: #{encoder_forward.25} parent=5 // pred_fallthru
      _
    %p174 = scmp.lt.s32.totalorder %s11, 2
    // Predicated region
    $region29: #{encoder_forward.25} parent=5 // pred_check
      %p175 = pneg %p174
    $region30: #{encoder_forward.25} parent=5 // pred_check_branch
      %177 = sbr.rel (%p175) target = $region32
    $region31: #{encoder_forward.25} parent=5 // pred_region
      // Predicated region
      $region33: #{encoder_forward.25} parent=31 // pred_check
        %p178 = pneg %p31
      $region34: #{encoder_forward.25} parent=31 // pred_check_branch
        %180 = sbr.rel (%p178) target = $region36
      $region35: #{encoder_forward.25} parent=31 // pred_region
        %s181 = smul.u32 6, %s11
        %p182 = scmp.lt.s32.totalorder %s181, 11
        %s183 = scalar_select %p182, %s181, 11
        %s184 = smul.addr %s183, 8
        %s185 = scalar_lea.vmem %s0, %s184
        %s186 = smul.u32 6, %s11
      $region36: #{encoder_forward.25} parent=31 // pred_fallthru
        _
    $region32: #{encoder_forward.25} parent=5 // pred_fallthru
      _
    %p187 = scmp.le.s32.totalorder 1, %s11
    %p188 = scmp.lt.s32.totalorder %s11, 3
    %p189 = pnand %p187, %p188
    %p190 = pneg %p189
    // Predicated region
    $region37: #{encoder_forward.25} parent=5 // pred_check
      _
    $region38: #{encoder_forward.25} parent=5 // pred_check_branch
      %192 = sbr.rel (%p189) target = $region40
    $region39: #{encoder_forward.25} parent=5 // pred_region
      %s193 = ssub.s32 %s11, 1
      %s194 = smul.u32 6, %s16
      %p195 = scmp.lt.s32.totalorder %s194, 11
      %s196 = scalar_select %p195, %s194, 11
      %s197 = smul.addr %s196, 8
      %s198 = scalar_lea.vmem %s0, %s197
      %p199 = pneg %p37
      %p200 = pneg %p34
      %p201 = pneg %p58
      %p202 = pneg %p55
      %p203 = pneg %p79
      %p204 = pneg %p76
      %p205 = pneg %p100
      %p206 = pneg %p97
      %p207 = pneg %p121
      %p208 = pneg %p118
      %p209 = pneg %p147
      %p210 = pneg %p144
      %s211 = smul.u32 6, %s16
      %p212 = scmp.lt.s32.totalorder %s211, 11
      %s213 = scalar_select %p212, %s211, 11
      %s214 = smul.addr %s213, 8
      %s215 = scalar_lea.vmem %s5, %s214
      %s216 = smul.u32 6, %s16
      %p217 = scmp.lt.s32.totalorder %s216, 11
      %s218 = scalar_select %p217, %s216, 11
      %s219 = smul.addr %s218, 8
      %s220 = scalar_lea.vmem %s0, %s219
      %s221 = smul.u32 6, %s16
      %s222 = smul.u32 6, %s16
      %p223 = scmp.lt.s32.totalorder %s222, 11
      %s224 = scalar_select %p223, %s222, 11
      %s225 = smul.addr %s224, 8
      %s226 = scalar_lea.vmem %s5, %s225
      %s227 = smul.u32 6, %s16
      %v228 = vld [vmem:[%s220] sm:$0xff]
      %v229 = vld [vmem:[%s220 + $0x8] sm:$0xff]
      %v230 = vld [vmem:[%s220 + $0x10] sm:$0xff]
      %v231 = vld [vmem:[%s220 + $0x18] sm:$0xff]
      %v232 = vld [vmem:[%s220 + $0x20] sm:$0xff]
      %v233 = vld [vmem:[%s220 + $0x28] sm:$0xff]
      %v234 = vld [vmem:[%s1] sm:$0x7]
      %v235 = vld [vmem:[%s2] sm:$0x1]
      %v237 = vperm.slane %v235, 0
      %vm239 = vcmask 23552
      %v241 = vsel %vm239, %v228, 0
      %v244 = vsel %vm239, %v229, 0
      %v247 = vsel %vm239, %v230, 0
      %v250 = vsel %vm239, %v231, 0
      %v253 = vsel %vm239, %v232, 0
      %v256 = vsel %vm239, %v233, 0
      %vm258 = vcmask 1042432
      %v260 = vsel %vm258, %v234, 0
      %262 = vmatpush.msra.mxu0 0.0
      %263 = vmatpush.msra.mxu0 0.0
      %264 = vmatpush.msra.mxu0 0.0
      %265 = vmatpush.msra.mxu0 0.0
      %266 = vmatpush.msra.mxu0 0.0
      %267 = vmatpush.msra.mxu0 0.0
      %268 = vmatpush.msra.mxu0 0.0
      %269 = vmatpush.msra.mxu0 0.0
      %270 = vmatpush.msra.mxu0 0.0
      %271 = vmatpush.msra.mxu0 0.0
      %272 = vmatpush.msra.mxu0 0.0
      %273 = vmatpush.msra.mxu0 0.0
      %274 = vmatpush.msra.mxu0 0.0
      %275 = vmatpush.msra.mxu0 0.0
      %276 = vmatpush.msra.mxu0 0.0
      %277 = vmatpush.msra.mxu0 %v260
      %278 = vmatmul.f32.gmra.mxu0 %v241
      %v279 = vpop.f32.mrf.mxu0
      %v280 = vadd.f32 %v237, %v279
      %281 = vmatmul.f32.gmra.mxu0 %v244
      %v282 = vpop.f32.mrf.mxu0
      %v283 = vadd.f32 %v237, %v282
      %284 = vmatmul.f32.gmra.mxu0 %v247
      %v285 = vpop.f32.mrf.mxu0
      %v286 = vadd.f32 %v237, %v285
      %287 = vmatmul.f32.gmra.mxu0 %v250
      %v288 = vpop.f32.mrf.mxu0
      %v289 = vadd.f32 %v237, %v288
      %290 = vmatmul.f32.gmra.mxu0 %v253
      %v291 = vpop.f32.mrf.mxu0
      %v292 = vadd.f32 %v237, %v291
      %293 = vmatmul.f32.gmra.mxu0 %v256
      %v294 = vpop.f32.mrf.mxu0
      %v295 = vadd.f32 %v237, %v294
      %296 = vdwg.mxu0
      %v297 = vmax.f32 %v280, 0.0
      %v298 = vmax.f32 %v283, 0.0
      %v299 = vmax.f32 %v286, 0.0
      %v300 = vmax.f32 %v289, 0.0
      %v301 = vmax.f32 %v292, 0.0
      %v302 = vmax.f32 %v295, 0.0
      %v303 = vld [vmem:[%s3] sm:$0xff]
      %v304 = vld [vmem:[%s3 + $0x8] sm:$0xff]
      %v305 = vld [vmem:[%s3 + $0x10] sm:$0xff]
      %v306 = vld [vmem:[%s3 + $0x18] sm:$0xff]
      %v307 = vld [vmem:[%s4] sm:$0x1]
      %v309 = vperm.slane %v307, 0
      %vm311 = vcmask 261120
      %v313 = vsel %vm311, %v297, 0
      %v316 = vsel %vm311, %v298, 0
      %v319 = vsel %vm311, %v299, 0
      %v322 = vsel %vm311, %v300, 0
      %v325 = vsel %vm311, %v301, 0
      %v328 = vsel %vm311, %v302, 0
      %330 = vmatpush.msra.mxu0 0.0
      %331 = vmatpush.msra.mxu0 0.0
      %332 = vmatpush.msra.mxu0 0.0
      %333 = vmatpush.msra.mxu0 0.0
      %334 = vmatpush.msra.mxu0 0.0
      %335 = vmatpush.msra.mxu0 0.0
      %336 = vmatpush.msra.mxu0 0.0
      %337 = vmatpush.msra.mxu0 0.0
      %338 = vmatpush.msra.mxu0 0.0
      %339 = vmatpush.msra.mxu0 0.0
      %340 = vmatpush.msra.mxu0 0.0
      %341 = vmatpush.msra.mxu0 0.0
      %342 = vmatpush.msra.mxu0 %v306
      %343 = vmatpush.msra.mxu0 %v305
      %344 = vmatpush.msra.mxu0 %v304
      %345 = vmatpush.msra.mxu0 %v303
      %346 = vmatmul.f32.gmra.mxu0 %v313
      %v347 = vpop.f32.mrf.mxu0
      %v348 = vadd.f32 %v309, %v347
      %349 = vmatmul.f32.gmra.mxu0 %v316
      %v350 = vpop.f32.mrf.mxu0
      %v351 = vadd.f32 %v309, %v350
      %352 = vmatmul.f32.gmra.mxu0 %v319
      %v353 = vpop.f32.mrf.mxu0
      %v354 = vadd.f32 %v309, %v353
      %355 = vmatmul.f32.gmra.mxu0 %v322
      %v356 = vpop.f32.mrf.mxu0
      %v357 = vadd.f32 %v309, %v356
      %358 = vmatmul.f32.gmra.mxu0 %v325
      %v359 = vpop.f32.mrf.mxu0
      %v360 = vadd.f32 %v309, %v359
      %361 = vmatmul.f32.gmra.mxu0 %v328
      %v362 = vpop.f32.mrf.mxu0
      %v363 = vadd.f32 %v309, %v362
      %364 = vdwg.mxu0
      %365 = vst.msk [vmem:[%s226] sm:$0xff] %vm311, %v348
      %366 = vst.msk [vmem:[%s226 + $0x8] sm:$0xff] %vm311, %v351
      %367 = vst.msk [vmem:[%s226 + $0x10] sm:$0xff] %vm311, %v354
      %368 = vst.msk [vmem:[%s226 + $0x18] sm:$0xff] %vm311, %v357
      %369 = vst.msk [vmem:[%s226 + $0x20] sm:$0xff] %vm311, %v360
      %370 = vst.msk [vmem:[%s226 + $0x28] sm:$0xff] %vm311, %v363
      %s371 = smul.u32 6, %s16
      %p372 = scmp.lt.s32.totalorder %s371, 11
      %s373 = scalar_select %p372, %s371, 11
      %s374 = smul.addr %s373, 8
      %s375 = scalar_lea.vmem %s5, %s374
      // Predicated region
      $region41: #{encoder_forward.25} parent=39 // pred_check
        %p376 = pneg %p144
      $region42: #{encoder_forward.25} parent=39 // pred_check_branch
        %378 = sbr.rel (%p376) target = $region44
      $region43: #{encoder_forward.25} parent=39 // pred_region
        %s379 = smul.u32 6, %s16
      $region44: #{encoder_forward.25} parent=39 // pred_fallthru
        _
    $region40: #{encoder_forward.25} parent=5 // pred_fallthru
      _
    %p380 = scmp.le.s32.totalorder 2, %s11
    // Predicated region
    $region45: #{encoder_forward.25} parent=5 // pred_check
      %p381 = pneg %p380
    $region46: #{encoder_forward.25} parent=5 // pred_check_branch
      %383 = sbr.rel (%p381) target = $region48
    $region47: #{encoder_forward.25} parent=5 // pred_region
      %s384 = ssub.s32 %s11, 2
      // Predicated region
      $region49: #{encoder_forward.25} parent=47 // pred_check
        %p385 = pneg %p150
      $region50: #{encoder_forward.25} parent=47 // pred_check_branch
        %387 = sbr.rel (%p385) target = $region52
      $region51: #{encoder_forward.25} parent=47 // pred_region
        %s388 = smul.u32 6, %s17
        %p389 = scmp.lt.s32.totalorder %s388, 11
        %s390 = scalar_select %p389, %s388, 11
        %s391 = smul.addr %s390, 8
        %s392 = scalar_lea.vmem %s5, %s391
      $region52: #{encoder_forward.25} parent=47 // pred_fallthru
        _
    $region48: #{encoder_forward.25} parent=5 // pred_fallthru
      _
  $region6: #{encoder_forward.25} parent=0 // loop_footer
    %s15 = sadd.s32 1, %s11
  $region7: #{encoder_forward.25} parent=0 // loop_footer_branch
    %10 = sbr.rel target = $region3
  $region8: #{encoder_forward.25} parent=0 // loop_exit
    _

// kernel: encoder_forward.26
$region0: #{encoder_forward.26}
  #allocation0 [shape = 'u32[]', space=smem, size = 0x4, offset = 0x4, fixed_abs, tag = 'smem constant byte address 0x4 - core index']
  #allocation1 [shape = 'u32[72,128]{1,0:T(1,128)}', space=vmem, size = 0x9000, scoped, tag = 'internal scratch']
  %s0 = inlined_call_operand.vmem [shape: f32[24,32], index: 0, kind: input, shape index: {}]
  %s1 = inlined_call_operand.vmem [shape: f32[24,128], index: 1, kind: input, shape index: {}]
  %s2 = inlined_call_operand.vmem [shape: f32[24,128], index: 2, kind: input, shape index: {}]
  %s3 = inlined_call_operand.vmem [shape: f32[24,128], index: 3, kind: input, shape index: {}]
  %s4 = inlined_call_operand.vmem [shape: f32[24,64], index: 4, kind: input, shape index: {}]
  %s5 = inlined_call_operand.vmem [shape: f32[128,128], index: 5, kind: input, shape index: {}]
  %s6 = inlined_call_operand.vmem [shape: f32[1,128], index: 6, kind: input, shape index: {}]
  %s7 = inlined_call_operand.vmem [shape: f32[128,128], index: 7, kind: input, shape index: {}]
  %s8 = inlined_call_operand.vmem [shape: f32[1,128], index: 8, kind: input, shape index: {}]
  %s9 = inlined_call_operand.vmem [shape: f32[32,64], index: 9, kind: input, shape index: {}]
  %s10 = inlined_call_operand.vmem [shape: f32[1,64], index: 10, kind: input, shape index: {}]
  %s11 = inlined_call_operand.vmem [shape: f32[24,64], index: 11, kind: output, shape index: {}]
  %s12 = sld [smem:[#allocation0]]
  $region77: #{encoder_forward.26} parent=0
    _
  %s14 = ssub.s32 1, %s12
  %s15 = scalar_select 0, %s14, %s12
  loop: start=0, step=1, limit=5
  $region2: #{encoder_forward.26} parent=0 // loop_pre_header
    _
  $region3: #{encoder_forward.26} parent=0 // loop_header
    %s17 = sphi 0, %s21
    %p18 = scmp.ge.s32.totalorder %s17, 5
    %s27 = sphi 0, %s29
    %s30 = sphi 0, %s27
    %s31 = sphi 0, %s30
    %s47 = sphi 0, %s31
    %s53 = sphi 0, %s55
    %s56 = sphi 0, %s53
    %s57 = sphi 0, %s56
    %s73 = sphi 0, %s57
    %s79 = sphi 0, %s81
    %s82 = sphi 0, %s79
    %s83 = sphi 0, %s82
    %s99 = sphi 0, %s83
    %s105 = sphi 0, %s107
    %s108 = sphi 0, %s105
    %s109 = sphi 0, %s108
    %s125 = sphi 0, %s109
    %s131 = sphi 0, %s133
    %s134 = sphi 0, %s131
    %s135 = sphi 0, %s134
    %s151 = sphi 0, %s135
    %s155 = sphi 0, %s155
    %s157 = sphi 0, %s155
    %s158 = sphi 0, %s157
    %s172 = sphi 0, %s158
    %s176 = sphi 0, %s176
    %s178 = sphi 0, %s176
    %s179 = sphi 0, %s178
    %s193 = sphi 0, %s179
    %s197 = sphi 0, %s197
    %s199 = sphi 0, %s197
    %s200 = sphi 0, %s199
    %s214 = sphi 0, %s200
    %s218 = sphi 0, %s218
    %s220 = sphi 0, %s218
    %s221 = sphi 0, %s220
    %s235 = sphi 0, %s221
    %s239 = sphi 0, %s239
    %s241 = sphi 0, %s239
    %s242 = sphi 0, %s241
    %s256 = sphi 0, %s242
    %s260 = sphi 0, %s260
    %s262 = sphi 0, %s260
    %s263 = sphi 0, %s262
    %s277 = sphi 0, %s263
    %s283 = sphi 0, %s285
    %s286 = sphi 0, %s283
    %s287 = sphi 0, %s286
    %s303 = sphi 0, %s287
  $region4: #{encoder_forward.26} parent=0 // loop_header_branch
    %20 = sbr.rel (%p18) target = $region8
  $region5: #{encoder_forward.26} parent=0 // loop_body
    %s22 = ssub.s32 %s17, 1
    %s23 = ssub.s32 %s17, 2
    %s24 = sadd.s32 %s17, 1
    %s25 = ssub.s32 %s17, %s24
    %p26 = scmp.eq.s32.totalorder %s25, 0
    %s28 = sadd.s32 %s27, 1
    %s29 = scalar_select %p26, %s27, %s28
    %p32 = pneg %p26
    %p33 = scmp.eq.s32.totalorder %s17, 2
    %p34 = por %p32, %p33
    %p35 = scmp.ne.s32.totalorder %s27, %s30
    %p36 = scmp.eq.s32.totalorder %s17, 0
    %p37 = por %p35, %p36
    %p38 = scmp.ne.s32.totalorder %s27, %s30
    %p39 = scmp.eq.s32.totalorder %s22, 2
    %p40 = por %p38, %p39
    %p41 = scmp.ne.s32.totalorder %s30, %s31
    %p42 = scmp.eq.s32.totalorder %s22, 0
    %p43 = por %p41, %p42
    %p44 = scmp.ne.s32.totalorder %s30, %s31
    %p45 = scmp.eq.s32.totalorder %s23, 2
    %p46 = por %p44, %p45
    %p48 = scmp.ne.s32.totalorder %s31, %s47
    %p49 = scmp.eq.s32.totalorder %s23, 0
    %p50 = por %p48, %p49
    %s51 = ssub.s32 %s17, %s24
    %p52 = scmp.eq.s32.totalorder %s51, 0
    %s54 = sadd.s32 %s53, 1
    %s55 = scalar_select %p52, %s53, %s54
    %p58 = pneg %p52
    %p59 = scmp.eq.s32.totalorder %s17, 2
    %p60 = por %p58, %p59
    %p61 = scmp.ne.s32.totalorder %s53, %s56
    %p62 = scmp.eq.s32.totalorder %s17, 0
    %p63 = por %p61, %p62
    %p64 = scmp.ne.s32.totalorder %s53, %s56
    %p65 = scmp.eq.s32.totalorder %s22, 2
    %p66 = por %p64, %p65
    %p67 = scmp.ne.s32.totalorder %s56, %s57
    %p68 = scmp.eq.s32.totalorder %s22, 0
    %p69 = por %p67, %p68
    %p70 = scmp.ne.s32.totalorder %s56, %s57
    %p71 = scmp.eq.s32.totalorder %s23, 2
    %p72 = por %p70, %p71
    %p74 = scmp.ne.s32.totalorder %s57, %s73
    %p75 = scmp.eq.s32.totalorder %s23, 0
    %p76 = por %p74, %p75
    %s77 = ssub.s32 %s17, %s24
    %p78 = scmp.eq.s32.totalorder %s77, 0
    %s80 = sadd.s32 %s79, 1
    %s81 = scalar_select %p78, %s79, %s80
    %p84 = pneg %p78
    %p85 = scmp.eq.s32.totalorder %s17, 2
    %p86 = por %p84, %p85
    %p87 = scmp.ne.s32.totalorder %s79, %s82
    %p88 = scmp.eq.s32.totalorder %s17, 0
    %p89 = por %p87, %p88
    %p90 = scmp.ne.s32.totalorder %s79, %s82
    %p91 = scmp.eq.s32.totalorder %s22, 2
    %p92 = por %p90, %p91
    %p93 = scmp.ne.s32.totalorder %s82, %s83
    %p94 = scmp.eq.s32.totalorder %s22, 0
    %p95 = por %p93, %p94
    %p96 = scmp.ne.s32.totalorder %s82, %s83
    %p97 = scmp.eq.s32.totalorder %s23, 2
    %p98 = por %p96, %p97
    %p100 = scmp.ne.s32.totalorder %s83, %s99
    %p101 = scmp.eq.s32.totalorder %s23, 0
    %p102 = por %p100, %p101
    %s103 = ssub.s32 %s17, %s24
    %p104 = scmp.eq.s32.totalorder %s103, 0
    %s106 = sadd.s32 %s105, 1
    %s107 = scalar_select %p104, %s105, %s106
    %p110 = pneg %p104
    %p111 = scmp.eq.s32.totalorder %s17, 2
    %p112 = por %p110, %p111
    %p113 = scmp.ne.s32.totalorder %s105, %s108
    %p114 = scmp.eq.s32.totalorder %s17, 0
    %p115 = por %p113, %p114
    %p116 = scmp.ne.s32.totalorder %s105, %s108
    %p117 = scmp.eq.s32.totalorder %s22, 2
    %p118 = por %p116, %p117
    %p119 = scmp.ne.s32.totalorder %s108, %s109
    %p120 = scmp.eq.s32.totalorder %s22, 0
    %p121 = por %p119, %p120
    %p122 = scmp.ne.s32.totalorder %s108, %s109
    %p123 = scmp.eq.s32.totalorder %s23, 2
    %p124 = por %p122, %p123
    %p126 = scmp.ne.s32.totalorder %s109, %s125
    %p127 = scmp.eq.s32.totalorder %s23, 0
    %p128 = por %p126, %p127
    %s129 = ssub.s32 %s17, %s24
    %p130 = scmp.eq.s32.totalorder %s129, 0
    %s132 = sadd.s32 %s131, 1
    %s133 = scalar_select %p130, %s131, %s132
    %p136 = pneg %p130
    %p137 = scmp.eq.s32.totalorder %s17, 2
    %p138 = por %p136, %p137
    %p139 = scmp.ne.s32.totalorder %s131, %s134
    %p140 = scmp.eq.s32.totalorder %s17, 0
    %p141 = por %p139, %p140
    %p142 = scmp.ne.s32.totalorder %s131, %s134
    %p143 = scmp.eq.s32.totalorder %s22, 2
    %p144 = por %p142, %p143
    %p145 = scmp.ne.s32.totalorder %s134, %s135
    %p146 = scmp.eq.s32.totalorder %s22, 0
    %p147 = por %p145, %p146
    %p148 = scmp.ne.s32.totalorder %s134, %s135
    %p149 = scmp.eq.s32.totalorder %s23, 2
    %p150 = por %p148, %p149
    %p152 = scmp.ne.s32.totalorder %s135, %s151
    %p153 = scmp.eq.s32.totalorder %s23, 0
    %p154 = por %p152, %p153
    %s156 = sadd.s32 %s155, 1
    %p159 = scmp.eq.s32.totalorder %s17, 2
    %p160 = scmp.ne.s32.totalorder %s155, %s157
    %p161 = scmp.eq.s32.totalorder %s17, 0
    %p162 = por %p160, %p161
    %p163 = scmp.ne.s32.totalorder %s155, %s157
    %p164 = scmp.eq.s32.totalorder %s22, 2
    %p165 = por %p163, %p164
    %p166 = scmp.ne.s32.totalorder %s157, %s158
    %p167 = scmp.eq.s32.totalorder %s22, 0
    %p168 = por %p166, %p167
    %p169 = scmp.ne.s32.totalorder %s157, %s158
    %p170 = scmp.eq.s32.totalorder %s23, 2
    %p171 = por %p169, %p170
    %p173 = scmp.ne.s32.totalorder %s158, %s172
    %p174 = scmp.eq.s32.totalorder %s23, 0
    %p175 = por %p173, %p174
    %s177 = sadd.s32 %s176, 1
    %p180 = scmp.eq.s32.totalorder %s17, 2
    %p181 = scmp.ne.s32.totalorder %s176, %s178
    %p182 = scmp.eq.s32.totalorder %s17, 0
    %p183 = por %p181, %p182
    %p184 = scmp.ne.s32.totalorder %s176, %s178
    %p185 = scmp.eq.s32.totalorder %s22, 2
    %p186 = por %p184, %p185
    %p187 = scmp.ne.s32.totalorder %s178, %s179
    %p188 = scmp.eq.s32.totalorder %s22, 0
    %p189 = por %p187, %p188
    %p190 = scmp.ne.s32.totalorder %s178, %s179
    %p191 = scmp.eq.s32.totalorder %s23, 2
    %p192 = por %p190, %p191
    %p194 = scmp.ne.s32.totalorder %s179, %s193
    %p195 = scmp.eq.s32.totalorder %s23, 0
    %p196 = por %p194, %p195
    %s198 = sadd.s32 %s197, 1
    %p201 = scmp.eq.s32.totalorder %s17, 2
    %p202 = scmp.ne.s32.totalorder %s197, %s199
    %p203 = scmp.eq.s32.totalorder %s17, 0
    %p204 = por %p202, %p203
    %p205 = scmp.ne.s32.totalorder %s197, %s199
    %p206 = scmp.eq.s32.totalorder %s22, 2
    %p207 = por %p205, %p206
    %p208 = scmp.ne.s32.totalorder %s199, %s200
    %p209 = scmp.eq.s32.totalorder %s22, 0
    %p210 = por %p208, %p209
    %p211 = scmp.ne.s32.totalorder %s199, %s200
    %p212 = scmp.eq.s32.totalorder %s23, 2
    %p213 = por %p211, %p212
    %p215 = scmp.ne.s32.totalorder %s200, %s214
    %p216 = scmp.eq.s32.totalorder %s23, 0
    %p217 = por %p215, %p216
    %s219 = sadd.s32 %s218, 1
    %p222 = scmp.eq.s32.totalorder %s17, 2
    %p223 = scmp.ne.s32.totalorder %s218, %s220
    %p224 = scmp.eq.s32.totalorder %s17, 0
    %p225 = por %p223, %p224
    %p226 = scmp.ne.s32.totalorder %s218, %s220
    %p227 = scmp.eq.s32.totalorder %s22, 2
    %p228 = por %p226, %p227
    %p229 = scmp.ne.s32.totalorder %s220, %s221
    %p230 = scmp.eq.s32.totalorder %s22, 0
    %p231 = por %p229, %p230
    %p232 = scmp.ne.s32.totalorder %s220, %s221
    %p233 = scmp.eq.s32.totalorder %s23, 2
    %p234 = por %p232, %p233
    %p236 = scmp.ne.s32.totalorder %s221, %s235
    %p237 = scmp.eq.s32.totalorder %s23, 0
    %p238 = por %p236, %p237
    %s240 = sadd.s32 %s239, 1
    %p243 = scmp.eq.s32.totalorder %s17, 2
    %p244 = scmp.ne.s32.totalorder %s239, %s241
    %p245 = scmp.eq.s32.totalorder %s17, 0
    %p246 = por %p244, %p245
    %p247 = scmp.ne.s32.totalorder %s239, %s241
    %p248 = scmp.eq.s32.totalorder %s22, 2
    %p249 = por %p247, %p248
    %p250 = scmp.ne.s32.totalorder %s241, %s242
    %p251 = scmp.eq.s32.totalorder %s22, 0
    %p252 = por %p250, %p251
    %p253 = scmp.ne.s32.totalorder %s241, %s242
    %p254 = scmp.eq.s32.totalorder %s23, 2
    %p255 = por %p253, %p254
    %p257 = scmp.ne.s32.totalorder %s242, %s256
    %p258 = scmp.eq.s32.totalorder %s23, 0
    %p259 = por %p257, %p258
    %s261 = sadd.s32 %s260, 1
    %p264 = scmp.eq.s32.totalorder %s17, 2
    %p265 = scmp.ne.s32.totalorder %s260, %s262
    %p266 = scmp.eq.s32.totalorder %s17, 0
    %p267 = por %p265, %p266
    %p268 = scmp.ne.s32.totalorder %s260, %s262
    %p269 = scmp.eq.s32.totalorder %s22, 2
    %p270 = por %p268, %p269
    %p271 = scmp.ne.s32.totalorder %s262, %s263
    %p272 = scmp.eq.s32.totalorder %s22, 0
    %p273 = por %p271, %p272
    %p274 = scmp.ne.s32.totalorder %s262, %s263
    %p275 = scmp.eq.s32.totalorder %s23, 2
    %p276 = por %p274, %p275
    %p278 = scmp.ne.s32.totalorder %s263, %s277
    %p279 = scmp.eq.s32.totalorder %s23, 0
    %p280 = por %p278, %p279
    %s281 = ssub.s32 %s17, %s24
    %p282 = scmp.eq.s32.totalorder %s281, 0
    %s284 = sadd.s32 %s283, 1
    %s285 = scalar_select %p282, %s283, %s284
    %p288 = pneg %p282
    %p289 = scmp.eq.s32.totalorder %s17, 2
    %p290 = por %p288, %p289
    %p291 = scmp.ne.s32.totalorder %s283, %s286
    %p292 = scmp.eq.s32.totalorder %s17, 0
    %p293 = por %p291, %p292
    %p294 = scmp.ne.s32.totalorder %s283, %s286
    %p295 = scmp.eq.s32.totalorder %s22, 2
    %p296 = por %p294, %p295
    %p297 = scmp.ne.s32.totalorder %s286, %s287
    %p298 = scmp.eq.s32.totalorder %s22, 0
    %p299 = por %p297, %p298
    %p300 = scmp.ne.s32.totalorder %s286, %s287
    %p301 = scmp.eq.s32.totalorder %s23, 2
    %p302 = por %p300, %p301
    %p304 = scmp.ne.s32.totalorder %s287, %s303
    %p305 = scmp.eq.s32.totalorder %s23, 0
    %p306 = por %p304, %p305
    %p307 = scmp.le.s32.totalorder 1, %s17
    %p308 = scmp.lt.s32.totalorder %s17, 4
    %p309 = pnand %p307, %p308
    %p310 = pneg %p309
    // Predicated region
    $region9: #{encoder_forward.26} parent=5 // pred_check
      _
    $region10: #{encoder_forward.26} parent=5 // pred_check_branch
      %312 = sbr.rel (%p309) target = $region12
    $region11: #{encoder_forward.26} parent=5 // pred_region
      %s313 = ssub.s32 %s17, 1
      // Predicated region
      $region13: #{encoder_forward.26} parent=11 // pred_check
        %p314 = pneg %p168
      $region14: #{encoder_forward.26} parent=11 // pred_check_branch
        %316 = sbr.rel (%p314) target = $region16
      $region15: #{encoder_forward.26} parent=11 // pred_region
        _
      $region16: #{encoder_forward.26} parent=11 // pred_fallthru
        _
      // Predicated region
      $region17: #{encoder_forward.26} parent=11 // pred_check
        %p317 = pneg %p189
      $region18: #{encoder_forward.26} parent=11 // pred_check_branch
        %319 = sbr.rel (%p317) target = $region20
      $region19: #{encoder_forward.26} parent=11 // pred_region
        _
      $region20: #{encoder_forward.26} parent=11 // pred_fallthru
        _
      // Predicated region
      $region21: #{encoder_forward.26} parent=11 // pred_check
        %p320 = pneg %p210
      $region22: #{encoder_forward.26} parent=11 // pred_check_branch
        %322 = sbr.rel (%p320) target = $region24
      $region23: #{encoder_forward.26} parent=11 // pred_region
        _
      $region24: #{encoder_forward.26} parent=11 // pred_fallthru
        _
      // Predicated region
      $region25: #{encoder_forward.26} parent=11 // pred_check
        %p323 = pneg %p231
      $region26: #{encoder_forward.26} parent=11 // pred_check_branch
        %325 = sbr.rel (%p323) target = $region28
      $region27: #{encoder_forward.26} parent=11 // pred_region
        _
      $region28: #{encoder_forward.26} parent=11 // pred_fallthru
        _
      // Predicated region
      $region29: #{encoder_forward.26} parent=11 // pred_check
        %p326 = pneg %p252
      $region30: #{encoder_forward.26} parent=11 // pred_check_branch
        %328 = sbr.rel (%p326) target = $region32
      $region31: #{encoder_forward.26} parent=11 // pred_region
        _
      $region32: #{encoder_forward.26} parent=11 // pred_fallthru
        _
      // Predicated region
      $region33: #{encoder_forward.26} parent=11 // pred_check
        %p329 = pneg %p273
      $region34: #{encoder_forward.26} parent=11 // pred_check_branch
        %331 = sbr.rel (%p329) target = $region36
      $region35: #{encoder_forward.26} parent=11 // pred_region
        _
      $region36: #{encoder_forward.26} parent=11 // pred_fallthru
        _
    $region12: #{encoder_forward.26} parent=5 // pred_fallthru
      _
    %p332 = scmp.lt.s32.totalorder %s17, 3
    // Predicated region
    $region37: #{encoder_forward.26} parent=5 // pred_check
      %p333 = pneg %p332
    $region38: #{encoder_forward.26} parent=5 // pred_check_branch
      %335 = sbr.rel (%p333) target = $region40
    $region39: #{encoder_forward.26} parent=5 // pred_region
      // Predicated region
      $region41: #{encoder_forward.26} parent=39 // pred_check
        %p336 = pneg %p37
      $region42: #{encoder_forward.26} parent=39 // pred_check_branch
        %338 = sbr.rel (%p336) target = $region44
      $region43: #{encoder_forward.26} parent=39 // pred_region
        %p339 = scmp.lt.s32.totalorder %s17, 2
        %s340 = scalar_select %p339, %s17, 2
        %s341 = smul.addr %s340, 8
        %s342 = scalar_lea.vmem %s0, %s341
      $region44: #{encoder_forward.26} parent=39 // pred_fallthru
        _
      // Predicated region
      $region45: #{encoder_forward.26} parent=39 // pred_check
        %p343 = pneg %p63
      $region46: #{encoder_forward.26} parent=39 // pred_check_branch
        %345 = sbr.rel (%p343) target = $region48
      $region47: #{encoder_forward.26} parent=39 // pred_region
        %p346 = scmp.lt.s32.totalorder %s17, 2
        %s347 = scalar_select %p346, %s17, 2
        %s348 = smul.addr %s347, 8
        %s349 = scalar_lea.vmem %s1, %s348
      $region48: #{encoder_forward.26} parent=39 // pred_fallthru
        _
      // Predicated region
      $region49: #{encoder_forward.26} parent=39 // pred_check
        %p350 = pneg %p89
      $region50: #{encoder_forward.26} parent=39 // pred_check_branch
        %352 = sbr.rel (%p350) target = $region52
      $region51: #{encoder_forward.26} parent=39 // pred_region
        %p353 = scmp.lt.s32.totalorder %s17, 2
        %s354 = scalar_select %p353, %s17, 2
        %s355 = smul.addr %s354, 8
        %s356 = scalar_lea.vmem %s2, %s355
      $region52: #{encoder_forward.26} parent=39 // pred_fallthru
        _
      // Predicated region
      $region53: #{encoder_forward.26} parent=39 // pred_check
        %p357 = pneg %p115
      $region54: #{encoder_forward.26} parent=39 // pred_check_branch
        %359 = sbr.rel (%p357) target = $region56
      $region55: #{encoder_forward.26} parent=39 // pred_region
        %p360 = scmp.lt.s32.totalorder %s17, 2
        %s361 = scalar_select %p360, %s17, 2
        %s362 = smul.addr %s361, 8
        %s363 = scalar_lea.vmem %s3, %s362
      $region56: #{encoder_forward.26} parent=39 // pred_fallthru
        _
      // Predicated region
      $region57: #{encoder_forward.26} parent=39 // pred_check
        %p364 = pneg %p141
      $region58: #{encoder_forward.26} parent=39 // pred_check_branch
        %366 = sbr.rel (%p364) target = $region60
      $region59: #{encoder_forward.26} parent=39 // pred_region
        %p367 = scmp.lt.s32.totalorder %s17, 2
        %s368 = scalar_select %p367, %s17, 2
        %s369 = smul.addr %s368, 8
        %s370 = scalar_lea.vmem %s4, %s369
      $region60: #{encoder_forward.26} parent=39 // pred_fallthru
        _
    $region40: #{encoder_forward.26} parent=5 // pred_fallthru
      _
    %p371 = scmp.le.s32.totalorder 1, %s17
    %p372 = scmp.lt.s32.totalorder %s17, 4
    %p373 = pnand %p371, %p372
    %p374 = pneg %p373
    // Predicated region
    $region61: #{encoder_forward.26} parent=5 // pred_check
      _
    $region62: #{encoder_forward.26} parent=5 // pred_check_branch
      %376 = sbr.rel (%p373) target = $region64
    $region63: #{encoder_forward.26} parent=5 // pred_region
      %s377 = ssub.s32 %s17, 1
      %p378 = scmp.lt.s32.totalorder %s22, 2
      %s379 = scalar_select %p378, %s22, 2
      %s380 = smul.addr %s379, 8
      %s381 = scalar_lea.vmem %s0, %s380
      %p382 = pneg %p43
      %p383 = pneg %p40
      %p384 = scmp.lt.s32.totalorder %s22, 2
      %s385 = scalar_select %p384, %s22, 2
      %s386 = smul.addr %s385, 8
      %s387 = scalar_lea.vmem %s1, %s386
      %p388 = pneg %p69
      %p389 = pneg %p66
      %p390 = scmp.lt.s32.totalorder %s22, 2
      %s391 = scalar_select %p390, %s22, 2
      %s392 = smul.addr %s391, 8
      %s393 = scalar_lea.vmem %s2, %s392
      %p394 = pneg %p95
      %p395 = pneg %p92
      %p396 = scmp.lt.s32.totalorder %s22, 2
      %s397 = scalar_select %p396, %s22, 2
      %s398 = smul.addr %s397, 8
      %s399 = scalar_lea.vmem %s3, %s398
      %p400 = pneg %p121
      %p401 = pneg %p118
      %p402 = scmp.lt.s32.totalorder %s22, 2
      %s403 = scalar_select %p402, %s22, 2
      %s404 = smul.addr %s403, 8
      %s405 = scalar_lea.vmem %s4, %s404
      %p406 = pneg %p147
      %p407 = pneg %p144
      %p408 = pneg %p168
      %p409 = pneg %p165
      %p410 = pneg %p189
      %p411 = pneg %p186
      %p412 = pneg %p210
      %p413 = pneg %p207
      %p414 = pneg %p231
      %p415 = pneg %p228
      %p416 = pneg %p252
      %p417 = pneg %p249
      %p418 = pneg %p273
      %p419 = pneg %p270
      %p420 = pneg %p299
      %p421 = pneg %p296
      %p422 = scmp.lt.s32.totalorder %s22, 2
      %s423 = scalar_select %p422, %s22, 2
      %s424 = smul.addr %s423, 8
      %s425 = scalar_lea.vmem %s11, %s424
      %p426 = scmp.lt.s32.totalorder %s22, 2
      %s427 = scalar_select %p426, %s22, 2
      %s428 = smul.addr %s427, 8
      %s429 = scalar_lea.vmem %s0, %s428
      %p430 = scmp.lt.s32.totalorder %s22, 2
      %s431 = scalar_select %p430, %s22, 2
      %s432 = smul.addr %s431, 8
      %s433 = scalar_lea.vmem %s1, %s432
      %p434 = scmp.lt.s32.totalorder %s22, 2
      %s435 = scalar_select %p434, %s22, 2
      %s436 = smul.addr %s435, 8
      %s437 = scalar_lea.vmem %s2, %s436
      %p438 = scmp.lt.s32.totalorder %s22, 2
      %s439 = scalar_select %p438, %s22, 2
      %s440 = smul.addr %s439, 8
      %s441 = scalar_lea.vmem %s3, %s440
      %p442 = scmp.lt.s32.totalorder %s22, 2
      %s443 = scalar_select %p442, %s22, 2
      %s444 = smul.addr %s443, 8
      %s445 = scalar_lea.vmem %s4, %s444
      %p446 = scmp.lt.s32.totalorder %s22, 2
      %s447 = scalar_select %p446, %s22, 2
      %s448 = smul.addr %s447, 8
      %s449 = scalar_lea.vmem %s11, %s448
      %v450 = vld [vmem:[%s429] sm:$0xff]
      %452 = vrot.lane.b32.xlu0 %v450, 32
      %v453 = vpop.permute.xlu0 %452
      %455 = vrot.lane.b32.xlu0 %v450, 64
      %v456 = vpop.permute.xlu0 %455
      %458 = vrot.lane.b32.xlu0 %v450, 96
      %v459 = vpop.permute.xlu0 %458
      %vm461 = vcmask 261120
      %v462 = vsel %vm461, %v450, %v453
      %vm463 = vcmask 523264
      %v464 = vsel %vm463, %v462, %v456
      %vm465 = vcmask 785408
      %v466 = vsel %vm465, %v464, %v459
      %v467 = vld [vmem:[%s441] sm:$0xff]
      %v468 = vld [vmem:[%s433] sm:$0xff]
      %v469 = vsub.f32 %v466, %v468
      %v470 = vadd.f32 %v469, %v467
      %v471 = vld [vmem:[%s5] sm:$0xff]
      %v472 = vld [vmem:[%s5 + $0x8] sm:$0xff]
      %v473 = vld [vmem:[%s5 + $0x10] sm:$0xff]
      %v474 = vld [vmem:[%s5 + $0x18] sm:$0xff]
      %v475 = vld [vmem:[%s5 + $0x20] sm:$0xff]
      %v476 = vld [vmem:[%s5 + $0x28] sm:$0xff]
      %v477 = vld [vmem:[%s5 + $0x30] sm:$0xff]
      %v478 = vld [vmem:[%s5 + $0x38] sm:$0xff]
      %v479 = vld [vmem:[%s5 + $0x40] sm:$0xff]
      %v480 = vld [vmem:[%s5 + $0x48] sm:$0xff]
      %v481 = vld [vmem:[%s5 + $0x50] sm:$0xff]
      %v482 = vld [vmem:[%s5 + $0x58] sm:$0xff]
      %v483 = vld [vmem:[%s5 + $0x60] sm:$0xff]
      %v484 = vld [vmem:[%s5 + $0x68] sm:$0xff]
      %v485 = vld [vmem:[%s5 + $0x70] sm:$0xff]
      %v486 = vld [vmem:[%s5 + $0x78] sm:$0xff]
      %v487 = vld [vmem:[%s6] sm:$0x1]
      %v489 = vperm.slane %v487, 0
      %491 = vmatpush.msra.mxu0 %v486
      %492 = vmatpush.msra.mxu0 %v485
      %493 = vmatpush.msra.mxu0 %v484
      %494 = vmatpush.msra.mxu0 %v483
      %495 = vmatpush.msra.mxu0 %v482
      %496 = vmatpush.msra.mxu0 %v481
      %497 = vmatpush.msra.mxu0 %v480
      %498 = vmatpush.msra.mxu0 %v479
      %499 = vmatpush.msra.mxu0 %v478
      %500 = vmatpush.msra.mxu0 %v477
      %501 = vmatpush.msra.mxu0 %v476
      %502 = vmatpush.msra.mxu0 %v475
      %503 = vmatpush.msra.mxu0 %v474
      %504 = vmatpush.msra.mxu0 %v473
      %505 = vmatpush.msra.mxu0 %v472
      %506 = vmatpush.msra.mxu0 %v471
      %507 = vmatmul.f32.gmra.mxu0 %v470
      %v508 = vpop.f32.mrf.mxu0
      %v509 = vadd.f32 %v489, %v508
      %510 = vdwg.mxu0
      %v511 = vmax.f32 %v509, 0.0
      %v512 = vld [vmem:[%s7] sm:$0xff]
      %v513 = vld [vmem:[%s7 + $0x8] sm:$0xff]
      %v514 = vld [vmem:[%s7 + $0x10] sm:$0xff]
      %v515 = vld [vmem:[%s7 + $0x18] sm:$0xff]
      %v516 = vld [vmem:[%s7 + $0x20] sm:$0xff]
      %v517 = vld [vmem:[%s7 + $0x28] sm:$0xff]
      %v518 = vld [vmem:[%s7 + $0x30] sm:$0xff]
      %v519 = vld [vmem:[%s7 + $0x38] sm:$0xff]
      %v520 = vld [vmem:[%s7 + $0x40] sm:$0xff]
      %v521 = vld [vmem:[%s7 + $0x48] sm:$0xff]
      %v522 = vld [vmem:[%s7 + $0x50] sm:$0xff]
      %v523 = vld [vmem:[%s7 + $0x58] sm:$0xff]
      %v524 = vld [vmem:[%s7 + $0x60] sm:$0xff]
      %v525 = vld [vmem:[%s7 + $0x68] sm:$0xff]
      %v526 = vld [vmem:[%s7 + $0x70] sm:$0xff]
      %v527 = vld [vmem:[%s7 + $0x78] sm:$0xff]
      %v528 = vld [vmem:[%s8] sm:$0x1]
      %v530 = vperm.slane %v528, 0
      %532 = vmatpush.msra.mxu0 %v527
      %533 = vmatpush.msra.mxu0 %v526
      %534 = vmatpush.msra.mxu0 %v525
      %535 = vmatpush.msra.mxu0 %v524
      %536 = vmatpush.msra.mxu0 %v523
      %537 = vmatpush.msra.mxu0 %v522
      %538 = vmatpush.msra.mxu0 %v521
      %539 = vmatpush.msra.mxu0 %v520
      %540 = vmatpush.msra.mxu0 %v519
      %541 = vmatpush.msra.mxu0 %v518
      %542 = vmatpush.msra.mxu0 %v517
      %543 = vmatpush.msra.mxu0 %v516
      %544 = vmatpush.msra.mxu0 %v515
      %545 = vmatpush.msra.mxu0 %v514
      %546 = vmatpush.msra.mxu0 %v513
      %547 = vmatpush.msra.mxu0 %v512
      %548 = vmatmul.f32.gmra.mxu0 %v511
      %v549 = vpop.f32.mrf.mxu0
      %v550 = vadd.f32 %v530, %v549
      %551 = vdwg.mxu0
      %v552 = vmul.f32 %v550, 0.17677669
      %554 = vrot.lane.b32.xlu0 %v552, 96
      %v555 = vpop.permute.xlu0 %554
      %v557 = vmax.f32 %v552, %v555
      %558 = vrot.lane.b32.xlu0 %v552, 64
      %v559 = vpop.permute.xlu0 %558
      %v561 = vmax.f32 %v557, %v559
      %562 = vrot.lane.b32.xlu0 %v552, 32
      %v563 = vpop.permute.xlu0 %562
      %v565 = vmax.f32 %v561, %v563
      %567 = vrot.lane.b32.xlu0 %v565, 32
      %v568 = vpop.permute.xlu0 %567
      %570 = vrot.lane.b32.xlu0 %v565, 64
      %v571 = vpop.permute.xlu0 %570
      %573 = vrot.lane.b32.xlu0 %v565, 96
      %v574 = vpop.permute.xlu0 %573
      %v576 = vsel %vm461, %v565, %v568
      %v577 = vsel %vm463, %v576, %v571
      %v578 = vsel %vm465, %v577, %v574
      %v579 = vsub.f32 %v552, %v578
      %v580 = vmul.f32 %v579, 1.442695
      %v581 = vpow.pop %v580
      %583 = vrot.lane.b32.xlu0 %v581, 96
      %v584 = vpop.permute.xlu0 %583
      %v586 = vadd.f32 %v581, %v584
      %587 = vrot.lane.b32.xlu0 %v581, 64
      %v588 = vpop.permute.xlu0 %587
      %v590 = vadd.f32 %v586, %v588
      %591 = vrot.lane.b32.xlu0 %v581, 32
      %v592 = vpop.permute.xlu0 %591
      %v594 = vadd.f32 %v590, %v592
      %v595 = vrcp.pop %v594
      %597 = vrot.lane.b32.xlu0 %v595, 32
      %v598 = vpop.permute.xlu0 %597
      %600 = vrot.lane.b32.xlu0 %v595, 64
      %v601 = vpop.permute.xlu0 %600
      %603 = vrot.lane.b32.xlu0 %v595, 96
      %v604 = vpop.permute.xlu0 %603
      %v606 = vsel %vm461, %v595, %v598
      %v607 = vsel %vm463, %v606, %v601
      %v608 = vsel %vm465, %v607, %v604
      %v609 = vmul.f32 %v581, %v608
      %v610 = vld [vmem:[%s437] sm:$0xff]
      %v611 = vadd.f32 %v610, %v467
      %v612 = vmul.f32 %v609, %v611
      %614 = vrot.lane.b32.xlu0 %v612, 96
      %v615 = vpop.permute.xlu0 %614
      %v617 = vadd.f32 %v612, %v615
      %618 = vrot.lane.b32.xlu0 %v612, 64
      %v619 = vpop.permute.xlu0 %618
      %v621 = vadd.f32 %v617, %v619
      %622 = vrot.lane.b32.xlu0 %v612, 32
      %v623 = vpop.permute.xlu0 %622
      %v625 = vadd.f32 %v621, %v623
      %v626 = vld [vmem:[%s9] sm:$0xff]
      %v627 = vld [vmem:[%s9 + $0x8] sm:$0xff]
      %v628 = vld [vmem:[%s9 + $0x10] sm:$0xff]
      %v629 = vld [vmem:[%s9 + $0x18] sm:$0xff]
      %v630 = vld [vmem:[%s10] sm:$0x1]
      %v632 = vperm.slane %v630, 0
      %v635 = vsel %vm461, %v625, 0
      %637 = vmatpush.msra.mxu0 0.0
      %638 = vmatpush.msra.mxu0 0.0
      %639 = vmatpush.msra.mxu0 0.0
      %640 = vmatpush.msra.mxu0 0.0
      %641 = vmatpush.msra.mxu0 0.0
      %642 = vmatpush.msra.mxu0 0.0
      %643 = vmatpush.msra.mxu0 0.0
      %644 = vmatpush.msra.mxu0 0.0
      %645 = vmatpush.msra.mxu0 0.0
      %646 = vmatpush.msra.mxu0 0.0
      %647 = vmatpush.msra.mxu0 0.0
      %648 = vmatpush.msra.mxu0 0.0
      %649 = vmatpush.msra.mxu0 %v629
      %650 = vmatpush.msra.mxu0 %v628
      %651 = vmatpush.msra.mxu0 %v627
      %652 = vmatpush.msra.mxu0 %v626
      %653 = vmatmul.f32.gmra.mxu0 %v635
      %v654 = vpop.f32.mrf.mxu0
      %v655 = vadd.f32 %v632, %v654
      %656 = vdwg.mxu0
      %v657 = vld [vmem:[%s445] sm:$0xff]
      %v658 = vadd.f32 %v655, %v657
      %659 = vst.msk [vmem:[%s449] sm:$0xff] %vm463, %v658
      %p660 = scmp.lt.s32.totalorder %s22, 2
      %s661 = scalar_select %p660, %s22, 2
      %s662 = smul.addr %s661, 8
      %s663 = scalar_lea.vmem %s11, %s662
      // Predicated region
      $region65: #{encoder_forward.26} parent=63 // pred_check
        %p664 = pneg %p296
      $region66: #{encoder_forward.26} parent=63 // pred_check_branch
        %666 = sbr.rel (%p664) target = $region68
      $region67: #{encoder_forward.26} parent=63 // pred_region
        _
      $region68: #{encoder_forward.26} parent=63 // pred_fallthru
        _
    $region64: #{encoder_forward.26} parent=5 // pred_fallthru
      _
    %p667 = scmp.le.s32.totalorder 2, %s17
    // Predicated region
    $region69: #{encoder_forward.26} parent=5 // pred_check
      %p668 = pneg %p667
    $region70: #{encoder_forward.26} parent=5 // pred_check_branch
      %670 = sbr.rel (%p668) target = $region72
    $region71: #{encoder_forward.26} parent=5 // pred_region
      %s671 = ssub.s32 %s17, 2
      // Predicated region
      $region73: #{encoder_forward.26} parent=71 // pred_check
        %p672 = pneg %p302
      $region74: #{encoder_forward.26} parent=71 // pred_check_branch
        %674 = sbr.rel (%p672) target = $region76
      $region75: #{encoder_forward.26} parent=71 // pred_region
        %p675 = scmp.lt.s32.totalorder %s23, 2
        %s676 = scalar_select %p675, %s23, 2
        %s677 = smul.addr %s676, 8
        %s678 = scalar_lea.vmem %s11, %s677
      $region76: #{encoder_forward.26} parent=71 // pred_fallthru
        _
    $region72: #{encoder_forward.26} parent=5 // pred_fallthru
      _
  $region6: #{encoder_forward.26} parent=0 // loop_footer
    %s21 = sadd.s32 1, %s17
  $region7: #{encoder_forward.26} parent=0 // loop_footer_branch
    %16 = sbr.rel target = $region3
  $region8: #{encoder_forward.26} parent=0 // loop_exit
    _

// kernel: neg.8
$region0: #{neg.8}
  #allocation0 [shape = 's32[1]{0}', space=sflag, size = 0x4, scoped, tag = 'scoped memory for neg.8']
  %s0 = inlined_call_operand.vmem [shape: f32[2,4,12], index: 0, kind: input, shape index: {}]
  %s1 = inlined_call_operand.vmem [shape: f32[2,4,12], index: 1, kind: output, shape index: {}]
  %v2 = vld [vmem:[%s0] sm:$0xf]
  %3 = xla_tuple %v2
  %4 = xla_tuple %3
  %v5 = vxor.u32 %v2, 2147483648
  %6 = xla_tuple %v5
  %7 = vst [vmem:[%s1] sm:$0xf] %v5
  %s8 = scalar_lea.vmem %s0, 4
  %v9 = vld [vmem:[%s8] sm:$0xf]
  %10 = xla_tuple %v9
  %11 = xla_tuple %10
  %v12 = vxor.u32 %v9, 2147483648
  %13 = xla_tuple %v12
  %s14 = scalar_lea.vmem %s1, 4
  %15 = vst [vmem:[%s14] sm:$0xf] %v12

// kernel: neg.9
$region0: #{neg.9}
  #allocation0 [shape = 's32[1]{0}', space=sflag, size = 0x4, scoped, tag = 'scoped memory for neg.9']
  %s0 = inlined_call_operand.vmem [shape: f32[2,4,4], index: 0, kind: input, shape index: {}]
  %s1 = inlined_call_operand.vmem [shape: f32[2,4,4], index: 1, kind: output, shape index: {}]
  %v2 = vld [vmem:[%s0] sm:$0xf]
  %3 = xla_tuple %v2
  %4 = xla_tuple %3
  %v5 = vxor.u32 %v2, 2147483648
  %6 = xla_tuple %v5
  %7 = vst [vmem:[%s1] sm:$0xf] %v5
  %s8 = scalar_lea.vmem %s0, 4
  %v9 = vld [vmem:[%s8] sm:$0xf]
  %10 = xla_tuple %v9
  %11 = xla_tuple %10
  %v12 = vxor.u32 %v9, 2147483648
  %13 = xla_tuple %v12
  %s14 = scalar_lea.vmem %s1, 4
  %15 = vst [vmem:[%s14] sm:$0xf] %v12

// kernel: encoder_forward.27
$region0: #{encoder_forward.27}
  #allocation0 [shape = 'u32[]', space=smem, size = 0x4, offset = 0x4, fixed_abs, tag = 'smem constant byte address 0x4 - core index']
  #allocation1 [shape = 'u32[72,128]{1,0:T(1,128)}', space=vmem, size = 0x9000, scoped, tag = 'internal scratch']
  %s0 = inlined_call_operand.vmem [shape: f32[32,67], index: 0, kind: input, shape index: {}]
  %s1 = inlined_call_operand.vmem [shape: f32[1,67], index: 1, kind: input, shape index: {}]
  %s2 = inlined_call_operand.vmem [shape: f32[1,67], index: 2, kind: input, shape index: {}]
  %s3 = inlined_call_operand.vmem [shape: f32[67,128], index: 3, kind: input, shape index: {}]
  %s4 = inlined_call_operand.vmem [shape: f32[1,128], index: 4, kind: input, shape index: {}]
  %s5 = inlined_call_operand.vmem [shape: f32[32,128], index: 5, kind: output, shape index: {0}]
  %s6 = inlined_call_operand.vmem [shape: f32[2,128], index: 6, kind: output, shape index: {1}]
  %7 = xla_tuple %s5, %s6
  %s8 = sld [smem:[#allocation0]]
  $region65: #{encoder_forward.27} parent=0
    _
  %s10 = ssub.s32 1, %s8
  %s11 = scalar_select 0, %s10, %s8
  loop: start=0, step=1, limit=4
  $region2: #{encoder_forward.27} parent=0 // loop_pre_header
    _
  $region3: #{encoder_forward.27} parent=0 // loop_header
    %s13 = sphi 0, %s17
    %p14 = scmp.ge.s32.totalorder %s13, 4
    %s23 = sphi 0, %s25
    %s26 = sphi 0, %s23
    %s27 = sphi 0, %s26
    %s43 = sphi 0, %s27
    %s47 = sphi 0, %s47
    %s49 = sphi 0, %s47
    %s50 = sphi 0, %s49
    %s64 = sphi 0, %s50
    %s68 = sphi 0, %s68
    %s70 = sphi 0, %s68
    %s71 = sphi 0, %s70
    %s85 = sphi 0, %s71
    %s89 = sphi 0, %s89
    %s91 = sphi 0, %s89
    %s92 = sphi 0, %s91
    %s106 = sphi 0, %s92
    %s110 = sphi 0, %s110
    %s112 = sphi 0, %s110
    %s113 = sphi 0, %s112
    %s127 = sphi 0, %s113
    %s133 = sphi 0, %s135
    %s136 = sphi 0, %s133
    %s137 = sphi 0, %s136
    %s153 = sphi 0, %s137
    %s157 = sphi 0, %s157
    %s159 = sphi 0, %s157
    %s160 = sphi 0, %s159
    %s174 = sphi 0, %s160
  $region4: #{encoder_forward.27} parent=0 // loop_header_branch
    %16 = sbr.rel (%p14) target = $region8
  $region5: #{encoder_forward.27} parent=0 // loop_body
    %s18 = ssub.s32 %s13, 1
    %s19 = ssub.s32 %s13, 2
    %s20 = sadd.s32 %s13, 1
    %s21 = ssub.s32 %s13, %s20
    %p22 = scmp.eq.s32.totalorder %s21, 0
    %s24 = sadd.s32 %s23, 1
    %s25 = scalar_select %p22, %s23, %s24
    %p28 = pneg %p22
    %p29 = scmp.eq.s32.totalorder %s13, 1
    %p30 = por %p28, %p29
    %p31 = scmp.ne.s32.totalorder %s23, %s26
    %p32 = scmp.eq.s32.totalorder %s13, 0
    %p33 = por %p31, %p32
    %p34 = scmp.ne.s32.totalorder %s23, %s26
    %p35 = scmp.eq.s32.totalorder %s18, 1
    %p36 = por %p34, %p35
    %p37 = scmp.ne.s32.totalorder %s26, %s27
    %p38 = scmp.eq.s32.totalorder %s18, 0
    %p39 = por %p37, %p38
    %p40 = scmp.ne.s32.totalorder %s26, %s27
    %p41 = scmp.eq.s32.totalorder %s19, 1
    %p42 = por %p40, %p41
    %p44 = scmp.ne.s32.totalorder %s27, %s43
    %p45 = scmp.eq.s32.totalorder %s19, 0
    %p46 = por %p44, %p45
    %s48 = sadd.s32 %s47, 1
    %p51 = scmp.eq.s32.totalorder %s13, 1
    %p52 = scmp.ne.s32.totalorder %s47, %s49
    %p53 = scmp.eq.s32.totalorder %s13, 0
    %p54 = por %p52, %p53
    %p55 = scmp.ne.s32.totalorder %s47, %s49
    %p56 = scmp.eq.s32.totalorder %s18, 1
    %p57 = por %p55, %p56
    %p58 = scmp.ne.s32.totalorder %s49, %s50
    %p59 = scmp.eq.s32.totalorder %s18, 0
    %p60 = por %p58, %p59
    %p61 = scmp.ne.s32.totalorder %s49, %s50
    %p62 = scmp.eq.s32.totalorder %s19, 1
    %p63 = por %p61, %p62
    %p65 = scmp.ne.s32.totalorder %s50, %s64
    %p66 = scmp.eq.s32.totalorder %s19, 0
    %p67 = por %p65, %p66
    %s69 = sadd.s32 %s68, 1
    %p72 = scmp.eq.s32.totalorder %s13, 1
    %p73 = scmp.ne.s32.totalorder %s68, %s70
    %p74 = scmp.eq.s32.totalorder %s13, 0
    %p75 = por %p73, %p74
    %p76 = scmp.ne.s32.totalorder %s68, %s70
    %p77 = scmp.eq.s32.totalorder %s18, 1
    %p78 = por %p76, %p77
    %p79 = scmp.ne.s32.totalorder %s70, %s71
    %p80 = scmp.eq.s32.totalorder %s18, 0
    %p81 = por %p79, %p80
    %p82 = scmp.ne.s32.totalorder %s70, %s71
    %p83 = scmp.eq.s32.totalorder %s19, 1
    %p84 = por %p82, %p83
    %p86 = scmp.ne.s32.totalorder %s71, %s85
    %p87 = scmp.eq.s32.totalorder %s19, 0
    %p88 = por %p86, %p87
    %s90 = sadd.s32 %s89, 1
    %p93 = scmp.eq.s32.totalorder %s13, 1
    %p94 = scmp.ne.s32.totalorder %s89, %s91
    %p95 = scmp.eq.s32.totalorder %s13, 0
    %p96 = por %p94, %p95
    %p97 = scmp.ne.s32.totalorder %s89, %s91
    %p98 = scmp.eq.s32.totalorder %s18, 1
    %p99 = por %p97, %p98
    %p100 = scmp.ne.s32.totalorder %s91, %s92
    %p101 = scmp.eq.s32.totalorder %s18, 0
    %p102 = por %p100, %p101
    %p103 = scmp.ne.s32.totalorder %s91, %s92
    %p104 = scmp.eq.s32.totalorder %s19, 1
    %p105 = por %p103, %p104
    %p107 = scmp.ne.s32.totalorder %s92, %s106
    %p108 = scmp.eq.s32.totalorder %s19, 0
    %p109 = por %p107, %p108
    %s111 = sadd.s32 %s110, 1
    %p114 = scmp.eq.s32.totalorder %s13, 1
    %p115 = scmp.ne.s32.totalorder %s110, %s112
    %p116 = scmp.eq.s32.totalorder %s13, 0
    %p117 = por %p115, %p116
    %p118 = scmp.ne.s32.totalorder %s110, %s112
    %p119 = scmp.eq.s32.totalorder %s18, 1
    %p120 = por %p118, %p119
    %p121 = scmp.ne.s32.totalorder %s112, %s113
    %p122 = scmp.eq.s32.totalorder %s18, 0
    %p123 = por %p121, %p122
    %p124 = scmp.ne.s32.totalorder %s112, %s113
    %p125 = scmp.eq.s32.totalorder %s19, 1
    %p126 = por %p124, %p125
    %p128 = scmp.ne.s32.totalorder %s113, %s127
    %p129 = scmp.eq.s32.totalorder %s19, 0
    %p130 = por %p128, %p129
    %s131 = ssub.s32 %s13, %s20
    %p132 = scmp.eq.s32.totalorder %s131, 0
    %s134 = sadd.s32 %s133, 1
    %s135 = scalar_select %p132, %s133, %s134
    %p138 = pneg %p132
    %p139 = scmp.eq.s32.totalorder %s13, 1
    %p140 = por %p138, %p139
    %p141 = scmp.ne.s32.totalorder %s133, %s136
    %p142 = scmp.eq.s32.totalorder %s13, 0
    %p143 = por %p141, %p142
    %p144 = scmp.ne.s32.totalorder %s133, %s136
    %p145 = scmp.eq.s32.totalorder %s18, 1
    %p146 = por %p144, %p145
    %p147 = scmp.ne.s32.totalorder %s136, %s137
    %p148 = scmp.eq.s32.totalorder %s18, 0
    %p149 = por %p147, %p148
    %p150 = scmp.ne.s32.totalorder %s136, %s137
    %p151 = scmp.eq.s32.totalorder %s19, 1
    %p152 = por %p150, %p151
    %p154 = scmp.ne.s32.totalorder %s137, %s153
    %p155 = scmp.eq.s32.totalorder %s19, 0
    %p156 = por %p154, %p155
    %s158 = sadd.s32 %s157, 1
    %p161 = scmp.eq.s32.totalorder %s13, 1
    %p162 = scmp.ne.s32.totalorder %s157, %s159
    %p163 = scmp.eq.s32.totalorder %s13, 0
    %p164 = por %p162, %p163
    %p165 = scmp.ne.s32.totalorder %s157, %s159
    %p166 = scmp.eq.s32.totalorder %s18, 1
    %p167 = por %p165, %p166
    %p168 = scmp.ne.s32.totalorder %s159, %s160
    %p169 = scmp.eq.s32.totalorder %s18, 0
    %p170 = por %p168, %p169
    %p171 = scmp.ne.s32.totalorder %s159, %s160
    %p172 = scmp.eq.s32.totalorder %s19, 1
    %p173 = por %p171, %p172
    %p175 = scmp.ne.s32.totalorder %s160, %s174
    %p176 = scmp.eq.s32.totalorder %s19, 0
    %p177 = por %p175, %p176
    %p178 = scmp.le.s32.totalorder 1, %s13
    %p179 = scmp.lt.s32.totalorder %s13, 3
    %p180 = pnand %p178, %p179
    %p181 = pneg %p180
    // Predicated region
    $region9: #{encoder_forward.27} parent=5 // pred_check
      _
    $region10: #{encoder_forward.27} parent=5 // pred_check_branch
      %183 = sbr.rel (%p180) target = $region12
    $region11: #{encoder_forward.27} parent=5 // pred_region
      %s184 = ssub.s32 %s13, 1
      // Predicated region
      $region13: #{encoder_forward.27} parent=11 // pred_check
        %p185 = pneg %p60
      $region14: #{encoder_forward.27} parent=11 // pred_check_branch
        %187 = sbr.rel (%p185) target = $region16
      $region15: #{encoder_forward.27} parent=11 // pred_region
        _
      $region16: #{encoder_forward.27} parent=11 // pred_fallthru
        _
      // Predicated region
      $region17: #{encoder_forward.27} parent=11 // pred_check
        %p188 = pneg %p81
      $region18: #{encoder_forward.27} parent=11 // pred_check_branch
        %190 = sbr.rel (%p188) target = $region20
      $region19: #{encoder_forward.27} parent=11 // pred_region
        _
      $region20: #{encoder_forward.27} parent=11 // pred_fallthru
        _
      // Predicated region
      $region21: #{encoder_forward.27} parent=11 // pred_check
        %p191 = pneg %p102
      $region22: #{encoder_forward.27} parent=11 // pred_check_branch
        %193 = sbr.rel (%p191) target = $region24
      $region23: #{encoder_forward.27} parent=11 // pred_region
        _
      $region24: #{encoder_forward.27} parent=11 // pred_fallthru
        _
      // Predicated region
      $region25: #{encoder_forward.27} parent=11 // pred_check
        %p194 = pneg %p123
      $region26: #{encoder_forward.27} parent=11 // pred_check_branch
        %196 = sbr.rel (%p194) target = $region28
      $region27: #{encoder_forward.27} parent=11 // pred_region
        _
      $region28: #{encoder_forward.27} parent=11 // pred_fallthru
        _
    $region12: #{encoder_forward.27} parent=5 // pred_fallthru
      _
    %p197 = scmp.lt.s32.totalorder %s13, 2
    // Predicated region
    $region29: #{encoder_forward.27} parent=5 // pred_check
      %p198 = pneg %p197
    $region30: #{encoder_forward.27} parent=5 // pred_check_branch
      %200 = sbr.rel (%p198) target = $region32
    $region31: #{encoder_forward.27} parent=5 // pred_region
      // Predicated region
      $region33: #{encoder_forward.27} parent=31 // pred_check
        %p201 = pneg %p33
      $region34: #{encoder_forward.27} parent=31 // pred_check_branch
        %203 = sbr.rel (%p201) target = $region36
      $region35: #{encoder_forward.27} parent=31 // pred_region
        %s204 = smul.u32 2, %s13
        %p205 = scmp.lt.s32.totalorder %s204, 3
        %s206 = scalar_select %p205, %s204, 3
        %s207 = smul.addr %s206, 8
        %s208 = scalar_lea.vmem %s0, %s207
        %s209 = smul.u32 2, %s13
      $region36: #{encoder_forward.27} parent=31 // pred_fallthru
        _
    $region32: #{encoder_forward.27} parent=5 // pred_fallthru
      _
    %p210 = scmp.le.s32.totalorder 1, %s13
    %p211 = scmp.lt.s32.totalorder %s13, 3
    %p212 = pnand %p210, %p211
    %p213 = pneg %p212
    // Predicated region
    $region37: #{encoder_forward.27} parent=5 // pred_check
      _
    $region38: #{encoder_forward.27} parent=5 // pred_check_branch
      %215 = sbr.rel (%p212) target = $region40
    $region39: #{encoder_forward.27} parent=5 // pred_region
      %s216 = ssub.s32 %s13, 1
      %s217 = smul.u32 2, %s18
      %p218 = scmp.lt.s32.totalorder %s217, 3
      %s219 = scalar_select %p218, %s217, 3
      %s220 = smul.addr %s219, 8
      %s221 = scalar_lea.vmem %s0, %s220
      %p222 = pneg %p39
      %p223 = pneg %p36
      %p224 = pneg %p60
      %p225 = pneg %p57
      %p226 = pneg %p81
      %p227 = pneg %p78
      %p228 = pneg %p102
      %p229 = pneg %p99
      %p230 = pneg %p123
      %p231 = pneg %p120
      %p232 = pneg %p149
      %p233 = pneg %p146
      %s234 = smul.u32 2, %s18
      %p235 = scmp.lt.s32.totalorder %s234, 3
      %s236 = scalar_select %p235, %s234, 3
      %s237 = smul.addr %s236, 8
      %s238 = scalar_lea.vmem %s5, %s237
      %p239 = pneg %p170
      %p240 = pneg %p167
      %s241 = smul.u32 2, %s18
      %p242 = scmp.lt.s32.totalorder %s241, 3
      %s243 = scalar_select %p242, %s241, 3
      %s244 = smul.addr %s243, 8
      %s245 = scalar_lea.vmem %s0, %s244
      %s246 = smul.u32 2, %s18
      %s247 = smul.u32 2, %s18
      %p248 = scmp.lt.s32.totalorder %s247, 3
      %s249 = scalar_select %p248, %s247, 3
      %s250 = smul.addr %s249, 8
      %s251 = scalar_lea.vmem %s5, %s250
      %s252 = smul.u32 2, %s18
      %v253 = vld [vmem:[%s245] sm:$0xff]
      %v254 = vld [vmem:[%s245 + $0x8] sm:$0xff]
      %v255 = vld [vmem:[%s3] sm:$0xff]
      %v256 = vld [vmem:[%s3 + $0x8] sm:$0xff]
      %v257 = vld [vmem:[%s3 + $0x10] sm:$0xff]
      %v258 = vld [vmem:[%s3 + $0x18] sm:$0xff]
      %v259 = vld [vmem:[%s3 + $0x20] sm:$0xff]
      %v260 = vld [vmem:[%s3 + $0x28] sm:$0xff]
      %v261 = vld [vmem:[%s3 + $0x30] sm:$0xff]
      %v262 = vld [vmem:[%s3 + $0x38] sm:$0xff]
      %v263 = vld [vmem:[%s3 + $0x40] sm:$0x7]
      %v264 = vld [vmem:[%s4] sm:$0x1]
      %v266 = vperm.slane %v264, 0
      %vm268 = vcmask 547840
      %v270 = vsel %vm268, %v253, 0
      %v273 = vsel %vm268, %v254, 0
      %vm275 = vcmask 1042432
      %v277 = vsel %vm275, %v263, 0
      %279 = vmatpush.msra.mxu0 0.0
      %280 = vmatpush.msra.mxu0 0.0
      %281 = vmatpush.msra.mxu0 0.0
      %282 = vmatpush.msra.mxu0 0.0
      %283 = vmatpush.msra.mxu0 0.0
      %284 = vmatpush.msra.mxu0 0.0
      %285 = vmatpush.msra.mxu0 0.0
      %286 = vmatpush.msra.mxu0 %v277
      %287 = vmatpush.msra.mxu0 %v262
      %288 = vmatpush.msra.mxu0 %v261
      %289 = vmatpush.msra.mxu0 %v260
      %290 = vmatpush.msra.mxu0 %v259
      %291 = vmatpush.msra.mxu0 %v258
      %292 = vmatpush.msra.mxu0 %v257
      %293 = vmatpush.msra.mxu0 %v256
      %294 = vmatpush.msra.mxu0 %v255
      %295 = vmatmul.f32.gmra.mxu0 %v270
      %v296 = vpop.f32.mrf.mxu0
      %v297 = vadd.f32 %v266, %v296
      %298 = vmatmul.f32.gmra.mxu0 %v273
      %v299 = vpop.f32.mrf.mxu0
      %v300 = vadd.f32 %v266, %v299
      %301 = vdwg.mxu0
      %302 = vst [vmem:[%s251] sm:$0xff] %v297
      %303 = vst [vmem:[%s251 + $0x8] sm:$0xff] %v300
      %p304 = scmp.eq.s32.totalorder %s18, 0
      // Predicated region
      $region41: #{encoder_forward.27} parent=39 // pred_check
        %p305 = pneg %p304
      $region42: #{encoder_forward.27} parent=39 // pred_check_branch
        %307 = sbr.rel (%p305) target = $region44
      $region43: #{encoder_forward.27} parent=39 // pred_region
        %308 = vst [vmem:[%s6] sm:$0x3] 0.0
      $region44: #{encoder_forward.27} parent=39 // pred_fallthru
        _
      %v309 = vld [vmem:[%s6] sm:$0x3]
      %v310 = vadd.f32 %v297, %v300
      %v311 = vrot.slane %v310, 4
      %v312 = vadd.f32 %v310, %v311
      %v313 = vrot.slane %v312, 2
      %v314 = vadd.f32 %v312, %v313
      %v315 = vrot.slane %v314, 1
      %v316 = vadd.f32 %v314, %v315
      %v317 = vmul.f32 %v297, %v297
      %v318 = vmul.f32 %v300, %v300
      %v319 = vadd.f32 %v317, %v318
      %v320 = vrot.slane %v319, 4
      %v321 = vadd.f32 %v319, %v320
      %v322 = vrot.slane %v321, 2
      %v323 = vadd.f32 %v321, %v322
      %v324 = vrot.slane %v323, 1
      %v325 = vadd.f32 %v323, %v324
      %vm326 = vcmask 1040384
      %v327 = vsel %vm326, %v316, %v325
      %v328 = vadd.f32 %v309, %v327
      %329 = vst [vmem:[%s6] sm:$0x3] %v328
      %s330 = smul.u32 2, %s18
      %p331 = scmp.lt.s32.totalorder %s330, 3
      %s332 = scalar_select %p331, %s330, 3
      %s333 = smul.addr %s332, 8
      %s334 = scalar_lea.vmem %s5, %s333
      // Predicated region
      $region45: #{encoder_forward.27} parent=39 // pred_check
        %p335 = pneg %p146
      $region46: #{encoder_forward.27} parent=39 // pred_check_branch
        %337 = sbr.rel (%p335) target = $region48
      $region47: #{encoder_forward.27} parent=39 // pred_region
        %s338 = smul.u32 2, %s18
      $region48: #{encoder_forward.27} parent=39 // pred_fallthru
        _
      // Predicated region
      $region49: #{encoder_forward.27} parent=39 // pred_check
        %p339 = pneg %p167
      $region50: #{encoder_forward.27} parent=39 // pred_check_branch
        %341 = sbr.rel (%p339) target = $region52
      $region51: #{encoder_forward.27} parent=39 // pred_region
        _
      $region52: #{encoder_forward.27} parent=39 // pred_fallthru
        _
      // Predicated region
      $region53: #{encoder_forward.27} parent=39 // pred_check
        %p342 = pneg %p167
      $region54: #{encoder_forward.27} parent=39 // pred_check_branch
        %344 = sbr.rel (%p342) target = $region56
      $region55: #{encoder_forward.27} parent=39 // pred_region
        _
      $region56: #{encoder_forward.27} parent=39 // pred_fallthru
        _
    $region40: #{encoder_forward.27} parent=5 // pred_fallthru
      _
    %p345 = scmp.le.s32.totalorder 2, %s13
    // Predicated region
    $region57: #{encoder_forward.27} parent=5 // pred_check
      %p346 = pneg %p345
    $region58: #{encoder_forward.27} parent=5 // pred_check_branch
      %348 = sbr.rel (%p346) target = $region60
    $region59: #{encoder_forward.27} parent=5 // pred_region
      %s349 = ssub.s32 %s13, 2
      // Predicated region
      $region61: #{encoder_forward.27} parent=59 // pred_check
        %p350 = pneg %p152
      $region62: #{encoder_forward.27} parent=59 // pred_check_branch
        %352 = sbr.rel (%p350) target = $region64
      $region63: #{encoder_forward.27} parent=59 // pred_region
        %s353 = smul.u32 2, %s19
        %p354 = scmp.lt.s32.totalorder %s353, 3
        %s355 = scalar_select %p354, %s353, 3
        %s356 = smul.addr %s355, 8
        %s357 = scalar_lea.vmem %s5, %s356
      $region64: #{encoder_forward.27} parent=59 // pred_fallthru
        _
    $region60: #{encoder_forward.27} parent=5 // pred_fallthru
      _
  $region6: #{encoder_forward.27} parent=0 // loop_footer
    %s17 = sadd.s32 1, %s13
  $region7: #{encoder_forward.27} parent=0 // loop_footer_branch
    %12 = sbr.rel target = $region3
  $region8: #{encoder_forward.27} parent=0 // loop_exit
    _

// kernel: encoder_forward.28
$region0: #{encoder_forward.28}
  #allocation0 [shape = 'u32[]', space=smem, size = 0x4, offset = 0x4, fixed_abs, tag = 'smem constant byte address 0x4 - core index']
  #allocation1 [shape = 'u32[72,128]{1,0:T(1,128)}', space=vmem, size = 0x9000, scoped, tag = 'internal scratch']
  %s0 = inlined_call_operand.vmem [shape: f32[32,128], index: 0, kind: input, shape index: {}]
  %s1 = inlined_call_operand.vmem [shape: f32[1,128], index: 1, kind: input, shape index: {}]
  %s2 = inlined_call_operand.vmem [shape: f32[1,128], index: 2, kind: input, shape index: {}]
  %s3 = inlined_call_operand.vmem [shape: f32[128,128], index: 3, kind: input, shape index: {}]
  %s4 = inlined_call_operand.vmem [shape: f32[1,128], index: 4, kind: input, shape index: {}]
  %s5 = inlined_call_operand.vmem [shape: f32[32,128], index: 5, kind: output, shape index: {0}]
  %s6 = inlined_call_operand.vmem [shape: f32[2,128], index: 6, kind: output, shape index: {1}]
  %7 = xla_tuple %s5, %s6
  %s8 = sld [smem:[#allocation0]]
  $region65: #{encoder_forward.28} parent=0
    _
  %s10 = ssub.s32 1, %s8
  %s11 = scalar_select 0, %s10, %s8
  loop: start=0, step=1, limit=4
  $region2: #{encoder_forward.28} parent=0 // loop_pre_header
    _
  $region3: #{encoder_forward.28} parent=0 // loop_header
    %s13 = sphi 0, %s17
    %p14 = scmp.ge.s32.totalorder %s13, 4
    %s23 = sphi 0, %s25
    %s26 = sphi 0, %s23
    %s27 = sphi 0, %s26
    %s43 = sphi 0, %s27
    %s47 = sphi 0, %s47
    %s49 = sphi 0, %s47
    %s50 = sphi 0, %s49
    %s64 = sphi 0, %s50
    %s68 = sphi 0, %s68
    %s70 = sphi 0, %s68
    %s71 = sphi 0, %s70
    %s85 = sphi 0, %s71
    %s89 = sphi 0, %s89
    %s91 = sphi 0, %s89
    %s92 = sphi 0, %s91
    %s106 = sphi 0, %s92
    %s110 = sphi 0, %s110
    %s112 = sphi 0, %s110
    %s113 = sphi 0, %s112
    %s127 = sphi 0, %s113
    %s133 = sphi 0, %s135
    %s136 = sphi 0, %s133
    %s137 = sphi 0, %s136
    %s153 = sphi 0, %s137
    %s157 = sphi 0, %s157
    %s159 = sphi 0, %s157
    %s160 = sphi 0, %s159
    %s174 = sphi 0, %s160
  $region4: #{encoder_forward.28} parent=0 // loop_header_branch
    %16 = sbr.rel (%p14) target = $region8
  $region5: #{encoder_forward.28} parent=0 // loop_body
    %s18 = ssub.s32 %s13, 1
    %s19 = ssub.s32 %s13, 2
    %s20 = sadd.s32 %s13, 1
    %s21 = ssub.s32 %s13, %s20
    %p22 = scmp.eq.s32.totalorder %s21, 0
    %s24 = sadd.s32 %s23, 1
    %s25 = scalar_select %p22, %s23, %s24
    %p28 = pneg %p22
    %p29 = scmp.eq.s32.totalorder %s13, 1
    %p30 = por %p28, %p29
    %p31 = scmp.ne.s32.totalorder %s23, %s26
    %p32 = scmp.eq.s32.totalorder %s13, 0
    %p33 = por %p31, %p32
    %p34 = scmp.ne.s32.totalorder %s23, %s26
    %p35 = scmp.eq.s32.totalorder %s18, 1
    %p36 = por %p34, %p35
    %p37 = scmp.ne.s32.totalorder %s26, %s27
    %p38 = scmp.eq.s32.totalorder %s18, 0
    %p39 = por %p37, %p38
    %p40 = scmp.ne.s32.totalorder %s26, %s27
    %p41 = scmp.eq.s32.totalorder %s19, 1
    %p42 = por %p40, %p41
    %p44 = scmp.ne.s32.totalorder %s27, %s43
    %p45 = scmp.eq.s32.totalorder %s19, 0
    %p46 = por %p44, %p45
    %s48 = sadd.s32 %s47, 1
    %p51 = scmp.eq.s32.totalorder %s13, 1
    %p52 = scmp.ne.s32.totalorder %s47, %s49
    %p53 = scmp.eq.s32.totalorder %s13, 0
    %p54 = por %p52, %p53
    %p55 = scmp.ne.s32.totalorder %s47, %s49
    %p56 = scmp.eq.s32.totalorder %s18, 1
    %p57 = por %p55, %p56
    %p58 = scmp.ne.s32.totalorder %s49, %s50
    %p59 = scmp.eq.s32.totalorder %s18, 0
    %p60 = por %p58, %p59
    %p61 = scmp.ne.s32.totalorder %s49, %s50
    %p62 = scmp.eq.s32.totalorder %s19, 1
    %p63 = por %p61, %p62
    %p65 = scmp.ne.s32.totalorder %s50, %s64
    %p66 = scmp.eq.s32.totalorder %s19, 0
    %p67 = por %p65, %p66
    %s69 = sadd.s32 %s68, 1
    %p72 = scmp.eq.s32.totalorder %s13, 1
    %p73 = scmp.ne.s32.totalorder %s68, %s70
    %p74 = scmp.eq.s32.totalorder %s13, 0
    %p75 = por %p73, %p74
    %p76 = scmp.ne.s32.totalorder %s68, %s70
    %p77 = scmp.eq.s32.totalorder %s18, 1
    %p78 = por %p76, %p77
    %p79 = scmp.ne.s32.totalorder %s70, %s71
    %p80 = scmp.eq.s32.totalorder %s18, 0
    %p81 = por %p79, %p80
    %p82 = scmp.ne.s32.totalorder %s70, %s71
    %p83 = scmp.eq.s32.totalorder %s19, 1
    %p84 = por %p82, %p83
    %p86 = scmp.ne.s32.totalorder %s71, %s85
    %p87 = scmp.eq.s32.totalorder %s19, 0
    %p88 = por %p86, %p87
    %s90 = sadd.s32 %s89, 1
    %p93 = scmp.eq.s32.totalorder %s13, 1
    %p94 = scmp.ne.s32.totalorder %s89, %s91
    %p95 = scmp.eq.s32.totalorder %s13, 0
    %p96 = por %p94, %p95
    %p97 = scmp.ne.s32.totalorder %s89, %s91
    %p98 = scmp.eq.s32.totalorder %s18, 1
    %p99 = por %p97, %p98
    %p100 = scmp.ne.s32.totalorder %s91, %s92
    %p101 = scmp.eq.s32.totalorder %s18, 0
    %p102 = por %p100, %p101
    %p103 = scmp.ne.s32.totalorder %s91, %s92
    %p104 = scmp.eq.s32.totalorder %s19, 1
    %p105 = por %p103, %p104
    %p107 = scmp.ne.s32.totalorder %s92, %s106
    %p108 = scmp.eq.s32.totalorder %s19, 0
    %p109 = por %p107, %p108
    %s111 = sadd.s32 %s110, 1
    %p114 = scmp.eq.s32.totalorder %s13, 1
    %p115 = scmp.ne.s32.totalorder %s110, %s112
    %p116 = scmp.eq.s32.totalorder %s13, 0
    %p117 = por %p115, %p116
    %p118 = scmp.ne.s32.totalorder %s110, %s112
    %p119 = scmp.eq.s32.totalorder %s18, 1
    %p120 = por %p118, %p119
    %p121 = scmp.ne.s32.totalorder %s112, %s113
    %p122 = scmp.eq.s32.totalorder %s18, 0
    %p123 = por %p121, %p122
    %p124 = scmp.ne.s32.totalorder %s112, %s113
    %p125 = scmp.eq.s32.totalorder %s19, 1
    %p126 = por %p124, %p125
    %p128 = scmp.ne.s32.totalorder %s113, %s127
    %p129 = scmp.eq.s32.totalorder %s19, 0
    %p130 = por %p128, %p129
    %s131 = ssub.s32 %s13, %s20
    %p132 = scmp.eq.s32.totalorder %s131, 0
    %s134 = sadd.s32 %s133, 1
    %s135 = scalar_select %p132, %s133, %s134
    %p138 = pneg %p132
    %p139 = scmp.eq.s32.totalorder %s13, 1
    %p140 = por %p138, %p139
    %p141 = scmp.ne.s32.totalorder %s133, %s136
    %p142 = scmp.eq.s32.totalorder %s13, 0
    %p143 = por %p141, %p142
    %p144 = scmp.ne.s32.totalorder %s133, %s136
    %p145 = scmp.eq.s32.totalorder %s18, 1
    %p146 = por %p144, %p145
    %p147 = scmp.ne.s32.totalorder %s136, %s137
    %p148 = scmp.eq.s32.totalorder %s18, 0
    %p149 = por %p147, %p148
    %p150 = scmp.ne.s32.totalorder %s136, %s137
    %p151 = scmp.eq.s32.totalorder %s19, 1
    %p152 = por %p150, %p151
    %p154 = scmp.ne.s32.totalorder %s137, %s153
    %p155 = scmp.eq.s32.totalorder %s19, 0
    %p156 = por %p154, %p155
    %s158 = sadd.s32 %s157, 1
    %p161 = scmp.eq.s32.totalorder %s13, 1
    %p162 = scmp.ne.s32.totalorder %s157, %s159
    %p163 = scmp.eq.s32.totalorder %s13, 0
    %p164 = por %p162, %p163
    %p165 = scmp.ne.s32.totalorder %s157, %s159
    %p166 = scmp.eq.s32.totalorder %s18, 1
    %p167 = por %p165, %p166
    %p168 = scmp.ne.s32.totalorder %s159, %s160
    %p169 = scmp.eq.s32.totalorder %s18, 0
    %p170 = por %p168, %p169
    %p171 = scmp.ne.s32.totalorder %s159, %s160
    %p172 = scmp.eq.s32.totalorder %s19, 1
    %p173 = por %p171, %p172
    %p175 = scmp.ne.s32.totalorder %s160, %s174
    %p176 = scmp.eq.s32.totalorder %s19, 0
    %p177 = por %p175, %p176
    %p178 = scmp.le.s32.totalorder 1, %s13
    %p179 = scmp.lt.s32.totalorder %s13, 3
    %p180 = pnand %p178, %p179
    %p181 = pneg %p180
    // Predicated region
    $region9: #{encoder_forward.28} parent=5 // pred_check
      _
    $region10: #{encoder_forward.28} parent=5 // pred_check_branch
      %183 = sbr.rel (%p180) target = $region12
    $region11: #{encoder_forward.28} parent=5 // pred_region
      %s184 = ssub.s32 %s13, 1
      // Predicated region
      $region13: #{encoder_forward.28} parent=11 // pred_check
        %p185 = pneg %p60
      $region14: #{encoder_forward.28} parent=11 // pred_check_branch
        %187 = sbr.rel (%p185) target = $region16
      $region15: #{encoder_forward.28} parent=11 // pred_region
        _
      $region16: #{encoder_forward.28} parent=11 // pred_fallthru
        _
      // Predicated region
      $region17: #{encoder_forward.28} parent=11 // pred_check
        %p188 = pneg %p81
      $region18: #{encoder_forward.28} parent=11 // pred_check_branch
        %190 = sbr.rel (%p188) target = $region20
      $region19: #{encoder_forward.28} parent=11 // pred_region
        _
      $region20: #{encoder_forward.28} parent=11 // pred_fallthru
        _
      // Predicated region
      $region21: #{encoder_forward.28} parent=11 // pred_check
        %p191 = pneg %p102
      $region22: #{encoder_forward.28} parent=11 // pred_check_branch
        %193 = sbr.rel (%p191) target = $region24
      $region23: #{encoder_forward.28} parent=11 // pred_region
        _
      $region24: #{encoder_forward.28} parent=11 // pred_fallthru
        _
      // Predicated region
      $region25: #{encoder_forward.28} parent=11 // pred_check
        %p194 = pneg %p123
      $region26: #{encoder_forward.28} parent=11 // pred_check_branch
        %196 = sbr.rel (%p194) target = $region28
      $region27: #{encoder_forward.28} parent=11 // pred_region
        _
      $region28: #{encoder_forward.28} parent=11 // pred_fallthru
        _
    $region12: #{encoder_forward.28} parent=5 // pred_fallthru
      _
    %p197 = scmp.lt.s32.totalorder %s13, 2
    // Predicated region
    $region29: #{encoder_forward.28} parent=5 // pred_check
      %p198 = pneg %p197
    $region30: #{encoder_forward.28} parent=5 // pred_check_branch
      %200 = sbr.rel (%p198) target = $region32
    $region31: #{encoder_forward.28} parent=5 // pred_region
      // Predicated region
      $region33: #{encoder_forward.28} parent=31 // pred_check
        %p201 = pneg %p33
      $region34: #{encoder_forward.28} parent=31 // pred_check_branch
        %203 = sbr.rel (%p201) target = $region36
      $region35: #{encoder_forward.28} parent=31 // pred_region
        %s204 = smul.u32 2, %s13
        %p205 = scmp.lt.s32.totalorder %s204, 3
        %s206 = scalar_select %p205, %s204, 3
        %s207 = smul.addr %s206, 8
        %s208 = scalar_lea.vmem %s0, %s207
        %s209 = smul.u32 2, %s13
      $region36: #{encoder_forward.28} parent=31 // pred_fallthru
        _
    $region32: #{encoder_forward.28} parent=5 // pred_fallthru
      _
    %p210 = scmp.le.s32.totalorder 1, %s13
    %p211 = scmp.lt.s32.totalorder %s13, 3
    %p212 = pnand %p210, %p211
    %p213 = pneg %p212
    // Predicated region
    $region37: #{encoder_forward.28} parent=5 // pred_check
      _
    $region38: #{encoder_forward.28} parent=5 // pred_check_branch
      %215 = sbr.rel (%p212) target = $region40
    $region39: #{encoder_forward.28} parent=5 // pred_region
      %s216 = ssub.s32 %s13, 1
      %s217 = smul.u32 2, %s18
      %p218 = scmp.lt.s32.totalorder %s217, 3
      %s219 = scalar_select %p218, %s217, 3
      %s220 = smul.addr %s219, 8
      %s221 = scalar_lea.vmem %s0, %s220
      %p222 = pneg %p39
      %p223 = pneg %p36
      %p224 = pneg %p60
      %p225 = pneg %p57
      %p226 = pneg %p81
      %p227 = pneg %p78
      %p228 = pneg %p102
      %p229 = pneg %p99
      %p230 = pneg %p123
      %p231 = pneg %p120
      %p232 = pneg %p149
      %p233 = pneg %p146
      %s234 = smul.u32 2, %s18
      %p235 = scmp.lt.s32.totalorder %s234, 3
      %s236 = scalar_select %p235, %s234, 3
      %s237 = smul.addr %s236, 8
      %s238 = scalar_lea.vmem %s5, %s237
      %p239 = pneg %p170
      %p240 = pneg %p167
      %s241 = smul.u32 2, %s18
      %p242 = scmp.lt.s32.totalorder %s241, 3
      %s243 = scalar_select %p242, %s241, 3
      %s244 = smul.addr %s243, 8
      %s245 = scalar_lea.vmem %s0, %s244
      %s246 = smul.u32 2, %s18
      %s247 = smul.u32 2, %s18
      %p248 = scmp.lt.s32.totalorder %s247, 3
      %s249 = scalar_select %p248, %s247, 3
      %s250 = smul.addr %s249, 8
      %s251 = scalar_lea.vmem %s5, %s250
      %s252 = smul.u32 2, %s18
      %v253 = vld [vmem:[%s245] sm:$0xff]
      %v254 = vld [vmem:[%s245 + $0x8] sm:$0xff]
      %v255 = vld [vmem:[%s1] sm:$0x1]
      %v257 = vperm.slane %v255, 0
      %v259 = vmul.f32 %v253, %v257
      %v260 = vmul.f32 %v254, %v257
      %v261 = vld [vmem:[%s2] sm:$0x1]
      %v263 = vperm.slane %v261, 0
      %v265 = vadd.f32 %v259, %v263
      %v266 = vadd.f32 %v260, %v263
      %v267 = vmax.f32 %v265, 0.0
      %v268 = vmax.f32 %v266, 0.0
      %v269 = vld [vmem:[%s3] sm:$0xff]
      %v270 = vld [vmem:[%s3 + $0x8] sm:$0xff]
      %v271 = vld [vmem:[%s3 + $0x10] sm:$0xff]
      %v272 = vld [vmem:[%s3 + $0x18] sm:$0xff]
      %v273 = vld [vmem:[%s3 + $0x20] sm:$0xff]
      %v274 = vld [vmem:[%s3 + $0x28] sm:$0xff]
      %v275 = vld [vmem:[%s3 + $0x30] sm:$0xff]
      %v276 = vld [vmem:[%s3 + $0x38] sm:$0xff]
      %v277 = vld [vmem:[%s3 + $0x40] sm:$0xff]
      %v278 = vld [vmem:[%s3 + $0x48] sm:$0xff]
      %v279 = vld [vmem:[%s3 + $0x50] sm:$0xff]
      %v280 = vld [vmem:[%s3 + $0x58] sm:$0xff]
      %v281 = vld [vmem:[%s3 + $0x60] sm:$0xff]
      %v282 = vld [vmem:[%s3 + $0x68] sm:$0xff]
      %v283 = vld [vmem:[%s3 + $0x70] sm:$0xff]
      %v284 = vld [vmem:[%s3 + $0x78] sm:$0xff]
      %v285 = vld [vmem:[%s4] sm:$0x1]
      %v287 = vperm.slane %v285, 0
      %289 = vmatpush.msra.mxu0 %v284
      %290 = vmatpush.msra.mxu0 %v283
      %291 = vmatpush.msra.mxu0 %v282
      %292 = vmatpush.msra.mxu0 %v281
      %293 = vmatpush.msra.mxu0 %v280
      %294 = vmatpush.msra.mxu0 %v279
      %295 = vmatpush.msra.mxu0 %v278
      %296 = vmatpush.msra.mxu0 %v277
      %297 = vmatpush.msra.mxu0 %v276
      %298 = vmatpush.msra.mxu0 %v275
      %299 = vmatpush.msra.mxu0 %v274
      %300 = vmatpush.msra.mxu0 %v273
      %301 = vmatpush.msra.mxu0 %v272
      %302 = vmatpush.msra.mxu0 %v271
      %303 = vmatpush.msra.mxu0 %v270
      %304 = vmatpush.msra.mxu0 %v269
      %305 = vmatmul.f32.gmra.mxu0 %v267
      %v306 = vpop.f32.mrf.mxu0
      %v307 = vadd.f32 %v287, %v306
      %308 = vmatmul.f32.gmra.mxu0 %v268
      %v309 = vpop.f32.mrf.mxu0
      %v310 = vadd.f32 %v287, %v309
      %311 = vdwg.mxu0
      %312 = vst [vmem:[%s251] sm:$0xff] %v307
      %313 = vst [vmem:[%s251 + $0x8] sm:$0xff] %v310
      %p314 = scmp.eq.s32.totalorder %s18, 0
      // Predicated region
      $region41: #{encoder_forward.28} parent=39 // pred_check
        %p315 = pneg %p314
      $region42: #{encoder_forward.28} parent=39 // pred_check_branch
        %317 = sbr.rel (%p315) target = $region44
      $region43: #{encoder_forward.28} parent=39 // pred_region
        %318 = vst [vmem:[%s6] sm:$0x3] 0.0
      $region44: #{encoder_forward.28} parent=39 // pred_fallthru
        _
      %v319 = vld [vmem:[%s6] sm:$0x3]
      %v320 = vadd.f32 %v307, %v310
      %v321 = vrot.slane %v320, 4
      %v322 = vadd.f32 %v320, %v321
      %v323 = vrot.slane %v322, 2
      %v324 = vadd.f32 %v322, %v323
      %v325 = vrot.slane %v324, 1
      %v326 = vadd.f32 %v324, %v325
      %v327 = vmul.f32 %v307, %v307
      %v328 = vmul.f32 %v310, %v310
      %v329 = vadd.f32 %v327, %v328
      %v330 = vrot.slane %v329, 4
      %v331 = vadd.f32 %v329, %v330
      %v332 = vrot.slane %v331, 2
      %v333 = vadd.f32 %v331, %v332
      %v334 = vrot.slane %v333, 1
      %v335 = vadd.f32 %v333, %v334
      %vm336 = vcmask 1040384
      %v337 = vsel %vm336, %v326, %v335
      %v338 = vadd.f32 %v319, %v337
      %339 = vst [vmem:[%s6] sm:$0x3] %v338
      %s340 = smul.u32 2, %s18
      %p341 = scmp.lt.s32.totalorder %s340, 3
      %s342 = scalar_select %p341, %s340, 3
      %s343 = smul.addr %s342, 8
      %s344 = scalar_lea.vmem %s5, %s343
      // Predicated region
      $region45: #{encoder_forward.28} parent=39 // pred_check
        %p345 = pneg %p146
      $region46: #{encoder_forward.28} parent=39 // pred_check_branch
        %347 = sbr.rel (%p345) target = $region48
      $region47: #{encoder_forward.28} parent=39 // pred_region
        %s348 = smul.u32 2, %s18
      $region48: #{encoder_forward.28} parent=39 // pred_fallthru
        _
      // Predicated region
      $region49: #{encoder_forward.28} parent=39 // pred_check
        %p349 = pneg %p167
      $region50: #{encoder_forward.28} parent=39 // pred_check_branch
        %351 = sbr.rel (%p349) target = $region52
      $region51: #{encoder_forward.28} parent=39 // pred_region
        _
      $region52: #{encoder_forward.28} parent=39 // pred_fallthru
        _
      // Predicated region
      $region53: #{encoder_forward.28} parent=39 // pred_check
        %p352 = pneg %p167
      $region54: #{encoder_forward.28} parent=39 // pred_check_branch
        %354 = sbr.rel (%p352) target = $region56
      $region55: #{encoder_forward.28} parent=39 // pred_region
        _
      $region56: #{encoder_forward.28} parent=39 // pred_fallthru
        _
    $region40: #{encoder_forward.28} parent=5 // pred_fallthru
      _
    %p355 = scmp.le.s32.totalorder 2, %s13
    // Predicated region
    $region57: #{encoder_forward.28} parent=5 // pred_check
      %p356 = pneg %p355
    $region58: #{encoder_forward.28} parent=5 // pred_check_branch
      %358 = sbr.rel (%p356) target = $region60
    $region59: #{encoder_forward.28} parent=5 // pred_region
      %s359 = ssub.s32 %s13, 2
      // Predicated region
      $region61: #{encoder_forward.28} parent=59 // pred_check
        %p360 = pneg %p152
      $region62: #{encoder_forward.28} parent=59 // pred_check_branch
        %362 = sbr.rel (%p360) target = $region64
      $region63: #{encoder_forward.28} parent=59 // pred_region
        %s363 = smul.u32 2, %s19
        %p364 = scmp.lt.s32.totalorder %s363, 3
        %s365 = scalar_select %p364, %s363, 3
        %s366 = smul.addr %s365, 8
        %s367 = scalar_lea.vmem %s5, %s366
      $region64: #{encoder_forward.28} parent=59 // pred_fallthru
        _
    $region60: #{encoder_forward.28} parent=5 // pred_fallthru
      _
  $region6: #{encoder_forward.28} parent=0 // loop_footer
    %s17 = sadd.s32 1, %s13
  $region7: #{encoder_forward.28} parent=0 // loop_footer_branch
    %12 = sbr.rel target = $region3
  $region8: #{encoder_forward.28} parent=0 // loop_exit
    _

// kernel: encoder_forward.29
$region0: #{encoder_forward.29}
  #allocation0 [shape = 'u32[]', space=smem, size = 0x4, offset = 0x4, fixed_abs, tag = 'smem constant byte address 0x4 - core index']
  #allocation1 [shape = 'u32[72,128]{1,0:T(1,128)}', space=vmem, size = 0x9000, scoped, tag = 'internal scratch']
  %s0 = inlined_call_operand.vmem [shape: f32[8,512], index: 0, kind: input, shape index: {}]
  %s1 = inlined_call_operand.vmem [shape: f32[1,128], index: 1, kind: input, shape index: {}]
  %s2 = inlined_call_operand.vmem [shape: f32[1,128], index: 2, kind: input, shape index: {}]
  %s3 = inlined_call_operand.vmem [shape: f32[8,128], index: 3, kind: output, shape index: {}]
  %s4 = sld [smem:[#allocation0]]
  $region22: #{encoder_forward.29} parent=0
    _
  %s6 = ssub.s32 1, %s4
  %s7 = scalar_select 0, %s6, %s4
  // Predicated region
  $region2: #{encoder_forward.29} parent=0 // pred_check
    _
  $region3: #{encoder_forward.29} parent=0 // pred_check_branch
    %9 = sbr.rel (0) target = $region5
  $region4: #{encoder_forward.29} parent=0 // pred_region
    _
  $region5: #{encoder_forward.29} parent=0 // pred_fallthru
    _
  // Predicated region
  $region6: #{encoder_forward.29} parent=0 // pred_check
    _
  $region7: #{encoder_forward.29} parent=0 // pred_check_branch
    %11 = sbr.rel (0) target = $region9
  $region8: #{encoder_forward.29} parent=0 // pred_region
    _
  $region9: #{encoder_forward.29} parent=0 // pred_fallthru
    _
  // Predicated region
  $region10: #{encoder_forward.29} parent=0 // pred_check
    _
  $region11: #{encoder_forward.29} parent=0 // pred_check_branch
    %13 = sbr.rel (0) target = $region13
  $region12: #{encoder_forward.29} parent=0 // pred_region
    _
  $region13: #{encoder_forward.29} parent=0 // pred_fallthru
    _
  %v14 = vld [vmem:[%s0] sm:$0xff]
  %v15 = vld [vmem:[%s0 + $0x8] sm:$0xff]
  %v16 = vld [vmem:[%s0 + $0x10] sm:$0xff]
  %v17 = vld [vmem:[%s0 + $0x18] sm:$0xff]
  %v18 = vld [vmem:[%s1] sm:$0x1]
  %v19 = vld [vmem:[%s2] sm:$0x1]
  %v21 = vperm.slane %v18, 0
  %v23 = vmul.f32 %v14, %v21
  %v25 = vperm.slane %v19, 0
  %v27 = vadd.f32 %v23, %v25
  %v28 = vmax.f32 %v27, 0.0
  %v29 = vmul.f32 %v15, %v21
  %v30 = vadd.f32 %v29, %v25
  %v31 = vmax.f32 %v30, 0.0
  %v32 = vmax.f32 %v28, %v31
  %v33 = vmul.f32 %v16, %v21
  %v34 = vadd.f32 %v33, %v25
  %v35 = vmax.f32 %v34, 0.0
  %v36 = vmax.f32 %v32, %v35
  %v37 = vmul.f32 %v17, %v21
  %v38 = vadd.f32 %v37, %v25
  %v39 = vmax.f32 %v38, 0.0
  %v40 = vmax.f32 %v36, %v39
  %41 = vst [vmem:[%s3] sm:$0xff] %v40
  // Predicated region
  $region14: #{encoder_forward.29} parent=0 // pred_check
    _
  $region15: #{encoder_forward.29} parent=0 // pred_check_branch
    %43 = sbr.rel (0) target = $region17
  $region16: #{encoder_forward.29} parent=0 // pred_region
    _
  $region17: #{encoder_forward.29} parent=0 // pred_fallthru
    _
  // Predicated region
  $region18: #{encoder_forward.29} parent=0 // pred_check
    _
  $region19: #{encoder_forward.29} parent=0 // pred_check_branch
    %45 = sbr.rel (0) target = $region21
  $region20: #{encoder_forward.29} parent=0 // pred_region
    _
  $region21: #{encoder_forward.29} parent=0 // pred_fallthru
    _

// kernel: encoder_forward.30
$region0: #{encoder_forward.30}
  #allocation0 [shape = 'u32[]', space=smem, size = 0x4, offset = 0x4, fixed_abs, tag = 'smem constant byte address 0x4 - core index']
  #allocation1 [shape = 'u32[72,128]{1,0:T(1,128)}', space=vmem, size = 0x9000, scoped, tag = 'internal scratch']
  %s0 = inlined_call_operand.vmem [shape: f32[8,128], index: 0, kind: input, shape index: {}]
  %s1 = inlined_call_operand.vmem [shape: f32[128,32], index: 1, kind: input, shape index: {}]
  %s2 = inlined_call_operand.vmem [shape: f32[1,32], index: 2, kind: input, shape index: {}]
  %s3 = inlined_call_operand.vmem [shape: f32[32,128], index: 3, kind: input, shape index: {}]
  %s4 = inlined_call_operand.vmem [shape: f32[8,128], index: 4, kind: output, shape index: {}]
  %s5 = sld [smem:[#allocation0]]
  $region26: #{encoder_forward.30} parent=0
    _
  %s7 = ssub.s32 1, %s5
  %s8 = scalar_select 0, %s7, %s5
  // Predicated region
  $region2: #{encoder_forward.30} parent=0 // pred_check
    _
  $region3: #{encoder_forward.30} parent=0 // pred_check_branch
    %10 = sbr.rel (0) target = $region5
  $region4: #{encoder_forward.30} parent=0 // pred_region
    _
  $region5: #{encoder_forward.30} parent=0 // pred_fallthru
    _
  // Predicated region
  $region6: #{encoder_forward.30} parent=0 // pred_check
    _
  $region7: #{encoder_forward.30} parent=0 // pred_check_branch
    %12 = sbr.rel (0) target = $region9
  $region8: #{encoder_forward.30} parent=0 // pred_region
    _
  $region9: #{encoder_forward.30} parent=0 // pred_fallthru
    _
  // Predicated region
  $region10: #{encoder_forward.30} parent=0 // pred_check
    _
  $region11: #{encoder_forward.30} parent=0 // pred_check_branch
    %14 = sbr.rel (0) target = $region13
  $region12: #{encoder_forward.30} parent=0 // pred_region
    _
  $region13: #{encoder_forward.30} parent=0 // pred_fallthru
    _
  // Predicated region
  $region14: #{encoder_forward.30} parent=0 // pred_check
    _
  $region15: #{encoder_forward.30} parent=0 // pred_check_branch
    %16 = sbr.rel (0) target = $region17
  $region16: #{encoder_forward.30} parent=0 // pred_region
    _
  $region17: #{encoder_forward.30} parent=0 // pred_fallthru
    _
  %v17 = vld [vmem:[%s0] sm:$0xff]
  %v18 = vld [vmem:[%s1] sm:$0xff]
  %v19 = vld [vmem:[%s1 + $0x8] sm:$0xff]
  %v20 = vld [vmem:[%s1 + $0x10] sm:$0xff]
  %v21 = vld [vmem:[%s1 + $0x18] sm:$0xff]
  %v22 = vld [vmem:[%s1 + $0x20] sm:$0xff]
  %v23 = vld [vmem:[%s1 + $0x28] sm:$0xff]
  %v24 = vld [vmem:[%s1 + $0x30] sm:$0xff]
  %v25 = vld [vmem:[%s1 + $0x38] sm:$0xff]
  %v26 = vld [vmem:[%s1 + $0x40] sm:$0xff]
  %v27 = vld [vmem:[%s1 + $0x48] sm:$0xff]
  %v28 = vld [vmem:[%s1 + $0x50] sm:$0xff]
  %v29 = vld [vmem:[%s1 + $0x58] sm:$0xff]
  %v30 = vld [vmem:[%s1 + $0x60] sm:$0xff]
  %v31 = vld [vmem:[%s1 + $0x68] sm:$0xff]
  %v32 = vld [vmem:[%s1 + $0x70] sm:$0xff]
  %v33 = vld [vmem:[%s1 + $0x78] sm:$0xff]
  %v34 = vld [vmem:[%s2] sm:$0x1]
  %v36 = vperm.slane %v34, 0
  %38 = vmatpush.msra.mxu0 %v33
  %39 = vmatpush.msra.mxu0 %v32
  %40 = vmatpush.msra.mxu0 %v31
  %41 = vmatpush.msra.mxu0 %v30
  %42 = vmatpush.msra.mxu0 %v29
  %43 = vmatpush.msra.mxu0 %v28
  %44 = vmatpush.msra.mxu0 %v27
  %45 = vmatpush.msra.mxu0 %v26
  %46 = vmatpush.msra.mxu0 %v25
  %47 = vmatpush.msra.mxu0 %v24
  %48 = vmatpush.msra.mxu0 %v23
  %49 = vmatpush.msra.mxu0 %v22
  %50 = vmatpush.msra.mxu0 %v21
  %51 = vmatpush.msra.mxu0 %v20
  %52 = vmatpush.msra.mxu0 %v19
  %53 = vmatpush.msra.mxu0 %v18
  %54 = vmatmul.f32.gmra.mxu0 %v17
  %v55 = vpop.f32.mrf.mxu0
  %v56 = vadd.f32 %v36, %v55
  %57 = vdwg.mxu0
  %v58 = vld [vmem:[%s3] sm:$0xff]
  %v59 = vld [vmem:[%s3 + $0x8] sm:$0xff]
  %v60 = vld [vmem:[%s3 + $0x10] sm:$0xff]
  %v61 = vld [vmem:[%s3 + $0x18] sm:$0xff]
  %vm62 = vcmask 261120
  %v64 = vsel %vm62, %v56, 0
  %66 = vmatpush.msra.mxu0 0.0
  %67 = vmatpush.msra.mxu0 0.0
  %68 = vmatpush.msra.mxu0 0.0
  %69 = vmatpush.msra.mxu0 0.0
  %70 = vmatpush.msra.mxu0 0.0
  %71 = vmatpush.msra.mxu0 0.0
  %72 = vmatpush.msra.mxu0 0.0
  %73 = vmatpush.msra.mxu0 0.0
  %74 = vmatpush.msra.mxu0 0.0
  %75 = vmatpush.msra.mxu0 0.0
  %76 = vmatpush.msra.mxu0 0.0
  %77 = vmatpush.msra.mxu0 0.0
  %78 = vmatpush.msra.mxu0 %v61
  %79 = vmatpush.msra.mxu0 %v60
  %80 = vmatpush.msra.mxu0 %v59
  %81 = vmatpush.msra.mxu0 %v58
  %82 = vmatmul.f32.gmra.mxu0 %v64
  %v83 = vpop.f32.mrf.mxu0
  %v84 = vadd.f32 0.0, %v83
  %85 = vdwg.mxu0
  %86 = vst [vmem:[%s4] sm:$0xff] %v84
  // Predicated region
  $region18: #{encoder_forward.30} parent=0 // pred_check
    _
  $region19: #{encoder_forward.30} parent=0 // pred_check_branch
    %88 = sbr.rel (0) target = $region21
  $region20: #{encoder_forward.30} parent=0 // pred_region
    _
  $region21: #{encoder_forward.30} parent=0 // pred_fallthru
    _
  // Predicated region
  $region22: #{encoder_forward.30} parent=0 // pred_check
    _
  $region23: #{encoder_forward.30} parent=0 // pred_check_branch
    %90 = sbr.rel (0) target = $region25
  $region24: #{encoder_forward.30} parent=0 // pred_region
    _
  $region25: #{encoder_forward.30} parent=0 // pred_fallthru
    _

// kernel: encoder_forward.31
$region0: #{encoder_forward.31}
  #allocation0 [shape = 'u32[]', space=smem, size = 0x4, offset = 0x4, fixed_abs, tag = 'smem constant byte address 0x4 - core index']
  #allocation1 [shape = 'u32[72,128]{1,0:T(1,128)}', space=vmem, size = 0x9000, scoped, tag = 'internal scratch']
  %s0 = inlined_call_operand.vmem [shape: f32[32,3], index: 0, kind: input, shape index: {}]
  %s1 = inlined_call_operand.vmem [shape: f32[3,32], index: 1, kind: input, shape index: {}]
  %s2 = inlined_call_operand.vmem [shape: f32[1,32], index: 2, kind: input, shape index: {}]
  %s3 = inlined_call_operand.vmem [shape: f32[32,32], index: 3, kind: input, shape index: {}]
  %s4 = inlined_call_operand.vmem [shape: f32[1,32], index: 4, kind: input, shape index: {}]
  %s5 = inlined_call_operand.vmem [shape: f32[32,32], index: 5, kind: output, shape index: {}]
  %s6 = sld [smem:[#allocation0]]
  $region53: #{encoder_forward.31} parent=0
    _
  %s8 = ssub.s32 1, %s6
  %s9 = scalar_select 0, %s8, %s6
  loop: start=0, step=1, limit=4
  $region2: #{encoder_forward.31} parent=0 // loop_pre_header
    _
  $region3: #{encoder_forward.31} parent=0 // loop_header
    %s11 = sphi 0, %s15
    %p12 = scmp.ge.s32.totalorder %s11, 4
    %s21 = sphi 0, %s23
    %s24 = sphi 0, %s21
    %s25 = sphi 0, %s24
    %s41 = sphi 0, %s25
    %s45 = sphi 0, %s45
    %s47 = sphi 0, %s45
    %s48 = sphi 0, %s47
    %s62 = sphi 0, %s48
    %s66 = sphi 0, %s66
    %s68 = sphi 0, %s66
    %s69 = sphi 0, %s68
    %s83 = sphi 0, %s69
    %s87 = sphi 0, %s87
    %s89 = sphi 0, %s87
    %s90 = sphi 0, %s89
    %s104 = sphi 0, %s90
    %s108 = sphi 0, %s108
    %s110 = sphi 0, %s108
    %s111 = sphi 0, %s110
    %s125 = sphi 0, %s111
    %s131 = sphi 0, %s133
    %s134 = sphi 0, %s131
    %s135 = sphi 0, %s134
    %s151 = sphi 0, %s135
  $region4: #{encoder_forward.31} parent=0 // loop_header_branch
    %14 = sbr.rel (%p12) target = $region8
  $region5: #{encoder_forward.31} parent=0 // loop_body
    %s16 = ssub.s32 %s11, 1
    %s17 = ssub.s32 %s11, 2
    %s18 = sadd.s32 %s11, 1
    %s19 = ssub.s32 %s11, %s18
    %p20 = scmp.eq.s32.totalorder %s19, 0
    %s22 = sadd.s32 %s21, 1
    %s23 = scalar_select %p20, %s21, %s22
    %p26 = pneg %p20
    %p27 = scmp.eq.s32.totalorder %s11, 1
    %p28 = por %p26, %p27
    %p29 = scmp.ne.s32.totalorder %s21, %s24
    %p30 = scmp.eq.s32.totalorder %s11, 0
    %p31 = por %p29, %p30
    %p32 = scmp.ne.s32.totalorder %s21, %s24
    %p33 = scmp.eq.s32.totalorder %s16, 1
    %p34 = por %p32, %p33
    %p35 = scmp.ne.s32.totalorder %s24, %s25
    %p36 = scmp.eq.s32.totalorder %s16, 0
    %p37 = por %p35, %p36
    %p38 = scmp.ne.s32.totalorder %s24, %s25
    %p39 = scmp.eq.s32.totalorder %s17, 1
    %p40 = por %p38, %p39
    %p42 = scmp.ne.s32.totalorder %s25, %s41
    %p43 = scmp.eq.s32.totalorder %s17, 0
    %p44 = por %p42, %p43
    %s46 = sadd.s32 %s45, 1
    %p49 = scmp.eq.s32.totalorder %s11, 1
    %p50 = scmp.ne.s32.totalorder %s45, %s47
    %p51 = scmp.eq.s32.totalorder %s11, 0
    %p52 = por %p50, %p51
    %p53 = scmp.ne.s32.totalorder %s45, %s47
    %p54 = scmp.eq.s32.totalorder %s16, 1
    %p55 = por %p53, %p54
    %p56 = scmp.ne.s32.totalorder %s47, %s48
    %p57 = scmp.eq.s32.totalorder %s16, 0
    %p58 = por %p56, %p57
    %p59 = scmp.ne.s32.totalorder %s47, %s48
    %p60 = scmp.eq.s32.totalorder %s17, 1
    %p61 = por %p59, %p60
    %p63 = scmp.ne.s32.totalorder %s48, %s62
    %p64 = scmp.eq.s32.totalorder %s17, 0
    %p65 = por %p63, %p64
    %s67 = sadd.s32 %s66, 1
    %p70 = scmp.eq.s32.totalorder %s11, 1
    %p71 = scmp.ne.s32.totalorder %s66, %s68
    %p72 = scmp.eq.s32.totalorder %s11, 0
    %p73 = por %p71, %p72
    %p74 = scmp.ne.s32.totalorder %s66, %s68
    %p75 = scmp.eq.s32.totalorder %s16, 1
    %p76 = por %p74, %p75
    %p77 = scmp.ne.s32.totalorder %s68, %s69
    %p78 = scmp.eq.s32.totalorder %s16, 0
    %p79 = por %p77, %p78
    %p80 = scmp.ne.s32.totalorder %s68, %s69
    %p81 = scmp.eq.s32.totalorder %s17, 1
    %p82 = por %p80, %p81
    %p84 = scmp.ne.s32.totalorder %s69, %s83
    %p85 = scmp.eq.s32.totalorder %s17, 0
    %p86 = por %p84, %p85
    %s88 = sadd.s32 %s87, 1
    %p91 = scmp.eq.s32.totalorder %s11, 1
    %p92 = scmp.ne.s32.totalorder %s87, %s89
    %p93 = scmp.eq.s32.totalorder %s11, 0
    %p94 = por %p92, %p93
    %p95 = scmp.ne.s32.totalorder %s87, %s89
    %p96 = scmp.eq.s32.totalorder %s16, 1
    %p97 = por %p95, %p96
    %p98 = scmp.ne.s32.totalorder %s89, %s90
    %p99 = scmp.eq.s32.totalorder %s16, 0
    %p100 = por %p98, %p99
    %p101 = scmp.ne.s32.totalorder %s89, %s90
    %p102 = scmp.eq.s32.totalorder %s17, 1
    %p103 = por %p101, %p102
    %p105 = scmp.ne.s32.totalorder %s90, %s104
    %p106 = scmp.eq.s32.totalorder %s17, 0
    %p107 = por %p105, %p106
    %s109 = sadd.s32 %s108, 1
    %p112 = scmp.eq.s32.totalorder %s11, 1
    %p113 = scmp.ne.s32.totalorder %s108, %s110
    %p114 = scmp.eq.s32.totalorder %s11, 0
    %p115 = por %p113, %p114
    %p116 = scmp.ne.s32.totalorder %s108, %s110
    %p117 = scmp.eq.s32.totalorder %s16, 1
    %p118 = por %p116, %p117
    %p119 = scmp.ne.s32.totalorder %s110, %s111
    %p120 = scmp.eq.s32.totalorder %s16, 0
    %p121 = por %p119, %p120
    %p122 = scmp.ne.s32.totalorder %s110, %s111
    %p123 = scmp.eq.s32.totalorder %s17, 1
    %p124 = por %p122, %p123
    %p126 = scmp.ne.s32.totalorder %s111, %s125
    %p127 = scmp.eq.s32.totalorder %s17, 0
    %p128 = por %p126, %p127
    %s129 = ssub.s32 %s11, %s18
    %p130 = scmp.eq.s32.totalorder %s129, 0
    %s132 = sadd.s32 %s131, 1
    %s133 = scalar_select %p130, %s131, %s132
    %p136 = pneg %p130
    %p137 = scmp.eq.s32.totalorder %s11, 1
    %p138 = por %p136, %p137
    %p139 = scmp.ne.s32.totalorder %s131, %s134
    %p140 = scmp.eq.s32.totalorder %s11, 0
    %p141 = por %p139, %p140
    %p142 = scmp.ne.s32.totalorder %s131, %s134
    %p143 = scmp.eq.s32.totalorder %s16, 1
    %p144 = por %p142, %p143
    %p145 = scmp.ne.s32.totalorder %s134, %s135
    %p146 = scmp.eq.s32.totalorder %s16, 0
    %p147 = por %p145, %p146
    %p148 = scmp.ne.s32.totalorder %s134, %s135
    %p149 = scmp.eq.s32.totalorder %s17, 1
    %p150 = por %p148, %p149
    %p152 = scmp.ne.s32.totalorder %s135, %s151
    %p153 = scmp.eq.s32.totalorder %s17, 0
    %p154 = por %p152, %p153
    %p155 = scmp.le.s32.totalorder 1, %s11
    %p156 = scmp.lt.s32.totalorder %s11, 3
    %p157 = pnand %p155, %p156
    %p158 = pneg %p157
    // Predicated region
    $region9: #{encoder_forward.31} parent=5 // pred_check
      _
    $region10: #{encoder_forward.31} parent=5 // pred_check_branch
      %160 = sbr.rel (%p157) target = $region12
    $region11: #{encoder_forward.31} parent=5 // pred_region
      %s161 = ssub.s32 %s11, 1
      // Predicated region
      $region13: #{encoder_forward.31} parent=11 // pred_check
        %p162 = pneg %p58
      $region14: #{encoder_forward.31} parent=11 // pred_check_branch
        %164 = sbr.rel (%p162) target = $region16
      $region15: #{encoder_forward.31} parent=11 // pred_region
        _
      $region16: #{encoder_forward.31} parent=11 // pred_fallthru
        _
      // Predicated region
      $region17: #{encoder_forward.31} parent=11 // pred_check
        %p165 = pneg %p79
      $region18: #{encoder_forward.31} parent=11 // pred_check_branch
        %167 = sbr.rel (%p165) target = $region20
      $region19: #{encoder_forward.31} parent=11 // pred_region
        _
      $region20: #{encoder_forward.31} parent=11 // pred_fallthru
        _
      // Predicated region
      $region21: #{encoder_forward.31} parent=11 // pred_check
        %p168 = pneg %p100
      $region22: #{encoder_forward.31} parent=11 // pred_check_branch
        %170 = sbr.rel (%p168) target = $region24
      $region23: #{encoder_forward.31} parent=11 // pred_region
        _
      $region24: #{encoder_forward.31} parent=11 // pred_fallthru
        _
      // Predicated region
      $region25: #{encoder_forward.31} parent=11 // pred_check
        %p171 = pneg %p121
      $region26: #{encoder_forward.31} parent=11 // pred_check_branch
        %173 = sbr.rel (%p171) target = $region28
      $region27: #{encoder_forward.31} parent=11 // pred_region
        _
      $region28: #{encoder_forward.31} parent=11 // pred_fallthru
        _
    $region12: #{encoder_forward.31} parent=5 // pred_fallthru
      _
    %p174 = scmp.lt.s32.totalorder %s11, 2
    // Predicated region
    $region29: #{encoder_forward.31} parent=5 // pred_check
      %p175 = pneg %p174
    $region30: #{encoder_forward.31} parent=5 // pred_check_branch
      %177 = sbr.rel (%p175) target = $region32
    $region31: #{encoder_forward.31} parent=5 // pred_region
      // Predicated region
      $region33: #{encoder_forward.31} parent=31 // pred_check
        %p178 = pneg %p31
      $region34: #{encoder_forward.31} parent=31 // pred_check_branch
        %180 = sbr.rel (%p178) target = $region36
      $region35: #{encoder_forward.31} parent=31 // pred_region
        %s181 = smul.u32 2, %s11
        %p182 = scmp.lt.s32.totalorder %s181, 3
        %s183 = scalar_select %p182, %s181, 3
        %s184 = smul.addr %s183, 8
        %s185 = scalar_lea.vmem %s0, %s184
        %s186 = smul.u32 2, %s11
      $region36: #{encoder_forward.31} parent=31 // pred_fallthru
        _
    $region32: #{encoder_forward.31} parent=5 // pred_fallthru
      _
    %p187 = scmp.le.s32.totalorder 1, %s11
    %p188 = scmp.lt.s32.totalorder %s11, 3
    %p189 = pnand %p187, %p188
    %p190 = pneg %p189
    // Predicated region
    $region37: #{encoder_forward.31} parent=5 // pred_check
      _
    $region38: #{encoder_forward.31} parent=5 // pred_check_branch
      %192 = sbr.rel (%p189) target = $region40
    $region39: #{encoder_forward.31} parent=5 // pred_region
      %s193 = ssub.s32 %s11, 1
      %s194 = smul.u32 2, %s16
      %p195 = scmp.lt.s32.totalorder %s194, 3
      %s196 = scalar_select %p195, %s194, 3
      %s197 = smul.addr %s196, 8
      %s198 = scalar_lea.vmem %s0, %s197
      %p199 = pneg %p37
      %p200 = pneg %p34
      %p201 = pneg %p58
      %p202 = pneg %p55
      %p203 = pneg %p79
      %p204 = pneg %p76
      %p205 = pneg %p100
      %p206 = pneg %p97
      %p207 = pneg %p121
      %p208 = pneg %p118
      %p209 = pneg %p147
      %p210 = pneg %p144
      %s211 = smul.u32 2, %s16
      %p212 = scmp.lt.s32.totalorder %s211, 3
      %s213 = scalar_select %p212, %s211, 3
      %s214 = smul.addr %s213, 8
      %s215 = scalar_lea.vmem %s5, %s214
      %s216 = smul.u32 2, %s16
      %p217 = scmp.lt.s32.totalorder %s216, 3
      %s218 = scalar_select %p217, %s216, 3
      %s219 = smul.addr %s218, 8
      %s220 = scalar_lea.vmem %s0, %s219
      %s221 = smul.u32 2, %s16
      %s222 = smul.u32 2, %s16
      %p223 = scmp.lt.s32.totalorder %s222, 3
      %s224 = scalar_select %p223, %s222, 3
      %s225 = smul.addr %s224, 8
      %s226 = scalar_lea.vmem %s5, %s225
      %s227 = smul.u32 2, %s16
      %v228 = vld [vmem:[%s220] sm:$0xff]
      %v229 = vld [vmem:[%s220 + $0x8] sm:$0xff]
      %v230 = vld [vmem:[%s1] sm:$0x7]
      %v231 = vld [vmem:[%s2] sm:$0x1]
      %v233 = vperm.slane %v231, 0
      %vm235 = vcmask 23552
      %v237 = vsel %vm235, %v228, 0
      %v240 = vsel %vm235, %v229, 0
      %vm242 = vcmask 1042432
      %v244 = vsel %vm242, %v230, 0
      %246 = vmatpush.msra.mxu0 0.0
      %247 = vmatpush.msra.mxu0 0.0
      %248 = vmatpush.msra.mxu0 0.0
      %249 = vmatpush.msra.mxu0 0.0
      %250 = vmatpush.msra.mxu0 0.0
      %251 = vmatpush.msra.mxu0 0.0
      %252 = vmatpush.msra.mxu0 0.0
      %253 = vmatpush.msra.mxu0 0.0
      %254 = vmatpush.msra.mxu0 0.0
      %255 = vmatpush.msra.mxu0 0.0
      %256 = vmatpush.msra.mxu0 0.0
      %257 = vmatpush.msra.mxu0 0.0
      %258 = vmatpush.msra.mxu0 0.0
      %259 = vmatpush.msra.mxu0 0.0
      %260 = vmatpush.msra.mxu0 0.0
      %261 = vmatpush.msra.mxu0 %v244
      %262 = vmatmul.f32.gmra.mxu0 %v237
      %v263 = vpop.f32.mrf.mxu0
      %v264 = vadd.f32 %v233, %v263
      %265 = vmatmul.f32.gmra.mxu0 %v240
      %v266 = vpop.f32.mrf.mxu0
      %v267 = vadd.f32 %v233, %v266
      %268 = vdwg.mxu0
      %v269 = vmax.f32 %v264, 0.0
      %v270 = vmax.f32 %v267, 0.0
      %v271 = vld [vmem:[%s3] sm:$0xff]
      %v272 = vld [vmem:[%s3 + $0x8] sm:$0xff]
      %v273 = vld [vmem:[%s3 + $0x10] sm:$0xff]
      %v274 = vld [vmem:[%s3 + $0x18] sm:$0xff]
      %v275 = vld [vmem:[%s4] sm:$0x1]
      %v277 = vperm.slane %v275, 0
      %vm279 = vcmask 261120
      %v281 = vsel %vm279, %v269, 0
      %v284 = vsel %vm279, %v270, 0
      %286 = vmatpush.msra.mxu0 0.0
      %287 = vmatpush.msra.mxu0 0.0
      %288 = vmatpush.msra.mxu0 0.0
      %289 = vmatpush.msra.mxu0 0.0
      %290 = vmatpush.msra.mxu0 0.0
      %291 = vmatpush.msra.mxu0 0.0
      %292 = vmatpush.msra.mxu0 0.0
      %293 = vmatpush.msra.mxu0 0.0
      %294 = vmatpush.msra.mxu0 0.0
      %295 = vmatpush.msra.mxu0 0.0
      %296 = vmatpush.msra.mxu0 0.0
      %297 = vmatpush.msra.mxu0 0.0
      %298 = vmatpush.msra.mxu0 %v274
      %299 = vmatpush.msra.mxu0 %v273
      %300 = vmatpush.msra.mxu0 %v272
      %301 = vmatpush.msra.mxu0 %v271
      %302 = vmatmul.f32.gmra.mxu0 %v281
      %v303 = vpop.f32.mrf.mxu0
      %v304 = vadd.f32 %v277, %v303
      %305 = vmatmul.f32.gmra.mxu0 %v284
      %v306 = vpop.f32.mrf.mxu0
      %v307 = vadd.f32 %v277, %v306
      %308 = vdwg.mxu0
      %309 = vst.msk [vmem:[%s226] sm:$0xff] %vm279, %v304
      %310 = vst.msk [vmem:[%s226 + $0x8] sm:$0xff] %vm279, %v307
      %s311 = smul.u32 2, %s16
      %p312 = scmp.lt.s32.totalorder %s311, 3
      %s313 = scalar_select %p312, %s311, 3
      %s314 = smul.addr %s313, 8
      %s315 = scalar_lea.vmem %s5, %s314
      // Predicated region
      $region41: #{encoder_forward.31} parent=39 // pred_check
        %p316 = pneg %p144
      $region42: #{encoder_forward.31} parent=39 // pred_check_branch
        %318 = sbr.rel (%p316) target = $region44
      $region43: #{encoder_forward.31} parent=39 // pred_region
        %s319 = smul.u32 2, %s16
      $region44: #{encoder_forward.31} parent=39 // pred_fallthru
        _
    $region40: #{encoder_forward.31} parent=5 // pred_fallthru
      _
    %p320 = scmp.le.s32.totalorder 2, %s11
    // Predicated region
    $region45: #{encoder_forward.31} parent=5 // pred_check
      %p321 = pneg %p320
    $region46: #{encoder_forward.31} parent=5 // pred_check_branch
      %323 = sbr.rel (%p321) target = $region48
    $region47: #{encoder_forward.31} parent=5 // pred_region
      %s324 = ssub.s32 %s11, 2
      // Predicated region
      $region49: #{encoder_forward.31} parent=47 // pred_check
        %p325 = pneg %p150
      $region50: #{encoder_forward.31} parent=47 // pred_check_branch
        %327 = sbr.rel (%p325) target = $region52
      $region51: #{encoder_forward.31} parent=47 // pred_region
        %s328 = smul.u32 2, %s17
        %p329 = scmp.lt.s32.totalorder %s328, 3
        %s330 = scalar_select %p329, %s328, 3
        %s331 = smul.addr %s330, 8
        %s332 = scalar_lea.vmem %s5, %s331
      $region52: #{encoder_forward.31} parent=47 // pred_fallthru
        _
    $region48: #{encoder_forward.31} parent=5 // pred_fallthru
      _
  $region6: #{encoder_forward.31} parent=0 // loop_footer
    %s15 = sadd.s32 1, %s11
  $region7: #{encoder_forward.31} parent=0 // loop_footer_branch
    %10 = sbr.rel target = $region3
  $region8: #{encoder_forward.31} parent=0 // loop_exit
    _

// kernel: encoder_forward.32
$region0: #{encoder_forward.32}
  #allocation0 [shape = 'u32[]', space=smem, size = 0x4, offset = 0x4, fixed_abs, tag = 'smem constant byte address 0x4 - core index']
  #allocation1 [shape = 'u32[72,128]{1,0:T(1,128)}', space=vmem, size = 0x9000, scoped, tag = 'internal scratch']
  %s0 = inlined_call_operand.vmem [shape: f32[8,32], index: 0, kind: input, shape index: {}]
  %s1 = inlined_call_operand.vmem [shape: f32[8,128], index: 1, kind: input, shape index: {}]
  %s2 = inlined_call_operand.vmem [shape: f32[8,128], index: 2, kind: input, shape index: {}]
  %s3 = inlined_call_operand.vmem [shape: f32[8,128], index: 3, kind: input, shape index: {}]
  %s4 = inlined_call_operand.vmem [shape: f32[8,128], index: 4, kind: input, shape index: {}]
  %s5 = inlined_call_operand.vmem [shape: f32[128,128], index: 5, kind: input, shape index: {}]
  %s6 = inlined_call_operand.vmem [shape: f32[1,128], index: 6, kind: input, shape index: {}]
  %s7 = inlined_call_operand.vmem [shape: f32[128,128], index: 7, kind: input, shape index: {}]
  %s8 = inlined_call_operand.vmem [shape: f32[1,128], index: 8, kind: input, shape index: {}]
  %s9 = inlined_call_operand.vmem [shape: f32[32,128], index: 9, kind: input, shape index: {}]
  %s10 = inlined_call_operand.vmem [shape: f32[1,128], index: 10, kind: input, shape index: {}]
  %s11 = inlined_call_operand.vmem [shape: f32[8,128], index: 11, kind: output, shape index: {}]
  %s12 = sld [smem:[#allocation0]]
  $region54: #{encoder_forward.32} parent=0
    _
  %s14 = ssub.s32 1, %s12
  %s15 = scalar_select 0, %s14, %s12
  // Predicated region
  $region2: #{encoder_forward.32} parent=0 // pred_check
    _
  $region3: #{encoder_forward.32} parent=0 // pred_check_branch
    %17 = sbr.rel (0) target = $region5
  $region4: #{encoder_forward.32} parent=0 // pred_region
    _
  $region5: #{encoder_forward.32} parent=0 // pred_fallthru
    _
  // Predicated region
  $region6: #{encoder_forward.32} parent=0 // pred_check
    _
  $region7: #{encoder_forward.32} parent=0 // pred_check_branch
    %19 = sbr.rel (0) target = $region9
  $region8: #{encoder_forward.32} parent=0 // pred_region
    _
  $region9: #{encoder_forward.32} parent=0 // pred_fallthru
    _
  // Predicated region
  $region10: #{encoder_forward.32} parent=0 // pred_check
    _
  $region11: #{encoder_forward.32} parent=0 // pred_check_branch
    %21 = sbr.rel (0) target = $region13
  $region12: #{encoder_forward.32} parent=0 // pred_region
    _
  $region13: #{encoder_forward.32} parent=0 // pred_fallthru
    _
  // Predicated region
  $region14: #{encoder_forward.32} parent=0 // pred_check
    _
  $region15: #{encoder_forward.32} parent=0 // pred_check_branch
    %23 = sbr.rel (0) target = $region17
  $region16: #{encoder_forward.32} parent=0 // pred_region
    _
  $region17: #{encoder_forward.32} parent=0 // pred_fallthru
    _
  // Predicated region
  $region18: #{encoder_forward.32} parent=0 // pred_check
    _
  $region19: #{encoder_forward.32} parent=0 // pred_check_branch
    %25 = sbr.rel (0) target = $region21
  $region20: #{encoder_forward.32} parent=0 // pred_region
    _
  $region21: #{encoder_forward.32} parent=0 // pred_fallthru
    _
  // Predicated region
  $region22: #{encoder_forward.32} parent=0 // pred_check
    _
  $region23: #{encoder_forward.32} parent=0 // pred_check_branch
    %27 = sbr.rel (0) target = $region25
  $region24: #{encoder_forward.32} parent=0 // pred_region
    _
  $region25: #{encoder_forward.32} parent=0 // pred_fallthru
    _
  // Predicated region
  $region26: #{encoder_forward.32} parent=0 // pred_check
    _
  $region27: #{encoder_forward.32} parent=0 // pred_check_branch
    %29 = sbr.rel (0) target = $region29
  $region28: #{encoder_forward.32} parent=0 // pred_region
    _
  $region29: #{encoder_forward.32} parent=0 // pred_fallthru
    _
  // Predicated region
  $region30: #{encoder_forward.32} parent=0 // pred_check
    _
  $region31: #{encoder_forward.32} parent=0 // pred_check_branch
    %31 = sbr.rel (0) target = $region33
  $region32: #{encoder_forward.32} parent=0 // pred_region
    _
  $region33: #{encoder_forward.32} parent=0 // pred_fallthru
    _
  // Predicated region
  $region34: #{encoder_forward.32} parent=0 // pred_check
    _
  $region35: #{encoder_forward.32} parent=0 // pred_check_branch
    %33 = sbr.rel (0) target = $region37
  $region36: #{encoder_forward.32} parent=0 // pred_region
    _
  $region37: #{encoder_forward.32} parent=0 // pred_fallthru
    _
  // Predicated region
  $region38: #{encoder_forward.32} parent=0 // pred_check
    _
  $region39: #{encoder_forward.32} parent=0 // pred_check_branch
    %35 = sbr.rel (0) target = $region41
  $region40: #{encoder_forward.32} parent=0 // pred_region
    _
  $region41: #{encoder_forward.32} parent=0 // pred_fallthru
    _
  // Predicated region
  $region42: #{encoder_forward.32} parent=0 // pred_check
    _
  $region43: #{encoder_forward.32} parent=0 // pred_check_branch
    %37 = sbr.rel (0) target = $region45
  $region44: #{encoder_forward.32} parent=0 // pred_region
    _
  $region45: #{encoder_forward.32} parent=0 // pred_fallthru
    _
  %v38 = vld [vmem:[%s0] sm:$0xff]
  %40 = vrot.lane.b32.xlu0 %v38, 32
  %v41 = vpop.permute.xlu0 %40
  %43 = vrot.lane.b32.xlu0 %v38, 64
  %v44 = vpop.permute.xlu0 %43
  %46 = vrot.lane.b32.xlu0 %v38, 96
  %v47 = vpop.permute.xlu0 %46
  %vm49 = vcmask 261120
  %v50 = vsel %vm49, %v38, %v41
  %vm51 = vcmask 523264
  %v52 = vsel %vm51, %v50, %v44
  %vm53 = vcmask 785408
  %v54 = vsel %vm53, %v52, %v47
  %v55 = vld [vmem:[%s3] sm:$0xff]
  %v56 = vld [vmem:[%s1] sm:$0xff]
  %v57 = vsub.f32 %v54, %v56
  %v58 = vadd.f32 %v57, %v55
  %v59 = vld [vmem:[%s5] sm:$0xff]
  %v60 = vld [vmem:[%s5 + $0x8] sm:$0xff]
  %v61 = vld [vmem:[%s5 + $0x10] sm:$0xff]
  %v62 = vld [vmem:[%s5 + $0x18] sm:$0xff]
  %v63 = vld [vmem:[%s5 + $0x20] sm:$0xff]
  %v64 = vld [vmem:[%s5 + $0x28] sm:$0xff]
  %v65 = vld [vmem:[%s5 + $0x30] sm:$0xff]
  %v66 = vld [vmem:[%s5 + $0x38] sm:$0xff]
  %v67 = vld [vmem:[%s5 + $0x40] sm:$0xff]
  %v68 = vld [vmem:[%s5 + $0x48] sm:$0xff]
  %v69 = vld [vmem:[%s5 + $0x50] sm:$0xff]
  %v70 = vld [vmem:[%s5 + $0x58] sm:$0xff]
  %v71 = vld [vmem:[%s5 + $0x60] sm:$0xff]
  %v72 = vld [vmem:[%s5 + $0x68] sm:$0xff]
  %v73 = vld [vmem:[%s5 + $0x70] sm:$0xff]
  %v74 = vld [vmem:[%s5 + $0x78] sm:$0xff]
  %v75 = vld [vmem:[%s6] sm:$0x1]
  %v77 = vperm.slane %v75, 0
  %79 = vmatpush.msra.mxu0 %v74
  %80 = vmatpush.msra.mxu0 %v73
  %81 = vmatpush.msra.mxu0 %v72
  %82 = vmatpush.msra.mxu0 %v71
  %83 = vmatpush.msra.mxu0 %v70
  %84 = vmatpush.msra.mxu0 %v69
  %85 = vmatpush.msra.mxu0 %v68
  %86 = vmatpush.msra.mxu0 %v67
  %87 = vmatpush.msra.mxu0 %v66
  %88 = vmatpush.msra.mxu0 %v65
  %89 = vmatpush.msra.mxu0 %v64
  %90 = vmatpush.msra.mxu0 %v63
  %91 = vmatpush.msra.mxu0 %v62
  %92 = vmatpush.msra.mxu0 %v61
  %93 = vmatpush.msra.mxu0 %v60
  %94 = vmatpush.msra.mxu0 %v59
  %95 = vmatmul.f32.gmra.mxu0 %v58
  %v96 = vpop.f32.mrf.mxu0
  %v97 = vadd.f32 %v77, %v96
  %98 = vdwg.mxu0
  %v99 = vmax.f32 %v97, 0.0
  %v100 = vld [vmem:[%s7] sm:$0xff]
  %v101 = vld [vmem:[%s7 + $0x8] sm:$0xff]
  %v102 = vld [vmem:[%s7 + $0x10] sm:$0xff]
  %v103 = vld [vmem:[%s7 + $0x18] sm:$0xff]
  %v104 = vld [vmem:[%s7 + $0x20] sm:$0xff]
  %v105 = vld [vmem:[%s7 + $0x28] sm:$0xff]
  %v106 = vld [vmem:[%s7 + $0x30] sm:$0xff]
  %v107 = vld [vmem:[%s7 + $0x38] sm:$0xff]
  %v108 = vld [vmem:[%s7 + $0x40] sm:$0xff]
  %v109 = vld [vmem:[%s7 + $0x48] sm:$0xff]
  %v110 = vld [vmem:[%s7 + $0x50] sm:$0xff]
  %v111 = vld [vmem:[%s7 + $0x58] sm:$0xff]
  %v112 = vld [vmem:[%s7 + $0x60] sm:$0xff]
  %v113 = vld [vmem:[%s7 + $0x68] sm:$0xff]
  %v114 = vld [vmem:[%s7 + $0x70] sm:$0xff]
  %v115 = vld [vmem:[%s7 + $0x78] sm:$0xff]
  %v116 = vld [vmem:[%s8] sm:$0x1]
  %v118 = vperm.slane %v116, 0
  %120 = vmatpush.msra.mxu0 %v115
  %121 = vmatpush.msra.mxu0 %v114
  %122 = vmatpush.msra.mxu0 %v113
  %123 = vmatpush.msra.mxu0 %v112
  %124 = vmatpush.msra.mxu0 %v111
  %125 = vmatpush.msra.mxu0 %v110
  %126 = vmatpush.msra.mxu0 %v109
  %127 = vmatpush.msra.mxu0 %v108
  %128 = vmatpush.msra.mxu0 %v107
  %129 = vmatpush.msra.mxu0 %v106
  %130 = vmatpush.msra.mxu0 %v105
  %131 = vmatpush.msra.mxu0 %v104
  %132 = vmatpush.msra.mxu0 %v103
  %133 = vmatpush.msra.mxu0 %v102
  %134 = vmatpush.msra.mxu0 %v101
  %135 = vmatpush.msra.mxu0 %v100
  %136 = vmatmul.f32.gmra.mxu0 %v99
  %v137 = vpop.f32.mrf.mxu0
  %v138 = vadd.f32 %v118, %v137
  %139 = vdwg.mxu0
  %v140 = vmul.f32 %v138, 0.17677669
  %142 = vrot.lane.b32.xlu0 %v140, 96
  %v143 = vpop.permute.xlu0 %142
  %v145 = vmax.f32 %v140, %v143
  %146 = vrot.lane.b32.xlu0 %v140, 64
  %v147 = vpop.permute.xlu0 %146
  %v149 = vmax.f32 %v145, %v147
  %150 = vrot.lane.b32.xlu0 %v140, 32
  %v151 = vpop.permute.xlu0 %150
  %v153 = vmax.f32 %v149, %v151
  %155 = vrot.lane.b32.xlu0 %v153, 32
  %v156 = vpop.permute.xlu0 %155
  %158 = vrot.lane.b32.xlu0 %v153, 64
  %v159 = vpop.permute.xlu0 %158
  %161 = vrot.lane.b32.xlu0 %v153, 96
  %v162 = vpop.permute.xlu0 %161
  %v164 = vsel %vm49, %v153, %v156
  %v165 = vsel %vm51, %v164, %v159
  %v166 = vsel %vm53, %v165, %v162
  %v167 = vsub.f32 %v140, %v166
  %v168 = vmul.f32 %v167, 1.442695
  %v169 = vpow.pop %v168
  %171 = vrot.lane.b32.xlu0 %v169, 96
  %v172 = vpop.permute.xlu0 %171
  %v174 = vadd.f32 %v169, %v172
  %175 = vrot.lane.b32.xlu0 %v169, 64
  %v176 = vpop.permute.xlu0 %175
  %v178 = vadd.f32 %v174, %v176
  %179 = vrot.lane.b32.xlu0 %v169, 32
  %v180 = vpop.permute.xlu0 %179
  %v182 = vadd.f32 %v178, %v180
  %v183 = vrcp.pop %v182
  %185 = vrot.lane.b32.xlu0 %v183, 32
  %v186 = vpop.permute.xlu0 %185
  %188 = vrot.lane.b32.xlu0 %v183, 64
  %v189 = vpop.permute.xlu0 %188
  %191 = vrot.lane.b32.xlu0 %v183, 96
  %v192 = vpop.permute.xlu0 %191
  %v194 = vsel %vm49, %v183, %v186
  %v195 = vsel %vm51, %v194, %v189
  %v196 = vsel %vm53, %v195, %v192
  %v197 = vmul.f32 %v169, %v196
  %v198 = vld [vmem:[%s2] sm:$0xff]
  %v199 = vadd.f32 %v198, %v55
  %v200 = vmul.f32 %v197, %v199
  %202 = vrot.lane.b32.xlu0 %v200, 96
  %v203 = vpop.permute.xlu0 %202
  %v205 = vadd.f32 %v200, %v203
  %206 = vrot.lane.b32.xlu0 %v200, 64
  %v207 = vpop.permute.xlu0 %206
  %v209 = vadd.f32 %v205, %v207
  %210 = vrot.lane.b32.xlu0 %v200, 32
  %v211 = vpop.permute.xlu0 %210
  %v213 = vadd.f32 %v209, %v211
  %v214 = vld [vmem:[%s9] sm:$0xff]
  %v215 = vld [vmem:[%s9 + $0x8] sm:$0xff]
  %v216 = vld [vmem:[%s9 + $0x10] sm:$0xff]
  %v217 = vld [vmem:[%s9 + $0x18] sm:$0xff]
  %v218 = vld [vmem:[%s10] sm:$0x1]
  %v220 = vperm.slane %v218, 0
  %v223 = vsel %vm49, %v213, 0
  %225 = vmatpush.msra.mxu0 0.0
  %226 = vmatpush.msra.mxu0 0.0
  %227 = vmatpush.msra.mxu0 0.0
  %228 = vmatpush.msra.mxu0 0.0
  %229 = vmatpush.msra.mxu0 0.0
  %230 = vmatpush.msra.mxu0 0.0
  %231 = vmatpush.msra.mxu0 0.0
  %232 = vmatpush.msra.mxu0 0.0
  %233 = vmatpush.msra.mxu0 0.0
  %234 = vmatpush.msra.mxu0 0.0
  %235 = vmatpush.msra.mxu0 0.0
  %236 = vmatpush.msra.mxu0 0.0
  %237 = vmatpush.msra.mxu0 %v217
  %238 = vmatpush.msra.mxu0 %v216
  %239 = vmatpush.msra.mxu0 %v215
  %240 = vmatpush.msra.mxu0 %v214
  %241 = vmatmul.f32.gmra.mxu0 %v223
  %v242 = vpop.f32.mrf.mxu0
  %v243 = vadd.f32 %v220, %v242
  %244 = vdwg.mxu0
  %v245 = vld [vmem:[%s4] sm:$0xff]
  %v246 = vadd.f32 %v243, %v245
  %247 = vst [vmem:[%s11] sm:$0xff] %v246
  // Predicated region
  $region46: #{encoder_forward.32} parent=0 // pred_check
    _
  $region47: #{encoder_forward.32} parent=0 // pred_check_branch
    %249 = sbr.rel (0) target = $region49
  $region48: #{encoder_forward.32} parent=0 // pred_region
    _
  $region49: #{encoder_forward.32} parent=0 // pred_fallthru
    _
  // Predicated region
  $region50: #{encoder_forward.32} parent=0 // pred_check
    _
  $region51: #{encoder_forward.32} parent=0 // pred_check_branch
    %251 = sbr.rel (0) target = $region53
  $region52: #{encoder_forward.32} parent=0 // pred_region
    _
  $region53: #{encoder_forward.32} parent=0 // pred_fallthru
    _

// kernel: encoder_forward.33
$region0: #{encoder_forward.33}
  #allocation0 [shape = 'u32[]', space=smem, size = 0x4, offset = 0x4, fixed_abs, tag = 'smem constant byte address 0x4 - core index']
  #allocation1 [shape = 'u32[72,128]{1,0:T(1,128)}', space=vmem, size = 0x9000, scoped, tag = 'internal scratch']
  %s0 = inlined_call_operand.vmem [shape: f32[2,4,128], index: 0, kind: input, shape index: {}]
  %s1 = inlined_call_operand.vmem [shape: f32[128,256], index: 1, kind: input, shape index: {}]
  %s2 = inlined_call_operand.vmem [shape: f32[1,256], index: 2, kind: input, shape index: {}]
  %s3 = inlined_call_operand.vmem [shape: f32[256,16], index: 3, kind: input, shape index: {}]
  %s4 = inlined_call_operand.vmem [shape: f32[1,16], index: 4, kind: input, shape index: {}]
  %s5 = inlined_call_operand.hbm [shape: f32[2,1,16], index: 5, kind: output, shape index: {}]
  %s6 = sld [smem:[#allocation0]]
  $region53: #{encoder_forward.33} parent=0
    _
  %s8 = ssub.s32 1, %s6
  %s9 = scalar_select 0, %s8, %s6
  $region1: #{encoder_forward.33} parent=0
    #allocation2 [shape = 'u8[1024]{0}', space=vmem, size = 0x400, scoped, tag = 'output window, operand 0']
    #allocation3 [shape = 's32[2]{0}', space=sflag, size = 0x8, scoped, tag = 'scoped memory for encoder_forward.33']
    %10 = vsyncpa [#allocation3], 0
    %s11 = scalar_lea.sflag [#allocation3], 1
    %12 = vsyncpa %s11, 0
    loop: start=0, step=1, limit=4
    $region2: #{encoder_forward.33} parent=1 // loop_pre_header
      _
    $region3: #{encoder_forward.33} parent=1 // loop_header
      %s14 = sphi 0, %s18
      %p15 = scmp.ge.s32.totalorder %s14, 4
      %s24 = sphi 0, %s26
      %s27 = sphi 0, %s24
      %s28 = sphi 0, %s27
      %s44 = sphi 0, %s28
      %s48 = sphi 0, %s48
      %s50 = sphi 0, %s48
      %s51 = sphi 0, %s50
      %s65 = sphi 0, %s51
      %s69 = sphi 0, %s69
      %s71 = sphi 0, %s69
      %s72 = sphi 0, %s71
      %s86 = sphi 0, %s72
      %s90 = sphi 0, %s90
      %s92 = sphi 0, %s90
      %s93 = sphi 0, %s92
      %s107 = sphi 0, %s93
      %s111 = sphi 0, %s111
      %s113 = sphi 0, %s111
      %s114 = sphi 0, %s113
      %s128 = sphi 0, %s114
      %s134 = sphi 0, %s136
      %s137 = sphi 0, %s134
      %s138 = sphi 0, %s137
      %s154 = sphi 0, %s138
    $region4: #{encoder_forward.33} parent=1 // loop_header_branch
      %17 = sbr.rel (%p15) target = $region8
    $region5: #{encoder_forward.33} parent=1 // loop_body
      %s19 = ssub.s32 %s14, 1
      %s20 = ssub.s32 %s14, 2
      %s21 = sadd.s32 %s14, 1
      %s22 = ssub.s32 %s14, %s21
      %p23 = scmp.eq.s32.totalorder %s22, 0
      %s25 = sadd.s32 %s24, 1
      %s26 = scalar_select %p23, %s24, %s25
      %p29 = pneg %p23
      %p30 = scmp.eq.s32.totalorder %s14, 1
      %p31 = por %p29, %p30
      %p32 = scmp.ne.s32.totalorder %s24, %s27
      %p33 = scmp.eq.s32.totalorder %s14, 0
      %p34 = por %p32, %p33
      %p35 = scmp.ne.s32.totalorder %s24, %s27
      %p36 = scmp.eq.s32.totalorder %s19, 1
      %p37 = por %p35, %p36
      %p38 = scmp.ne.s32.totalorder %s27, %s28
      %p39 = scmp.eq.s32.totalorder %s19, 0
      %p40 = por %p38, %p39
      %p41 = scmp.ne.s32.totalorder %s27, %s28
      %p42 = scmp.eq.s32.totalorder %s20, 1
      %p43 = por %p41, %p42
      %p45 = scmp.ne.s32.totalorder %s28, %s44
      %p46 = scmp.eq.s32.totalorder %s20, 0
      %p47 = por %p45, %p46
      %s49 = sadd.s32 %s48, 1
      %p52 = scmp.eq.s32.totalorder %s14, 1
      %p53 = scmp.ne.s32.totalorder %s48, %s50
      %p54 = scmp.eq.s32.totalorder %s14, 0
      %p55 = por %p53, %p54
      %p56 = scmp.ne.s32.totalorder %s48, %s50
      %p57 = scmp.eq.s32.totalorder %s19, 1
      %p58 = por %p56, %p57
      %p59 = scmp.ne.s32.totalorder %s50, %s51
      %p60 = scmp.eq.s32.totalorder %s19, 0
      %p61 = por %p59, %p60
      %p62 = scmp.ne.s32.totalorder %s50, %s51
      %p63 = scmp.eq.s32.totalorder %s20, 1
      %p64 = por %p62, %p63
      %p66 = scmp.ne.s32.totalorder %s51, %s65
      %p67 = scmp.eq.s32.totalorder %s20, 0
      %p68 = por %p66, %p67
      %s70 = sadd.s32 %s69, 1
      %p73 = scmp.eq.s32.totalorder %s14, 1
      %p74 = scmp.ne.s32.totalorder %s69, %s71
      %p75 = scmp.eq.s32.totalorder %s14, 0
      %p76 = por %p74, %p75
      %p77 = scmp.ne.s32.totalorder %s69, %s71
      %p78 = scmp.eq.s32.totalorder %s19, 1
      %p79 = por %p77, %p78
      %p80 = scmp.ne.s32.totalorder %s71, %s72
      %p81 = scmp.eq.s32.totalorder %s19, 0
      %p82 = por %p80, %p81
      %p83 = scmp.ne.s32.totalorder %s71, %s72
      %p84 = scmp.eq.s32.totalorder %s20, 1
      %p85 = por %p83, %p84
      %p87 = scmp.ne.s32.totalorder %s72, %s86
      %p88 = scmp.eq.s32.totalorder %s20, 0
      %p89 = por %p87, %p88
      %s91 = sadd.s32 %s90, 1
      %p94 = scmp.eq.s32.totalorder %s14, 1
      %p95 = scmp.ne.s32.totalorder %s90, %s92
      %p96 = scmp.eq.s32.totalorder %s14, 0
      %p97 = por %p95, %p96
      %p98 = scmp.ne.s32.totalorder %s90, %s92
      %p99 = scmp.eq.s32.totalorder %s19, 1
      %p100 = por %p98, %p99
      %p101 = scmp.ne.s32.totalorder %s92, %s93
      %p102 = scmp.eq.s32.totalorder %s19, 0
      %p103 = por %p101, %p102
      %p104 = scmp.ne.s32.totalorder %s92, %s93
      %p105 = scmp.eq.s32.totalorder %s20, 1
      %p106 = por %p104, %p105
      %p108 = scmp.ne.s32.totalorder %s93, %s107
      %p109 = scmp.eq.s32.totalorder %s20, 0
      %p110 = por %p108, %p109
      %s112 = sadd.s32 %s111, 1
      %p115 = scmp.eq.s32.totalorder %s14, 1
      %p116 = scmp.ne.s32.totalorder %s111, %s113
      %p117 = scmp.eq.s32.totalorder %s14, 0
      %p118 = por %p116, %p117
      %p119 = scmp.ne.s32.totalorder %s111, %s113
      %p120 = scmp.eq.s32.totalorder %s19, 1
      %p121 = por %p119, %p120
      %p122 = scmp.ne.s32.totalorder %s113, %s114
      %p123 = scmp.eq.s32.totalorder %s19, 0
      %p124 = por %p122, %p123
      %p125 = scmp.ne.s32.totalorder %s113, %s114
      %p126 = scmp.eq.s32.totalorder %s20, 1
      %p127 = por %p125, %p126
      %p129 = scmp.ne.s32.totalorder %s114, %s128
      %p130 = scmp.eq.s32.totalorder %s20, 0
      %p131 = por %p129, %p130
      %s132 = ssub.s32 %s14, %s21
      %p133 = scmp.eq.s32.totalorder %s132, 0
      %s135 = sadd.s32 %s134, 1
      %s136 = scalar_select %p133, %s134, %s135
      %p139 = pneg %p133
      %p140 = scmp.eq.s32.totalorder %s14, 1
      %p141 = por %p139, %p140
      %p142 = scmp.ne.s32.totalorder %s134, %s137
      %p143 = scmp.eq.s32.totalorder %s14, 0
      %p144 = por %p142, %p143
      %p145 = scmp.ne.s32.totalorder %s134, %s137
      %p146 = scmp.eq.s32.totalorder %s19, 1
      %p147 = por %p145, %p146
      %p148 = scmp.ne.s32.totalorder %s137, %s138
      %p149 = scmp.eq.s32.totalorder %s19, 0
      %p150 = por %p148, %p149
      %p151 = scmp.ne.s32.totalorder %s137, %s138
      %p152 = scmp.eq.s32.totalorder %s20, 1
      %p153 = por %p151, %p152
      %p155 = scmp.ne.s32.totalorder %s138, %s154
      %p156 = scmp.eq.s32.totalorder %s20, 0
      %p157 = por %p155, %p156
      %p158 = scmp.le.s32.totalorder 1, %s14
      %p159 = scmp.lt.s32.totalorder %s14, 3
      %p160 = pnand %p158, %p159
      %p161 = pneg %p160
      // Predicated region
      $region9: #{encoder_forward.33} parent=5 // pred_check
        _
      $region10: #{encoder_forward.33} parent=5 // pred_check_branch
        %163 = sbr.rel (%p160) target = $region12
      $region11: #{encoder_forward.33} parent=5 // pred_region
        %s164 = ssub.s32 %s14, 1
        // Predicated region
        $region13: #{encoder_forward.33} parent=11 // pred_check
          %p165 = pneg %p61
        $region14: #{encoder_forward.33} parent=11 // pred_check_branch
          %167 = sbr.rel (%p165) target = $region16
        $region15: #{encoder_forward.33} parent=11 // pred_region
          _
        $region16: #{encoder_forward.33} parent=11 // pred_fallthru
          _
        // Predicated region
        $region17: #{encoder_forward.33} parent=11 // pred_check
          %p168 = pneg %p82
        $region18: #{encoder_forward.33} parent=11 // pred_check_branch
          %170 = sbr.rel (%p168) target = $region20
        $region19: #{encoder_forward.33} parent=11 // pred_region
          _
        $region20: #{encoder_forward.33} parent=11 // pred_fallthru
          _
        // Predicated region
        $region21: #{encoder_forward.33} parent=11 // pred_check
          %p171 = pneg %p103
        $region22: #{encoder_forward.33} parent=11 // pred_check_branch
          %173 = sbr.rel (%p171) target = $region24
        $region23: #{encoder_forward.33} parent=11 // pred_region
          _
        $region24: #{encoder_forward.33} parent=11 // pred_fallthru
          _
        // Predicated region
        $region25: #{encoder_forward.33} parent=11 // pred_check
          %p174 = pneg %p124
        $region26: #{encoder_forward.33} parent=11 // pred_check_branch
          %176 = sbr.rel (%p174) target = $region28
        $region27: #{encoder_forward.33} parent=11 // pred_region
          _
        $region28: #{encoder_forward.33} parent=11 // pred_fallthru
          _
      $region12: #{encoder_forward.33} parent=5 // pred_fallthru
        _
      %p177 = scmp.lt.s32.totalorder %s14, 2
      // Predicated region
      $region29: #{encoder_forward.33} parent=5 // pred_check
        %p178 = pneg %p177
      $region30: #{encoder_forward.33} parent=5 // pred_check_branch
        %180 = sbr.rel (%p178) target = $region32
      $region31: #{encoder_forward.33} parent=5 // pred_region
        // Predicated region
        $region33: #{encoder_forward.33} parent=31 // pred_check
          %p181 = pneg %p34
        $region34: #{encoder_forward.33} parent=31 // pred_check_branch
          %183 = sbr.rel (%p181) target = $region36
        $region35: #{encoder_forward.33} parent=31 // pred_region
          %p184 = scmp.lt.s32.totalorder %s14, 1
          %s185 = scalar_select %p184, %s14, 1
          %s186 = smul.addr %s185, 4
          %s187 = scalar_lea.vmem %s0, %s186
        $region36: #{encoder_forward.33} parent=31 // pred_fallthru
          _
      $region32: #{encoder_forward.33} parent=5 // pred_fallthru
        _
      %p188 = scmp.le.s32.totalorder 1, %s14
      %p189 = scmp.lt.s32.totalorder %s14, 3
      %p190 = pnand %p188, %p189
      %p191 = pneg %p190
      // Predicated region
      $region37: #{encoder_forward.33} parent=5 // pred_check
        _
      $region38: #{encoder_forward.33} parent=5 // pred_check_branch
        %193 = sbr.rel (%p190) target = $region40
      $region39: #{encoder_forward.33} parent=5 // pred_region
        %s194 = ssub.s32 %s14, 1
        %p195 = scmp.lt.s32.totalorder %s19, 1
        %s196 = scalar_select %p195, %s19, 1
        %s197 = smul.addr %s196, 4
        %s198 = scalar_lea.vmem %s0, %s197
        %p199 = pneg %p40
        %p200 = pneg %p37
        %p201 = pneg %p61
        %p202 = pneg %p58
        %p203 = pneg %p82
        %p204 = pneg %p79
        %p205 = pneg %p103
        %p206 = pneg %p100
        %p207 = pneg %p124
        %p208 = pneg %p121
        %p209 = pneg %p150
        %p210 = pneg %p147
        %s211 = sand.u32 %s137, 1
        %s212 = scalar_lea.sflag [#allocation3], %s211
        %s213 = sand.u32 %s137, 1
        %s214 = scalar_lea.vmem [#allocation2], %s213
        %p215 = scmp.lt.s32.totalorder %s19, 1
        %s216 = scalar_select %p215, %s19, 1
        %s217 = smul.addr %s216, 4
        %s218 = scalar_lea.vmem %s0, %s217
        %v219 = vld [vmem:[%s218] sm:$0xf]
        %v220 = vld [vmem:[%s1] sm:$0xff]
        %v221 = vld [vmem:[%s1 + $0x8] sm:$0xff]
        %v222 = vld [vmem:[%s1 + $0x10] sm:$0xff]
        %v223 = vld [vmem:[%s1 + $0x18] sm:$0xff]
        %v224 = vld [vmem:[%s1 + $0x20] sm:$0xff]
        %v225 = vld [vmem:[%s1 + $0x28] sm:$0xff]
        %v226 = vld [vmem:[%s1 + $0x30] sm:$0xff]
        %v227 = vld [vmem:[%s1 + $0x38] sm:$0xff]
        %v228 = vld [vmem:[%s1 + $0x40] sm:$0xff]
        %v229 = vld [vmem:[%s1 + $0x48] sm:$0xff]
        %v230 = vld [vmem:[%s1 + $0x50] sm:$0xff]
        %v231 = vld [vmem:[%s1 + $0x58] sm:$0xff]
        %v232 = vld [vmem:[%s1 + $0x60] sm:$0xff]
        %v233 = vld [vmem:[%s1 + $0x68] sm:$0xff]
        %v234 = vld [vmem:[%s1 + $0x70] sm:$0xff]
        %v235 = vld [vmem:[%s1 + $0x78] sm:$0xff]
        %v236 = vld [vmem:[%s1 + $0x80] sm:$0xff]
        %v237 = vld [vmem:[%s1 + $0x88] sm:$0xff]
        %v238 = vld [vmem:[%s1 + $0x90] sm:$0xff]
        %v239 = vld [vmem:[%s1 + $0x98] sm:$0xff]
        %v240 = vld [vmem:[%s1 + $0xa0] sm:$0xff]
        %v241 = vld [vmem:[%s1 + $0xa8] sm:$0xff]
        %v242 = vld [vmem:[%s1 + $0xb0] sm:$0xff]
        %v243 = vld [vmem:[%s1 + $0xb8] sm:$0xff]
        %v244 = vld [vmem:[%s1 + $0xc0] sm:$0xff]
        %v245 = vld [vmem:[%s1 + $0xc8] sm:$0xff]
        %v246 = vld [vmem:[%s1 + $0xd0] sm:$0xff]
        %v247 = vld [vmem:[%s1 + $0xd8] sm:$0xff]
        %v248 = vld [vmem:[%s1 + $0xe0] sm:$0xff]
        %v249 = vld [vmem:[%s1 + $0xe8] sm:$0xff]
        %v250 = vld [vmem:[%s1 + $0xf0] sm:$0xff]
        %v251 = vld [vmem:[%s1 + $0xf8] sm:$0xff]
        %v252 = vld [vmem:[%s2] sm:$0x3]
        %v254 = vperm.slane %v252, 0
        %v255 = vperm.slane %v252, 1
        %258 = vmatpush.msra.mxu0 %v250
        %259 = vmatpush.msra.mxu0 %v248
        %260 = vmatpush.msra.mxu0 %v246
        %261 = vmatpush.msra.mxu0 %v244
        %262 = vmatpush.msra.mxu0 %v242
        %263 = vmatpush.msra.mxu0 %v240
        %264 = vmatpush.msra.mxu0 %v238
        %265 = vmatpush.msra.mxu0 %v236
        %266 = vmatpush.msra.mxu0 %v234
        %267 = vmatpush.msra.mxu0 %v232
        %268 = vmatpush.msra.mxu0 %v230
        %269 = vmatpush.msra.mxu0 %v228
        %270 = vmatpush.msra.mxu0 %v226
        %271 = vmatpush.msra.mxu0 %v224
        %272 = vmatpush.msra.mxu0 %v222
        %273 = vmatpush.msra.mxu0 %v220
        %274 = vmatmul.f32.gmra.mxu0 %v219
        %v275 = vpop.f32.mrf.mxu0
        %v276 = vadd.f32 %v254, %v275
        %277 = vdwg.mxu0
        %278 = vmatpush.msra.mxu0 %v251
        %279 = vmatpush.msra.mxu0 %v249
        %280 = vmatpush.msra.mxu0 %v247
        %281 = vmatpush.msra.mxu0 %v245
        %282 = vmatpush.msra.mxu0 %v243
        %283 = vmatpush.msra.mxu0 %v241
        %284 = vmatpush.msra.mxu0 %v239
        %285 = vmatpush.msra.mxu0 %v237
        %286 = vmatpush.msra.mxu0 %v235
        %287 = vmatpush.msra.mxu0 %v233
        %288 = vmatpush.msra.mxu0 %v231
        %289 = vmatpush.msra.mxu0 %v229
        %290 = vmatpush.msra.mxu0 %v227
        %291 = vmatpush.msra.mxu0 %v225
        %292 = vmatpush.msra.mxu0 %v223
        %293 = vmatpush.msra.mxu0 %v221
        %294 = vmatmul.f32.gmra.mxu0 %v219
        %v295 = vpop.f32.mrf.mxu0
        %v296 = vadd.f32 %v255, %v295
        %297 = vdwg.mxu0
        %v298 = vmax.f32 %v276, 0.0
        %v299 = vmax.f32 %v296, 0.0
        %v300 = vld [vmem:[%s3] sm:$0xff]
        %v301 = vld [vmem:[%s3 + $0x8] sm:$0xff]
        %v302 = vld [vmem:[%s3 + $0x10] sm:$0xff]
        %v303 = vld [vmem:[%s3 + $0x18] sm:$0xff]
        %v304 = vld [vmem:[%s3 + $0x20] sm:$0xff]
        %v305 = vld [vmem:[%s3 + $0x28] sm:$0xff]
        %v306 = vld [vmem:[%s3 + $0x30] sm:$0xff]
        %v307 = vld [vmem:[%s3 + $0x38] sm:$0xff]
        %v308 = vld [vmem:[%s3 + $0x40] sm:$0xff]
        %v309 = vld [vmem:[%s3 + $0x48] sm:$0xff]
        %v310 = vld [vmem:[%s3 + $0x50] sm:$0xff]
        %v311 = vld [vmem:[%s3 + $0x58] sm:$0xff]
        %v312 = vld [vmem:[%s3 + $0x60] sm:$0xff]
        %v313 = vld [vmem:[%s3 + $0x68] sm:$0xff]
        %v314 = vld [vmem:[%s3 + $0x70] sm:$0xff]
        %v315 = vld [vmem:[%s3 + $0x78] sm:$0xff]
        %v316 = vld [vmem:[%s3 + $0x80] sm:$0xff]
        %v317 = vld [vmem:[%s3 + $0x88] sm:$0xff]
        %v318 = vld [vmem:[%s3 + $0x90] sm:$0xff]
        %v319 = vld [vmem:[%s3 + $0x98] sm:$0xff]
        %v320 = vld [vmem:[%s3 + $0xa0] sm:$0xff]
        %v321 = vld [vmem:[%s3 + $0xa8] sm:$0xff]
        %v322 = vld [vmem:[%s3 + $0xb0] sm:$0xff]
        %v323 = vld [vmem:[%s3 + $0xb8] sm:$0xff]
        %v324 = vld [vmem:[%s3 + $0xc0] sm:$0xff]
        %v325 = vld [vmem:[%s3 + $0xc8] sm:$0xff]
        %v326 = vld [vmem:[%s3 + $0xd0] sm:$0xff]
        %v327 = vld [vmem:[%s3 + $0xd8] sm:$0xff]
        %v328 = vld [vmem:[%s3 + $0xe0] sm:$0xff]
        %v329 = vld [vmem:[%s3 + $0xe8] sm:$0xff]
        %v330 = vld [vmem:[%s3 + $0xf0] sm:$0xff]
        %v331 = vld [vmem:[%s3 + $0xf8] sm:$0xff]
        %v332 = vld [vmem:[%s4] sm:$0x1]
        %v334 = vperm.slane %v332, 0
        %336 = vmatpush.msra.mxu0 %v315
        %337 = vmatpush.msra.mxu0 %v314
        %338 = vmatpush.msra.mxu0 %v313
        %339 = vmatpush.msra.mxu0 %v312
        %340 = vmatpush.msra.mxu0 %v311
        %341 = vmatpush.msra.mxu0 %v310
        %342 = vmatpush.msra.mxu0 %v309
        %343 = vmatpush.msra.mxu0 %v308
        %344 = vmatpush.msra.mxu0 %v307
        %345 = vmatpush.msra.mxu0 %v306
        %346 = vmatpush.msra.mxu0 %v305
        %347 = vmatpush.msra.mxu0 %v304
        %348 = vmatpush.msra.mxu0 %v303
        %349 = vmatpush.msra.mxu0 %v302
        %350 = vmatpush.msra.mxu0 %v301
        %351 = vmatpush.msra.mxu0 %v300
        %352 = vmatmul.f32.gmra.mxu0 %v298
        %v353 = vpop.f32.mrf.mxu0
        %v354 = vadd.f32 %v334, %v353
        %355 = vdwg.mxu0
        %356 = vmatpush.msra.mxu0 %v331
        %357 = vmatpush.msra.mxu0 %v330
        %358 = vmatpush.msra.mxu0 %v329
        %359 = vmatpush.msra.mxu0 %v328
        %360 = vmatpush.msra.mxu0 %v327
        %361 = vmatpush.msra.mxu0 %v326
        %362 = vmatpush.msra.mxu0 %v325
        %363 = vmatpush.msra.mxu0 %v324
        %364 = vmatpush.msra.mxu0 %v323
        %365 = vmatpush.msra.mxu0 %v322
        %366 = vmatpush.msra.mxu0 %v321
        %367 = vmatpush.msra.mxu0 %v320
        %368 = vmatpush.msra.mxu0 %v319
        %369 = vmatpush.msra.mxu0 %v318
        %370 = vmatpush.msra.mxu0 %v317
        %371 = vmatpush.msra.mxu0 %v316
        %372 = vmatmul.f32.gmra.mxu0 %v299
        %v373 = vpop.f32.mrf.mxu0
        %v374 = vadd.f32 %v354, %v373
        %375 = vdwg.mxu0
        %vm376 = vcmask 125952
        %v377 = vsel %vm376, %v374, -inf
        %v378 = vrot.slane %v377, 4
        %v379 = vmax.f32 %v377, %v378
        %v380 = vrot.slane %v379, 2
        %v381 = vmax.f32 %v379, %v380
        %v382 = vrot.slane %v381, 1
        %v383 = vmax.f32 %v381, %v382
        %vm384 = vcmask 122880
        %385 = vst.msk [vmem:[%s214] sm:$0x1] %vm384, %v383
        %s386 = sand.u32 %s137, 1
        %s387 = scalar_lea.sflag [#allocation3], %s386
        %s388 = sand.u32 %s137, 1
        %s389 = scalar_lea.vmem [#allocation2], %s388
        // Predicated region
        $region41: #{encoder_forward.33} parent=39 // pred_check
          %p390 = pneg %p147
        $region42: #{encoder_forward.33} parent=39 // pred_check_branch
          %392 = sbr.rel (%p390) target = $region44
        $region43: #{encoder_forward.33} parent=39 // pred_region
          %394 = vsyncadd %s387, 0
          %s395 = scalar_lea.hbm %s5, %s19
          %s397 = sshll.u32 %s389, 4
          %s398 = int_to_ptr.vmem [resolvable:$true] %s397
          %s399 = sshll.u32 %s395, 4
          %s400 = int_to_ptr.hbm [resolvable:$true] %s399
          %402 = dma.vmem_to_hbm [thread:$0]  %s398, 16, %s400, %s387
        $region44: #{encoder_forward.33} parent=39 // pred_fallthru
          _
      $region40: #{encoder_forward.33} parent=5 // pred_fallthru
        _
      %p403 = scmp.le.s32.totalorder 2, %s14
      // Predicated region
      $region45: #{encoder_forward.33} parent=5 // pred_check
        %p404 = pneg %p403
      $region46: #{encoder_forward.33} parent=5 // pred_check_branch
        %406 = sbr.rel (%p404) target = $region48
      $region47: #{encoder_forward.33} parent=5 // pred_region
        %s407 = ssub.s32 %s14, 2
        // Predicated region
        $region49: #{encoder_forward.33} parent=47 // pred_check
          %p408 = pneg %p153
        $region50: #{encoder_forward.33} parent=47 // pred_check_branch
          %410 = sbr.rel (%p408) target = $region52
        $region51: #{encoder_forward.33} parent=47 // pred_region
          %s411 = sand.u32 %s138, 1
          %s412 = scalar_lea.sflag [#allocation3], %s411
          %s413 = sand.u32 %s138, 1
          %s414 = scalar_lea.vmem [#allocation2], %s413
          %416 = dma.done %s412, 16
        $region52: #{encoder_forward.33} parent=47 // pred_fallthru
          _
      $region48: #{encoder_forward.33} parent=5 // pred_fallthru
        _
    $region6: #{encoder_forward.33} parent=1 // loop_footer
      %s18 = sadd.s32 1, %s14
    $region7: #{encoder_forward.33} parent=1 // loop_footer_branch
      %13 = sbr.rel target = $region3
    $region8: #{encoder_forward.33} parent=1 // loop_exit
      _
    %417 = vsyncpa [#allocation3], 1
    %s418 = scalar_lea.sflag [#allocation3], 1
    %419 = vsyncpa %s418, 1

</llo_original>
